<compile_context>
chip_gen: v5e
topology: v5e:2x2
jax: 0.10.0
libtpu: 0.0.40
codegen_flags: <defaults>
</compile_context>

<pallas_src>
import numpy as np
import jax
import jax.numpy as jnp
from jax import lax
from jax.experimental import pallas as pl
from jax.experimental.pallas import tpu as pltpu


# ---------------------------------------------------------------------------
# Per-generation plan: (co_tiles, weight pipeline depth)
#   v5e / v6e: one TensorCore  -> co_tiles=1, default double-buffering
#   v7x      : two TensorCores -> co_tiles=2, 3-deep weight buffering
# ---------------------------------------------------------------------------
def _tpu_plan():
    try:
        kind = jax.devices()[0].device_kind.lower().replace(" ", "")
    except Exception:
        return 1, 2
    if "v7" in kind or "tpu7" in kind:
        return 2, 3
    return 1, 2


# ---------------------------------------------------------------------------
# Kernel 1: fused PSP stage (pool + 1x1 conv + BN + ReLU + upsample), all bf16
# operands with f32 accumulation.
# ---------------------------------------------------------------------------
def _psp_stages_kernel(diff_ref, pool_ref, up_ref, w_ref, scale_ref, bias_ref,
                       o_ref):
    # adaptive-avg-pool as a block-diagonal (over batch) operator, bf16 MXU pass
    pooled = jnp.dot(pool_ref[...], diff_ref[...],
                     preferred_element_type=jnp.float32)              # (P, Cin)
    # 1x1 conv (bf16 weights, f32 accumulate) + folded BN + ReLU
    y = jnp.dot(pooled.astype(jnp.bfloat16), w_ref[...],
                preferred_element_type=jnp.float32)                   # (P, Cout)
    y = jnp.maximum(y * scale_ref[...] + bias_ref[...], 0.0)
    # bilinear upsample operator; zero-padded pool rows give relu(bias) != 0,
    # but the matching zero upsample columns kill their contribution, so the
    # P padding stays correct.
    o_ref[...] = jnp.dot(up_ref[...], y.astype(jnp.bfloat16),
                         preferred_element_type=jnp.float32
                         ).astype(o_ref.dtype)                        # (NS, Cout)


def psp_stages(diff16, pool_bd16, up_bd16, w_stack16, scale_stack, bias_stack):
    NS, Cin = diff16.shape
    n_stages, P, _ = pool_bd16.shape
    Cout = w_stack16.shape[-1]
    return pl.pallas_call(
        _psp_stages_kernel,
        out_shape=jax.ShapeDtypeStruct((NS, n_stages * Cout), jnp.bfloat16),
        grid=(n_stages,),
        in_specs=[
            pl.BlockSpec((NS, Cin), lambda s: (0, 0)),               # |a-b| (resident)
            pl.BlockSpec((None, P, NS), lambda s: (s, 0, 0)),        # pool op (bf16)
            pl.BlockSpec((None, NS, P), lambda s: (s, 0, 0)),        # upsample op (bf16)
            pl.BlockSpec((None, Cin, Cout), lambda s: (s, 0, 0)),    # 1x1 conv w (bf16)
            pl.BlockSpec((None, 1, Cout), lambda s: (s, 0, 0)),      # folded BN scale
            pl.BlockSpec((None, 1, Cout), lambda s: (s, 0, 0)),      # folded BN bias
        ],
        out_specs=pl.BlockSpec((NS, Cout), lambda s: (0, s)),
        compiler_params=pltpu.CompilerParams(
            dimension_semantics=("parallel",),
            vmem_limit_bytes=32 * 1024 * 1024),
    )(diff16, pool_bd16, up_bd16, w_stack16, scale_stack, bias_stack)


# ---------------------------------------------------------------------------
# Kernel 2: bottleneck 3x3 conv (pad=1) + BN + ReLU, no materialized im2col.
#   grid = (co_tiles, 9 taps); tap is the (innermost) reduction axis.
# ---------------------------------------------------------------------------
def _bottleneck_kernel(x_ref, sh_ref, w_ref, scale_ref, bias_ref, o_ref,
                       acc_ref):
    t = pl.program_id(1)

    # one fused K=Ccat matmul per tap (single contiguous bf16 weight stream)
    y = jnp.dot(x_ref[...], w_ref[...],
                preferred_element_type=jnp.float32)                   # (NS, CoT)
    # 3x3 spatial shift as a tiny block-diagonal 0/1 operator (bf16 -> exact,
    # single MXU pass, hidden under the weight DMA)
    contrib = jnp.dot(sh_ref[...], y.astype(jnp.bfloat16),
                      preferred_element_type=jnp.float32)             # (NS, CoT)

    @pl.when(t == 0)
    def _():                                   # first tap writes directly
        acc_ref[...] = contrib

    @pl.when(t > 0)
    def _():
        acc_ref[...] += contrib

    @pl.when(t == pl.num_programs(1) - 1)
    def _():
        o_ref[...] = jnp.maximum(
            acc_ref[...] * scale_ref[...] + bias_ref[...], 0.0
        ).astype(o_ref.dtype)


def bottleneck_conv(x_cat16, shift_mats16, w3_tiled16, scale, bias,
                    *, co_tiles, w_buffers=2):
    NS, Ccat = x_cat16.shape
    n_taps = shift_mats16.shape[0]
    CoT = w3_tiled16.shape[-1]
    Cout = CoT * co_tiles
    assert w3_tiled16.shape == (co_tiles * n_taps, Ccat, CoT)

    w_spec_kwargs = {}
    if w_buffers != 2:          # only request non-default pipelining depth (v7x)
        w_spec_kwargs["pipeline_mode"] = pl.Buffered(w_buffers)
    w_spec = pl.BlockSpec((None, Ccat, CoT),
                          lambda co, t: (co * n_taps + t, 0, 0),
                          **w_spec_kwargs)

    return pl.pallas_call(
        _bottleneck_kernel,
        out_shape=jax.ShapeDtypeStruct((NS, Cout), jnp.bfloat16),
        grid=(co_tiles, n_taps),
        in_specs=[
            pl.BlockSpec((NS, Ccat), lambda co, t: (0, 0)),           # X (resident)
            pl.BlockSpec((None, NS, NS), lambda co, t: (t, 0, 0)),    # shift op (bf16)
            w_spec,                                                   # fused 3x3 weights
            pl.BlockSpec((1, CoT), lambda co, t: (0, co)),            # BN scale
            pl.BlockSpec((1, CoT), lambda co, t: (0, co)),            # BN bias
        ],
        out_specs=pl.BlockSpec((NS, CoT), lambda co, t: (0, co)),
        scratch_shapes=[pltpu.VMEM((NS, CoT), jnp.float32)],
        compiler_params=pltpu.CompilerParams(
            dimension_semantics=("parallel", "arbitrary"),
            vmem_limit_bytes=32 * 1024 * 1024),
    )(x_cat16, shift_mats16, w3_tiled16, scale, bias)


# ---------------------------------------------------------------------------
# Glue: linear operators for pooling / upsampling / 3x3 spatial shifts, BN fold
# ---------------------------------------------------------------------------
def adaptive_pool_matrix_1d(in_size, out_size):
    p = np.zeros((out_size, in_size), np.float32)
    for i in range(out_size):
        s = int(np.floor(i * in_size / out_size))
        e = int(np.ceil((i + 1) * in_size / out_size))
        p[i, s:e] = 1.0 / (e - s)
    return p


def bilinear_upsample_matrix_1d(out_size, in_size):
    # matches F.interpolate(mode='bilinear', align_corners=False) per axis
    u = np.zeros((out_size, in_size), np.float32)
    if in_size == 1:
        u[:, 0] = 1.0
        return u
    scale = in_size / out_size
    for o in range(out_size):
        src = max((o + 0.5) * scale - 0.5, 0.0)
        i0 = min(int(np.floor(src)), in_size - 1)
        i1 = min(i0 + 1, in_size - 1)
        w1 = src - i0
        u[o, i0] += 1.0 - w1
        u[o, i1] += w1
    return u


def shift_matrix_2d(H, W, di, dj):
    """(S,S) 0/1 operator: row (pi,pj) selects source (pi+di-1, pj+dj-1), zero-padded."""
    S = H * W
    m = np.zeros((S, S), np.float32)
    for pi in range(H):
        for pj in range(W):
            si, sj = pi + di - 1, pj + dj - 1
            if 0 <= si < H and 0 <= sj < W:
                m[pi * W + pj, si * W + sj] = 1.0
    return m


def fold_bn(gamma, beta, mean, var, eps=1e-5):
    # BatchNorm2d in eval mode (running stats), folded into an affine epilogue.
    scale = gamma / jnp.sqrt(var + eps)
    bias = beta - mean * scale
    return (scale.reshape(1, -1).astype(jnp.float32),
            bias.reshape(1, -1).astype(jnp.float32))


def tile_bottleneck_weights(w3, co_tiles):
    """(9, Ccat, Cout) f32 -> (co_tiles*9, Ccat, Cout//co_tiles) bf16.

    Pre-layout so each streamed (Ccat, CoT) weight block is contiguous in HBM
    (full-burst DMA descriptors on the HBM-bound kernel)."""
    n_taps, Ccat, Cout = w3.shape
    assert Cout % co_tiles == 0
    CoT = Cout // co_tiles
    w = w3.reshape(n_taps, Ccat, co_tiles, CoT)
    w = jnp.transpose(w, (2, 0, 1, 3)).reshape(co_tiles * n_taps, Ccat, CoT)
    return w.astype(jnp.bfloat16)


# ---------------------------------------------------------------------------
# Encoder.forward:  diff = |base(A) - base(B)|;  x = PSP(diff);  return (x, C)
# ---------------------------------------------------------------------------
def _reference_forward(a, b, params, N, H, W):
    """Pure-JAX f32 reference matching the PyTorch module semantics."""
    hp = lax.Precision.HIGHEST
    S = H * W
    Cin = a.shape[-1]
    diff = jnp.abs(a - b)
    diff_img = diff.reshape(N, S, Cin)
    n_stages = params["w_stack"].shape[0]
    Cout = params["w_stack"].shape[-1]
    pyramids = [diff]
    for s in range(n_stages):
        pool2d = params["pool_raw"][s]
        up2d = params["up_raw"][s]
        w = params["w_stack"][s]
        sc = params["scale_stack"][s]
        bi = params["bias_stack"][s]
        outs = []
        for n in range(N):
            pooled = jnp.dot(pool2d, diff_img[n], precision=hp)
            y = jnp.maximum(jnp.dot(pooled, w, precision=hp) * sc + bi, 0.0)
            outs.append(jnp.dot(up2d, y, precision=hp))
        pyramids.append(jnp.stack(outs, 0).reshape(N * S, Cout))
    cat = jnp.concatenate(pyramids, axis=-1)
    Ccat = cat.shape[-1]
    xpad = jnp.pad(cat.reshape(N, H, W, Ccat), ((0, 0), (1, 1), (1, 1), (0, 0)))
    patches = jnp.concatenate(
        [xpad[:, di:di + H, dj:dj + W, :] for di in range(3) for dj in range(3)],
        axis=-1).reshape(N * S, 9 * Ccat)
    w3 = params["w3"].reshape(9 * Ccat, Cout)
    out = jnp.maximum(
        jnp.dot(patches, w3, precision=hp)
        * params["bott_scale"] + params["bott_bias"], 0.0)
    return out


def encoder_forward(A_feat, B_feat, C, params, use_pallas=True):
    N, Cin, H, W = A_feat.shape
    S = H * W
    a = jnp.transpose(A_feat, (0, 2, 3, 1)).reshape(N * S, Cin)
    b = jnp.transpose(B_feat, (0, 2, 3, 1)).reshape(N * S, Cin)

    if use_pallas:
        # |a-b| computed once (f32 subtract, bf16 store) and shared by both kernels.
        diff16 = jnp.abs(a - b).astype(jnp.bfloat16)
        psp16 = psp_stages(diff16, params["pool_bd16"], params["up_bd16"],
                           params["w_stack16"], params["scale_stack"],
                           params["bias_stack"])
        # Single resident X = concat(|a-b|, psp) bf16 buffer for the bottleneck.
        x_cat16 = jnp.concatenate([diff16, psp16], axis=-1)
        out = bottleneck_conv(x_cat16, params["shift_mats16"],
                              params["w3_tiled16"],
                              params["bott_scale"], params["bott_bias"],
                              co_tiles=params["co_tiles"],
                              w_buffers=params["w_buffers"])
        out = out.astype(jnp.float32)
    else:
        out = _reference_forward(a, b, params, N, H, W)

    x = jnp.transpose(out.reshape(N, H, W, -1), (0, 3, 1, 2))   # back to NCHW
    return x, C


if __name__ == "__main__":
    N, Cin, H, W = 2, 2048, 8, 8           # backbone feature maps (small spatial)
    bin_sizes = (1, 2, 3, 6)
    S = H * W
    NS = N * S
    n_stages = len(bin_sizes)
    Cout = Cin // n_stages                 # 512
    Cpsp = Cout * n_stages                 # 2048
    Ccat = Cin + Cpsp                      # 4096

    co_tiles, w_buffers = _tpu_plan()      # 1/2-deep on v5e/v6e, 2/3-deep on v7x

    key = jax.random.PRNGKey(0)
    kit = iter(jax.random.split(key, 64))

    # ---- PSP stage params & block-diagonal pooling / upsample operators ----
    P_ALL = int(np.ceil(max(b * b for b in bin_sizes) * N / 8)) * 8   # 72
    eyeN = np.eye(N, dtype=np.float32)
    w_list, sc_list, bi_list = [], [], []
    pool_raw, up_raw, pool_bd, up_bd = [], [], [], []
    for bsz in bin_sizes:
        w = jax.random.normal(next(kit), (Cin, Cout), jnp.float32) * 0.02
        gamma = 1.0 + 0.1 * jax.random.normal(next(kit), (Cout,), jnp.float32)
        beta = 0.1 * jax.random.normal(next(kit), (Cout,), jnp.float32)
        mean = 0.1 * jax.random.normal(next(kit), (Cout,), jnp.float32)
        var = 1.0 + 0.1 * jnp.abs(jax.random.normal(next(kit), (Cout,), jnp.float32))
        sc, bi = fold_bn(gamma, beta, mean, var)
        w_list.append(w); sc_list.append(sc); bi_list.append(bi)

        pool2d = np.kron(adaptive_pool_matrix_1d(H, bsz),
                         adaptive_pool_matrix_1d(W, bsz))             # (b*b, S)
        up2d = np.kron(bilinear_upsample_matrix_1d(H, bsz),
                       bilinear_upsample_matrix_1d(W, bsz))           # (S, b*b)
        pool_raw.append(jnp.asarray(pool2d))
        up_raw.append(jnp.asarray(up2d))

        pbd = np.zeros((P_ALL, NS), np.float32)
        pbd[:N * bsz * bsz, :] = np.kron(eyeN, pool2d)                # block-diag over batch
        ubd = np.zeros((NS, P_ALL), np.float32)
        ubd[:, :N * bsz * bsz] = np.kron(eyeN, up2d)
        pool_bd.append(pbd); up_bd.append(ubd)

    w_stack = jnp.stack(w_list, 0)                    # (4, Cin, Cout) f32
    scale_stack = jnp.stack(sc_list, 0)               # (4, 1, Cout)
    bias_stack = jnp.stack(bi_list, 0)

    # ---- bottleneck (3x3, pad=1) conv params + BN ---------------------------
    w3 = jax.random.normal(next(kit), (9, Ccat, Cout), jnp.float32) * 0.01
    gamma = 1.0 + 0.1 * jax.random.normal(next(kit), (Cout,), jnp.float32)
    beta = 0.1 * jax.random.normal(next(kit), (Cout,), jnp.float32)
    mean = 0.1 * jax.random.normal(next(kit), (Cout,), jnp.float32)
    var = 1.0 + 0.1 * jnp.abs(jax.random.normal(next(kit), (Cout,), jnp.float32))
    bott_scale, bott_bias = fold_bn(gamma, beta, mean, var)

    shift_mats = np.stack([np.kron(eyeN, shift_matrix_2d(H, W, di, dj))
                           for di in range(3) for dj in range(3)], 0)  # (9, NS, NS)

    params = {
        # pallas-side (bf16 operands / stacked block-diagonal operators)
        "pool_bd16": jnp.asarray(np.stack(pool_bd, 0)).astype(jnp.bfloat16),
        "up_bd16": jnp.asarray(np.stack(up_bd, 0)).astype(jnp.bfloat16),
        "w_stack16": w_stack.astype(jnp.bfloat16),            # (4, Cin, Cout)
        "shift_mats16": jnp.asarray(shift_mats).astype(jnp.bfloat16),  # exact 0/1
        "w3_tiled16": tile_bottleneck_weights(w3, co_tiles),  # (co*9, Ccat, CoT)
        "co_tiles": co_tiles, "w_buffers": w_buffers,
        # shared / reference-side (f32)
        "scale_stack": scale_stack, "bias_stack": bias_stack,
        "w_stack": w_stack, "pool_raw": pool_raw, "up_raw": up_raw,
        "w3": w3, "bott_scale": bott_scale, "bott_bias": bott_bias,
    }

    A_feat = jax.random.normal(next(kit), (N, Cin, H, W), jnp.float32)
    B_feat = jax.random.normal(next(kit), (N, Cin, H, W), jnp.float32)
    C = jax.random.normal(next(kit), (N, 16, 16), jnp.float32)

    x, c_out = encoder_forward(A_feat, B_feat, C, params, use_pallas=True)
    jax.block_until_ready(x)

    # pure-JAX f32 reference (Pallas path uses bf16 weights/activations/operators)
    x_ref, _ = encoder_forward(A_feat, B_feat, C, params, use_pallas=False)
    np.testing.assert_allclose(np.asarray(x), np.asarray(x_ref),
                               rtol=5e-2, atol=1e-1)

    assert x.shape == (N, Cout, H, W) and c_out.shape == C.shape
    print("KERNEL_OK")
</pallas_src>

<mosaic_0001>
module attributes {stable_mosaic.version = 11 : i64} {
  func.func @_psp_stages_kernel(%arg0: i32, %arg1: memref<128x2048xbf16, #tpu.memory_space<vmem>>, %arg2: memref<1x72x128xbf16, #tpu.memory_space<vmem>>, %arg3: memref<1x128x72xbf16, #tpu.memory_space<vmem>>, %arg4: memref<1x2048x512xbf16, #tpu.memory_space<vmem>>, %arg5: memref<1x1x512xf32, #tpu.memory_space<vmem>>, %arg6: memref<1x1x512xf32, #tpu.memory_space<vmem>>, %arg7: memref<128x512xbf16, #tpu.memory_space<vmem>>) attributes {dimension_semantics = [#tpu.dimension_semantics<parallel>], iteration_bounds = array<i64: 4>, scalar_prefetch = 0 : i64, scratch_operands = 0 : i64, tpu.core_type = #tpu.core_type<tc>, window_params = [{pipeline_mode = #tpu.pipeline_mode<synchronous>, transform_indices = @transform_0, window_bounds = array<i64: 128, 2048>}, {transform_indices = @transform_1, window_bounds = array<i64: 1, 72, 128>}, {transform_indices = @transform_2, window_bounds = array<i64: 1, 128, 72>}, {transform_indices = @transform_3, window_bounds = array<i64: 1, 2048, 512>}, {transform_indices = @transform_4, window_bounds = array<i64: 1, 1, 512>}, {transform_indices = @transform_5, window_bounds = array<i64: 1, 1, 512>}, {transform_indices = @transform_6, window_bounds = array<i64: 128, 512>}]} {
    %c0 = arith.constant 0 : index
    %c0_0 = arith.constant 0 : index
    %c0_1 = arith.constant 0 : index
    %0 = vector.load %arg2[%c0, %c0_0, %c0_1] : memref<1x72x128xbf16, #tpu.memory_space<vmem>>, vector<1x72x128xbf16>
    %1 = vector.shape_cast %0 : vector<1x72x128xbf16> to vector<72x128xbf16>
    %c0_2 = arith.constant 0 : index
    %c0_3 = arith.constant 0 : index
    %2 = vector.load %arg1[%c0_2, %c0_3] : memref<128x2048xbf16, #tpu.memory_space<vmem>>, vector<128x2048xbf16>
    %cst = arith.constant dense<0.000000e+00> : vector<72x2048xf32>
    %3 = tpu.matmul %1, %2, %cst {dimension_numbers = #tpu.dot_dimension_numbers<[1], [0], [0], [1], [0, 0, 1, 1], [], []>} : vector<72x128xbf16>, vector<128x2048xbf16>, vector<72x2048xf32> -> vector<72x2048xf32>
    %4 = arith.truncf %3 : vector<72x2048xf32> to vector<72x2048xbf16>
    %c0_4 = arith.constant 0 : index
    %c0_5 = arith.constant 0 : index
    %c0_6 = arith.constant 0 : index
    %5 = vector.load %arg4[%c0_4, %c0_5, %c0_6] : memref<1x2048x512xbf16, #tpu.memory_space<vmem>>, vector<1x2048x512xbf16>
    %6 = vector.shape_cast %5 : vector<1x2048x512xbf16> to vector<2048x512xbf16>
    %cst_7 = arith.constant dense<0.000000e+00> : vector<72x512xf32>
    %7 = tpu.matmul %4, %6, %cst_7 {dimension_numbers = #tpu.dot_dimension_numbers<[1], [0], [0], [1], [0, 0, 1, 1], [], []>} : vector<72x2048xbf16>, vector<2048x512xbf16>, vector<72x512xf32> -> vector<72x512xf32>
    %c0_8 = arith.constant 0 : index
    %c0_9 = arith.constant 0 : index
    %c0_10 = arith.constant 0 : index
    %8 = vector.load %arg5[%c0_8, %c0_9, %c0_10] : memref<1x1x512xf32, #tpu.memory_space<vmem>>, vector<1x1x512xf32>
    %9 = vector.shape_cast %8 : vector<1x1x512xf32> to vector<1x512xf32>
    %10 = vector.broadcast %9 : vector<1x512xf32> to vector<72x512xf32>
    %11 = arith.mulf %7, %10 : vector<72x512xf32>
    %c0_11 = arith.constant 0 : index
    %c0_12 = arith.constant 0 : index
    %c0_13 = arith.constant 0 : index
    %12 = vector.load %arg6[%c0_11, %c0_12, %c0_13] : memref<1x1x512xf32, #tpu.memory_space<vmem>>, vector<1x1x512xf32>
    %13 = vector.shape_cast %12 : vector<1x1x512xf32> to vector<1x512xf32>
    %14 = vector.broadcast %13 : vector<1x512xf32> to vector<72x512xf32>
    %15 = arith.addf %11, %14 : vector<72x512xf32>
    %cst_14 = arith.constant 0.000000e+00 : f32
    %16 = vector.broadcast %cst_14 : f32 to vector<72x512xf32>
    %17 = arith.maximumf %15, %16 : vector<72x512xf32>
    %c0_15 = arith.constant 0 : index
    %c0_16 = arith.constant 0 : index
    %c0_17 = arith.constant 0 : index
    %18 = vector.load %arg3[%c0_15, %c0_16, %c0_17] : memref<1x128x72xbf16, #tpu.memory_space<vmem>>, vector<1x128x72xbf16>
    %19 = vector.shape_cast %18 : vector<1x128x72xbf16> to vector<128x72xbf16>
    %20 = arith.truncf %17 : vector<72x512xf32> to vector<72x512xbf16>
    %cst_18 = arith.constant dense<0.000000e+00> : vector<128x512xf32>
    %21 = tpu.matmul %19, %20, %cst_18 {dimension_numbers = #tpu.dot_dimension_numbers<[1], [0], [0], [1], [0, 0, 1, 1], [], []>} : vector<128x72xbf16>, vector<72x512xbf16>, vector<128x512xf32> -> vector<128x512xf32>
    %22 = arith.truncf %21 : vector<128x512xf32> to vector<128x512xbf16>
    %c0_19 = arith.constant 0 : index
    %c0_20 = arith.constant 0 : index
    %23 = vector.load %arg7[%c0_19, %c0_20] : memref<128x512xbf16, #tpu.memory_space<vmem>>, vector<128x512xbf16>
    tpu.vector_store %arg7[%c0_19, %c0_20], %22 {strides = array<i32>} : memref<128x512xbf16, #tpu.memory_space<vmem>>, vector<128x512xbf16>,
    return
  }
  func.func @transform_0(%arg0: i32) -> (i32, i32) {
    %c0_i32 = arith.constant 0 : i32
    %c0_i32_0 = arith.constant 0 : i32
    %c0_i32_1 = arith.constant 0 : i32
    return %c0_i32, %c0_i32_0 : i32, i32
  }
  func.func @transform_1(%arg0: i32) -> (i32, i32, i32) {
    %c0_i32 = arith.constant 0 : i32
    %c0_i32_0 = arith.constant 0 : i32
    %c0_i32_1 = arith.constant 0 : i32
    return %arg0, %c0_i32, %c0_i32_0 : i32, i32, i32
  }
  func.func @transform_2(%arg0: i32) -> (i32, i32, i32) {
    %c0_i32 = arith.constant 0 : i32
    %c0_i32_0 = arith.constant 0 : i32
    %c0_i32_1 = arith.constant 0 : i32
    return %arg0, %c0_i32, %c0_i32_0 : i32, i32, i32
  }
  func.func @transform_3(%arg0: i32) -> (i32, i32, i32) {
    %c0_i32 = arith.constant 0 : i32
    %c0_i32_0 = arith.constant 0 : i32
    %c0_i32_1 = arith.constant 0 : i32
    return %arg0, %c0_i32, %c0_i32_0 : i32, i32, i32
  }
  func.func @transform_4(%arg0: i32) -> (i32, i32, i32) {
    %c0_i32 = arith.constant 0 : i32
    %c0_i32_0 = arith.constant 0 : i32
    %c0_i32_1 = arith.constant 0 : i32
    return %arg0, %c0_i32, %c0_i32_0 : i32, i32, i32
  }
  func.func @transform_5(%arg0: i32) -> (i32, i32, i32) {
    %c0_i32 = arith.constant 0 : i32
    %c0_i32_0 = arith.constant 0 : i32
    %c0_i32_1 = arith.constant 0 : i32
    return %arg0, %c0_i32, %c0_i32_0 : i32, i32, i32
  }
  func.func @transform_6(%arg0: i32) -> (i32, i32) {
    %c0_i32 = arith.constant 0 : i32
    %c0_i32_0 = arith.constant 0 : i32
    return %c0_i32, %arg0 : i32, i32
  }
}

</mosaic_0001>

<llo_original>
// kernel: tpu_custom_call.1
$region0: #{tpu_custom_call.1}
  #allocation0 [shape = 'u32[]', space=smem, size = 0x4, offset = 0x4, fixed_abs, tag = 'smem constant byte address 0x4 - core index']
  #allocation1 [shape = 'u32[72,128]{1,0:T(1,128)}', space=vmem, size = 0x9000, scoped, tag = 'internal scratch']
  %s0 = inlined_call_operand.hbm [shape: bf16[128,2048], index: 0, kind: input, shape index: {}]
  %s1 = inlined_call_operand.hbm [shape: bf16[4,72,128], index: 1, kind: input, shape index: {}]
  %s2 = inlined_call_operand.vmem [shape: bf16[4,128,72], index: 2, kind: input, shape index: {}]
  %s3 = inlined_call_operand.hbm [shape: bf16[4,2048,512], index: 3, kind: input, shape index: {}]
  %s4 = inlined_call_operand.hbm [shape: f32[4,1,512], index: 4, kind: input, shape index: {}]
  %s5 = inlined_call_operand.hbm [shape: f32[4,1,512], index: 5, kind: input, shape index: {}]
  %s6 = inlined_call_operand.hbm [shape: bf16[128,2048], index: 6, kind: output, shape index: {}]
  %s7 = sld [smem:[#allocation0]]
  $region77: #{tpu_custom_call.1} parent=0
    _
  %s9 = ssub.s32 1, %s7
  %s10 = scalar_select 0, %s9, %s7
  $region1: #{tpu_custom_call.1} parent=0
    #allocation2 [shape = 'u8[524288]{0}', space=vmem, size = 0x80000, scoped, tag = 'input window, operand 0, single buffered']
    #allocation3 [shape = 's32[2]{0}', space=sflag, size = 0x8, scoped, tag = 'scoped memory for tpu_custom_call.1']
    #allocation4 [shape = 's32[2]{0}', space=sflag, size = 0x8, scoped, tag = 'scoped memory for tpu_custom_call.1']
    #allocation5 [shape = 'u8[36864]{0}', space=vmem, size = 0x9000, scoped, tag = 'input window, operand 1']
    #allocation6 [shape = 's32[2]{0}', space=sflag, size = 0x8, scoped, tag = 'scoped memory for tpu_custom_call.1']
    #allocation7 [shape = 'u8[4194304]{0}', space=vmem, size = 0x400000, scoped, tag = 'input window, operand 3']
    #allocation8 [shape = 'u8[4096]{0}', space=vmem, size = 0x1000, scoped, tag = 'input window, operand 4']
    #allocation9 [shape = 's32[2]{0}', space=sflag, size = 0x8, scoped, tag = 'scoped memory for tpu_custom_call.1']
    #allocation10 [shape = 'u8[4096]{0}', space=vmem, size = 0x1000, scoped, tag = 'input window, operand 5']
    #allocation11 [shape = 'u8[262144]{0}', space=vmem, size = 0x40000, scoped, tag = 'output window, operand 0']
    %11 = vsyncpa [#allocation3], 0
    %12 = vsyncpa [#allocation6], 0
    %s13 = scalar_lea.sflag [#allocation6], 1
    %14 = vsyncpa %s13, 0
    %15 = vsyncpa [#allocation9], 0
    %s16 = scalar_lea.sflag [#allocation9], 1
    %17 = vsyncpa %s16, 0
    %18 = vsyncpa [#allocation4], 0
    %s19 = scalar_lea.sflag [#allocation4], 1
    %20 = vsyncpa %s19, 0
    loop: start=0, step=1, limit=6
    $region2: #{tpu_custom_call.1} parent=1 // loop_pre_header
      _
    $region3: #{tpu_custom_call.1} parent=1 // loop_header
      %s22 = sphi 0, %s26
      %p23 = scmp.ge.s32.totalorder %s22, 6
      %s30 = sphi 0, %s30
      %s32 = sphi 0, %s30
      %s33 = sphi 0, %s32
      %s47 = sphi 0, %s33
      %s53 = sphi 0, %s55
      %s56 = sphi 0, %s53
      %s57 = sphi 0, %s56
      %s73 = sphi 0, %s57
      %s79 = sphi 0, %s81
      %s82 = sphi 0, %s79
      %s83 = sphi 0, %s82
      %s99 = sphi 0, %s83
      %s105 = sphi 0, %s107
      %s108 = sphi 0, %s105
      %s109 = sphi 0, %s108
      %s125 = sphi 0, %s109
      %s131 = sphi 0, %s133
      %s134 = sphi 0, %s131
      %s135 = sphi 0, %s134
      %s151 = sphi 0, %s135
      %s157 = sphi 0, %s159
      %s160 = sphi 0, %s157
      %s161 = sphi 0, %s160
      %s177 = sphi 0, %s161
      %s183 = sphi 0, %s185
      %s186 = sphi 0, %s183
      %s187 = sphi 0, %s186
      %s203 = sphi 0, %s187
    $region4: #{tpu_custom_call.1} parent=1 // loop_header_branch
      %25 = sbr.rel (%p23) target = $region8
    $region5: #{tpu_custom_call.1} parent=1 // loop_body
      %s27 = ssub.s32 %s22, 1
      %s28 = ssub.s32 %s22, 2
      %s29 = sadd.s32 %s22, 1
      %s31 = sadd.s32 %s30, 1
      %p34 = scmp.eq.s32.totalorder %s22, 3
      %p35 = scmp.ne.s32.totalorder %s30, %s32
      %p36 = scmp.eq.s32.totalorder %s22, 0
      %p37 = por %p35, %p36
      %p38 = scmp.ne.s32.totalorder %s30, %s32
      %p39 = scmp.eq.s32.totalorder %s27, 3
      %p40 = por %p38, %p39
      %p41 = scmp.ne.s32.totalorder %s32, %s33
      %p42 = scmp.eq.s32.totalorder %s27, 0
      %p43 = por %p41, %p42
      %p44 = scmp.ne.s32.totalorder %s32, %s33
      %p45 = scmp.eq.s32.totalorder %s28, 3
      %p46 = por %p44, %p45
      %p48 = scmp.ne.s32.totalorder %s33, %s47
      %p49 = scmp.eq.s32.totalorder %s28, 0
      %p50 = por %p48, %p49
      %s51 = ssub.s32 %s22, %s29
      %p52 = scmp.eq.s32.totalorder %s51, 0
      %s54 = sadd.s32 %s53, 1
      %s55 = scalar_select %p52, %s53, %s54
      %p58 = pneg %p52
      %p59 = scmp.eq.s32.totalorder %s22, 3
      %p60 = por %p58, %p59
      %p61 = scmp.ne.s32.totalorder %s53, %s56
      %p62 = scmp.eq.s32.totalorder %s22, 0
      %p63 = por %p61, %p62
      %p64 = scmp.ne.s32.totalorder %s53, %s56
      %p65 = scmp.eq.s32.totalorder %s27, 3
      %p66 = por %p64, %p65
      %p67 = scmp.ne.s32.totalorder %s56, %s57
      %p68 = scmp.eq.s32.totalorder %s27, 0
      %p69 = por %p67, %p68
      %p70 = scmp.ne.s32.totalorder %s56, %s57
      %p71 = scmp.eq.s32.totalorder %s28, 3
      %p72 = por %p70, %p71
      %p74 = scmp.ne.s32.totalorder %s57, %s73
      %p75 = scmp.eq.s32.totalorder %s28, 0
      %p76 = por %p74, %p75
      %s77 = ssub.s32 %s22, %s29
      %p78 = scmp.eq.s32.totalorder %s77, 0
      %s80 = sadd.s32 %s79, 1
      %s81 = scalar_select %p78, %s79, %s80
      %p84 = pneg %p78
      %p85 = scmp.eq.s32.totalorder %s22, 3
      %p86 = por %p84, %p85
      %p87 = scmp.ne.s32.totalorder %s79, %s82
      %p88 = scmp.eq.s32.totalorder %s22, 0
      %p89 = por %p87, %p88
      %p90 = scmp.ne.s32.totalorder %s79, %s82
      %p91 = scmp.eq.s32.totalorder %s27, 3
      %p92 = por %p90, %p91
      %p93 = scmp.ne.s32.totalorder %s82, %s83
      %p94 = scmp.eq.s32.totalorder %s27, 0
      %p95 = por %p93, %p94
      %p96 = scmp.ne.s32.totalorder %s82, %s83
      %p97 = scmp.eq.s32.totalorder %s28, 3
      %p98 = por %p96, %p97
      %p100 = scmp.ne.s32.totalorder %s83, %s99
      %p101 = scmp.eq.s32.totalorder %s28, 0
      %p102 = por %p100, %p101
      %s103 = ssub.s32 %s22, %s29
      %p104 = scmp.eq.s32.totalorder %s103, 0
      %s106 = sadd.s32 %s105, 1
      %s107 = scalar_select %p104, %s105, %s106
      %p110 = pneg %p104
      %p111 = scmp.eq.s32.totalorder %s22, 3
      %p112 = por %p110, %p111
      %p113 = scmp.ne.s32.totalorder %s105, %s108
      %p114 = scmp.eq.s32.totalorder %s22, 0
      %p115 = por %p113, %p114
      %p116 = scmp.ne.s32.totalorder %s105, %s108
      %p117 = scmp.eq.s32.totalorder %s27, 3
      %p118 = por %p116, %p117
      %p119 = scmp.ne.s32.totalorder %s108, %s109
      %p120 = scmp.eq.s32.totalorder %s27, 0
      %p121 = por %p119, %p120
      %p122 = scmp.ne.s32.totalorder %s108, %s109
      %p123 = scmp.eq.s32.totalorder %s28, 3
      %p124 = por %p122, %p123
      %p126 = scmp.ne.s32.totalorder %s109, %s125
      %p127 = scmp.eq.s32.totalorder %s28, 0
      %p128 = por %p126, %p127
      %s129 = ssub.s32 %s22, %s29
      %p130 = scmp.eq.s32.totalorder %s129, 0
      %s132 = sadd.s32 %s131, 1
      %s133 = scalar_select %p130, %s131, %s132
      %p136 = pneg %p130
      %p137 = scmp.eq.s32.totalorder %s22, 3
      %p138 = por %p136, %p137
      %p139 = scmp.ne.s32.totalorder %s131, %s134
      %p140 = scmp.eq.s32.totalorder %s22, 0
      %p141 = por %p139, %p140
      %p142 = scmp.ne.s32.totalorder %s131, %s134
      %p143 = scmp.eq.s32.totalorder %s27, 3
      %p144 = por %p142, %p143
      %p145 = scmp.ne.s32.totalorder %s134, %s135
      %p146 = scmp.eq.s32.totalorder %s27, 0
      %p147 = por %p145, %p146
      %p148 = scmp.ne.s32.totalorder %s134, %s135
      %p149 = scmp.eq.s32.totalorder %s28, 3
      %p150 = por %p148, %p149
      %p152 = scmp.ne.s32.totalorder %s135, %s151
      %p153 = scmp.eq.s32.totalorder %s28, 0
      %p154 = por %p152, %p153
      %s155 = ssub.s32 %s22, %s29
      %p156 = scmp.eq.s32.totalorder %s155, 0
      %s158 = sadd.s32 %s157, 1
      %s159 = scalar_select %p156, %s157, %s158
      %p162 = pneg %p156
      %p163 = scmp.eq.s32.totalorder %s22, 3
      %p164 = por %p162, %p163
      %p165 = scmp.ne.s32.totalorder %s157, %s160
      %p166 = scmp.eq.s32.totalorder %s22, 0
      %p167 = por %p165, %p166
      %p168 = scmp.ne.s32.totalorder %s157, %s160
      %p169 = scmp.eq.s32.totalorder %s27, 3
      %p170 = por %p168, %p169
      %p171 = scmp.ne.s32.totalorder %s160, %s161
      %p172 = scmp.eq.s32.totalorder %s27, 0
      %p173 = por %p171, %p172
      %p174 = scmp.ne.s32.totalorder %s160, %s161
      %p175 = scmp.eq.s32.totalorder %s28, 3
      %p176 = por %p174, %p175
      %p178 = scmp.ne.s32.totalorder %s161, %s177
      %p179 = scmp.eq.s32.totalorder %s28, 0
      %p180 = por %p178, %p179
      %s181 = ssub.s32 %s22, %s29
      %p182 = scmp.eq.s32.totalorder %s181, 0
      %s184 = sadd.s32 %s183, 1
      %s185 = scalar_select %p182, %s183, %s184
      %p188 = pneg %p182
      %p189 = scmp.eq.s32.totalorder %s22, 3
      %p190 = por %p188, %p189
      %p191 = scmp.ne.s32.totalorder %s183, %s186
      %p192 = scmp.eq.s32.totalorder %s22, 0
      %p193 = por %p191, %p192
      %p194 = scmp.ne.s32.totalorder %s183, %s186
      %p195 = scmp.eq.s32.totalorder %s27, 3
      %p196 = por %p194, %p195
      %p197 = scmp.ne.s32.totalorder %s186, %s187
      %p198 = scmp.eq.s32.totalorder %s27, 0
      %p199 = por %p197, %p198
      %p200 = scmp.ne.s32.totalorder %s186, %s187
      %p201 = scmp.eq.s32.totalorder %s28, 3
      %p202 = por %p200, %p201
      %p204 = scmp.ne.s32.totalorder %s187, %s203
      %p205 = scmp.eq.s32.totalorder %s28, 0
      %p206 = por %p204, %p205
      %p207 = scmp.le.s32.totalorder 1, %s22
      %p208 = scmp.lt.s32.totalorder %s22, 5
      %p209 = pnand %p207, %p208
      %p210 = pneg %p209
      // Predicated region
      $region9: #{tpu_custom_call.1} parent=5 // pred_check
        _
      $region10: #{tpu_custom_call.1} parent=5 // pred_check_branch
        %212 = sbr.rel (%p209) target = $region12
      $region11: #{tpu_custom_call.1} parent=5 // pred_region
        %s213 = ssub.s32 %s22, 1
        // Predicated region
        $region13: #{tpu_custom_call.1} parent=11 // pred_check
          %p214 = pneg %p43
        $region14: #{tpu_custom_call.1} parent=11 // pred_check_branch
          %216 = sbr.rel (%p214) target = $region16
        $region15: #{tpu_custom_call.1} parent=11 // pred_region
          %218 = vsyncadd [#allocation3], 0
          %s219 = sshll.u32 %s0, 4
          %s220 = int_to_ptr.hbm [resolvable:$true] %s219
          %s221 = sshll.u32 [#allocation2], 4
          %s222 = int_to_ptr.vmem [resolvable:$true] %s221
          %227 = dma.hbm_to_vmem [thread:$0]  %s220, 16384, %s222, [#allocation3], 1024, 1024, 64
        $region16: #{tpu_custom_call.1} parent=11 // pred_fallthru
          _
      $region12: #{tpu_custom_call.1} parent=5 // pred_fallthru
        _
      %p228 = scmp.lt.s32.totalorder %s22, 4
      // Predicated region
      $region17: #{tpu_custom_call.1} parent=5 // pred_check
        %p229 = pneg %p228
      $region18: #{tpu_custom_call.1} parent=5 // pred_check_branch
        %231 = sbr.rel (%p229) target = $region20
      $region19: #{tpu_custom_call.1} parent=5 // pred_region
        // Predicated region
        $region21: #{tpu_custom_call.1} parent=19 // pred_check
          %p232 = pneg %p63
        $region22: #{tpu_custom_call.1} parent=19 // pred_check_branch
          %234 = sbr.rel (%p232) target = $region24
        $region23: #{tpu_custom_call.1} parent=19 // pred_region
          %s235 = sand.u32 %s22, 1
          %s236 = scalar_lea.sflag [#allocation6], %s235
          %s237 = sand.u32 %s53, 1
          %s238 = smul.addr %s237, 36
          %s239 = scalar_lea.vmem [#allocation5], %s238
          %241 = vsyncadd %s236, 0
          %s242 = smul.addr %s22, 9
          %s243 = smul.addr %s242, 4
          %s244 = scalar_lea.hbm %s1, %s243
          %s245 = sshll.u32 %s244, 4
          %s246 = int_to_ptr.hbm [resolvable:$true] %s245
          %s247 = sshll.u32 %s239, 4
          %s248 = int_to_ptr.vmem [resolvable:$true] %s247
          %253 = dma.hbm_to_vmem [thread:$0]  %s246, 576, %s248, %s236, 64, 64, 4
        $region24: #{tpu_custom_call.1} parent=19 // pred_fallthru
          _
        // Predicated region
        $region25: #{tpu_custom_call.1} parent=19 // pred_check
          %p254 = pneg %p89
        $region26: #{tpu_custom_call.1} parent=19 // pred_check_branch
          %256 = sbr.rel (%p254) target = $region28
        $region27: #{tpu_custom_call.1} parent=19 // pred_region
          %p257 = scmp.lt.s32.totalorder %s22, 3
          %s258 = scalar_select %p257, %s22, 3
          %s259 = smul.addr %s258, 16
          %s260 = smul.addr %s259, 4
          %s261 = scalar_lea.vmem %s2, %s260
        $region28: #{tpu_custom_call.1} parent=19 // pred_fallthru
          _
        // Predicated region
        $region29: #{tpu_custom_call.1} parent=19 // pred_check
          %p262 = pneg %p115
        $region30: #{tpu_custom_call.1} parent=19 // pred_check_branch
          %264 = sbr.rel (%p262) target = $region32
        $region31: #{tpu_custom_call.1} parent=19 // pred_region
          %s265 = sand.u32 %s22, 1
          %s266 = scalar_lea.sflag [#allocation6], %s265
          %s267 = sand.u32 %s105, 1
          %s268 = smul.addr %s267, 4096
          %s269 = scalar_lea.vmem [#allocation7], %s268
          %271 = vsyncadd %s266, 0
          %s272 = smul.addr %s22, 1024
          %s273 = smul.addr %s272, 4
          %s274 = scalar_lea.hbm %s3, %s273
          %s275 = sshll.u32 %s274, 4
          %s276 = int_to_ptr.hbm [resolvable:$true] %s275
          %s277 = sshll.u32 %s269, 4
          %s278 = int_to_ptr.vmem [resolvable:$true] %s277
          %283 = dma.hbm_to_vmem [thread:$0]  %s276, 65536, %s278, %s266, 256, 256, 16
        $region32: #{tpu_custom_call.1} parent=19 // pred_fallthru
          _
        // Predicated region
        $region33: #{tpu_custom_call.1} parent=19 // pred_check
          %p284 = pneg %p141
        $region34: #{tpu_custom_call.1} parent=19 // pred_check_branch
          %286 = sbr.rel (%p284) target = $region36
        $region35: #{tpu_custom_call.1} parent=19 // pred_region
          %s287 = sand.u32 %s22, 1
          %s288 = scalar_lea.sflag [#allocation9], %s287
          %s289 = sand.u32 %s131, 1
          %s290 = smul.addr %s289, 4
          %s291 = scalar_lea.vmem [#allocation8], %s290
          %293 = vsyncadd %s288, 0
          %s294 = smul.addr %s22, 4
          %s295 = scalar_lea.hbm %s4, %s294
          %s297 = sshll.u32 %s295, 4
          %s298 = int_to_ptr.hbm [resolvable:$true] %s297
          %s299 = sshll.u32 %s291, 4
          %s300 = int_to_ptr.vmem [resolvable:$true] %s299
          %302 = dma.hbm_to_vmem [thread:$0]  %s298, 64, %s300, %s288
        $region36: #{tpu_custom_call.1} parent=19 // pred_fallthru
          _
        // Predicated region
        $region37: #{tpu_custom_call.1} parent=19 // pred_check
          %p303 = pneg %p167
        $region38: #{tpu_custom_call.1} parent=19 // pred_check_branch
          %305 = sbr.rel (%p303) target = $region40
        $region39: #{tpu_custom_call.1} parent=19 // pred_region
          %s306 = sand.u32 %s22, 1
          %s307 = scalar_lea.sflag [#allocation9], %s306
          %s308 = sand.u32 %s157, 1
          %s309 = smul.addr %s308, 4
          %s310 = scalar_lea.vmem [#allocation10], %s309
          %312 = vsyncadd %s307, 0
          %s313 = smul.addr %s22, 4
          %s314 = scalar_lea.hbm %s5, %s313
          %s316 = sshll.u32 %s314, 4
          %s317 = int_to_ptr.hbm [resolvable:$true] %s316
          %s318 = sshll.u32 %s310, 4
          %s319 = int_to_ptr.vmem [resolvable:$true] %s318
          %321 = dma.hbm_to_vmem [thread:$0]  %s317, 64, %s319, %s307
        $region40: #{tpu_custom_call.1} parent=19 // pred_fallthru
          _
      $region20: #{tpu_custom_call.1} parent=5 // pred_fallthru
        _
      %p322 = scmp.le.s32.totalorder 1, %s22
      %p323 = scmp.lt.s32.totalorder %s22, 5
      %p324 = pnand %p322, %p323
      %p325 = pneg %p324
      // Predicated region
      $region41: #{tpu_custom_call.1} parent=5 // pred_check
        _
      $region42: #{tpu_custom_call.1} parent=5 // pred_check_branch
        %327 = sbr.rel (%p324) target = $region44
      $region43: #{tpu_custom_call.1} parent=5 // pred_region
        %s328 = ssub.s32 %s22, 1
        // Predicated region
        $region45: #{tpu_custom_call.1} parent=43 // pred_check
          %p329 = pneg %p43
        $region46: #{tpu_custom_call.1} parent=43 // pred_check_branch
          %331 = sbr.rel (%p329) target = $region48
        $region47: #{tpu_custom_call.1} parent=43 // pred_region
          %333 = dma.done [#allocation3], 16384
        $region48: #{tpu_custom_call.1} parent=43 // pred_fallthru
          _
        %s334 = sand.u32 %s27, 1
        %s335 = scalar_lea.sflag [#allocation6], %s334
        %s336 = sand.u32 %s56, 1
        %s337 = smul.addr %s336, 36
        %s338 = scalar_lea.vmem [#allocation5], %s337
        // Predicated region
        $region49: #{tpu_custom_call.1} parent=43 // pred_check
          %p339 = pneg %p69
        $region50: #{tpu_custom_call.1} parent=43 // pred_check_branch
          %341 = sbr.rel (%p339) target = $region52
        $region51: #{tpu_custom_call.1} parent=43 // pred_region
          %343 = dma.done %s335, 576
        $region52: #{tpu_custom_call.1} parent=43 // pred_fallthru
          _
        %s344 = sand.u32 %s27, 1
        %s345 = scalar_lea.sflag [#allocation6], %s344
        %s346 = sand.u32 %s108, 1
        %s347 = smul.addr %s346, 4096
        %s348 = scalar_lea.vmem [#allocation7], %s347
        // Predicated region
        $region53: #{tpu_custom_call.1} parent=43 // pred_check
          %p349 = pneg %p121
        $region54: #{tpu_custom_call.1} parent=43 // pred_check_branch
          %351 = sbr.rel (%p349) target = $region56
        $region55: #{tpu_custom_call.1} parent=43 // pred_region
          %353 = dma.done %s345, 65536
        $region56: #{tpu_custom_call.1} parent=43 // pred_fallthru
          _
        %s354 = sand.u32 %s27, 1
        %s355 = scalar_lea.sflag [#allocation9], %s354
        %s356 = sand.u32 %s134, 1
        %s357 = smul.addr %s356, 4
        %s358 = scalar_lea.vmem [#allocation8], %s357
        // Predicated region
        $region57: #{tpu_custom_call.1} parent=43 // pred_check
          %p359 = pneg %p147
        $region58: #{tpu_custom_call.1} parent=43 // pred_check_branch
          %361 = sbr.rel (%p359) target = $region60
        $region59: #{tpu_custom_call.1} parent=43 // pred_region
          %363 = dma.done %s355, 64
        $region60: #{tpu_custom_call.1} parent=43 // pred_fallthru
          _
        %s364 = sand.u32 %s27, 1
        %s365 = scalar_lea.sflag [#allocation9], %s364
        %s366 = sand.u32 %s160, 1
        %s367 = smul.addr %s366, 4
        %s368 = scalar_lea.vmem [#allocation10], %s367
        // Predicated region
        $region61: #{tpu_custom_call.1} parent=43 // pred_check
          %p369 = pneg %p173
        $region62: #{tpu_custom_call.1} parent=43 // pred_check_branch
          %371 = sbr.rel (%p369) target = $region64
        $region63: #{tpu_custom_call.1} parent=43 // pred_region
          %373 = dma.done %s365, 64
        $region64: #{tpu_custom_call.1} parent=43 // pred_fallthru
          _
        %p374 = pneg %p43
        %p375 = pneg %p40
        %s376 = sand.u32 %s27, 1
        %s377 = scalar_lea.sflag [#allocation6], %s376
        %s378 = sand.u32 %s56, 1
        %s379 = smul.addr %s378, 36
        %s380 = scalar_lea.vmem [#allocation5], %s379
        %p381 = pneg %p69
        %p382 = pneg %p66
        %p383 = scmp.lt.s32.totalorder %s27, 3
        %s384 = scalar_select %p383, %s27, 3
        %s385 = smul.addr %s384, 16
        %s386 = smul.addr %s385, 4
        %s387 = scalar_lea.vmem %s2, %s386
        %p388 = pneg %p95
        %p389 = pneg %p92
        %s390 = sand.u32 %s27, 1
        %s391 = scalar_lea.sflag [#allocation6], %s390
        %s392 = sand.u32 %s108, 1
        %s393 = smul.addr %s392, 4096
        %s394 = scalar_lea.vmem [#allocation7], %s393
        %p395 = pneg %p121
        %p396 = pneg %p118
        %s397 = sand.u32 %s27, 1
        %s398 = scalar_lea.sflag [#allocation9], %s397
        %s399 = sand.u32 %s134, 1
        %s400 = smul.addr %s399, 4
        %s401 = scalar_lea.vmem [#allocation8], %s400
        %p402 = pneg %p147
        %p403 = pneg %p144
        %s404 = sand.u32 %s27, 1
        %s405 = scalar_lea.sflag [#allocation9], %s404
        %s406 = sand.u32 %s160, 1
        %s407 = smul.addr %s406, 4
        %s408 = scalar_lea.vmem [#allocation10], %s407
        %p409 = pneg %p173
        %p410 = pneg %p170
        %p411 = pneg %p199
        %p412 = pneg %p196
        %s413 = sand.u32 %s186, 1
        %s414 = scalar_lea.sflag [#allocation4], %s413
        %s415 = sand.u32 %s186, 1
        %s416 = smul.addr %s415, 256
        %s417 = scalar_lea.vmem [#allocation11], %s416
        %p418 = scmp.lt.s32.totalorder %s27, 3
        %s419 = scalar_select %p418, %s27, 3
        %s420 = smul.addr %s419, 16
        %s421 = smul.addr %s420, 4
        %s422 = scalar_lea.vmem %s2, %s421
        %s423 = smul.u32 4, %s27
        %v425 = vld [vmem:[%s338] sm:$0xf]
        %v426 = vld [vmem:[%s338 + $0x4] sm:$0xf]
        %v427 = vld [vmem:[%s338 + $0x8] sm:$0xf]
        %v428 = vld [vmem:[%s338 + $0xc] sm:$0xf]
        %v429 = vld [vmem:[%s338 + $0x10] sm:$0xf]
        %v430 = vld [vmem:[%s338 + $0x14] sm:$0xf]
        %v431 = vld [vmem:[%s338 + $0x18] sm:$0xf]
        %v432 = vld [vmem:[%s338 + $0x1c] sm:$0xf]
        %v433 = vld [vmem:[%s338 + $0x20] sm:$0xf]
        %v434 = vld [vmem:[#allocation2] sm:$0xff]
        %v435 = vld [vmem:[#allocation2 + $0x8] sm:$0xff]
        %v436 = vld [vmem:[#allocation2 + $0x10] sm:$0xff]
        %v437 = vld [vmem:[#allocation2 + $0x18] sm:$0xff]
        %v438 = vld [vmem:[#allocation2 + $0x20] sm:$0xff]
        %v439 = vld [vmem:[#allocation2 + $0x28] sm:$0xff]
        %v440 = vld [vmem:[#allocation2 + $0x30] sm:$0xff]
        %v441 = vld [vmem:[#allocation2 + $0x38] sm:$0xff]
        %v442 = vld [vmem:[#allocation2 + $0x40] sm:$0xff]
        %v443 = vld [vmem:[#allocation2 + $0x48] sm:$0xff]
        %v444 = vld [vmem:[#allocation2 + $0x50] sm:$0xff]
        %v445 = vld [vmem:[#allocation2 + $0x58] sm:$0xff]
        %v446 = vld [vmem:[#allocation2 + $0x60] sm:$0xff]
        %v447 = vld [vmem:[#allocation2 + $0x68] sm:$0xff]
        %v448 = vld [vmem:[#allocation2 + $0x70] sm:$0xff]
        %v449 = vld [vmem:[#allocation2 + $0x78] sm:$0xff]
        %v450 = vld [vmem:[#allocation2 + $0x80] sm:$0xff]
        %v451 = vld [vmem:[#allocation2 + $0x88] sm:$0xff]
        %v452 = vld [vmem:[#allocation2 + $0x90] sm:$0xff]
        %v453 = vld [vmem:[#allocation2 + $0x98] sm:$0xff]
        %v454 = vld [vmem:[#allocation2 + $0xa0] sm:$0xff]
        %v455 = vld [vmem:[#allocation2 + $0xa8] sm:$0xff]
        %v456 = vld [vmem:[#allocation2 + $0xb0] sm:$0xff]
        %v457 = vld [vmem:[#allocation2 + $0xb8] sm:$0xff]
        %v458 = vld [vmem:[#allocation2 + $0xc0] sm:$0xff]
        %v459 = vld [vmem:[#allocation2 + $0xc8] sm:$0xff]
        %v460 = vld [vmem:[#allocation2 + $0xd0] sm:$0xff]
        %v461 = vld [vmem:[#allocation2 + $0xd8] sm:$0xff]
        %v462 = vld [vmem:[#allocation2 + $0xe0] sm:$0xff]
        %v463 = vld [vmem:[#allocation2 + $0xe8] sm:$0xff]
        %v464 = vld [vmem:[#allocation2 + $0xf0] sm:$0xff]
        %v465 = vld [vmem:[#allocation2 + $0xf8] sm:$0xff]
        %v466 = vld [vmem:[#allocation2 + $0x100] sm:$0xff]
        %v467 = vld [vmem:[#allocation2 + $0x108] sm:$0xff]
        %v468 = vld [vmem:[#allocation2 + $0x110] sm:$0xff]
        %v469 = vld [vmem:[#allocation2 + $0x118] sm:$0xff]
        %v470 = vld [vmem:[#allocation2 + $0x120] sm:$0xff]
        %v471 = vld [vmem:[#allocation2 + $0x128] sm:$0xff]
        %v472 = vld [vmem:[#allocation2 + $0x130] sm:$0xff]
        %v473 = vld [vmem:[#allocation2 + $0x138] sm:$0xff]
        %v474 = vld [vmem:[#allocation2 + $0x140] sm:$0xff]
        %v475 = vld [vmem:[#allocation2 + $0x148] sm:$0xff]
        %v476 = vld [vmem:[#allocation2 + $0x150] sm:$0xff]
        %v477 = vld [vmem:[#allocation2 + $0x158] sm:$0xff]
        %v478 = vld [vmem:[#allocation2 + $0x160] sm:$0xff]
        %v479 = vld [vmem:[#allocation2 + $0x168] sm:$0xff]
        %v480 = vld [vmem:[#allocation2 + $0x170] sm:$0xff]
        %v481 = vld [vmem:[#allocation2 + $0x178] sm:$0xff]
        %v482 = vld [vmem:[#allocation2 + $0x180] sm:$0xff]
        %v483 = vld [vmem:[#allocation2 + $0x188] sm:$0xff]
        %v484 = vld [vmem:[#allocation2 + $0x190] sm:$0xff]
        %v485 = vld [vmem:[#allocation2 + $0x198] sm:$0xff]
        %v486 = vld [vmem:[#allocation2 + $0x1a0] sm:$0xff]
        %v487 = vld [vmem:[#allocation2 + $0x1a8] sm:$0xff]
        %v488 = vld [vmem:[#allocation2 + $0x1b0] sm:$0xff]
        %v489 = vld [vmem:[#allocation2 + $0x1b8] sm:$0xff]
        %v490 = vld [vmem:[#allocation2 + $0x1c0] sm:$0xff]
        %v491 = vld [vmem:[#allocation2 + $0x1c8] sm:$0xff]
        %v492 = vld [vmem:[#allocation2 + $0x1d0] sm:$0xff]
        %v493 = vld [vmem:[#allocation2 + $0x1d8] sm:$0xff]
        %v494 = vld [vmem:[#allocation2 + $0x1e0] sm:$0xff]
        %v495 = vld [vmem:[#allocation2 + $0x1e8] sm:$0xff]
        %v496 = vld [vmem:[#allocation2 + $0x1f0] sm:$0xff]
        %v497 = vld [vmem:[#allocation2 + $0x1f8] sm:$0xff]
        %v498 = vld [vmem:[#allocation2 + $0x200] sm:$0xff]
        %v499 = vld [vmem:[#allocation2 + $0x208] sm:$0xff]
        %v500 = vld [vmem:[#allocation2 + $0x210] sm:$0xff]
        %v501 = vld [vmem:[#allocation2 + $0x218] sm:$0xff]
        %v502 = vld [vmem:[#allocation2 + $0x220] sm:$0xff]
        %v503 = vld [vmem:[#allocation2 + $0x228] sm:$0xff]
        %v504 = vld [vmem:[#allocation2 + $0x230] sm:$0xff]
        %v505 = vld [vmem:[#allocation2 + $0x238] sm:$0xff]
        %v506 = vld [vmem:[#allocation2 + $0x240] sm:$0xff]
        %v507 = vld [vmem:[#allocation2 + $0x248] sm:$0xff]
        %v508 = vld [vmem:[#allocation2 + $0x250] sm:$0xff]
        %v509 = vld [vmem:[#allocation2 + $0x258] sm:$0xff]
        %v510 = vld [vmem:[#allocation2 + $0x260] sm:$0xff]
        %v511 = vld [vmem:[#allocation2 + $0x268] sm:$0xff]
        %v512 = vld [vmem:[#allocation2 + $0x270] sm:$0xff]
        %v513 = vld [vmem:[#allocation2 + $0x278] sm:$0xff]
        %v514 = vld [vmem:[#allocation2 + $0x280] sm:$0xff]
        %v515 = vld [vmem:[#allocation2 + $0x288] sm:$0xff]
        %v516 = vld [vmem:[#allocation2 + $0x290] sm:$0xff]
        %v517 = vld [vmem:[#allocation2 + $0x298] sm:$0xff]
        %v518 = vld [vmem:[#allocation2 + $0x2a0] sm:$0xff]
        %v519 = vld [vmem:[#allocation2 + $0x2a8] sm:$0xff]
        %v520 = vld [vmem:[#allocation2 + $0x2b0] sm:$0xff]
        %v521 = vld [vmem:[#allocation2 + $0x2b8] sm:$0xff]
        %v522 = vld [vmem:[#allocation2 + $0x2c0] sm:$0xff]
        %v523 = vld [vmem:[#allocation2 + $0x2c8] sm:$0xff]
        %v524 = vld [vmem:[#allocation2 + $0x2d0] sm:$0xff]
        %v525 = vld [vmem:[#allocation2 + $0x2d8] sm:$0xff]
        %v526 = vld [vmem:[#allocation2 + $0x2e0] sm:$0xff]
        %v527 = vld [vmem:[#allocation2 + $0x2e8] sm:$0xff]
        %v528 = vld [vmem:[#allocation2 + $0x2f0] sm:$0xff]
        %v529 = vld [vmem:[#allocation2 + $0x2f8] sm:$0xff]
        %v530 = vld [vmem:[#allocation2 + $0x300] sm:$0xff]
        %v531 = vld [vmem:[#allocation2 + $0x308] sm:$0xff]
        %v532 = vld [vmem:[#allocation2 + $0x310] sm:$0xff]
        %v533 = vld [vmem:[#allocation2 + $0x318] sm:$0xff]
        %v534 = vld [vmem:[#allocation2 + $0x320] sm:$0xff]
        %v535 = vld [vmem:[#allocation2 + $0x328] sm:$0xff]
        %v536 = vld [vmem:[#allocation2 + $0x330] sm:$0xff]
        %v537 = vld [vmem:[#allocation2 + $0x338] sm:$0xff]
        %v538 = vld [vmem:[#allocation2 + $0x340] sm:$0xff]
        %v539 = vld [vmem:[#allocation2 + $0x348] sm:$0xff]
        %v540 = vld [vmem:[#allocation2 + $0x350] sm:$0xff]
        %v541 = vld [vmem:[#allocation2 + $0x358] sm:$0xff]
        %v542 = vld [vmem:[#allocation2 + $0x360] sm:$0xff]
        %v543 = vld [vmem:[#allocation2 + $0x368] sm:$0xff]
        %v544 = vld [vmem:[#allocation2 + $0x370] sm:$0xff]
        %v545 = vld [vmem:[#allocation2 + $0x378] sm:$0xff]
        %v546 = vld [vmem:[#allocation2 + $0x380] sm:$0xff]
        %v547 = vld [vmem:[#allocation2 + $0x388] sm:$0xff]
        %v548 = vld [vmem:[#allocation2 + $0x390] sm:$0xff]
        %v549 = vld [vmem:[#allocation2 + $0x398] sm:$0xff]
        %v550 = vld [vmem:[#allocation2 + $0x3a0] sm:$0xff]
        %v551 = vld [vmem:[#allocation2 + $0x3a8] sm:$0xff]
        %v552 = vld [vmem:[#allocation2 + $0x3b0] sm:$0xff]
        %v553 = vld [vmem:[#allocation2 + $0x3b8] sm:$0xff]
        %v554 = vld [vmem:[#allocation2 + $0x3c0] sm:$0xff]
        %v555 = vld [vmem:[#allocation2 + $0x3c8] sm:$0xff]
        %v556 = vld [vmem:[#allocation2 + $0x3d0] sm:$0xff]
        %v557 = vld [vmem:[#allocation2 + $0x3d8] sm:$0xff]
        %v558 = vld [vmem:[#allocation2 + $0x3e0] sm:$0xff]
        %v559 = vld [vmem:[#allocation2 + $0x3e8] sm:$0xff]
        %v560 = vld [vmem:[#allocation2 + $0x3f0] sm:$0xff]
        %v561 = vld [vmem:[#allocation2 + $0x3f8] sm:$0xff]
        %v571 = vunpack.c.l.b16 %v425
        %v572 = vunpack.c.l.b16 %v426
        %v573 = vunpack.c.l.b16 %v427
        %v574 = vunpack.c.l.b16 %v428
        %v575 = vunpack.c.l.b16 %v429
        %v576 = vunpack.c.l.b16 %v430
        %v577 = vunpack.c.l.b16 %v431
        %v578 = vunpack.c.l.b16 %v432
        %v579 = vunpack.c.l.b16 %v433
        %v580 = vpack.c.b16 %v572, %v571
        %v581 = vpack.c.b16 %v574, %v573
        %v582 = vpack.c.b16 %v576, %v575
        %v583 = vpack.c.b16 %v578, %v577
        %v584 = vpack.c.b16 %v579, %v579
        %v718 = vunpack.c.l.b16 %v434
        %v719 = vunpack.c.h.b16 %v434
        %v720 = vunpack.c.l.b16 %v435
        %v721 = vunpack.c.h.b16 %v435
        %v722 = vunpack.c.l.b16 %v436
        %v723 = vunpack.c.h.b16 %v436
        %v724 = vunpack.c.l.b16 %v437
        %v725 = vunpack.c.h.b16 %v437
        %v726 = vunpack.c.l.b16 %v438
        %v727 = vunpack.c.h.b16 %v438
        %v728 = vunpack.c.l.b16 %v439
        %v729 = vunpack.c.h.b16 %v439
        %v730 = vunpack.c.l.b16 %v440
        %v731 = vunpack.c.h.b16 %v440
        %v732 = vunpack.c.l.b16 %v441
        %v733 = vunpack.c.h.b16 %v441
        %v734 = vunpack.c.l.b16 %v442
        %v735 = vunpack.c.h.b16 %v442
        %v736 = vunpack.c.l.b16 %v443
        %v737 = vunpack.c.h.b16 %v443
        %v738 = vunpack.c.l.b16 %v444
        %v739 = vunpack.c.h.b16 %v444
        %v740 = vunpack.c.l.b16 %v445
        %v741 = vunpack.c.h.b16 %v445
        %v742 = vunpack.c.l.b16 %v446
        %v743 = vunpack.c.h.b16 %v446
        %v744 = vunpack.c.l.b16 %v447
        %v745 = vunpack.c.h.b16 %v447
        %v746 = vunpack.c.l.b16 %v448
        %v747 = vunpack.c.h.b16 %v448
        %v748 = vunpack.c.l.b16 %v449
        %v749 = vunpack.c.h.b16 %v449
        %v750 = vunpack.c.l.b16 %v450
        %v751 = vunpack.c.h.b16 %v450
        %v752 = vunpack.c.l.b16 %v451
        %v753 = vunpack.c.h.b16 %v451
        %v754 = vunpack.c.l.b16 %v452
        %v755 = vunpack.c.h.b16 %v452
        %v756 = vunpack.c.l.b16 %v453
        %v757 = vunpack.c.h.b16 %v453
        %v758 = vunpack.c.l.b16 %v454
        %v759 = vunpack.c.h.b16 %v454
        %v760 = vunpack.c.l.b16 %v455
        %v761 = vunpack.c.h.b16 %v455
        %v762 = vunpack.c.l.b16 %v456
        %v763 = vunpack.c.h.b16 %v456
        %v764 = vunpack.c.l.b16 %v457
        %v765 = vunpack.c.h.b16 %v457
        %v766 = vunpack.c.l.b16 %v458
        %v767 = vunpack.c.h.b16 %v458
        %v768 = vunpack.c.l.b16 %v459
        %v769 = vunpack.c.h.b16 %v459
        %v770 = vunpack.c.l.b16 %v460
        %v771 = vunpack.c.h.b16 %v460
        %v772 = vunpack.c.l.b16 %v461
        %v773 = vunpack.c.h.b16 %v461
        %v774 = vunpack.c.l.b16 %v462
        %v775 = vunpack.c.h.b16 %v462
        %v776 = vunpack.c.l.b16 %v463
        %v777 = vunpack.c.h.b16 %v463
        %v778 = vunpack.c.l.b16 %v464
        %v779 = vunpack.c.h.b16 %v464
        %v780 = vunpack.c.l.b16 %v465
        %v781 = vunpack.c.h.b16 %v465
        %v782 = vunpack.c.l.b16 %v466
        %v783 = vunpack.c.h.b16 %v466
        %v784 = vunpack.c.l.b16 %v467
        %v785 = vunpack.c.h.b16 %v467
        %v786 = vunpack.c.l.b16 %v468
        %v787 = vunpack.c.h.b16 %v468
        %v788 = vunpack.c.l.b16 %v469
        %v789 = vunpack.c.h.b16 %v469
        %v790 = vunpack.c.l.b16 %v470
        %v791 = vunpack.c.h.b16 %v470
        %v792 = vunpack.c.l.b16 %v471
        %v793 = vunpack.c.h.b16 %v471
        %v794 = vunpack.c.l.b16 %v472
        %v795 = vunpack.c.h.b16 %v472
        %v796 = vunpack.c.l.b16 %v473
        %v797 = vunpack.c.h.b16 %v473
        %v798 = vunpack.c.l.b16 %v474
        %v799 = vunpack.c.h.b16 %v474
        %v800 = vunpack.c.l.b16 %v475
        %v801 = vunpack.c.h.b16 %v475
        %v802 = vunpack.c.l.b16 %v476
        %v803 = vunpack.c.h.b16 %v476
        %v804 = vunpack.c.l.b16 %v477
        %v805 = vunpack.c.h.b16 %v477
        %v806 = vunpack.c.l.b16 %v478
        %v807 = vunpack.c.h.b16 %v478
        %v808 = vunpack.c.l.b16 %v479
        %v809 = vunpack.c.h.b16 %v479
        %v810 = vunpack.c.l.b16 %v480
        %v811 = vunpack.c.h.b16 %v480
        %v812 = vunpack.c.l.b16 %v481
        %v813 = vunpack.c.h.b16 %v481
        %v814 = vunpack.c.l.b16 %v482
        %v815 = vunpack.c.h.b16 %v482
        %v816 = vunpack.c.l.b16 %v483
        %v817 = vunpack.c.h.b16 %v483
        %v818 = vunpack.c.l.b16 %v484
        %v819 = vunpack.c.h.b16 %v484
        %v820 = vunpack.c.l.b16 %v485
        %v821 = vunpack.c.h.b16 %v485
        %v822 = vunpack.c.l.b16 %v486
        %v823 = vunpack.c.h.b16 %v486
        %v824 = vunpack.c.l.b16 %v487
        %v825 = vunpack.c.h.b16 %v487
        %v826 = vunpack.c.l.b16 %v488
        %v827 = vunpack.c.h.b16 %v488
        %v828 = vunpack.c.l.b16 %v489
        %v829 = vunpack.c.h.b16 %v489
        %v830 = vunpack.c.l.b16 %v490
        %v831 = vunpack.c.h.b16 %v490
        %v832 = vunpack.c.l.b16 %v491
        %v833 = vunpack.c.h.b16 %v491
        %v834 = vunpack.c.l.b16 %v492
        %v835 = vunpack.c.h.b16 %v492
        %v836 = vunpack.c.l.b16 %v493
        %v837 = vunpack.c.h.b16 %v493
        %v838 = vunpack.c.l.b16 %v494
        %v839 = vunpack.c.h.b16 %v494
        %v840 = vunpack.c.l.b16 %v495
        %v841 = vunpack.c.h.b16 %v495
        %v842 = vunpack.c.l.b16 %v496
        %v843 = vunpack.c.h.b16 %v496
        %v844 = vunpack.c.l.b16 %v497
        %v845 = vunpack.c.h.b16 %v497
        %v846 = vunpack.c.l.b16 %v498
        %v847 = vunpack.c.h.b16 %v498
        %v848 = vunpack.c.l.b16 %v499
        %v849 = vunpack.c.h.b16 %v499
        %v850 = vunpack.c.l.b16 %v500
        %v851 = vunpack.c.h.b16 %v500
        %v852 = vunpack.c.l.b16 %v501
        %v853 = vunpack.c.h.b16 %v501
        %v854 = vunpack.c.l.b16 %v502
        %v855 = vunpack.c.h.b16 %v502
        %v856 = vunpack.c.l.b16 %v503
        %v857 = vunpack.c.h.b16 %v503
        %v858 = vunpack.c.l.b16 %v504
        %v859 = vunpack.c.h.b16 %v504
        %v860 = vunpack.c.l.b16 %v505
        %v861 = vunpack.c.h.b16 %v505
        %v862 = vunpack.c.l.b16 %v506
        %v863 = vunpack.c.h.b16 %v506
        %v864 = vunpack.c.l.b16 %v507
        %v865 = vunpack.c.h.b16 %v507
        %v866 = vunpack.c.l.b16 %v508
        %v867 = vunpack.c.h.b16 %v508
        %v868 = vunpack.c.l.b16 %v509
        %v869 = vunpack.c.h.b16 %v509
        %v870 = vunpack.c.l.b16 %v510
        %v871 = vunpack.c.h.b16 %v510
        %v872 = vunpack.c.l.b16 %v511
        %v873 = vunpack.c.h.b16 %v511
        %v874 = vunpack.c.l.b16 %v512
        %v875 = vunpack.c.h.b16 %v512
        %v876 = vunpack.c.l.b16 %v513
        %v877 = vunpack.c.h.b16 %v513
        %v878 = vunpack.c.l.b16 %v514
        %v879 = vunpack.c.h.b16 %v514
        %v880 = vunpack.c.l.b16 %v515
        %v881 = vunpack.c.h.b16 %v515
        %v882 = vunpack.c.l.b16 %v516
        %v883 = vunpack.c.h.b16 %v516
        %v884 = vunpack.c.l.b16 %v517
        %v885 = vunpack.c.h.b16 %v517
        %v886 = vunpack.c.l.b16 %v518
        %v887 = vunpack.c.h.b16 %v518
        %v888 = vunpack.c.l.b16 %v519
        %v889 = vunpack.c.h.b16 %v519
        %v890 = vunpack.c.l.b16 %v520
        %v891 = vunpack.c.h.b16 %v520
        %v892 = vunpack.c.l.b16 %v521
        %v893 = vunpack.c.h.b16 %v521
        %v894 = vunpack.c.l.b16 %v522
        %v895 = vunpack.c.h.b16 %v522
        %v896 = vunpack.c.l.b16 %v523
        %v897 = vunpack.c.h.b16 %v523
        %v898 = vunpack.c.l.b16 %v524
        %v899 = vunpack.c.h.b16 %v524
        %v900 = vunpack.c.l.b16 %v525
        %v901 = vunpack.c.h.b16 %v525
        %v902 = vunpack.c.l.b16 %v526
        %v903 = vunpack.c.h.b16 %v526
        %v904 = vunpack.c.l.b16 %v527
        %v905 = vunpack.c.h.b16 %v527
        %v906 = vunpack.c.l.b16 %v528
        %v907 = vunpack.c.h.b16 %v528
        %v908 = vunpack.c.l.b16 %v529
        %v909 = vunpack.c.h.b16 %v529
        %v910 = vunpack.c.l.b16 %v530
        %v911 = vunpack.c.h.b16 %v530
        %v912 = vunpack.c.l.b16 %v531
        %v913 = vunpack.c.h.b16 %v531
        %v914 = vunpack.c.l.b16 %v532
        %v915 = vunpack.c.h.b16 %v532
        %v916 = vunpack.c.l.b16 %v533
        %v917 = vunpack.c.h.b16 %v533
        %v918 = vunpack.c.l.b16 %v534
        %v919 = vunpack.c.h.b16 %v534
        %v920 = vunpack.c.l.b16 %v535
        %v921 = vunpack.c.h.b16 %v535
        %v922 = vunpack.c.l.b16 %v536
        %v923 = vunpack.c.h.b16 %v536
        %v924 = vunpack.c.l.b16 %v537
        %v925 = vunpack.c.h.b16 %v537
        %v926 = vunpack.c.l.b16 %v538
        %v927 = vunpack.c.h.b16 %v538
        %v928 = vunpack.c.l.b16 %v539
        %v929 = vunpack.c.h.b16 %v539
        %v930 = vunpack.c.l.b16 %v540
        %v931 = vunpack.c.h.b16 %v540
        %v932 = vunpack.c.l.b16 %v541
        %v933 = vunpack.c.h.b16 %v541
        %v934 = vunpack.c.l.b16 %v542
        %v935 = vunpack.c.h.b16 %v542
        %v936 = vunpack.c.l.b16 %v543
        %v937 = vunpack.c.h.b16 %v543
        %v938 = vunpack.c.l.b16 %v544
        %v939 = vunpack.c.h.b16 %v544
        %v940 = vunpack.c.l.b16 %v545
        %v941 = vunpack.c.h.b16 %v545
        %v942 = vunpack.c.l.b16 %v546
        %v943 = vunpack.c.h.b16 %v546
        %v944 = vunpack.c.l.b16 %v547
        %v945 = vunpack.c.h.b16 %v547
        %v946 = vunpack.c.l.b16 %v548
        %v947 = vunpack.c.h.b16 %v548
        %v948 = vunpack.c.l.b16 %v549
        %v949 = vunpack.c.h.b16 %v549
        %v950 = vunpack.c.l.b16 %v550
        %v951 = vunpack.c.h.b16 %v550
        %v952 = vunpack.c.l.b16 %v551
        %v953 = vunpack.c.h.b16 %v551
        %v954 = vunpack.c.l.b16 %v552
        %v955 = vunpack.c.h.b16 %v552
        %v956 = vunpack.c.l.b16 %v553
        %v957 = vunpack.c.h.b16 %v553
        %v958 = vunpack.c.l.b16 %v554
        %v959 = vunpack.c.h.b16 %v554
        %v960 = vunpack.c.l.b16 %v555
        %v961 = vunpack.c.h.b16 %v555
        %v962 = vunpack.c.l.b16 %v556
        %v963 = vunpack.c.h.b16 %v556
        %v964 = vunpack.c.l.b16 %v557
        %v965 = vunpack.c.h.b16 %v557
        %v966 = vunpack.c.l.b16 %v558
        %v967 = vunpack.c.h.b16 %v558
        %v968 = vunpack.c.l.b16 %v559
        %v969 = vunpack.c.h.b16 %v559
        %v970 = vunpack.c.l.b16 %v560
        %v971 = vunpack.c.h.b16 %v560
        %v972 = vunpack.c.l.b16 %v561
        %v973 = vunpack.c.h.b16 %v561
        %v974 = vpack.c.b16 %v734, %v718
        %v975 = vpack.c.b16 %v735, %v719
        %v976 = vpack.c.b16 %v736, %v720
        %v977 = vpack.c.b16 %v737, %v721
        %v978 = vpack.c.b16 %v738, %v722
        %v979 = vpack.c.b16 %v739, %v723
        %v980 = vpack.c.b16 %v740, %v724
        %v981 = vpack.c.b16 %v741, %v725
        %v982 = vpack.c.b16 %v742, %v726
        %v983 = vpack.c.b16 %v743, %v727
        %v984 = vpack.c.b16 %v744, %v728
        %v985 = vpack.c.b16 %v745, %v729
        %v986 = vpack.c.b16 %v746, %v730
        %v987 = vpack.c.b16 %v747, %v731
        %v988 = vpack.c.b16 %v748, %v732
        %v989 = vpack.c.b16 %v749, %v733
        %v990 = vpack.c.b16 %v766, %v750
        %v991 = vpack.c.b16 %v767, %v751
        %v992 = vpack.c.b16 %v768, %v752
        %v993 = vpack.c.b16 %v769, %v753
        %v994 = vpack.c.b16 %v770, %v754
        %v995 = vpack.c.b16 %v771, %v755
        %v996 = vpack.c.b16 %v772, %v756
        %v997 = vpack.c.b16 %v773, %v757
        %v998 = vpack.c.b16 %v774, %v758
        %v999 = vpack.c.b16 %v775, %v759
        %v1000 = vpack.c.b16 %v776, %v760
        %v1001 = vpack.c.b16 %v777, %v761
        %v1002 = vpack.c.b16 %v778, %v762
        %v1003 = vpack.c.b16 %v779, %v763
        %v1004 = vpack.c.b16 %v780, %v764
        %v1005 = vpack.c.b16 %v781, %v765
        %v1006 = vpack.c.b16 %v798, %v782
        %v1007 = vpack.c.b16 %v799, %v783
        %v1008 = vpack.c.b16 %v800, %v784
        %v1009 = vpack.c.b16 %v801, %v785
        %v1010 = vpack.c.b16 %v802, %v786
        %v1011 = vpack.c.b16 %v803, %v787
        %v1012 = vpack.c.b16 %v804, %v788
        %v1013 = vpack.c.b16 %v805, %v789
        %v1014 = vpack.c.b16 %v806, %v790
        %v1015 = vpack.c.b16 %v807, %v791
        %v1016 = vpack.c.b16 %v808, %v792
        %v1017 = vpack.c.b16 %v809, %v793
        %v1018 = vpack.c.b16 %v810, %v794
        %v1019 = vpack.c.b16 %v811, %v795
        %v1020 = vpack.c.b16 %v812, %v796
        %v1021 = vpack.c.b16 %v813, %v797
        %v1022 = vpack.c.b16 %v830, %v814
        %v1023 = vpack.c.b16 %v831, %v815
        %v1024 = vpack.c.b16 %v832, %v816
        %v1025 = vpack.c.b16 %v833, %v817
        %v1026 = vpack.c.b16 %v834, %v818
        %v1027 = vpack.c.b16 %v835, %v819
        %v1028 = vpack.c.b16 %v836, %v820
        %v1029 = vpack.c.b16 %v837, %v821
        %v1030 = vpack.c.b16 %v838, %v822
        %v1031 = vpack.c.b16 %v839, %v823
        %v1032 = vpack.c.b16 %v840, %v824
        %v1033 = vpack.c.b16 %v841, %v825
        %v1034 = vpack.c.b16 %v842, %v826
        %v1035 = vpack.c.b16 %v843, %v827
        %v1036 = vpack.c.b16 %v844, %v828
        %v1037 = vpack.c.b16 %v845, %v829
        %v1038 = vpack.c.b16 %v862, %v846
        %v1039 = vpack.c.b16 %v863, %v847
        %v1040 = vpack.c.b16 %v864, %v848
        %v1041 = vpack.c.b16 %v865, %v849
        %v1042 = vpack.c.b16 %v866, %v850
        %v1043 = vpack.c.b16 %v867, %v851
        %v1044 = vpack.c.b16 %v868, %v852
        %v1045 = vpack.c.b16 %v869, %v853
        %v1046 = vpack.c.b16 %v870, %v854
        %v1047 = vpack.c.b16 %v871, %v855
        %v1048 = vpack.c.b16 %v872, %v856
        %v1049 = vpack.c.b16 %v873, %v857
        %v1050 = vpack.c.b16 %v874, %v858
        %v1051 = vpack.c.b16 %v875, %v859
        %v1052 = vpack.c.b16 %v876, %v860
        %v1053 = vpack.c.b16 %v877, %v861
        %v1054 = vpack.c.b16 %v894, %v878
        %v1055 = vpack.c.b16 %v895, %v879
        %v1056 = vpack.c.b16 %v896, %v880
        %v1057 = vpack.c.b16 %v897, %v881
        %v1058 = vpack.c.b16 %v898, %v882
        %v1059 = vpack.c.b16 %v899, %v883
        %v1060 = vpack.c.b16 %v900, %v884
        %v1061 = vpack.c.b16 %v901, %v885
        %v1062 = vpack.c.b16 %v902, %v886
        %v1063 = vpack.c.b16 %v903, %v887
        %v1064 = vpack.c.b16 %v904, %v888
        %v1065 = vpack.c.b16 %v905, %v889
        %v1066 = vpack.c.b16 %v906, %v890
        %v1067 = vpack.c.b16 %v907, %v891
        %v1068 = vpack.c.b16 %v908, %v892
        %v1069 = vpack.c.b16 %v909, %v893
        %v1070 = vpack.c.b16 %v926, %v910
        %v1071 = vpack.c.b16 %v927, %v911
        %v1072 = vpack.c.b16 %v928, %v912
        %v1073 = vpack.c.b16 %v929, %v913
        %v1074 = vpack.c.b16 %v930, %v914
        %v1075 = vpack.c.b16 %v931, %v915
        %v1076 = vpack.c.b16 %v932, %v916
        %v1077 = vpack.c.b16 %v933, %v917
        %v1078 = vpack.c.b16 %v934, %v918
        %v1079 = vpack.c.b16 %v935, %v919
        %v1080 = vpack.c.b16 %v936, %v920
        %v1081 = vpack.c.b16 %v937, %v921
        %v1082 = vpack.c.b16 %v938, %v922
        %v1083 = vpack.c.b16 %v939, %v923
        %v1084 = vpack.c.b16 %v940, %v924
        %v1085 = vpack.c.b16 %v941, %v925
        %v1086 = vpack.c.b16 %v958, %v942
        %v1087 = vpack.c.b16 %v959, %v943
        %v1088 = vpack.c.b16 %v960, %v944
        %v1089 = vpack.c.b16 %v961, %v945
        %v1090 = vpack.c.b16 %v962, %v946
        %v1091 = vpack.c.b16 %v963, %v947
        %v1092 = vpack.c.b16 %v964, %v948
        %v1093 = vpack.c.b16 %v965, %v949
        %v1094 = vpack.c.b16 %v966, %v950
        %v1095 = vpack.c.b16 %v967, %v951
        %v1096 = vpack.c.b16 %v968, %v952
        %v1097 = vpack.c.b16 %v969, %v953
        %v1098 = vpack.c.b16 %v970, %v954
        %v1099 = vpack.c.b16 %v971, %v955
        %v1100 = vpack.c.b16 %v972, %v956
        %v1101 = vpack.c.b16 %v973, %v957
        %1230 = vmatpush.bf16.msra.mxu0 %v1086
        %1231 = vmatpush.bf16.msra.mxu0 %v1070
        %1232 = vmatpush.bf16.msra.mxu0 %v1054
        %1233 = vmatpush.bf16.msra.mxu0 %v1038
        %1234 = vmatpush.bf16.msra.mxu0 %v1022
        %1235 = vmatpush.bf16.msra.mxu0 %v1006
        %1236 = vmatpush.bf16.msra.mxu0 %v990
        %1237 = vmatpush.bf16.msra.mxu0 %v974
        %1238 = vmatmul.bf16.gmra.mxu0 %v580
        %v1239 = vpop.f32.mrf.mxu0
        %v1240 = vadd.f32 0.0, %v1239
        %v1241 = vpop.f32.mrf.mxu0
        %v1242 = vadd.f32 0.0, %v1241
        %1243 = vmatmul.bf16.gmra.mxu0 %v581
        %v1244 = vpop.f32.mrf.mxu0
        %v1245 = vadd.f32 0.0, %v1244
        %v1246 = vpop.f32.mrf.mxu0
        %v1247 = vadd.f32 0.0, %v1246
        %1248 = vmatmul.bf16.gmra.mxu0 %v582
        %v1249 = vpop.f32.mrf.mxu0
        %v1250 = vadd.f32 0.0, %v1249
        %v1251 = vpop.f32.mrf.mxu0
        %v1252 = vadd.f32 0.0, %v1251
        %1253 = vmatmul.bf16.gmra.mxu0 %v583
        %v1254 = vpop.f32.mrf.mxu0
        %v1255 = vadd.f32 0.0, %v1254
        %v1256 = vpop.f32.mrf.mxu0
        %v1257 = vadd.f32 0.0, %v1256
        %1258 = vmatmul.bf16.gmra.mxu0 %v584
        %v1259 = vpop.f32.mrf.mxu0
        %v1260 = vadd.f32 0.0, %v1259
        %v1261 = vpop.f32.mrf.mxu0
        %1262 = vdwg.mxu0
        %1263 = vmatpush.bf16.msra.mxu0 %v1087
        %1264 = vmatpush.bf16.msra.mxu0 %v1071
        %1265 = vmatpush.bf16.msra.mxu0 %v1055
        %1266 = vmatpush.bf16.msra.mxu0 %v1039
        %1267 = vmatpush.bf16.msra.mxu0 %v1023
        %1268 = vmatpush.bf16.msra.mxu0 %v1007
        %1269 = vmatpush.bf16.msra.mxu0 %v991
        %1270 = vmatpush.bf16.msra.mxu0 %v975
        %1271 = vmatmul.bf16.gmra.mxu0 %v580
        %v1272 = vpop.f32.mrf.mxu0
        %v1273 = vadd.f32 0.0, %v1272
        %v1274 = vpop.f32.mrf.mxu0
        %v1275 = vadd.f32 0.0, %v1274
        %1276 = vmatmul.bf16.gmra.mxu0 %v581
        %v1277 = vpop.f32.mrf.mxu0
        %v1278 = vadd.f32 0.0, %v1277
        %v1279 = vpop.f32.mrf.mxu0
        %v1280 = vadd.f32 0.0, %v1279
        %1281 = vmatmul.bf16.gmra.mxu0 %v582
        %v1282 = vpop.f32.mrf.mxu0
        %v1283 = vadd.f32 0.0, %v1282
        %v1284 = vpop.f32.mrf.mxu0
        %v1285 = vadd.f32 0.0, %v1284
        %1286 = vmatmul.bf16.gmra.mxu0 %v583
        %v1287 = vpop.f32.mrf.mxu0
        %v1288 = vadd.f32 0.0, %v1287
        %v1289 = vpop.f32.mrf.mxu0
        %v1290 = vadd.f32 0.0, %v1289
        %1291 = vmatmul.bf16.gmra.mxu0 %v584
        %v1292 = vpop.f32.mrf.mxu0
        %v1293 = vadd.f32 0.0, %v1292
        %v1294 = vpop.f32.mrf.mxu0
        %1295 = vdwg.mxu0
        %1296 = vmatpush.bf16.msra.mxu0 %v1088
        %1297 = vmatpush.bf16.msra.mxu0 %v1072
        %1298 = vmatpush.bf16.msra.mxu0 %v1056
        %1299 = vmatpush.bf16.msra.mxu0 %v1040
        %1300 = vmatpush.bf16.msra.mxu0 %v1024
        %1301 = vmatpush.bf16.msra.mxu0 %v1008
        %1302 = vmatpush.bf16.msra.mxu0 %v992
        %1303 = vmatpush.bf16.msra.mxu0 %v976
        %1304 = vmatmul.bf16.gmra.mxu0 %v580
        %v1305 = vpop.f32.mrf.mxu0
        %v1306 = vadd.f32 0.0, %v1305
        %v1307 = vpop.f32.mrf.mxu0
        %v1308 = vadd.f32 0.0, %v1307
        %1309 = vmatmul.bf16.gmra.mxu0 %v581
        %v1310 = vpop.f32.mrf.mxu0
        %v1311 = vadd.f32 0.0, %v1310
        %v1312 = vpop.f32.mrf.mxu0
        %v1313 = vadd.f32 0.0, %v1312
        %1314 = vmatmul.bf16.gmra.mxu0 %v582
        %v1315 = vpop.f32.mrf.mxu0
        %v1316 = vadd.f32 0.0, %v1315
        %v1317 = vpop.f32.mrf.mxu0
        %v1318 = vadd.f32 0.0, %v1317
        %1319 = vmatmul.bf16.gmra.mxu0 %v583
        %v1320 = vpop.f32.mrf.mxu0
        %v1321 = vadd.f32 0.0, %v1320
        %v1322 = vpop.f32.mrf.mxu0
        %v1323 = vadd.f32 0.0, %v1322
        %1324 = vmatmul.bf16.gmra.mxu0 %v584
        %v1325 = vpop.f32.mrf.mxu0
        %v1326 = vadd.f32 0.0, %v1325
        %v1327 = vpop.f32.mrf.mxu0
        %1328 = vdwg.mxu0
        %1329 = vmatpush.bf16.msra.mxu0 %v1089
        %1330 = vmatpush.bf16.msra.mxu0 %v1073
        %1331 = vmatpush.bf16.msra.mxu0 %v1057
        %1332 = vmatpush.bf16.msra.mxu0 %v1041
        %1333 = vmatpush.bf16.msra.mxu0 %v1025
        %1334 = vmatpush.bf16.msra.mxu0 %v1009
        %1335 = vmatpush.bf16.msra.mxu0 %v993
        %1336 = vmatpush.bf16.msra.mxu0 %v977
        %1337 = vmatmul.bf16.gmra.mxu0 %v580
        %v1338 = vpop.f32.mrf.mxu0
        %v1339 = vadd.f32 0.0, %v1338
        %v1340 = vpop.f32.mrf.mxu0
        %v1341 = vadd.f32 0.0, %v1340
        %1342 = vmatmul.bf16.gmra.mxu0 %v581
        %v1343 = vpop.f32.mrf.mxu0
        %v1344 = vadd.f32 0.0, %v1343
        %v1345 = vpop.f32.mrf.mxu0
        %v1346 = vadd.f32 0.0, %v1345
        %1347 = vmatmul.bf16.gmra.mxu0 %v582
        %v1348 = vpop.f32.mrf.mxu0
        %v1349 = vadd.f32 0.0, %v1348
        %v1350 = vpop.f32.mrf.mxu0
        %v1351 = vadd.f32 0.0, %v1350
        %1352 = vmatmul.bf16.gmra.mxu0 %v583
        %v1353 = vpop.f32.mrf.mxu0
        %v1354 = vadd.f32 0.0, %v1353
        %v1355 = vpop.f32.mrf.mxu0
        %v1356 = vadd.f32 0.0, %v1355
        %1357 = vmatmul.bf16.gmra.mxu0 %v584
        %v1358 = vpop.f32.mrf.mxu0
        %v1359 = vadd.f32 0.0, %v1358
        %v1360 = vpop.f32.mrf.mxu0
        %1361 = vdwg.mxu0
        %1362 = vmatpush.bf16.msra.mxu0 %v1090
        %1363 = vmatpush.bf16.msra.mxu0 %v1074
        %1364 = vmatpush.bf16.msra.mxu0 %v1058
        %1365 = vmatpush.bf16.msra.mxu0 %v1042
        %1366 = vmatpush.bf16.msra.mxu0 %v1026
        %1367 = vmatpush.bf16.msra.mxu0 %v1010
        %1368 = vmatpush.bf16.msra.mxu0 %v994
        %1369 = vmatpush.bf16.msra.mxu0 %v978
        %1370 = vmatmul.bf16.gmra.mxu0 %v580
        %v1371 = vpop.f32.mrf.mxu0
        %v1372 = vadd.f32 0.0, %v1371
        %v1373 = vpop.f32.mrf.mxu0
        %v1374 = vadd.f32 0.0, %v1373
        %1375 = vmatmul.bf16.gmra.mxu0 %v581
        %v1376 = vpop.f32.mrf.mxu0
        %v1377 = vadd.f32 0.0, %v1376
        %v1378 = vpop.f32.mrf.mxu0
        %v1379 = vadd.f32 0.0, %v1378
        %1380 = vmatmul.bf16.gmra.mxu0 %v582
        %v1381 = vpop.f32.mrf.mxu0
        %v1382 = vadd.f32 0.0, %v1381
        %v1383 = vpop.f32.mrf.mxu0
        %v1384 = vadd.f32 0.0, %v1383
        %1385 = vmatmul.bf16.gmra.mxu0 %v583
        %v1386 = vpop.f32.mrf.mxu0
        %v1387 = vadd.f32 0.0, %v1386
        %v1388 = vpop.f32.mrf.mxu0
        %v1389 = vadd.f32 0.0, %v1388
        %1390 = vmatmul.bf16.gmra.mxu0 %v584
        %v1391 = vpop.f32.mrf.mxu0
        %v1392 = vadd.f32 0.0, %v1391
        %v1393 = vpop.f32.mrf.mxu0
        %1394 = vdwg.mxu0
        %1395 = vmatpush.bf16.msra.mxu0 %v1091
        %1396 = vmatpush.bf16.msra.mxu0 %v1075
        %1397 = vmatpush.bf16.msra.mxu0 %v1059
        %1398 = vmatpush.bf16.msra.mxu0 %v1043
        %1399 = vmatpush.bf16.msra.mxu0 %v1027
        %1400 = vmatpush.bf16.msra.mxu0 %v1011
        %1401 = vmatpush.bf16.msra.mxu0 %v995
        %1402 = vmatpush.bf16.msra.mxu0 %v979
        %1403 = vmatmul.bf16.gmra.mxu0 %v580
        %v1404 = vpop.f32.mrf.mxu0
        %v1405 = vadd.f32 0.0, %v1404
        %v1406 = vpop.f32.mrf.mxu0
        %v1407 = vadd.f32 0.0, %v1406
        %1408 = vmatmul.bf16.gmra.mxu0 %v581
        %v1409 = vpop.f32.mrf.mxu0
        %v1410 = vadd.f32 0.0, %v1409
        %v1411 = vpop.f32.mrf.mxu0
        %v1412 = vadd.f32 0.0, %v1411
        %1413 = vmatmul.bf16.gmra.mxu0 %v582
        %v1414 = vpop.f32.mrf.mxu0
        %v1415 = vadd.f32 0.0, %v1414
        %v1416 = vpop.f32.mrf.mxu0
        %v1417 = vadd.f32 0.0, %v1416
        %1418 = vmatmul.bf16.gmra.mxu0 %v583
        %v1419 = vpop.f32.mrf.mxu0
        %v1420 = vadd.f32 0.0, %v1419
        %v1421 = vpop.f32.mrf.mxu0
        %v1422 = vadd.f32 0.0, %v1421
        %1423 = vmatmul.bf16.gmra.mxu0 %v584
        %v1424 = vpop.f32.mrf.mxu0
        %v1425 = vadd.f32 0.0, %v1424
        %v1426 = vpop.f32.mrf.mxu0
        %1427 = vdwg.mxu0
        %1428 = vmatpush.bf16.msra.mxu0 %v1092
        %1429 = vmatpush.bf16.msra.mxu0 %v1076
        %1430 = vmatpush.bf16.msra.mxu0 %v1060
        %1431 = vmatpush.bf16.msra.mxu0 %v1044
        %1432 = vmatpush.bf16.msra.mxu0 %v1028
        %1433 = vmatpush.bf16.msra.mxu0 %v1012
        %1434 = vmatpush.bf16.msra.mxu0 %v996
        %1435 = vmatpush.bf16.msra.mxu0 %v980
        %1436 = vmatmul.bf16.gmra.mxu0 %v580
        %v1437 = vpop.f32.mrf.mxu0
        %v1438 = vadd.f32 0.0, %v1437
        %v1439 = vpop.f32.mrf.mxu0
        %v1440 = vadd.f32 0.0, %v1439
        %1441 = vmatmul.bf16.gmra.mxu0 %v581
        %v1442 = vpop.f32.mrf.mxu0
        %v1443 = vadd.f32 0.0, %v1442
        %v1444 = vpop.f32.mrf.mxu0
        %v1445 = vadd.f32 0.0, %v1444
        %1446 = vmatmul.bf16.gmra.mxu0 %v582
        %v1447 = vpop.f32.mrf.mxu0
        %v1448 = vadd.f32 0.0, %v1447
        %v1449 = vpop.f32.mrf.mxu0
        %v1450 = vadd.f32 0.0, %v1449
        %1451 = vmatmul.bf16.gmra.mxu0 %v583
        %v1452 = vpop.f32.mrf.mxu0
        %v1453 = vadd.f32 0.0, %v1452
        %v1454 = vpop.f32.mrf.mxu0
        %v1455 = vadd.f32 0.0, %v1454
        %1456 = vmatmul.bf16.gmra.mxu0 %v584
        %v1457 = vpop.f32.mrf.mxu0
        %v1458 = vadd.f32 0.0, %v1457
        %v1459 = vpop.f32.mrf.mxu0
        %1460 = vdwg.mxu0
        %1461 = vmatpush.bf16.msra.mxu0 %v1093
        %1462 = vmatpush.bf16.msra.mxu0 %v1077
        %1463 = vmatpush.bf16.msra.mxu0 %v1061
        %1464 = vmatpush.bf16.msra.mxu0 %v1045
        %1465 = vmatpush.bf16.msra.mxu0 %v1029
        %1466 = vmatpush.bf16.msra.mxu0 %v1013
        %1467 = vmatpush.bf16.msra.mxu0 %v997
        %1468 = vmatpush.bf16.msra.mxu0 %v981
        %1469 = vmatmul.bf16.gmra.mxu0 %v580
        %v1470 = vpop.f32.mrf.mxu0
        %v1471 = vadd.f32 0.0, %v1470
        %v1472 = vpop.f32.mrf.mxu0
        %v1473 = vadd.f32 0.0, %v1472
        %1474 = vmatmul.bf16.gmra.mxu0 %v581
        %v1475 = vpop.f32.mrf.mxu0
        %v1476 = vadd.f32 0.0, %v1475
        %v1477 = vpop.f32.mrf.mxu0
        %v1478 = vadd.f32 0.0, %v1477
        %1479 = vmatmul.bf16.gmra.mxu0 %v582
        %v1480 = vpop.f32.mrf.mxu0
        %v1481 = vadd.f32 0.0, %v1480
        %v1482 = vpop.f32.mrf.mxu0
        %v1483 = vadd.f32 0.0, %v1482
        %1484 = vmatmul.bf16.gmra.mxu0 %v583
        %v1485 = vpop.f32.mrf.mxu0
        %v1486 = vadd.f32 0.0, %v1485
        %v1487 = vpop.f32.mrf.mxu0
        %v1488 = vadd.f32 0.0, %v1487
        %1489 = vmatmul.bf16.gmra.mxu0 %v584
        %v1490 = vpop.f32.mrf.mxu0
        %v1491 = vadd.f32 0.0, %v1490
        %v1492 = vpop.f32.mrf.mxu0
        %1493 = vdwg.mxu0
        %1494 = vmatpush.bf16.msra.mxu0 %v1094
        %1495 = vmatpush.bf16.msra.mxu0 %v1078
        %1496 = vmatpush.bf16.msra.mxu0 %v1062
        %1497 = vmatpush.bf16.msra.mxu0 %v1046
        %1498 = vmatpush.bf16.msra.mxu0 %v1030
        %1499 = vmatpush.bf16.msra.mxu0 %v1014
        %1500 = vmatpush.bf16.msra.mxu0 %v998
        %1501 = vmatpush.bf16.msra.mxu0 %v982
        %1502 = vmatmul.bf16.gmra.mxu0 %v580
        %v1503 = vpop.f32.mrf.mxu0
        %v1504 = vadd.f32 0.0, %v1503
        %v1505 = vpop.f32.mrf.mxu0
        %v1506 = vadd.f32 0.0, %v1505
        %1507 = vmatmul.bf16.gmra.mxu0 %v581
        %v1508 = vpop.f32.mrf.mxu0
        %v1509 = vadd.f32 0.0, %v1508
        %v1510 = vpop.f32.mrf.mxu0
        %v1511 = vadd.f32 0.0, %v1510
        %1512 = vmatmul.bf16.gmra.mxu0 %v582
        %v1513 = vpop.f32.mrf.mxu0
        %v1514 = vadd.f32 0.0, %v1513
        %v1515 = vpop.f32.mrf.mxu0
        %v1516 = vadd.f32 0.0, %v1515
        %1517 = vmatmul.bf16.gmra.mxu0 %v583
        %v1518 = vpop.f32.mrf.mxu0
        %v1519 = vadd.f32 0.0, %v1518
        %v1520 = vpop.f32.mrf.mxu0
        %v1521 = vadd.f32 0.0, %v1520
        %1522 = vmatmul.bf16.gmra.mxu0 %v584
        %v1523 = vpop.f32.mrf.mxu0
        %v1524 = vadd.f32 0.0, %v1523
        %v1525 = vpop.f32.mrf.mxu0
        %1526 = vdwg.mxu0
        %1527 = vmatpush.bf16.msra.mxu0 %v1095
        %1528 = vmatpush.bf16.msra.mxu0 %v1079
        %1529 = vmatpush.bf16.msra.mxu0 %v1063
        %1530 = vmatpush.bf16.msra.mxu0 %v1047
        %1531 = vmatpush.bf16.msra.mxu0 %v1031
        %1532 = vmatpush.bf16.msra.mxu0 %v1015
        %1533 = vmatpush.bf16.msra.mxu0 %v999
        %1534 = vmatpush.bf16.msra.mxu0 %v983
        %1535 = vmatmul.bf16.gmra.mxu0 %v580
        %v1536 = vpop.f32.mrf.mxu0
        %v1537 = vadd.f32 0.0, %v1536
        %v1538 = vpop.f32.mrf.mxu0
        %v1539 = vadd.f32 0.0, %v1538
        %1540 = vmatmul.bf16.gmra.mxu0 %v581
        %v1541 = vpop.f32.mrf.mxu0
        %v1542 = vadd.f32 0.0, %v1541
        %v1543 = vpop.f32.mrf.mxu0
        %v1544 = vadd.f32 0.0, %v1543
        %1545 = vmatmul.bf16.gmra.mxu0 %v582
        %v1546 = vpop.f32.mrf.mxu0
        %v1547 = vadd.f32 0.0, %v1546
        %v1548 = vpop.f32.mrf.mxu0
        %v1549 = vadd.f32 0.0, %v1548
        %1550 = vmatmul.bf16.gmra.mxu0 %v583
        %v1551 = vpop.f32.mrf.mxu0
        %v1552 = vadd.f32 0.0, %v1551
        %v1553 = vpop.f32.mrf.mxu0
        %v1554 = vadd.f32 0.0, %v1553
        %1555 = vmatmul.bf16.gmra.mxu0 %v584
        %v1556 = vpop.f32.mrf.mxu0
        %v1557 = vadd.f32 0.0, %v1556
        %v1558 = vpop.f32.mrf.mxu0
        %1559 = vdwg.mxu0
        %1560 = vmatpush.bf16.msra.mxu0 %v1096
        %1561 = vmatpush.bf16.msra.mxu0 %v1080
        %1562 = vmatpush.bf16.msra.mxu0 %v1064
        %1563 = vmatpush.bf16.msra.mxu0 %v1048
        %1564 = vmatpush.bf16.msra.mxu0 %v1032
        %1565 = vmatpush.bf16.msra.mxu0 %v1016
        %1566 = vmatpush.bf16.msra.mxu0 %v1000
        %1567 = vmatpush.bf16.msra.mxu0 %v984
        %1568 = vmatmul.bf16.gmra.mxu0 %v580
        %v1569 = vpop.f32.mrf.mxu0
        %v1570 = vadd.f32 0.0, %v1569
        %v1571 = vpop.f32.mrf.mxu0
        %v1572 = vadd.f32 0.0, %v1571
        %1573 = vmatmul.bf16.gmra.mxu0 %v581
        %v1574 = vpop.f32.mrf.mxu0
        %v1575 = vadd.f32 0.0, %v1574
        %v1576 = vpop.f32.mrf.mxu0
        %v1577 = vadd.f32 0.0, %v1576
        %1578 = vmatmul.bf16.gmra.mxu0 %v582
        %v1579 = vpop.f32.mrf.mxu0
        %v1580 = vadd.f32 0.0, %v1579
        %v1581 = vpop.f32.mrf.mxu0
        %v1582 = vadd.f32 0.0, %v1581
        %1583 = vmatmul.bf16.gmra.mxu0 %v583
        %v1584 = vpop.f32.mrf.mxu0
        %v1585 = vadd.f32 0.0, %v1584
        %v1586 = vpop.f32.mrf.mxu0
        %v1587 = vadd.f32 0.0, %v1586
        %1588 = vmatmul.bf16.gmra.mxu0 %v584
        %v1589 = vpop.f32.mrf.mxu0
        %v1590 = vadd.f32 0.0, %v1589
        %v1591 = vpop.f32.mrf.mxu0
        %1592 = vdwg.mxu0
        %1593 = vmatpush.bf16.msra.mxu0 %v1097
        %1594 = vmatpush.bf16.msra.mxu0 %v1081
        %1595 = vmatpush.bf16.msra.mxu0 %v1065
        %1596 = vmatpush.bf16.msra.mxu0 %v1049
        %1597 = vmatpush.bf16.msra.mxu0 %v1033
        %1598 = vmatpush.bf16.msra.mxu0 %v1017
        %1599 = vmatpush.bf16.msra.mxu0 %v1001
        %1600 = vmatpush.bf16.msra.mxu0 %v985
        %1601 = vmatmul.bf16.gmra.mxu0 %v580
        %v1602 = vpop.f32.mrf.mxu0
        %v1603 = vadd.f32 0.0, %v1602
        %v1604 = vpop.f32.mrf.mxu0
        %v1605 = vadd.f32 0.0, %v1604
        %1606 = vmatmul.bf16.gmra.mxu0 %v581
        %v1607 = vpop.f32.mrf.mxu0
        %v1608 = vadd.f32 0.0, %v1607
        %v1609 = vpop.f32.mrf.mxu0
        %v1610 = vadd.f32 0.0, %v1609
        %1611 = vmatmul.bf16.gmra.mxu0 %v582
        %v1612 = vpop.f32.mrf.mxu0
        %v1613 = vadd.f32 0.0, %v1612
        %v1614 = vpop.f32.mrf.mxu0
        %v1615 = vadd.f32 0.0, %v1614
        %1616 = vmatmul.bf16.gmra.mxu0 %v583
        %v1617 = vpop.f32.mrf.mxu0
        %v1618 = vadd.f32 0.0, %v1617
        %v1619 = vpop.f32.mrf.mxu0
        %v1620 = vadd.f32 0.0, %v1619
        %1621 = vmatmul.bf16.gmra.mxu0 %v584
        %v1622 = vpop.f32.mrf.mxu0
        %v1623 = vadd.f32 0.0, %v1622
        %v1624 = vpop.f32.mrf.mxu0
        %1625 = vdwg.mxu0
        %1626 = vmatpush.bf16.msra.mxu0 %v1098
        %1627 = vmatpush.bf16.msra.mxu0 %v1082
        %1628 = vmatpush.bf16.msra.mxu0 %v1066
        %1629 = vmatpush.bf16.msra.mxu0 %v1050
        %1630 = vmatpush.bf16.msra.mxu0 %v1034
        %1631 = vmatpush.bf16.msra.mxu0 %v1018
        %1632 = vmatpush.bf16.msra.mxu0 %v1002
        %1633 = vmatpush.bf16.msra.mxu0 %v986
        %1634 = vmatmul.bf16.gmra.mxu0 %v580
        %v1635 = vpop.f32.mrf.mxu0
        %v1636 = vadd.f32 0.0, %v1635
        %v1637 = vpop.f32.mrf.mxu0
        %v1638 = vadd.f32 0.0, %v1637
        %1639 = vmatmul.bf16.gmra.mxu0 %v581
        %v1640 = vpop.f32.mrf.mxu0
        %v1641 = vadd.f32 0.0, %v1640
        %v1642 = vpop.f32.mrf.mxu0
        %v1643 = vadd.f32 0.0, %v1642
        %1644 = vmatmul.bf16.gmra.mxu0 %v582
        %v1645 = vpop.f32.mrf.mxu0
        %v1646 = vadd.f32 0.0, %v1645
        %v1647 = vpop.f32.mrf.mxu0
        %v1648 = vadd.f32 0.0, %v1647
        %1649 = vmatmul.bf16.gmra.mxu0 %v583
        %v1650 = vpop.f32.mrf.mxu0
        %v1651 = vadd.f32 0.0, %v1650
        %v1652 = vpop.f32.mrf.mxu0
        %v1653 = vadd.f32 0.0, %v1652
        %1654 = vmatmul.bf16.gmra.mxu0 %v584
        %v1655 = vpop.f32.mrf.mxu0
        %v1656 = vadd.f32 0.0, %v1655
        %v1657 = vpop.f32.mrf.mxu0
        %1658 = vdwg.mxu0
        %1659 = vmatpush.bf16.msra.mxu0 %v1099
        %1660 = vmatpush.bf16.msra.mxu0 %v1083
        %1661 = vmatpush.bf16.msra.mxu0 %v1067
        %1662 = vmatpush.bf16.msra.mxu0 %v1051
        %1663 = vmatpush.bf16.msra.mxu0 %v1035
        %1664 = vmatpush.bf16.msra.mxu0 %v1019
        %1665 = vmatpush.bf16.msra.mxu0 %v1003
        %1666 = vmatpush.bf16.msra.mxu0 %v987
        %1667 = vmatmul.bf16.gmra.mxu0 %v580
        %v1668 = vpop.f32.mrf.mxu0
        %v1669 = vadd.f32 0.0, %v1668
        %v1670 = vpop.f32.mrf.mxu0
        %v1671 = vadd.f32 0.0, %v1670
        %1672 = vmatmul.bf16.gmra.mxu0 %v581
        %v1673 = vpop.f32.mrf.mxu0
        %v1674 = vadd.f32 0.0, %v1673
        %v1675 = vpop.f32.mrf.mxu0
        %v1676 = vadd.f32 0.0, %v1675
        %1677 = vmatmul.bf16.gmra.mxu0 %v582
        %v1678 = vpop.f32.mrf.mxu0
        %v1679 = vadd.f32 0.0, %v1678
        %v1680 = vpop.f32.mrf.mxu0
        %v1681 = vadd.f32 0.0, %v1680
        %1682 = vmatmul.bf16.gmra.mxu0 %v583
        %v1683 = vpop.f32.mrf.mxu0
        %v1684 = vadd.f32 0.0, %v1683
        %v1685 = vpop.f32.mrf.mxu0
        %v1686 = vadd.f32 0.0, %v1685
        %1687 = vmatmul.bf16.gmra.mxu0 %v584
        %v1688 = vpop.f32.mrf.mxu0
        %v1689 = vadd.f32 0.0, %v1688
        %v1690 = vpop.f32.mrf.mxu0
        %1691 = vdwg.mxu0
        %1692 = vmatpush.bf16.msra.mxu0 %v1100
        %1693 = vmatpush.bf16.msra.mxu0 %v1084
        %1694 = vmatpush.bf16.msra.mxu0 %v1068
        %1695 = vmatpush.bf16.msra.mxu0 %v1052
        %1696 = vmatpush.bf16.msra.mxu0 %v1036
        %1697 = vmatpush.bf16.msra.mxu0 %v1020
        %1698 = vmatpush.bf16.msra.mxu0 %v1004
        %1699 = vmatpush.bf16.msra.mxu0 %v988
        %1700 = vmatmul.bf16.gmra.mxu0 %v580
        %v1701 = vpop.f32.mrf.mxu0
        %v1702 = vadd.f32 0.0, %v1701
        %v1703 = vpop.f32.mrf.mxu0
        %v1704 = vadd.f32 0.0, %v1703
        %1705 = vmatmul.bf16.gmra.mxu0 %v581
        %v1706 = vpop.f32.mrf.mxu0
        %v1707 = vadd.f32 0.0, %v1706
        %v1708 = vpop.f32.mrf.mxu0
        %v1709 = vadd.f32 0.0, %v1708
        %1710 = vmatmul.bf16.gmra.mxu0 %v582
        %v1711 = vpop.f32.mrf.mxu0
        %v1712 = vadd.f32 0.0, %v1711
        %v1713 = vpop.f32.mrf.mxu0
        %v1714 = vadd.f32 0.0, %v1713
        %1715 = vmatmul.bf16.gmra.mxu0 %v583
        %v1716 = vpop.f32.mrf.mxu0
        %v1717 = vadd.f32 0.0, %v1716
        %v1718 = vpop.f32.mrf.mxu0
        %v1719 = vadd.f32 0.0, %v1718
        %1720 = vmatmul.bf16.gmra.mxu0 %v584
        %v1721 = vpop.f32.mrf.mxu0
        %v1722 = vadd.f32 0.0, %v1721
        %v1723 = vpop.f32.mrf.mxu0
        %1724 = vdwg.mxu0
        %1725 = vmatpush.bf16.msra.mxu0 %v1101
        %1726 = vmatpush.bf16.msra.mxu0 %v1085
        %1727 = vmatpush.bf16.msra.mxu0 %v1069
        %1728 = vmatpush.bf16.msra.mxu0 %v1053
        %1729 = vmatpush.bf16.msra.mxu0 %v1037
        %1730 = vmatpush.bf16.msra.mxu0 %v1021
        %1731 = vmatpush.bf16.msra.mxu0 %v1005
        %1732 = vmatpush.bf16.msra.mxu0 %v989
        %1733 = vmatmul.bf16.gmra.mxu0 %v580
        %v1734 = vpop.f32.mrf.mxu0
        %v1735 = vadd.f32 0.0, %v1734
        %v1736 = vpop.f32.mrf.mxu0
        %v1737 = vadd.f32 0.0, %v1736
        %1738 = vmatmul.bf16.gmra.mxu0 %v581
        %v1739 = vpop.f32.mrf.mxu0
        %v1740 = vadd.f32 0.0, %v1739
        %v1741 = vpop.f32.mrf.mxu0
        %v1742 = vadd.f32 0.0, %v1741
        %1743 = vmatmul.bf16.gmra.mxu0 %v582
        %v1744 = vpop.f32.mrf.mxu0
        %v1745 = vadd.f32 0.0, %v1744
        %v1746 = vpop.f32.mrf.mxu0
        %v1747 = vadd.f32 0.0, %v1746
        %1748 = vmatmul.bf16.gmra.mxu0 %v583
        %v1749 = vpop.f32.mrf.mxu0
        %v1750 = vadd.f32 0.0, %v1749
        %v1751 = vpop.f32.mrf.mxu0
        %v1752 = vadd.f32 0.0, %v1751
        %1753 = vmatmul.bf16.gmra.mxu0 %v584
        %v1754 = vpop.f32.mrf.mxu0
        %v1755 = vadd.f32 0.0, %v1754
        %v1756 = vpop.f32.mrf.mxu0
        %1757 = vdwg.mxu0
        %v1758 = vpack.c.bf16 %v1242, %v1240
        %v1759 = vpack.c.bf16 %v1275, %v1273
        %v1760 = vpack.c.bf16 %v1308, %v1306
        %v1761 = vpack.c.bf16 %v1341, %v1339
        %v1762 = vpack.c.bf16 %v1374, %v1372
        %v1763 = vpack.c.bf16 %v1407, %v1405
        %v1764 = vpack.c.bf16 %v1440, %v1438
        %v1765 = vpack.c.bf16 %v1473, %v1471
        %v1766 = vpack.c.bf16 %v1506, %v1504
        %v1767 = vpack.c.bf16 %v1539, %v1537
        %v1768 = vpack.c.bf16 %v1572, %v1570
        %v1769 = vpack.c.bf16 %v1605, %v1603
        %v1770 = vpack.c.bf16 %v1638, %v1636
        %v1771 = vpack.c.bf16 %v1671, %v1669
        %v1772 = vpack.c.bf16 %v1704, %v1702
        %v1773 = vpack.c.bf16 %v1737, %v1735
        %v1774 = vpack.c.bf16 %v1247, %v1245
        %v1775 = vpack.c.bf16 %v1280, %v1278
        %v1776 = vpack.c.bf16 %v1313, %v1311
        %v1777 = vpack.c.bf16 %v1346, %v1344
        %v1778 = vpack.c.bf16 %v1379, %v1377
        %v1779 = vpack.c.bf16 %v1412, %v1410
        %v1780 = vpack.c.bf16 %v1445, %v1443
        %v1781 = vpack.c.bf16 %v1478, %v1476
        %v1782 = vpack.c.bf16 %v1511, %v1509
        %v1783 = vpack.c.bf16 %v1544, %v1542
        %v1784 = vpack.c.bf16 %v1577, %v1575
        %v1785 = vpack.c.bf16 %v1610, %v1608
        %v1786 = vpack.c.bf16 %v1643, %v1641
        %v1787 = vpack.c.bf16 %v1676, %v1674
        %v1788 = vpack.c.bf16 %v1709, %v1707
        %v1789 = vpack.c.bf16 %v1742, %v1740
        %v1790 = vpack.c.bf16 %v1252, %v1250
        %v1791 = vpack.c.bf16 %v1285, %v1283
        %v1792 = vpack.c.bf16 %v1318, %v1316
        %v1793 = vpack.c.bf16 %v1351, %v1349
        %v1794 = vpack.c.bf16 %v1384, %v1382
        %v1795 = vpack.c.bf16 %v1417, %v1415
        %v1796 = vpack.c.bf16 %v1450, %v1448
        %v1797 = vpack.c.bf16 %v1483, %v1481
        %v1798 = vpack.c.bf16 %v1516, %v1514
        %v1799 = vpack.c.bf16 %v1549, %v1547
        %v1800 = vpack.c.bf16 %v1582, %v1580
        %v1801 = vpack.c.bf16 %v1615, %v1613
        %v1802 = vpack.c.bf16 %v1648, %v1646
        %v1803 = vpack.c.bf16 %v1681, %v1679
        %v1804 = vpack.c.bf16 %v1714, %v1712
        %v1805 = vpack.c.bf16 %v1747, %v1745
        %v1806 = vpack.c.bf16 %v1257, %v1255
        %v1807 = vpack.c.bf16 %v1290, %v1288
        %v1808 = vpack.c.bf16 %v1323, %v1321
        %v1809 = vpack.c.bf16 %v1356, %v1354
        %v1810 = vpack.c.bf16 %v1389, %v1387
        %v1811 = vpack.c.bf16 %v1422, %v1420
        %v1812 = vpack.c.bf16 %v1455, %v1453
        %v1813 = vpack.c.bf16 %v1488, %v1486
        %v1814 = vpack.c.bf16 %v1521, %v1519
        %v1815 = vpack.c.bf16 %v1554, %v1552
        %v1816 = vpack.c.bf16 %v1587, %v1585
        %v1817 = vpack.c.bf16 %v1620, %v1618
        %v1818 = vpack.c.bf16 %v1653, %v1651
        %v1819 = vpack.c.bf16 %v1686, %v1684
        %v1820 = vpack.c.bf16 %v1719, %v1717
        %v1821 = vpack.c.bf16 %v1752, %v1750
        %v1822 = vpack.c.bf16 %v1260, %v1260
        %v1823 = vpack.c.bf16 %v1293, %v1293
        %v1824 = vpack.c.bf16 %v1326, %v1326
        %v1825 = vpack.c.bf16 %v1359, %v1359
        %v1826 = vpack.c.bf16 %v1392, %v1392
        %v1827 = vpack.c.bf16 %v1425, %v1425
        %v1828 = vpack.c.bf16 %v1458, %v1458
        %v1829 = vpack.c.bf16 %v1491, %v1491
        %v1830 = vpack.c.bf16 %v1524, %v1524
        %v1831 = vpack.c.bf16 %v1557, %v1557
        %v1832 = vpack.c.bf16 %v1590, %v1590
        %v1833 = vpack.c.bf16 %v1623, %v1623
        %v1834 = vpack.c.bf16 %v1656, %v1656
        %v1835 = vpack.c.bf16 %v1689, %v1689
        %v1836 = vpack.c.bf16 %v1722, %v1722
        %v1837 = vpack.c.bf16 %v1755, %v1755
        %v1838 = vld [vmem:[%s348] sm:$0xff]
        %v1839 = vld [vmem:[%s348 + $0x8] sm:$0xff]
        %v1840 = vld [vmem:[%s348 + $0x10] sm:$0xff]
        %v1841 = vld [vmem:[%s348 + $0x18] sm:$0xff]
        %v1842 = vld [vmem:[%s348 + $0x20] sm:$0xff]
        %v1843 = vld [vmem:[%s348 + $0x28] sm:$0xff]
        %v1844 = vld [vmem:[%s348 + $0x30] sm:$0xff]
        %v1845 = vld [vmem:[%s348 + $0x38] sm:$0xff]
        %v1846 = vld [vmem:[%s348 + $0x40] sm:$0xff]
        %v1847 = vld [vmem:[%s348 + $0x48] sm:$0xff]
        %v1848 = vld [vmem:[%s348 + $0x50] sm:$0xff]
        %v1849 = vld [vmem:[%s348 + $0x58] sm:$0xff]
        %v1850 = vld [vmem:[%s348 + $0x60] sm:$0xff]
        %v1851 = vld [vmem:[%s348 + $0x68] sm:$0xff]
        %v1852 = vld [vmem:[%s348 + $0x70] sm:$0xff]
        %v1853 = vld [vmem:[%s348 + $0x78] sm:$0xff]
        %v1854 = vld [vmem:[%s348 + $0x80] sm:$0xff]
        %v1855 = vld [vmem:[%s348 + $0x88] sm:$0xff]
        %v1856 = vld [vmem:[%s348 + $0x90] sm:$0xff]
        %v1857 = vld [vmem:[%s348 + $0x98] sm:$0xff]
        %v1858 = vld [vmem:[%s348 + $0xa0] sm:$0xff]
        %v1859 = vld [vmem:[%s348 + $0xa8] sm:$0xff]
        %v1860 = vld [vmem:[%s348 + $0xb0] sm:$0xff]
        %v1861 = vld [vmem:[%s348 + $0xb8] sm:$0xff]
        %v1862 = vld [vmem:[%s348 + $0xc0] sm:$0xff]
        %v1863 = vld [vmem:[%s348 + $0xc8] sm:$0xff]
        %v1864 = vld [vmem:[%s348 + $0xd0] sm:$0xff]
        %v1865 = vld [vmem:[%s348 + $0xd8] sm:$0xff]
        %v1866 = vld [vmem:[%s348 + $0xe0] sm:$0xff]
        %v1867 = vld [vmem:[%s348 + $0xe8] sm:$0xff]
        %v1868 = vld [vmem:[%s348 + $0xf0] sm:$0xff]
        %v1869 = vld [vmem:[%s348 + $0xf8] sm:$0xff]
        %v1870 = vld [vmem:[%s348 + $0x100] sm:$0xff]
        %v1871 = vld [vmem:[%s348 + $0x108] sm:$0xff]
        %v1872 = vld [vmem:[%s348 + $0x110] sm:$0xff]
        %v1873 = vld [vmem:[%s348 + $0x118] sm:$0xff]
        %v1874 = vld [vmem:[%s348 + $0x120] sm:$0xff]
        %v1875 = vld [vmem:[%s348 + $0x128] sm:$0xff]
        %v1876 = vld [vmem:[%s348 + $0x130] sm:$0xff]
        %v1877 = vld [vmem:[%s348 + $0x138] sm:$0xff]
        %v1878 = vld [vmem:[%s348 + $0x140] sm:$0xff]
        %v1879 = vld [vmem:[%s348 + $0x148] sm:$0xff]
        %v1880 = vld [vmem:[%s348 + $0x150] sm:$0xff]
        %v1881 = vld [vmem:[%s348 + $0x158] sm:$0xff]
        %v1882 = vld [vmem:[%s348 + $0x160] sm:$0xff]
        %v1883 = vld [vmem:[%s348 + $0x168] sm:$0xff]
        %v1884 = vld [vmem:[%s348 + $0x170] sm:$0xff]
        %v1885 = vld [vmem:[%s348 + $0x178] sm:$0xff]
        %v1886 = vld [vmem:[%s348 + $0x180] sm:$0xff]
        %v1887 = vld [vmem:[%s348 + $0x188] sm:$0xff]
        %v1888 = vld [vmem:[%s348 + $0x190] sm:$0xff]
        %v1889 = vld [vmem:[%s348 + $0x198] sm:$0xff]
        %v1890 = vld [vmem:[%s348 + $0x1a0] sm:$0xff]
        %v1891 = vld [vmem:[%s348 + $0x1a8] sm:$0xff]
        %v1892 = vld [vmem:[%s348 + $0x1b0] sm:$0xff]
        %v1893 = vld [vmem:[%s348 + $0x1b8] sm:$0xff]
        %v1894 = vld [vmem:[%s348 + $0x1c0] sm:$0xff]
        %v1895 = vld [vmem:[%s348 + $0x1c8] sm:$0xff]
        %v1896 = vld [vmem:[%s348 + $0x1d0] sm:$0xff]
        %v1897 = vld [vmem:[%s348 + $0x1d8] sm:$0xff]
        %v1898 = vld [vmem:[%s348 + $0x1e0] sm:$0xff]
        %v1899 = vld [vmem:[%s348 + $0x1e8] sm:$0xff]
        %v1900 = vld [vmem:[%s348 + $0x1f0] sm:$0xff]
        %v1901 = vld [vmem:[%s348 + $0x1f8] sm:$0xff]
        %v1902 = vld [vmem:[%s348 + $0x200] sm:$0xff]
        %v1903 = vld [vmem:[%s348 + $0x208] sm:$0xff]
        %v1904 = vld [vmem:[%s348 + $0x210] sm:$0xff]
        %v1905 = vld [vmem:[%s348 + $0x218] sm:$0xff]
        %v1906 = vld [vmem:[%s348 + $0x220] sm:$0xff]
        %v1907 = vld [vmem:[%s348 + $0x228] sm:$0xff]
        %v1908 = vld [vmem:[%s348 + $0x230] sm:$0xff]
        %v1909 = vld [vmem:[%s348 + $0x238] sm:$0xff]
        %v1910 = vld [vmem:[%s348 + $0x240] sm:$0xff]
        %v1911 = vld [vmem:[%s348 + $0x248] sm:$0xff]
        %v1912 = vld [vmem:[%s348 + $0x250] sm:$0xff]
        %v1913 = vld [vmem:[%s348 + $0x258] sm:$0xff]
        %v1914 = vld [vmem:[%s348 + $0x260] sm:$0xff]
        %v1915 = vld [vmem:[%s348 + $0x268] sm:$0xff]
        %v1916 = vld [vmem:[%s348 + $0x270] sm:$0xff]
        %v1917 = vld [vmem:[%s348 + $0x278] sm:$0xff]
        %v1918 = vld [vmem:[%s348 + $0x280] sm:$0xff]
        %v1919 = vld [vmem:[%s348 + $0x288] sm:$0xff]
        %v1920 = vld [vmem:[%s348 + $0x290] sm:$0xff]
        %v1921 = vld [vmem:[%s348 + $0x298] sm:$0xff]
        %v1922 = vld [vmem:[%s348 + $0x2a0] sm:$0xff]
        %v1923 = vld [vmem:[%s348 + $0x2a8] sm:$0xff]
        %v1924 = vld [vmem:[%s348 + $0x2b0] sm:$0xff]
        %v1925 = vld [vmem:[%s348 + $0x2b8] sm:$0xff]
        %v1926 = vld [vmem:[%s348 + $0x2c0] sm:$0xff]
        %v1927 = vld [vmem:[%s348 + $0x2c8] sm:$0xff]
        %v1928 = vld [vmem:[%s348 + $0x2d0] sm:$0xff]
        %v1929 = vld [vmem:[%s348 + $0x2d8] sm:$0xff]
        %v1930 = vld [vmem:[%s348 + $0x2e0] sm:$0xff]
        %v1931 = vld [vmem:[%s348 + $0x2e8] sm:$0xff]
        %v1932 = vld [vmem:[%s348 + $0x2f0] sm:$0xff]
        %v1933 = vld [vmem:[%s348 + $0x2f8] sm:$0xff]
        %v1934 = vld [vmem:[%s348 + $0x300] sm:$0xff]
        %v1935 = vld [vmem:[%s348 + $0x308] sm:$0xff]
        %v1936 = vld [vmem:[%s348 + $0x310] sm:$0xff]
        %v1937 = vld [vmem:[%s348 + $0x318] sm:$0xff]
        %v1938 = vld [vmem:[%s348 + $0x320] sm:$0xff]
        %v1939 = vld [vmem:[%s348 + $0x328] sm:$0xff]
        %v1940 = vld [vmem:[%s348 + $0x330] sm:$0xff]
        %v1941 = vld [vmem:[%s348 + $0x338] sm:$0xff]
        %v1942 = vld [vmem:[%s348 + $0x340] sm:$0xff]
        %v1943 = vld [vmem:[%s348 + $0x348] sm:$0xff]
        %v1944 = vld [vmem:[%s348 + $0x350] sm:$0xff]
        %v1945 = vld [vmem:[%s348 + $0x358] sm:$0xff]
        %v1946 = vld [vmem:[%s348 + $0x360] sm:$0xff]
        %v1947 = vld [vmem:[%s348 + $0x368] sm:$0xff]
        %v1948 = vld [vmem:[%s348 + $0x370] sm:$0xff]
        %v1949 = vld [vmem:[%s348 + $0x378] sm:$0xff]
        %v1950 = vld [vmem:[%s348 + $0x380] sm:$0xff]
        %v1951 = vld [vmem:[%s348 + $0x388] sm:$0xff]
        %v1952 = vld [vmem:[%s348 + $0x390] sm:$0xff]
        %v1953 = vld [vmem:[%s348 + $0x398] sm:$0xff]
        %v1954 = vld [vmem:[%s348 + $0x3a0] sm:$0xff]
        %v1955 = vld [vmem:[%s348 + $0x3a8] sm:$0xff]
        %v1956 = vld [vmem:[%s348 + $0x3b0] sm:$0xff]
        %v1957 = vld [vmem:[%s348 + $0x3b8] sm:$0xff]
        %v1958 = vld [vmem:[%s348 + $0x3c0] sm:$0xff]
        %v1959 = vld [vmem:[%s348 + $0x3c8] sm:$0xff]
        %v1960 = vld [vmem:[%s348 + $0x3d0] sm:$0xff]
        %v1961 = vld [vmem:[%s348 + $0x3d8] sm:$0xff]
        %v1962 = vld [vmem:[%s348 + $0x3e0] sm:$0xff]
        %v1963 = vld [vmem:[%s348 + $0x3e8] sm:$0xff]
        %v1964 = vld [vmem:[%s348 + $0x3f0] sm:$0xff]
        %v1965 = vld [vmem:[%s348 + $0x3f8] sm:$0xff]
        %v1966 = vld [vmem:[%s348 + $0x400] sm:$0xff]
        %v1967 = vld [vmem:[%s348 + $0x408] sm:$0xff]
        %v1968 = vld [vmem:[%s348 + $0x410] sm:$0xff]
        %v1969 = vld [vmem:[%s348 + $0x418] sm:$0xff]
        %v1970 = vld [vmem:[%s348 + $0x420] sm:$0xff]
        %v1971 = vld [vmem:[%s348 + $0x428] sm:$0xff]
        %v1972 = vld [vmem:[%s348 + $0x430] sm:$0xff]
        %v1973 = vld [vmem:[%s348 + $0x438] sm:$0xff]
        %v1974 = vld [vmem:[%s348 + $0x440] sm:$0xff]
        %v1975 = vld [vmem:[%s348 + $0x448] sm:$0xff]
        %v1976 = vld [vmem:[%s348 + $0x450] sm:$0xff]
        %v1977 = vld [vmem:[%s348 + $0x458] sm:$0xff]
        %v1978 = vld [vmem:[%s348 + $0x460] sm:$0xff]
        %v1979 = vld [vmem:[%s348 + $0x468] sm:$0xff]
        %v1980 = vld [vmem:[%s348 + $0x470] sm:$0xff]
        %v1981 = vld [vmem:[%s348 + $0x478] sm:$0xff]
        %v1982 = vld [vmem:[%s348 + $0x480] sm:$0xff]
        %v1983 = vld [vmem:[%s348 + $0x488] sm:$0xff]
        %v1984 = vld [vmem:[%s348 + $0x490] sm:$0xff]
        %v1985 = vld [vmem:[%s348 + $0x498] sm:$0xff]
        %v1986 = vld [vmem:[%s348 + $0x4a0] sm:$0xff]
        %v1987 = vld [vmem:[%s348 + $0x4a8] sm:$0xff]
        %v1988 = vld [vmem:[%s348 + $0x4b0] sm:$0xff]
        %v1989 = vld [vmem:[%s348 + $0x4b8] sm:$0xff]
        %v1990 = vld [vmem:[%s348 + $0x4c0] sm:$0xff]
        %v1991 = vld [vmem:[%s348 + $0x4c8] sm:$0xff]
        %v1992 = vld [vmem:[%s348 + $0x4d0] sm:$0xff]
        %v1993 = vld [vmem:[%s348 + $0x4d8] sm:$0xff]
        %v1994 = vld [vmem:[%s348 + $0x4e0] sm:$0xff]
        %v1995 = vld [vmem:[%s348 + $0x4e8] sm:$0xff]
        %v1996 = vld [vmem:[%s348 + $0x4f0] sm:$0xff]
        %v1997 = vld [vmem:[%s348 + $0x4f8] sm:$0xff]
        %v1998 = vld [vmem:[%s348 + $0x500] sm:$0xff]
        %v1999 = vld [vmem:[%s348 + $0x508] sm:$0xff]
        %v2000 = vld [vmem:[%s348 + $0x510] sm:$0xff]
        %v2001 = vld [vmem:[%s348 + $0x518] sm:$0xff]
        %v2002 = vld [vmem:[%s348 + $0x520] sm:$0xff]
        %v2003 = vld [vmem:[%s348 + $0x528] sm:$0xff]
        %v2004 = vld [vmem:[%s348 + $0x530] sm:$0xff]
        %v2005 = vld [vmem:[%s348 + $0x538] sm:$0xff]
        %v2006 = vld [vmem:[%s348 + $0x540] sm:$0xff]
        %v2007 = vld [vmem:[%s348 + $0x548] sm:$0xff]
        %v2008 = vld [vmem:[%s348 + $0x550] sm:$0xff]
        %v2009 = vld [vmem:[%s348 + $0x558] sm:$0xff]
        %v2010 = vld [vmem:[%s348 + $0x560] sm:$0xff]
        %v2011 = vld [vmem:[%s348 + $0x568] sm:$0xff]
        %v2012 = vld [vmem:[%s348 + $0x570] sm:$0xff]
        %v2013 = vld [vmem:[%s348 + $0x578] sm:$0xff]
        %v2014 = vld [vmem:[%s348 + $0x580] sm:$0xff]
        %v2015 = vld [vmem:[%s348 + $0x588] sm:$0xff]
        %v2016 = vld [vmem:[%s348 + $0x590] sm:$0xff]
        %v2017 = vld [vmem:[%s348 + $0x598] sm:$0xff]
        %v2018 = vld [vmem:[%s348 + $0x5a0] sm:$0xff]
        %v2019 = vld [vmem:[%s348 + $0x5a8] sm:$0xff]
        %v2020 = vld [vmem:[%s348 + $0x5b0] sm:$0xff]
        %v2021 = vld [vmem:[%s348 + $0x5b8] sm:$0xff]
        %v2022 = vld [vmem:[%s348 + $0x5c0] sm:$0xff]
        %v2023 = vld [vmem:[%s348 + $0x5c8] sm:$0xff]
        %v2024 = vld [vmem:[%s348 + $0x5d0] sm:$0xff]
        %v2025 = vld [vmem:[%s348 + $0x5d8] sm:$0xff]
        %v2026 = vld [vmem:[%s348 + $0x5e0] sm:$0xff]
        %v2027 = vld [vmem:[%s348 + $0x5e8] sm:$0xff]
        %v2028 = vld [vmem:[%s348 + $0x5f0] sm:$0xff]
        %v2029 = vld [vmem:[%s348 + $0x5f8] sm:$0xff]
        %v2030 = vld [vmem:[%s348 + $0x600] sm:$0xff]
        %v2031 = vld [vmem:[%s348 + $0x608] sm:$0xff]
        %v2032 = vld [vmem:[%s348 + $0x610] sm:$0xff]
        %v2033 = vld [vmem:[%s348 + $0x618] sm:$0xff]
        %v2034 = vld [vmem:[%s348 + $0x620] sm:$0xff]
        %v2035 = vld [vmem:[%s348 + $0x628] sm:$0xff]
        %v2036 = vld [vmem:[%s348 + $0x630] sm:$0xff]
        %v2037 = vld [vmem:[%s348 + $0x638] sm:$0xff]
        %v2038 = vld [vmem:[%s348 + $0x640] sm:$0xff]
        %v2039 = vld [vmem:[%s348 + $0x648] sm:$0xff]
        %v2040 = vld [vmem:[%s348 + $0x650] sm:$0xff]
        %v2041 = vld [vmem:[%s348 + $0x658] sm:$0xff]
        %v2042 = vld [vmem:[%s348 + $0x660] sm:$0xff]
        %v2043 = vld [vmem:[%s348 + $0x668] sm:$0xff]
        %v2044 = vld [vmem:[%s348 + $0x670] sm:$0xff]
        %v2045 = vld [vmem:[%s348 + $0x678] sm:$0xff]
        %v2046 = vld [vmem:[%s348 + $0x680] sm:$0xff]
        %v2047 = vld [vmem:[%s348 + $0x688] sm:$0xff]
        %v2048 = vld [vmem:[%s348 + $0x690] sm:$0xff]
        %v2049 = vld [vmem:[%s348 + $0x698] sm:$0xff]
        %v2050 = vld [vmem:[%s348 + $0x6a0] sm:$0xff]
        %v2051 = vld [vmem:[%s348 + $0x6a8] sm:$0xff]
        %v2052 = vld [vmem:[%s348 + $0x6b0] sm:$0xff]
        %v2053 = vld [vmem:[%s348 + $0x6b8] sm:$0xff]
        %v2054 = vld [vmem:[%s348 + $0x6c0] sm:$0xff]
        %v2055 = vld [vmem:[%s348 + $0x6c8] sm:$0xff]
        %v2056 = vld [vmem:[%s348 + $0x6d0] sm:$0xff]
        %v2057 = vld [vmem:[%s348 + $0x6d8] sm:$0xff]
        %v2058 = vld [vmem:[%s348 + $0x6e0] sm:$0xff]
        %v2059 = vld [vmem:[%s348 + $0x6e8] sm:$0xff]
        %v2060 = vld [vmem:[%s348 + $0x6f0] sm:$0xff]
        %v2061 = vld [vmem:[%s348 + $0x6f8] sm:$0xff]
        %v2062 = vld [vmem:[%s348 + $0x700] sm:$0xff]
        %v2063 = vld [vmem:[%s348 + $0x708] sm:$0xff]
        %v2064 = vld [vmem:[%s348 + $0x710] sm:$0xff]
        %v2065 = vld [vmem:[%s348 + $0x718] sm:$0xff]
        %v2066 = vld [vmem:[%s348 + $0x720] sm:$0xff]
        %v2067 = vld [vmem:[%s348 + $0x728] sm:$0xff]
        %v2068 = vld [vmem:[%s348 + $0x730] sm:$0xff]
        %v2069 = vld [vmem:[%s348 + $0x738] sm:$0xff]
        %v2070 = vld [vmem:[%s348 + $0x740] sm:$0xff]
        %v2071 = vld [vmem:[%s348 + $0x748] sm:$0xff]
        %v2072 = vld [vmem:[%s348 + $0x750] sm:$0xff]
        %v2073 = vld [vmem:[%s348 + $0x758] sm:$0xff]
        %v2074 = vld [vmem:[%s348 + $0x760] sm:$0xff]
        %v2075 = vld [vmem:[%s348 + $0x768] sm:$0xff]
        %v2076 = vld [vmem:[%s348 + $0x770] sm:$0xff]
        %v2077 = vld [vmem:[%s348 + $0x778] sm:$0xff]
        %v2078 = vld [vmem:[%s348 + $0x780] sm:$0xff]
        %v2079 = vld [vmem:[%s348 + $0x788] sm:$0xff]
        %v2080 = vld [vmem:[%s348 + $0x790] sm:$0xff]
        %v2081 = vld [vmem:[%s348 + $0x798] sm:$0xff]
        %v2082 = vld [vmem:[%s348 + $0x7a0] sm:$0xff]
        %v2083 = vld [vmem:[%s348 + $0x7a8] sm:$0xff]
        %v2084 = vld [vmem:[%s348 + $0x7b0] sm:$0xff]
        %v2085 = vld [vmem:[%s348 + $0x7b8] sm:$0xff]
        %v2086 = vld [vmem:[%s348 + $0x7c0] sm:$0xff]
        %v2087 = vld [vmem:[%s348 + $0x7c8] sm:$0xff]
        %v2088 = vld [vmem:[%s348 + $0x7d0] sm:$0xff]
        %v2089 = vld [vmem:[%s348 + $0x7d8] sm:$0xff]
        %v2090 = vld [vmem:[%s348 + $0x7e0] sm:$0xff]
        %v2091 = vld [vmem:[%s348 + $0x7e8] sm:$0xff]
        %v2092 = vld [vmem:[%s348 + $0x7f0] sm:$0xff]
        %v2093 = vld [vmem:[%s348 + $0x7f8] sm:$0xff]
        %v2094 = vld [vmem:[%s348 + $0x800] sm:$0xff]
        %v2095 = vld [vmem:[%s348 + $0x808] sm:$0xff]
        %v2096 = vld [vmem:[%s348 + $0x810] sm:$0xff]
        %v2097 = vld [vmem:[%s348 + $0x818] sm:$0xff]
        %v2098 = vld [vmem:[%s348 + $0x820] sm:$0xff]
        %v2099 = vld [vmem:[%s348 + $0x828] sm:$0xff]
        %v2100 = vld [vmem:[%s348 + $0x830] sm:$0xff]
        %v2101 = vld [vmem:[%s348 + $0x838] sm:$0xff]
        %v2102 = vld [vmem:[%s348 + $0x840] sm:$0xff]
        %v2103 = vld [vmem:[%s348 + $0x848] sm:$0xff]
        %v2104 = vld [vmem:[%s348 + $0x850] sm:$0xff]
        %v2105 = vld [vmem:[%s348 + $0x858] sm:$0xff]
        %v2106 = vld [vmem:[%s348 + $0x860] sm:$0xff]
        %v2107 = vld [vmem:[%s348 + $0x868] sm:$0xff]
        %v2108 = vld [vmem:[%s348 + $0x870] sm:$0xff]
        %v2109 = vld [vmem:[%s348 + $0x878] sm:$0xff]
        %v2110 = vld [vmem:[%s348 + $0x880] sm:$0xff]
        %v2111 = vld [vmem:[%s348 + $0x888] sm:$0xff]
        %v2112 = vld [vmem:[%s348 + $0x890] sm:$0xff]
        %v2113 = vld [vmem:[%s348 + $0x898] sm:$0xff]
        %v2114 = vld [vmem:[%s348 + $0x8a0] sm:$0xff]
        %v2115 = vld [vmem:[%s348 + $0x8a8] sm:$0xff]
        %v2116 = vld [vmem:[%s348 + $0x8b0] sm:$0xff]
        %v2117 = vld [vmem:[%s348 + $0x8b8] sm:$0xff]
        %v2118 = vld [vmem:[%s348 + $0x8c0] sm:$0xff]
        %v2119 = vld [vmem:[%s348 + $0x8c8] sm:$0xff]
        %v2120 = vld [vmem:[%s348 + $0x8d0] sm:$0xff]
        %v2121 = vld [vmem:[%s348 + $0x8d8] sm:$0xff]
        %v2122 = vld [vmem:[%s348 + $0x8e0] sm:$0xff]
        %v2123 = vld [vmem:[%s348 + $0x8e8] sm:$0xff]
        %v2124 = vld [vmem:[%s348 + $0x8f0] sm:$0xff]
        %v2125 = vld [vmem:[%s348 + $0x8f8] sm:$0xff]
        %v2126 = vld [vmem:[%s348 + $0x900] sm:$0xff]
        %v2127 = vld [vmem:[%s348 + $0x908] sm:$0xff]
        %v2128 = vld [vmem:[%s348 + $0x910] sm:$0xff]
        %v2129 = vld [vmem:[%s348 + $0x918] sm:$0xff]
        %v2130 = vld [vmem:[%s348 + $0x920] sm:$0xff]
        %v2131 = vld [vmem:[%s348 + $0x928] sm:$0xff]
        %v2132 = vld [vmem:[%s348 + $0x930] sm:$0xff]
        %v2133 = vld [vmem:[%s348 + $0x938] sm:$0xff]
        %v2134 = vld [vmem:[%s348 + $0x940] sm:$0xff]
        %v2135 = vld [vmem:[%s348 + $0x948] sm:$0xff]
        %v2136 = vld [vmem:[%s348 + $0x950] sm:$0xff]
        %v2137 = vld [vmem:[%s348 + $0x958] sm:$0xff]
        %v2138 = vld [vmem:[%s348 + $0x960] sm:$0xff]
        %v2139 = vld [vmem:[%s348 + $0x968] sm:$0xff]
        %v2140 = vld [vmem:[%s348 + $0x970] sm:$0xff]
        %v2141 = vld [vmem:[%s348 + $0x978] sm:$0xff]
        %v2142 = vld [vmem:[%s348 + $0x980] sm:$0xff]
        %v2143 = vld [vmem:[%s348 + $0x988] sm:$0xff]
        %v2144 = vld [vmem:[%s348 + $0x990] sm:$0xff]
        %v2145 = vld [vmem:[%s348 + $0x998] sm:$0xff]
        %v2146 = vld [vmem:[%s348 + $0x9a0] sm:$0xff]
        %v2147 = vld [vmem:[%s348 + $0x9a8] sm:$0xff]
        %v2148 = vld [vmem:[%s348 + $0x9b0] sm:$0xff]
        %v2149 = vld [vmem:[%s348 + $0x9b8] sm:$0xff]
        %v2150 = vld [vmem:[%s348 + $0x9c0] sm:$0xff]
        %v2151 = vld [vmem:[%s348 + $0x9c8] sm:$0xff]
        %v2152 = vld [vmem:[%s348 + $0x9d0] sm:$0xff]
        %v2153 = vld [vmem:[%s348 + $0x9d8] sm:$0xff]
        %v2154 = vld [vmem:[%s348 + $0x9e0] sm:$0xff]
        %v2155 = vld [vmem:[%s348 + $0x9e8] sm:$0xff]
        %v2156 = vld [vmem:[%s348 + $0x9f0] sm:$0xff]
        %v2157 = vld [vmem:[%s348 + $0x9f8] sm:$0xff]
        %v2158 = vld [vmem:[%s348 + $0xa00] sm:$0xff]
        %v2159 = vld [vmem:[%s348 + $0xa08] sm:$0xff]
        %v2160 = vld [vmem:[%s348 + $0xa10] sm:$0xff]
        %v2161 = vld [vmem:[%s348 + $0xa18] sm:$0xff]
        %v2162 = vld [vmem:[%s348 + $0xa20] sm:$0xff]
        %v2163 = vld [vmem:[%s348 + $0xa28] sm:$0xff]
        %v2164 = vld [vmem:[%s348 + $0xa30] sm:$0xff]
        %v2165 = vld [vmem:[%s348 + $0xa38] sm:$0xff]
        %v2166 = vld [vmem:[%s348 + $0xa40] sm:$0xff]
        %v2167 = vld [vmem:[%s348 + $0xa48] sm:$0xff]
        %v2168 = vld [vmem:[%s348 + $0xa50] sm:$0xff]
        %v2169 = vld [vmem:[%s348 + $0xa58] sm:$0xff]
        %v2170 = vld [vmem:[%s348 + $0xa60] sm:$0xff]
        %v2171 = vld [vmem:[%s348 + $0xa68] sm:$0xff]
        %v2172 = vld [vmem:[%s348 + $0xa70] sm:$0xff]
        %v2173 = vld [vmem:[%s348 + $0xa78] sm:$0xff]
        %v2174 = vld [vmem:[%s348 + $0xa80] sm:$0xff]
        %v2175 = vld [vmem:[%s348 + $0xa88] sm:$0xff]
        %v2176 = vld [vmem:[%s348 + $0xa90] sm:$0xff]
        %v2177 = vld [vmem:[%s348 + $0xa98] sm:$0xff]
        %v2178 = vld [vmem:[%s348 + $0xaa0] sm:$0xff]
        %v2179 = vld [vmem:[%s348 + $0xaa8] sm:$0xff]
        %v2180 = vld [vmem:[%s348 + $0xab0] sm:$0xff]
        %v2181 = vld [vmem:[%s348 + $0xab8] sm:$0xff]
        %v2182 = vld [vmem:[%s348 + $0xac0] sm:$0xff]
        %v2183 = vld [vmem:[%s348 + $0xac8] sm:$0xff]
        %v2184 = vld [vmem:[%s348 + $0xad0] sm:$0xff]
        %v2185 = vld [vmem:[%s348 + $0xad8] sm:$0xff]
        %v2186 = vld [vmem:[%s348 + $0xae0] sm:$0xff]
        %v2187 = vld [vmem:[%s348 + $0xae8] sm:$0xff]
        %v2188 = vld [vmem:[%s348 + $0xaf0] sm:$0xff]
        %v2189 = vld [vmem:[%s348 + $0xaf8] sm:$0xff]
        %v2190 = vld [vmem:[%s348 + $0xb00] sm:$0xff]
        %v2191 = vld [vmem:[%s348 + $0xb08] sm:$0xff]
        %v2192 = vld [vmem:[%s348 + $0xb10] sm:$0xff]
        %v2193 = vld [vmem:[%s348 + $0xb18] sm:$0xff]
        %v2194 = vld [vmem:[%s348 + $0xb20] sm:$0xff]
        %v2195 = vld [vmem:[%s348 + $0xb28] sm:$0xff]
        %v2196 = vld [vmem:[%s348 + $0xb30] sm:$0xff]
        %v2197 = vld [vmem:[%s348 + $0xb38] sm:$0xff]
        %v2198 = vld [vmem:[%s348 + $0xb40] sm:$0xff]
        %v2199 = vld [vmem:[%s348 + $0xb48] sm:$0xff]
        %v2200 = vld [vmem:[%s348 + $0xb50] sm:$0xff]
        %v2201 = vld [vmem:[%s348 + $0xb58] sm:$0xff]
        %v2202 = vld [vmem:[%s348 + $0xb60] sm:$0xff]
        %v2203 = vld [vmem:[%s348 + $0xb68] sm:$0xff]
        %v2204 = vld [vmem:[%s348 + $0xb70] sm:$0xff]
        %v2205 = vld [vmem:[%s348 + $0xb78] sm:$0xff]
        %v2206 = vld [vmem:[%s348 + $0xb80] sm:$0xff]
        %v2207 = vld [vmem:[%s348 + $0xb88] sm:$0xff]
        %v2208 = vld [vmem:[%s348 + $0xb90] sm:$0xff]
        %v2209 = vld [vmem:[%s348 + $0xb98] sm:$0xff]
        %v2210 = vld [vmem:[%s348 + $0xba0] sm:$0xff]
        %v2211 = vld [vmem:[%s348 + $0xba8] sm:$0xff]
        %v2212 = vld [vmem:[%s348 + $0xbb0] sm:$0xff]
        %v2213 = vld [vmem:[%s348 + $0xbb8] sm:$0xff]
        %v2214 = vld [vmem:[%s348 + $0xbc0] sm:$0xff]
        %v2215 = vld [vmem:[%s348 + $0xbc8] sm:$0xff]
        %v2216 = vld [vmem:[%s348 + $0xbd0] sm:$0xff]
        %v2217 = vld [vmem:[%s348 + $0xbd8] sm:$0xff]
        %v2218 = vld [vmem:[%s348 + $0xbe0] sm:$0xff]
        %v2219 = vld [vmem:[%s348 + $0xbe8] sm:$0xff]
        %v2220 = vld [vmem:[%s348 + $0xbf0] sm:$0xff]
        %v2221 = vld [vmem:[%s348 + $0xbf8] sm:$0xff]
        %v2222 = vld [vmem:[%s348 + $0xc00] sm:$0xff]
        %v2223 = vld [vmem:[%s348 + $0xc08] sm:$0xff]
        %v2224 = vld [vmem:[%s348 + $0xc10] sm:$0xff]
        %v2225 = vld [vmem:[%s348 + $0xc18] sm:$0xff]
        %v2226 = vld [vmem:[%s348 + $0xc20] sm:$0xff]
        %v2227 = vld [vmem:[%s348 + $0xc28] sm:$0xff]
        %v2228 = vld [vmem:[%s348 + $0xc30] sm:$0xff]
        %v2229 = vld [vmem:[%s348 + $0xc38] sm:$0xff]
        %v2230 = vld [vmem:[%s348 + $0xc40] sm:$0xff]
        %v2231 = vld [vmem:[%s348 + $0xc48] sm:$0xff]
        %v2232 = vld [vmem:[%s348 + $0xc50] sm:$0xff]
        %v2233 = vld [vmem:[%s348 + $0xc58] sm:$0xff]
        %v2234 = vld [vmem:[%s348 + $0xc60] sm:$0xff]
        %v2235 = vld [vmem:[%s348 + $0xc68] sm:$0xff]
        %v2236 = vld [vmem:[%s348 + $0xc70] sm:$0xff]
        %v2237 = vld [vmem:[%s348 + $0xc78] sm:$0xff]
        %v2238 = vld [vmem:[%s348 + $0xc80] sm:$0xff]
        %v2239 = vld [vmem:[%s348 + $0xc88] sm:$0xff]
        %v2240 = vld [vmem:[%s348 + $0xc90] sm:$0xff]
        %v2241 = vld [vmem:[%s348 + $0xc98] sm:$0xff]
        %v2242 = vld [vmem:[%s348 + $0xca0] sm:$0xff]
        %v2243 = vld [vmem:[%s348 + $0xca8] sm:$0xff]
        %v2244 = vld [vmem:[%s348 + $0xcb0] sm:$0xff]
        %v2245 = vld [vmem:[%s348 + $0xcb8] sm:$0xff]
        %v2246 = vld [vmem:[%s348 + $0xcc0] sm:$0xff]
        %v2247 = vld [vmem:[%s348 + $0xcc8] sm:$0xff]
        %v2248 = vld [vmem:[%s348 + $0xcd0] sm:$0xff]
        %v2249 = vld [vmem:[%s348 + $0xcd8] sm:$0xff]
        %v2250 = vld [vmem:[%s348 + $0xce0] sm:$0xff]
        %v2251 = vld [vmem:[%s348 + $0xce8] sm:$0xff]
        %v2252 = vld [vmem:[%s348 + $0xcf0] sm:$0xff]
        %v2253 = vld [vmem:[%s348 + $0xcf8] sm:$0xff]
        %v2254 = vld [vmem:[%s348 + $0xd00] sm:$0xff]
        %v2255 = vld [vmem:[%s348 + $0xd08] sm:$0xff]
        %v2256 = vld [vmem:[%s348 + $0xd10] sm:$0xff]
        %v2257 = vld [vmem:[%s348 + $0xd18] sm:$0xff]
        %v2258 = vld [vmem:[%s348 + $0xd20] sm:$0xff]
        %v2259 = vld [vmem:[%s348 + $0xd28] sm:$0xff]
        %v2260 = vld [vmem:[%s348 + $0xd30] sm:$0xff]
        %v2261 = vld [vmem:[%s348 + $0xd38] sm:$0xff]
        %v2262 = vld [vmem:[%s348 + $0xd40] sm:$0xff]
        %v2263 = vld [vmem:[%s348 + $0xd48] sm:$0xff]
        %v2264 = vld [vmem:[%s348 + $0xd50] sm:$0xff]
        %v2265 = vld [vmem:[%s348 + $0xd58] sm:$0xff]
        %v2266 = vld [vmem:[%s348 + $0xd60] sm:$0xff]
        %v2267 = vld [vmem:[%s348 + $0xd68] sm:$0xff]
        %v2268 = vld [vmem:[%s348 + $0xd70] sm:$0xff]
        %v2269 = vld [vmem:[%s348 + $0xd78] sm:$0xff]
        %v2270 = vld [vmem:[%s348 + $0xd80] sm:$0xff]
        %v2271 = vld [vmem:[%s348 + $0xd88] sm:$0xff]
        %v2272 = vld [vmem:[%s348 + $0xd90] sm:$0xff]
        %v2273 = vld [vmem:[%s348 + $0xd98] sm:$0xff]
        %v2274 = vld [vmem:[%s348 + $0xda0] sm:$0xff]
        %v2275 = vld [vmem:[%s348 + $0xda8] sm:$0xff]
        %v2276 = vld [vmem:[%s348 + $0xdb0] sm:$0xff]
        %v2277 = vld [vmem:[%s348 + $0xdb8] sm:$0xff]
        %v2278 = vld [vmem:[%s348 + $0xdc0] sm:$0xff]
        %v2279 = vld [vmem:[%s348 + $0xdc8] sm:$0xff]
        %v2280 = vld [vmem:[%s348 + $0xdd0] sm:$0xff]
        %v2281 = vld [vmem:[%s348 + $0xdd8] sm:$0xff]
        %v2282 = vld [vmem:[%s348 + $0xde0] sm:$0xff]
        %v2283 = vld [vmem:[%s348 + $0xde8] sm:$0xff]
        %v2284 = vld [vmem:[%s348 + $0xdf0] sm:$0xff]
        %v2285 = vld [vmem:[%s348 + $0xdf8] sm:$0xff]
        %v2286 = vld [vmem:[%s348 + $0xe00] sm:$0xff]
        %v2287 = vld [vmem:[%s348 + $0xe08] sm:$0xff]
        %v2288 = vld [vmem:[%s348 + $0xe10] sm:$0xff]
        %v2289 = vld [vmem:[%s348 + $0xe18] sm:$0xff]
        %v2290 = vld [vmem:[%s348 + $0xe20] sm:$0xff]
        %v2291 = vld [vmem:[%s348 + $0xe28] sm:$0xff]
        %v2292 = vld [vmem:[%s348 + $0xe30] sm:$0xff]
        %v2293 = vld [vmem:[%s348 + $0xe38] sm:$0xff]
        %v2294 = vld [vmem:[%s348 + $0xe40] sm:$0xff]
        %v2295 = vld [vmem:[%s348 + $0xe48] sm:$0xff]
        %v2296 = vld [vmem:[%s348 + $0xe50] sm:$0xff]
        %v2297 = vld [vmem:[%s348 + $0xe58] sm:$0xff]
        %v2298 = vld [vmem:[%s348 + $0xe60] sm:$0xff]
        %v2299 = vld [vmem:[%s348 + $0xe68] sm:$0xff]
        %v2300 = vld [vmem:[%s348 + $0xe70] sm:$0xff]
        %v2301 = vld [vmem:[%s348 + $0xe78] sm:$0xff]
        %v2302 = vld [vmem:[%s348 + $0xe80] sm:$0xff]
        %v2303 = vld [vmem:[%s348 + $0xe88] sm:$0xff]
        %v2304 = vld [vmem:[%s348 + $0xe90] sm:$0xff]
        %v2305 = vld [vmem:[%s348 + $0xe98] sm:$0xff]
        %v2306 = vld [vmem:[%s348 + $0xea0] sm:$0xff]
        %v2307 = vld [vmem:[%s348 + $0xea8] sm:$0xff]
        %v2308 = vld [vmem:[%s348 + $0xeb0] sm:$0xff]
        %v2309 = vld [vmem:[%s348 + $0xeb8] sm:$0xff]
        %v2310 = vld [vmem:[%s348 + $0xec0] sm:$0xff]
        %v2311 = vld [vmem:[%s348 + $0xec8] sm:$0xff]
        %v2312 = vld [vmem:[%s348 + $0xed0] sm:$0xff]
        %v2313 = vld [vmem:[%s348 + $0xed8] sm:$0xff]
        %v2314 = vld [vmem:[%s348 + $0xee0] sm:$0xff]
        %v2315 = vld [vmem:[%s348 + $0xee8] sm:$0xff]
        %v2316 = vld [vmem:[%s348 + $0xef0] sm:$0xff]
        %v2317 = vld [vmem:[%s348 + $0xef8] sm:$0xff]
        %v2318 = vld [vmem:[%s348 + $0xf00] sm:$0xff]
        %v2319 = vld [vmem:[%s348 + $0xf08] sm:$0xff]
        %v2320 = vld [vmem:[%s348 + $0xf10] sm:$0xff]
        %v2321 = vld [vmem:[%s348 + $0xf18] sm:$0xff]
        %v2322 = vld [vmem:[%s348 + $0xf20] sm:$0xff]
        %v2323 = vld [vmem:[%s348 + $0xf28] sm:$0xff]
        %v2324 = vld [vmem:[%s348 + $0xf30] sm:$0xff]
        %v2325 = vld [vmem:[%s348 + $0xf38] sm:$0xff]
        %v2326 = vld [vmem:[%s348 + $0xf40] sm:$0xff]
        %v2327 = vld [vmem:[%s348 + $0xf48] sm:$0xff]
        %v2328 = vld [vmem:[%s348 + $0xf50] sm:$0xff]
        %v2329 = vld [vmem:[%s348 + $0xf58] sm:$0xff]
        %v2330 = vld [vmem:[%s348 + $0xf60] sm:$0xff]
        %v2331 = vld [vmem:[%s348 + $0xf68] sm:$0xff]
        %v2332 = vld [vmem:[%s348 + $0xf70] sm:$0xff]
        %v2333 = vld [vmem:[%s348 + $0xf78] sm:$0xff]
        %v2334 = vld [vmem:[%s348 + $0xf80] sm:$0xff]
        %v2335 = vld [vmem:[%s348 + $0xf88] sm:$0xff]
        %v2336 = vld [vmem:[%s348 + $0xf90] sm:$0xff]
        %v2337 = vld [vmem:[%s348 + $0xf98] sm:$0xff]
        %v2338 = vld [vmem:[%s348 + $0xfa0] sm:$0xff]
        %v2339 = vld [vmem:[%s348 + $0xfa8] sm:$0xff]
        %v2340 = vld [vmem:[%s348 + $0xfb0] sm:$0xff]
        %v2341 = vld [vmem:[%s348 + $0xfb8] sm:$0xff]
        %v2342 = vld [vmem:[%s348 + $0xfc0] sm:$0xff]
        %v2343 = vld [vmem:[%s348 + $0xfc8] sm:$0xff]
        %v2344 = vld [vmem:[%s348 + $0xfd0] sm:$0xff]
        %v2345 = vld [vmem:[%s348 + $0xfd8] sm:$0xff]
        %v2346 = vld [vmem:[%s348 + $0xfe0] sm:$0xff]
        %v2347 = vld [vmem:[%s348 + $0xfe8] sm:$0xff]
        %v2348 = vld [vmem:[%s348 + $0xff0] sm:$0xff]
        %v2349 = vld [vmem:[%s348 + $0xff8] sm:$0xff]
        %v2862 = vunpack.c.l.b16 %v1838
        %v2863 = vunpack.c.h.b16 %v1838
        %v2864 = vunpack.c.l.b16 %v1839
        %v2865 = vunpack.c.h.b16 %v1839
        %v2866 = vunpack.c.l.b16 %v1840
        %v2867 = vunpack.c.h.b16 %v1840
        %v2868 = vunpack.c.l.b16 %v1841
        %v2869 = vunpack.c.h.b16 %v1841
        %v2870 = vunpack.c.l.b16 %v1842
        %v2871 = vunpack.c.h.b16 %v1842
        %v2872 = vunpack.c.l.b16 %v1843
        %v2873 = vunpack.c.h.b16 %v1843
        %v2874 = vunpack.c.l.b16 %v1844
        %v2875 = vunpack.c.h.b16 %v1844
        %v2876 = vunpack.c.l.b16 %v1845
        %v2877 = vunpack.c.h.b16 %v1845
        %v2878 = vunpack.c.l.b16 %v1846
        %v2879 = vunpack.c.h.b16 %v1846
        %v2880 = vunpack.c.l.b16 %v1847
        %v2881 = vunpack.c.h.b16 %v1847
        %v2882 = vunpack.c.l.b16 %v1848
        %v2883 = vunpack.c.h.b16 %v1848
        %v2884 = vunpack.c.l.b16 %v1849
        %v2885 = vunpack.c.h.b16 %v1849
        %v2886 = vunpack.c.l.b16 %v1850
        %v2887 = vunpack.c.h.b16 %v1850
        %v2888 = vunpack.c.l.b16 %v1851
        %v2889 = vunpack.c.h.b16 %v1851
        %v2890 = vunpack.c.l.b16 %v1852
        %v2891 = vunpack.c.h.b16 %v1852
        %v2892 = vunpack.c.l.b16 %v1853
        %v2893 = vunpack.c.h.b16 %v1853
        %v2894 = vunpack.c.l.b16 %v1854
        %v2895 = vunpack.c.h.b16 %v1854
        %v2896 = vunpack.c.l.b16 %v1855
        %v2897 = vunpack.c.h.b16 %v1855
        %v2898 = vunpack.c.l.b16 %v1856
        %v2899 = vunpack.c.h.b16 %v1856
        %v2900 = vunpack.c.l.b16 %v1857
        %v2901 = vunpack.c.h.b16 %v1857
        %v2902 = vunpack.c.l.b16 %v1858
        %v2903 = vunpack.c.h.b16 %v1858
        %v2904 = vunpack.c.l.b16 %v1859
        %v2905 = vunpack.c.h.b16 %v1859
        %v2906 = vunpack.c.l.b16 %v1860
        %v2907 = vunpack.c.h.b16 %v1860
        %v2908 = vunpack.c.l.b16 %v1861
        %v2909 = vunpack.c.h.b16 %v1861
        %v2910 = vunpack.c.l.b16 %v1862
        %v2911 = vunpack.c.h.b16 %v1862
        %v2912 = vunpack.c.l.b16 %v1863
        %v2913 = vunpack.c.h.b16 %v1863
        %v2914 = vunpack.c.l.b16 %v1864
        %v2915 = vunpack.c.h.b16 %v1864
        %v2916 = vunpack.c.l.b16 %v1865
        %v2917 = vunpack.c.h.b16 %v1865
        %v2918 = vunpack.c.l.b16 %v1866
        %v2919 = vunpack.c.h.b16 %v1866
        %v2920 = vunpack.c.l.b16 %v1867
        %v2921 = vunpack.c.h.b16 %v1867
        %v2922 = vunpack.c.l.b16 %v1868
        %v2923 = vunpack.c.h.b16 %v1868
        %v2924 = vunpack.c.l.b16 %v1869
        %v2925 = vunpack.c.h.b16 %v1869
        %v2926 = vunpack.c.l.b16 %v1870
        %v2927 = vunpack.c.h.b16 %v1870
        %v2928 = vunpack.c.l.b16 %v1871
        %v2929 = vunpack.c.h.b16 %v1871
        %v2930 = vunpack.c.l.b16 %v1872
        %v2931 = vunpack.c.h.b16 %v1872
        %v2932 = vunpack.c.l.b16 %v1873
        %v2933 = vunpack.c.h.b16 %v1873
        %v2934 = vunpack.c.l.b16 %v1874
        %v2935 = vunpack.c.h.b16 %v1874
        %v2936 = vunpack.c.l.b16 %v1875
        %v2937 = vunpack.c.h.b16 %v1875
        %v2938 = vunpack.c.l.b16 %v1876
        %v2939 = vunpack.c.h.b16 %v1876
        %v2940 = vunpack.c.l.b16 %v1877
        %v2941 = vunpack.c.h.b16 %v1877
        %v2942 = vunpack.c.l.b16 %v1878
        %v2943 = vunpack.c.h.b16 %v1878
        %v2944 = vunpack.c.l.b16 %v1879
        %v2945 = vunpack.c.h.b16 %v1879
        %v2946 = vunpack.c.l.b16 %v1880
        %v2947 = vunpack.c.h.b16 %v1880
        %v2948 = vunpack.c.l.b16 %v1881
        %v2949 = vunpack.c.h.b16 %v1881
        %v2950 = vunpack.c.l.b16 %v1882
        %v2951 = vunpack.c.h.b16 %v1882
        %v2952 = vunpack.c.l.b16 %v1883
        %v2953 = vunpack.c.h.b16 %v1883
        %v2954 = vunpack.c.l.b16 %v1884
        %v2955 = vunpack.c.h.b16 %v1884
        %v2956 = vunpack.c.l.b16 %v1885
        %v2957 = vunpack.c.h.b16 %v1885
        %v2958 = vunpack.c.l.b16 %v1886
        %v2959 = vunpack.c.h.b16 %v1886
        %v2960 = vunpack.c.l.b16 %v1887
        %v2961 = vunpack.c.h.b16 %v1887
        %v2962 = vunpack.c.l.b16 %v1888
        %v2963 = vunpack.c.h.b16 %v1888
        %v2964 = vunpack.c.l.b16 %v1889
        %v2965 = vunpack.c.h.b16 %v1889
        %v2966 = vunpack.c.l.b16 %v1890
        %v2967 = vunpack.c.h.b16 %v1890
        %v2968 = vunpack.c.l.b16 %v1891
        %v2969 = vunpack.c.h.b16 %v1891
        %v2970 = vunpack.c.l.b16 %v1892
        %v2971 = vunpack.c.h.b16 %v1892
        %v2972 = vunpack.c.l.b16 %v1893
        %v2973 = vunpack.c.h.b16 %v1893
        %v2974 = vunpack.c.l.b16 %v1894
        %v2975 = vunpack.c.h.b16 %v1894
        %v2976 = vunpack.c.l.b16 %v1895
        %v2977 = vunpack.c.h.b16 %v1895
        %v2978 = vunpack.c.l.b16 %v1896
        %v2979 = vunpack.c.h.b16 %v1896
        %v2980 = vunpack.c.l.b16 %v1897
        %v2981 = vunpack.c.h.b16 %v1897
        %v2982 = vunpack.c.l.b16 %v1898
        %v2983 = vunpack.c.h.b16 %v1898
        %v2984 = vunpack.c.l.b16 %v1899
        %v2985 = vunpack.c.h.b16 %v1899
        %v2986 = vunpack.c.l.b16 %v1900
        %v2987 = vunpack.c.h.b16 %v1900
        %v2988 = vunpack.c.l.b16 %v1901
        %v2989 = vunpack.c.h.b16 %v1901
        %v2990 = vunpack.c.l.b16 %v1902
        %v2991 = vunpack.c.h.b16 %v1902
        %v2992 = vunpack.c.l.b16 %v1903
        %v2993 = vunpack.c.h.b16 %v1903
        %v2994 = vunpack.c.l.b16 %v1904
        %v2995 = vunpack.c.h.b16 %v1904
        %v2996 = vunpack.c.l.b16 %v1905
        %v2997 = vunpack.c.h.b16 %v1905
        %v2998 = vunpack.c.l.b16 %v1906
        %v2999 = vunpack.c.h.b16 %v1906
        %v3000 = vunpack.c.l.b16 %v1907
        %v3001 = vunpack.c.h.b16 %v1907
        %v3002 = vunpack.c.l.b16 %v1908
        %v3003 = vunpack.c.h.b16 %v1908
        %v3004 = vunpack.c.l.b16 %v1909
        %v3005 = vunpack.c.h.b16 %v1909
        %v3006 = vunpack.c.l.b16 %v1910
        %v3007 = vunpack.c.h.b16 %v1910
        %v3008 = vunpack.c.l.b16 %v1911
        %v3009 = vunpack.c.h.b16 %v1911
        %v3010 = vunpack.c.l.b16 %v1912
        %v3011 = vunpack.c.h.b16 %v1912
        %v3012 = vunpack.c.l.b16 %v1913
        %v3013 = vunpack.c.h.b16 %v1913
        %v3014 = vunpack.c.l.b16 %v1914
        %v3015 = vunpack.c.h.b16 %v1914
        %v3016 = vunpack.c.l.b16 %v1915
        %v3017 = vunpack.c.h.b16 %v1915
        %v3018 = vunpack.c.l.b16 %v1916
        %v3019 = vunpack.c.h.b16 %v1916
        %v3020 = vunpack.c.l.b16 %v1917
        %v3021 = vunpack.c.h.b16 %v1917
        %v3022 = vunpack.c.l.b16 %v1918
        %v3023 = vunpack.c.h.b16 %v1918
        %v3024 = vunpack.c.l.b16 %v1919
        %v3025 = vunpack.c.h.b16 %v1919
        %v3026 = vunpack.c.l.b16 %v1920
        %v3027 = vunpack.c.h.b16 %v1920
        %v3028 = vunpack.c.l.b16 %v1921
        %v3029 = vunpack.c.h.b16 %v1921
        %v3030 = vunpack.c.l.b16 %v1922
        %v3031 = vunpack.c.h.b16 %v1922
        %v3032 = vunpack.c.l.b16 %v1923
        %v3033 = vunpack.c.h.b16 %v1923
        %v3034 = vunpack.c.l.b16 %v1924
        %v3035 = vunpack.c.h.b16 %v1924
        %v3036 = vunpack.c.l.b16 %v1925
        %v3037 = vunpack.c.h.b16 %v1925
        %v3038 = vunpack.c.l.b16 %v1926
        %v3039 = vunpack.c.h.b16 %v1926
        %v3040 = vunpack.c.l.b16 %v1927
        %v3041 = vunpack.c.h.b16 %v1927
        %v3042 = vunpack.c.l.b16 %v1928
        %v3043 = vunpack.c.h.b16 %v1928
        %v3044 = vunpack.c.l.b16 %v1929
        %v3045 = vunpack.c.h.b16 %v1929
        %v3046 = vunpack.c.l.b16 %v1930
        %v3047 = vunpack.c.h.b16 %v1930
        %v3048 = vunpack.c.l.b16 %v1931
        %v3049 = vunpack.c.h.b16 %v1931
        %v3050 = vunpack.c.l.b16 %v1932
        %v3051 = vunpack.c.h.b16 %v1932
        %v3052 = vunpack.c.l.b16 %v1933
        %v3053 = vunpack.c.h.b16 %v1933
        %v3054 = vunpack.c.l.b16 %v1934
        %v3055 = vunpack.c.h.b16 %v1934
        %v3056 = vunpack.c.l.b16 %v1935
        %v3057 = vunpack.c.h.b16 %v1935
        %v3058 = vunpack.c.l.b16 %v1936
        %v3059 = vunpack.c.h.b16 %v1936
        %v3060 = vunpack.c.l.b16 %v1937
        %v3061 = vunpack.c.h.b16 %v1937
        %v3062 = vunpack.c.l.b16 %v1938
        %v3063 = vunpack.c.h.b16 %v1938
        %v3064 = vunpack.c.l.b16 %v1939
        %v3065 = vunpack.c.h.b16 %v1939
        %v3066 = vunpack.c.l.b16 %v1940
        %v3067 = vunpack.c.h.b16 %v1940
        %v3068 = vunpack.c.l.b16 %v1941
        %v3069 = vunpack.c.h.b16 %v1941
        %v3070 = vunpack.c.l.b16 %v1942
        %v3071 = vunpack.c.h.b16 %v1942
        %v3072 = vunpack.c.l.b16 %v1943
        %v3073 = vunpack.c.h.b16 %v1943
        %v3074 = vunpack.c.l.b16 %v1944
        %v3075 = vunpack.c.h.b16 %v1944
        %v3076 = vunpack.c.l.b16 %v1945
        %v3077 = vunpack.c.h.b16 %v1945
        %v3078 = vunpack.c.l.b16 %v1946
        %v3079 = vunpack.c.h.b16 %v1946
        %v3080 = vunpack.c.l.b16 %v1947
        %v3081 = vunpack.c.h.b16 %v1947
        %v3082 = vunpack.c.l.b16 %v1948
        %v3083 = vunpack.c.h.b16 %v1948
        %v3084 = vunpack.c.l.b16 %v1949
        %v3085 = vunpack.c.h.b16 %v1949
        %v3086 = vunpack.c.l.b16 %v1950
        %v3087 = vunpack.c.h.b16 %v1950
        %v3088 = vunpack.c.l.b16 %v1951
        %v3089 = vunpack.c.h.b16 %v1951
        %v3090 = vunpack.c.l.b16 %v1952
        %v3091 = vunpack.c.h.b16 %v1952
        %v3092 = vunpack.c.l.b16 %v1953
        %v3093 = vunpack.c.h.b16 %v1953
        %v3094 = vunpack.c.l.b16 %v1954
        %v3095 = vunpack.c.h.b16 %v1954
        %v3096 = vunpack.c.l.b16 %v1955
        %v3097 = vunpack.c.h.b16 %v1955
        %v3098 = vunpack.c.l.b16 %v1956
        %v3099 = vunpack.c.h.b16 %v1956
        %v3100 = vunpack.c.l.b16 %v1957
        %v3101 = vunpack.c.h.b16 %v1957
        %v3102 = vunpack.c.l.b16 %v1958
        %v3103 = vunpack.c.h.b16 %v1958
        %v3104 = vunpack.c.l.b16 %v1959
        %v3105 = vunpack.c.h.b16 %v1959
        %v3106 = vunpack.c.l.b16 %v1960
        %v3107 = vunpack.c.h.b16 %v1960
        %v3108 = vunpack.c.l.b16 %v1961
        %v3109 = vunpack.c.h.b16 %v1961
        %v3110 = vunpack.c.l.b16 %v1962
        %v3111 = vunpack.c.h.b16 %v1962
        %v3112 = vunpack.c.l.b16 %v1963
        %v3113 = vunpack.c.h.b16 %v1963
        %v3114 = vunpack.c.l.b16 %v1964
        %v3115 = vunpack.c.h.b16 %v1964
        %v3116 = vunpack.c.l.b16 %v1965
        %v3117 = vunpack.c.h.b16 %v1965
        %v3118 = vunpack.c.l.b16 %v1966
        %v3119 = vunpack.c.h.b16 %v1966
        %v3120 = vunpack.c.l.b16 %v1967
        %v3121 = vunpack.c.h.b16 %v1967
        %v3122 = vunpack.c.l.b16 %v1968
        %v3123 = vunpack.c.h.b16 %v1968
        %v3124 = vunpack.c.l.b16 %v1969
        %v3125 = vunpack.c.h.b16 %v1969
        %v3126 = vunpack.c.l.b16 %v1970
        %v3127 = vunpack.c.h.b16 %v1970
        %v3128 = vunpack.c.l.b16 %v1971
        %v3129 = vunpack.c.h.b16 %v1971
        %v3130 = vunpack.c.l.b16 %v1972
        %v3131 = vunpack.c.h.b16 %v1972
        %v3132 = vunpack.c.l.b16 %v1973
        %v3133 = vunpack.c.h.b16 %v1973
        %v3134 = vunpack.c.l.b16 %v1974
        %v3135 = vunpack.c.h.b16 %v1974
        %v3136 = vunpack.c.l.b16 %v1975
        %v3137 = vunpack.c.h.b16 %v1975
        %v3138 = vunpack.c.l.b16 %v1976
        %v3139 = vunpack.c.h.b16 %v1976
        %v3140 = vunpack.c.l.b16 %v1977
        %v3141 = vunpack.c.h.b16 %v1977
        %v3142 = vunpack.c.l.b16 %v1978
        %v3143 = vunpack.c.h.b16 %v1978
        %v3144 = vunpack.c.l.b16 %v1979
        %v3145 = vunpack.c.h.b16 %v1979
        %v3146 = vunpack.c.l.b16 %v1980
        %v3147 = vunpack.c.h.b16 %v1980
        %v3148 = vunpack.c.l.b16 %v1981
        %v3149 = vunpack.c.h.b16 %v1981
        %v3150 = vunpack.c.l.b16 %v1982
        %v3151 = vunpack.c.h.b16 %v1982
        %v3152 = vunpack.c.l.b16 %v1983
        %v3153 = vunpack.c.h.b16 %v1983
        %v3154 = vunpack.c.l.b16 %v1984
        %v3155 = vunpack.c.h.b16 %v1984
        %v3156 = vunpack.c.l.b16 %v1985
        %v3157 = vunpack.c.h.b16 %v1985
        %v3158 = vunpack.c.l.b16 %v1986
        %v3159 = vunpack.c.h.b16 %v1986
        %v3160 = vunpack.c.l.b16 %v1987
        %v3161 = vunpack.c.h.b16 %v1987
        %v3162 = vunpack.c.l.b16 %v1988
        %v3163 = vunpack.c.h.b16 %v1988
        %v3164 = vunpack.c.l.b16 %v1989
        %v3165 = vunpack.c.h.b16 %v1989
        %v3166 = vunpack.c.l.b16 %v1990
        %v3167 = vunpack.c.h.b16 %v1990
        %v3168 = vunpack.c.l.b16 %v1991
        %v3169 = vunpack.c.h.b16 %v1991
        %v3170 = vunpack.c.l.b16 %v1992
        %v3171 = vunpack.c.h.b16 %v1992
        %v3172 = vunpack.c.l.b16 %v1993
        %v3173 = vunpack.c.h.b16 %v1993
        %v3174 = vunpack.c.l.b16 %v1994
        %v3175 = vunpack.c.h.b16 %v1994
        %v3176 = vunpack.c.l.b16 %v1995
        %v3177 = vunpack.c.h.b16 %v1995
        %v3178 = vunpack.c.l.b16 %v1996
        %v3179 = vunpack.c.h.b16 %v1996
        %v3180 = vunpack.c.l.b16 %v1997
        %v3181 = vunpack.c.h.b16 %v1997
        %v3182 = vunpack.c.l.b16 %v1998
        %v3183 = vunpack.c.h.b16 %v1998
        %v3184 = vunpack.c.l.b16 %v1999
        %v3185 = vunpack.c.h.b16 %v1999
        %v3186 = vunpack.c.l.b16 %v2000
        %v3187 = vunpack.c.h.b16 %v2000
        %v3188 = vunpack.c.l.b16 %v2001
        %v3189 = vunpack.c.h.b16 %v2001
        %v3190 = vunpack.c.l.b16 %v2002
        %v3191 = vunpack.c.h.b16 %v2002
        %v3192 = vunpack.c.l.b16 %v2003
        %v3193 = vunpack.c.h.b16 %v2003
        %v3194 = vunpack.c.l.b16 %v2004
        %v3195 = vunpack.c.h.b16 %v2004
        %v3196 = vunpack.c.l.b16 %v2005
        %v3197 = vunpack.c.h.b16 %v2005
        %v3198 = vunpack.c.l.b16 %v2006
        %v3199 = vunpack.c.h.b16 %v2006
        %v3200 = vunpack.c.l.b16 %v2007
        %v3201 = vunpack.c.h.b16 %v2007
        %v3202 = vunpack.c.l.b16 %v2008
        %v3203 = vunpack.c.h.b16 %v2008
        %v3204 = vunpack.c.l.b16 %v2009
        %v3205 = vunpack.c.h.b16 %v2009
        %v3206 = vunpack.c.l.b16 %v2010
        %v3207 = vunpack.c.h.b16 %v2010
        %v3208 = vunpack.c.l.b16 %v2011
        %v3209 = vunpack.c.h.b16 %v2011
        %v3210 = vunpack.c.l.b16 %v2012
        %v3211 = vunpack.c.h.b16 %v2012
        %v3212 = vunpack.c.l.b16 %v2013
        %v3213 = vunpack.c.h.b16 %v2013
        %v3214 = vunpack.c.l.b16 %v2014
        %v3215 = vunpack.c.h.b16 %v2014
        %v3216 = vunpack.c.l.b16 %v2015
        %v3217 = vunpack.c.h.b16 %v2015
        %v3218 = vunpack.c.l.b16 %v2016
        %v3219 = vunpack.c.h.b16 %v2016
        %v3220 = vunpack.c.l.b16 %v2017
        %v3221 = vunpack.c.h.b16 %v2017
        %v3222 = vunpack.c.l.b16 %v2018
        %v3223 = vunpack.c.h.b16 %v2018
        %v3224 = vunpack.c.l.b16 %v2019
        %v3225 = vunpack.c.h.b16 %v2019
        %v3226 = vunpack.c.l.b16 %v2020
        %v3227 = vunpack.c.h.b16 %v2020
        %v3228 = vunpack.c.l.b16 %v2021
        %v3229 = vunpack.c.h.b16 %v2021
        %v3230 = vunpack.c.l.b16 %v2022
        %v3231 = vunpack.c.h.b16 %v2022
        %v3232 = vunpack.c.l.b16 %v2023
        %v3233 = vunpack.c.h.b16 %v2023
        %v3234 = vunpack.c.l.b16 %v2024
        %v3235 = vunpack.c.h.b16 %v2024
        %v3236 = vunpack.c.l.b16 %v2025
        %v3237 = vunpack.c.h.b16 %v2025
        %v3238 = vunpack.c.l.b16 %v2026
        %v3239 = vunpack.c.h.b16 %v2026
        %v3240 = vunpack.c.l.b16 %v2027
        %v3241 = vunpack.c.h.b16 %v2027
        %v3242 = vunpack.c.l.b16 %v2028
        %v3243 = vunpack.c.h.b16 %v2028
        %v3244 = vunpack.c.l.b16 %v2029
        %v3245 = vunpack.c.h.b16 %v2029
        %v3246 = vunpack.c.l.b16 %v2030
        %v3247 = vunpack.c.h.b16 %v2030
        %v3248 = vunpack.c.l.b16 %v2031
        %v3249 = vunpack.c.h.b16 %v2031
        %v3250 = vunpack.c.l.b16 %v2032
        %v3251 = vunpack.c.h.b16 %v2032
        %v3252 = vunpack.c.l.b16 %v2033
        %v3253 = vunpack.c.h.b16 %v2033
        %v3254 = vunpack.c.l.b16 %v2034
        %v3255 = vunpack.c.h.b16 %v2034
        %v3256 = vunpack.c.l.b16 %v2035
        %v3257 = vunpack.c.h.b16 %v2035
        %v3258 = vunpack.c.l.b16 %v2036
        %v3259 = vunpack.c.h.b16 %v2036
        %v3260 = vunpack.c.l.b16 %v2037
        %v3261 = vunpack.c.h.b16 %v2037
        %v3262 = vunpack.c.l.b16 %v2038
        %v3263 = vunpack.c.h.b16 %v2038
        %v3264 = vunpack.c.l.b16 %v2039
        %v3265 = vunpack.c.h.b16 %v2039
        %v3266 = vunpack.c.l.b16 %v2040
        %v3267 = vunpack.c.h.b16 %v2040
        %v3268 = vunpack.c.l.b16 %v2041
        %v3269 = vunpack.c.h.b16 %v2041
        %v3270 = vunpack.c.l.b16 %v2042
        %v3271 = vunpack.c.h.b16 %v2042
        %v3272 = vunpack.c.l.b16 %v2043
        %v3273 = vunpack.c.h.b16 %v2043
        %v3274 = vunpack.c.l.b16 %v2044
        %v3275 = vunpack.c.h.b16 %v2044
        %v3276 = vunpack.c.l.b16 %v2045
        %v3277 = vunpack.c.h.b16 %v2045
        %v3278 = vunpack.c.l.b16 %v2046
        %v3279 = vunpack.c.h.b16 %v2046
        %v3280 = vunpack.c.l.b16 %v2047
        %v3281 = vunpack.c.h.b16 %v2047
        %v3282 = vunpack.c.l.b16 %v2048
        %v3283 = vunpack.c.h.b16 %v2048
        %v3284 = vunpack.c.l.b16 %v2049
        %v3285 = vunpack.c.h.b16 %v2049
        %v3286 = vunpack.c.l.b16 %v2050
        %v3287 = vunpack.c.h.b16 %v2050
        %v3288 = vunpack.c.l.b16 %v2051
        %v3289 = vunpack.c.h.b16 %v2051
        %v3290 = vunpack.c.l.b16 %v2052
        %v3291 = vunpack.c.h.b16 %v2052
        %v3292 = vunpack.c.l.b16 %v2053
        %v3293 = vunpack.c.h.b16 %v2053
        %v3294 = vunpack.c.l.b16 %v2054
        %v3295 = vunpack.c.h.b16 %v2054
        %v3296 = vunpack.c.l.b16 %v2055
        %v3297 = vunpack.c.h.b16 %v2055
        %v3298 = vunpack.c.l.b16 %v2056
        %v3299 = vunpack.c.h.b16 %v2056
        %v3300 = vunpack.c.l.b16 %v2057
        %v3301 = vunpack.c.h.b16 %v2057
        %v3302 = vunpack.c.l.b16 %v2058
        %v3303 = vunpack.c.h.b16 %v2058
        %v3304 = vunpack.c.l.b16 %v2059
        %v3305 = vunpack.c.h.b16 %v2059
        %v3306 = vunpack.c.l.b16 %v2060
        %v3307 = vunpack.c.h.b16 %v2060
        %v3308 = vunpack.c.l.b16 %v2061
        %v3309 = vunpack.c.h.b16 %v2061
        %v3310 = vunpack.c.l.b16 %v2062
        %v3311 = vunpack.c.h.b16 %v2062
        %v3312 = vunpack.c.l.b16 %v2063
        %v3313 = vunpack.c.h.b16 %v2063
        %v3314 = vunpack.c.l.b16 %v2064
        %v3315 = vunpack.c.h.b16 %v2064
        %v3316 = vunpack.c.l.b16 %v2065
        %v3317 = vunpack.c.h.b16 %v2065
        %v3318 = vunpack.c.l.b16 %v2066
        %v3319 = vunpack.c.h.b16 %v2066
        %v3320 = vunpack.c.l.b16 %v2067
        %v3321 = vunpack.c.h.b16 %v2067
        %v3322 = vunpack.c.l.b16 %v2068
        %v3323 = vunpack.c.h.b16 %v2068
        %v3324 = vunpack.c.l.b16 %v2069
        %v3325 = vunpack.c.h.b16 %v2069
        %v3326 = vunpack.c.l.b16 %v2070
        %v3327 = vunpack.c.h.b16 %v2070
        %v3328 = vunpack.c.l.b16 %v2071
        %v3329 = vunpack.c.h.b16 %v2071
        %v3330 = vunpack.c.l.b16 %v2072
        %v3331 = vunpack.c.h.b16 %v2072
        %v3332 = vunpack.c.l.b16 %v2073
        %v3333 = vunpack.c.h.b16 %v2073
        %v3334 = vunpack.c.l.b16 %v2074
        %v3335 = vunpack.c.h.b16 %v2074
        %v3336 = vunpack.c.l.b16 %v2075
        %v3337 = vunpack.c.h.b16 %v2075
        %v3338 = vunpack.c.l.b16 %v2076
        %v3339 = vunpack.c.h.b16 %v2076
        %v3340 = vunpack.c.l.b16 %v2077
        %v3341 = vunpack.c.h.b16 %v2077
        %v3342 = vunpack.c.l.b16 %v2078
        %v3343 = vunpack.c.h.b16 %v2078
        %v3344 = vunpack.c.l.b16 %v2079
        %v3345 = vunpack.c.h.b16 %v2079
        %v3346 = vunpack.c.l.b16 %v2080
        %v3347 = vunpack.c.h.b16 %v2080
        %v3348 = vunpack.c.l.b16 %v2081
        %v3349 = vunpack.c.h.b16 %v2081
        %v3350 = vunpack.c.l.b16 %v2082
        %v3351 = vunpack.c.h.b16 %v2082
        %v3352 = vunpack.c.l.b16 %v2083
        %v3353 = vunpack.c.h.b16 %v2083
        %v3354 = vunpack.c.l.b16 %v2084
        %v3355 = vunpack.c.h.b16 %v2084
        %v3356 = vunpack.c.l.b16 %v2085
        %v3357 = vunpack.c.h.b16 %v2085
        %v3358 = vunpack.c.l.b16 %v2086
        %v3359 = vunpack.c.h.b16 %v2086
        %v3360 = vunpack.c.l.b16 %v2087
        %v3361 = vunpack.c.h.b16 %v2087
        %v3362 = vunpack.c.l.b16 %v2088
        %v3363 = vunpack.c.h.b16 %v2088
        %v3364 = vunpack.c.l.b16 %v2089
        %v3365 = vunpack.c.h.b16 %v2089
        %v3366 = vunpack.c.l.b16 %v2090
        %v3367 = vunpack.c.h.b16 %v2090
        %v3368 = vunpack.c.l.b16 %v2091
        %v3369 = vunpack.c.h.b16 %v2091
        %v3370 = vunpack.c.l.b16 %v2092
        %v3371 = vunpack.c.h.b16 %v2092
        %v3372 = vunpack.c.l.b16 %v2093
        %v3373 = vunpack.c.h.b16 %v2093
        %v3374 = vunpack.c.l.b16 %v2094
        %v3375 = vunpack.c.h.b16 %v2094
        %v3376 = vunpack.c.l.b16 %v2095
        %v3377 = vunpack.c.h.b16 %v2095
        %v3378 = vunpack.c.l.b16 %v2096
        %v3379 = vunpack.c.h.b16 %v2096
        %v3380 = vunpack.c.l.b16 %v2097
        %v3381 = vunpack.c.h.b16 %v2097
        %v3382 = vunpack.c.l.b16 %v2098
        %v3383 = vunpack.c.h.b16 %v2098
        %v3384 = vunpack.c.l.b16 %v2099
        %v3385 = vunpack.c.h.b16 %v2099
        %v3386 = vunpack.c.l.b16 %v2100
        %v3387 = vunpack.c.h.b16 %v2100
        %v3388 = vunpack.c.l.b16 %v2101
        %v3389 = vunpack.c.h.b16 %v2101
        %v3390 = vunpack.c.l.b16 %v2102
        %v3391 = vunpack.c.h.b16 %v2102
        %v3392 = vunpack.c.l.b16 %v2103
        %v3393 = vunpack.c.h.b16 %v2103
        %v3394 = vunpack.c.l.b16 %v2104
        %v3395 = vunpack.c.h.b16 %v2104
        %v3396 = vunpack.c.l.b16 %v2105
        %v3397 = vunpack.c.h.b16 %v2105
        %v3398 = vunpack.c.l.b16 %v2106
        %v3399 = vunpack.c.h.b16 %v2106
        %v3400 = vunpack.c.l.b16 %v2107
        %v3401 = vunpack.c.h.b16 %v2107
        %v3402 = vunpack.c.l.b16 %v2108
        %v3403 = vunpack.c.h.b16 %v2108
        %v3404 = vunpack.c.l.b16 %v2109
        %v3405 = vunpack.c.h.b16 %v2109
        %v3406 = vunpack.c.l.b16 %v2110
        %v3407 = vunpack.c.h.b16 %v2110
        %v3408 = vunpack.c.l.b16 %v2111
        %v3409 = vunpack.c.h.b16 %v2111
        %v3410 = vunpack.c.l.b16 %v2112
        %v3411 = vunpack.c.h.b16 %v2112
        %v3412 = vunpack.c.l.b16 %v2113
        %v3413 = vunpack.c.h.b16 %v2113
        %v3414 = vunpack.c.l.b16 %v2114
        %v3415 = vunpack.c.h.b16 %v2114
        %v3416 = vunpack.c.l.b16 %v2115
        %v3417 = vunpack.c.h.b16 %v2115
        %v3418 = vunpack.c.l.b16 %v2116
        %v3419 = vunpack.c.h.b16 %v2116
        %v3420 = vunpack.c.l.b16 %v2117
        %v3421 = vunpack.c.h.b16 %v2117
        %v3422 = vunpack.c.l.b16 %v2118
        %v3423 = vunpack.c.h.b16 %v2118
        %v3424 = vunpack.c.l.b16 %v2119
        %v3425 = vunpack.c.h.b16 %v2119
        %v3426 = vunpack.c.l.b16 %v2120
        %v3427 = vunpack.c.h.b16 %v2120
        %v3428 = vunpack.c.l.b16 %v2121
        %v3429 = vunpack.c.h.b16 %v2121
        %v3430 = vunpack.c.l.b16 %v2122
        %v3431 = vunpack.c.h.b16 %v2122
        %v3432 = vunpack.c.l.b16 %v2123
        %v3433 = vunpack.c.h.b16 %v2123
        %v3434 = vunpack.c.l.b16 %v2124
        %v3435 = vunpack.c.h.b16 %v2124
        %v3436 = vunpack.c.l.b16 %v2125
        %v3437 = vunpack.c.h.b16 %v2125
        %v3438 = vunpack.c.l.b16 %v2126
        %v3439 = vunpack.c.h.b16 %v2126
        %v3440 = vunpack.c.l.b16 %v2127
        %v3441 = vunpack.c.h.b16 %v2127
        %v3442 = vunpack.c.l.b16 %v2128
        %v3443 = vunpack.c.h.b16 %v2128
        %v3444 = vunpack.c.l.b16 %v2129
        %v3445 = vunpack.c.h.b16 %v2129
        %v3446 = vunpack.c.l.b16 %v2130
        %v3447 = vunpack.c.h.b16 %v2130
        %v3448 = vunpack.c.l.b16 %v2131
        %v3449 = vunpack.c.h.b16 %v2131
        %v3450 = vunpack.c.l.b16 %v2132
        %v3451 = vunpack.c.h.b16 %v2132
        %v3452 = vunpack.c.l.b16 %v2133
        %v3453 = vunpack.c.h.b16 %v2133
        %v3454 = vunpack.c.l.b16 %v2134
        %v3455 = vunpack.c.h.b16 %v2134
        %v3456 = vunpack.c.l.b16 %v2135
        %v3457 = vunpack.c.h.b16 %v2135
        %v3458 = vunpack.c.l.b16 %v2136
        %v3459 = vunpack.c.h.b16 %v2136
        %v3460 = vunpack.c.l.b16 %v2137
        %v3461 = vunpack.c.h.b16 %v2137
        %v3462 = vunpack.c.l.b16 %v2138
        %v3463 = vunpack.c.h.b16 %v2138
        %v3464 = vunpack.c.l.b16 %v2139
        %v3465 = vunpack.c.h.b16 %v2139
        %v3466 = vunpack.c.l.b16 %v2140
        %v3467 = vunpack.c.h.b16 %v2140
        %v3468 = vunpack.c.l.b16 %v2141
        %v3469 = vunpack.c.h.b16 %v2141
        %v3470 = vunpack.c.l.b16 %v2142
        %v3471 = vunpack.c.h.b16 %v2142
        %v3472 = vunpack.c.l.b16 %v2143
        %v3473 = vunpack.c.h.b16 %v2143
        %v3474 = vunpack.c.l.b16 %v2144
        %v3475 = vunpack.c.h.b16 %v2144
        %v3476 = vunpack.c.l.b16 %v2145
        %v3477 = vunpack.c.h.b16 %v2145
        %v3478 = vunpack.c.l.b16 %v2146
        %v3479 = vunpack.c.h.b16 %v2146
        %v3480 = vunpack.c.l.b16 %v2147
        %v3481 = vunpack.c.h.b16 %v2147
        %v3482 = vunpack.c.l.b16 %v2148
        %v3483 = vunpack.c.h.b16 %v2148
        %v3484 = vunpack.c.l.b16 %v2149
        %v3485 = vunpack.c.h.b16 %v2149
        %v3486 = vunpack.c.l.b16 %v2150
        %v3487 = vunpack.c.h.b16 %v2150
        %v3488 = vunpack.c.l.b16 %v2151
        %v3489 = vunpack.c.h.b16 %v2151
        %v3490 = vunpack.c.l.b16 %v2152
        %v3491 = vunpack.c.h.b16 %v2152
        %v3492 = vunpack.c.l.b16 %v2153
        %v3493 = vunpack.c.h.b16 %v2153
        %v3494 = vunpack.c.l.b16 %v2154
        %v3495 = vunpack.c.h.b16 %v2154
        %v3496 = vunpack.c.l.b16 %v2155
        %v3497 = vunpack.c.h.b16 %v2155
        %v3498 = vunpack.c.l.b16 %v2156
        %v3499 = vunpack.c.h.b16 %v2156
        %v3500 = vunpack.c.l.b16 %v2157
        %v3501 = vunpack.c.h.b16 %v2157
        %v3502 = vunpack.c.l.b16 %v2158
        %v3503 = vunpack.c.h.b16 %v2158
        %v3504 = vunpack.c.l.b16 %v2159
        %v3505 = vunpack.c.h.b16 %v2159
        %v3506 = vunpack.c.l.b16 %v2160
        %v3507 = vunpack.c.h.b16 %v2160
        %v3508 = vunpack.c.l.b16 %v2161
        %v3509 = vunpack.c.h.b16 %v2161
        %v3510 = vunpack.c.l.b16 %v2162
        %v3511 = vunpack.c.h.b16 %v2162
        %v3512 = vunpack.c.l.b16 %v2163
        %v3513 = vunpack.c.h.b16 %v2163
        %v3514 = vunpack.c.l.b16 %v2164
        %v3515 = vunpack.c.h.b16 %v2164
        %v3516 = vunpack.c.l.b16 %v2165
        %v3517 = vunpack.c.h.b16 %v2165
        %v3518 = vunpack.c.l.b16 %v2166
        %v3519 = vunpack.c.h.b16 %v2166
        %v3520 = vunpack.c.l.b16 %v2167
        %v3521 = vunpack.c.h.b16 %v2167
        %v3522 = vunpack.c.l.b16 %v2168
        %v3523 = vunpack.c.h.b16 %v2168
        %v3524 = vunpack.c.l.b16 %v2169
        %v3525 = vunpack.c.h.b16 %v2169
        %v3526 = vunpack.c.l.b16 %v2170
        %v3527 = vunpack.c.h.b16 %v2170
        %v3528 = vunpack.c.l.b16 %v2171
        %v3529 = vunpack.c.h.b16 %v2171
        %v3530 = vunpack.c.l.b16 %v2172
        %v3531 = vunpack.c.h.b16 %v2172
        %v3532 = vunpack.c.l.b16 %v2173
        %v3533 = vunpack.c.h.b16 %v2173
        %v3534 = vunpack.c.l.b16 %v2174
        %v3535 = vunpack.c.h.b16 %v2174
        %v3536 = vunpack.c.l.b16 %v2175
        %v3537 = vunpack.c.h.b16 %v2175
        %v3538 = vunpack.c.l.b16 %v2176
        %v3539 = vunpack.c.h.b16 %v2176
        %v3540 = vunpack.c.l.b16 %v2177
        %v3541 = vunpack.c.h.b16 %v2177
        %v3542 = vunpack.c.l.b16 %v2178
        %v3543 = vunpack.c.h.b16 %v2178
        %v3544 = vunpack.c.l.b16 %v2179
        %v3545 = vunpack.c.h.b16 %v2179
        %v3546 = vunpack.c.l.b16 %v2180
        %v3547 = vunpack.c.h.b16 %v2180
        %v3548 = vunpack.c.l.b16 %v2181
        %v3549 = vunpack.c.h.b16 %v2181
        %v3550 = vunpack.c.l.b16 %v2182
        %v3551 = vunpack.c.h.b16 %v2182
        %v3552 = vunpack.c.l.b16 %v2183
        %v3553 = vunpack.c.h.b16 %v2183
        %v3554 = vunpack.c.l.b16 %v2184
        %v3555 = vunpack.c.h.b16 %v2184
        %v3556 = vunpack.c.l.b16 %v2185
        %v3557 = vunpack.c.h.b16 %v2185
        %v3558 = vunpack.c.l.b16 %v2186
        %v3559 = vunpack.c.h.b16 %v2186
        %v3560 = vunpack.c.l.b16 %v2187
        %v3561 = vunpack.c.h.b16 %v2187
        %v3562 = vunpack.c.l.b16 %v2188
        %v3563 = vunpack.c.h.b16 %v2188
        %v3564 = vunpack.c.l.b16 %v2189
        %v3565 = vunpack.c.h.b16 %v2189
        %v3566 = vunpack.c.l.b16 %v2190
        %v3567 = vunpack.c.h.b16 %v2190
        %v3568 = vunpack.c.l.b16 %v2191
        %v3569 = vunpack.c.h.b16 %v2191
        %v3570 = vunpack.c.l.b16 %v2192
        %v3571 = vunpack.c.h.b16 %v2192
        %v3572 = vunpack.c.l.b16 %v2193
        %v3573 = vunpack.c.h.b16 %v2193
        %v3574 = vunpack.c.l.b16 %v2194
        %v3575 = vunpack.c.h.b16 %v2194
        %v3576 = vunpack.c.l.b16 %v2195
        %v3577 = vunpack.c.h.b16 %v2195
        %v3578 = vunpack.c.l.b16 %v2196
        %v3579 = vunpack.c.h.b16 %v2196
        %v3580 = vunpack.c.l.b16 %v2197
        %v3581 = vunpack.c.h.b16 %v2197
        %v3582 = vunpack.c.l.b16 %v2198
        %v3583 = vunpack.c.h.b16 %v2198
        %v3584 = vunpack.c.l.b16 %v2199
        %v3585 = vunpack.c.h.b16 %v2199
        %v3586 = vunpack.c.l.b16 %v2200
        %v3587 = vunpack.c.h.b16 %v2200
        %v3588 = vunpack.c.l.b16 %v2201
        %v3589 = vunpack.c.h.b16 %v2201
        %v3590 = vunpack.c.l.b16 %v2202
        %v3591 = vunpack.c.h.b16 %v2202
        %v3592 = vunpack.c.l.b16 %v2203
        %v3593 = vunpack.c.h.b16 %v2203
        %v3594 = vunpack.c.l.b16 %v2204
        %v3595 = vunpack.c.h.b16 %v2204
        %v3596 = vunpack.c.l.b16 %v2205
        %v3597 = vunpack.c.h.b16 %v2205
        %v3598 = vunpack.c.l.b16 %v2206
        %v3599 = vunpack.c.h.b16 %v2206
        %v3600 = vunpack.c.l.b16 %v2207
        %v3601 = vunpack.c.h.b16 %v2207
        %v3602 = vunpack.c.l.b16 %v2208
        %v3603 = vunpack.c.h.b16 %v2208
        %v3604 = vunpack.c.l.b16 %v2209
        %v3605 = vunpack.c.h.b16 %v2209
        %v3606 = vunpack.c.l.b16 %v2210
        %v3607 = vunpack.c.h.b16 %v2210
        %v3608 = vunpack.c.l.b16 %v2211
        %v3609 = vunpack.c.h.b16 %v2211
        %v3610 = vunpack.c.l.b16 %v2212
        %v3611 = vunpack.c.h.b16 %v2212
        %v3612 = vunpack.c.l.b16 %v2213
        %v3613 = vunpack.c.h.b16 %v2213
        %v3614 = vunpack.c.l.b16 %v2214
        %v3615 = vunpack.c.h.b16 %v2214
        %v3616 = vunpack.c.l.b16 %v2215
        %v3617 = vunpack.c.h.b16 %v2215
        %v3618 = vunpack.c.l.b16 %v2216
        %v3619 = vunpack.c.h.b16 %v2216
        %v3620 = vunpack.c.l.b16 %v2217
        %v3621 = vunpack.c.h.b16 %v2217
        %v3622 = vunpack.c.l.b16 %v2218
        %v3623 = vunpack.c.h.b16 %v2218
        %v3624 = vunpack.c.l.b16 %v2219
        %v3625 = vunpack.c.h.b16 %v2219
        %v3626 = vunpack.c.l.b16 %v2220
        %v3627 = vunpack.c.h.b16 %v2220
        %v3628 = vunpack.c.l.b16 %v2221
        %v3629 = vunpack.c.h.b16 %v2221
        %v3630 = vunpack.c.l.b16 %v2222
        %v3631 = vunpack.c.h.b16 %v2222
        %v3632 = vunpack.c.l.b16 %v2223
        %v3633 = vunpack.c.h.b16 %v2223
        %v3634 = vunpack.c.l.b16 %v2224
        %v3635 = vunpack.c.h.b16 %v2224
        %v3636 = vunpack.c.l.b16 %v2225
        %v3637 = vunpack.c.h.b16 %v2225
        %v3638 = vunpack.c.l.b16 %v2226
        %v3639 = vunpack.c.h.b16 %v2226
        %v3640 = vunpack.c.l.b16 %v2227
        %v3641 = vunpack.c.h.b16 %v2227
        %v3642 = vunpack.c.l.b16 %v2228
        %v3643 = vunpack.c.h.b16 %v2228
        %v3644 = vunpack.c.l.b16 %v2229
        %v3645 = vunpack.c.h.b16 %v2229
        %v3646 = vunpack.c.l.b16 %v2230
        %v3647 = vunpack.c.h.b16 %v2230
        %v3648 = vunpack.c.l.b16 %v2231
        %v3649 = vunpack.c.h.b16 %v2231
        %v3650 = vunpack.c.l.b16 %v2232
        %v3651 = vunpack.c.h.b16 %v2232
        %v3652 = vunpack.c.l.b16 %v2233
        %v3653 = vunpack.c.h.b16 %v2233
        %v3654 = vunpack.c.l.b16 %v2234
        %v3655 = vunpack.c.h.b16 %v2234
        %v3656 = vunpack.c.l.b16 %v2235
        %v3657 = vunpack.c.h.b16 %v2235
        %v3658 = vunpack.c.l.b16 %v2236
        %v3659 = vunpack.c.h.b16 %v2236
        %v3660 = vunpack.c.l.b16 %v2237
        %v3661 = vunpack.c.h.b16 %v2237
        %v3662 = vunpack.c.l.b16 %v2238
        %v3663 = vunpack.c.h.b16 %v2238
        %v3664 = vunpack.c.l.b16 %v2239
        %v3665 = vunpack.c.h.b16 %v2239
        %v3666 = vunpack.c.l.b16 %v2240
        %v3667 = vunpack.c.h.b16 %v2240
        %v3668 = vunpack.c.l.b16 %v2241
        %v3669 = vunpack.c.h.b16 %v2241
        %v3670 = vunpack.c.l.b16 %v2242
        %v3671 = vunpack.c.h.b16 %v2242
        %v3672 = vunpack.c.l.b16 %v2243
        %v3673 = vunpack.c.h.b16 %v2243
        %v3674 = vunpack.c.l.b16 %v2244
        %v3675 = vunpack.c.h.b16 %v2244
        %v3676 = vunpack.c.l.b16 %v2245
        %v3677 = vunpack.c.h.b16 %v2245
        %v3678 = vunpack.c.l.b16 %v2246
        %v3679 = vunpack.c.h.b16 %v2246
        %v3680 = vunpack.c.l.b16 %v2247
        %v3681 = vunpack.c.h.b16 %v2247
        %v3682 = vunpack.c.l.b16 %v2248
        %v3683 = vunpack.c.h.b16 %v2248
        %v3684 = vunpack.c.l.b16 %v2249
        %v3685 = vunpack.c.h.b16 %v2249
        %v3686 = vunpack.c.l.b16 %v2250
        %v3687 = vunpack.c.h.b16 %v2250
        %v3688 = vunpack.c.l.b16 %v2251
        %v3689 = vunpack.c.h.b16 %v2251
        %v3690 = vunpack.c.l.b16 %v2252
        %v3691 = vunpack.c.h.b16 %v2252
        %v3692 = vunpack.c.l.b16 %v2253
        %v3693 = vunpack.c.h.b16 %v2253
        %v3694 = vunpack.c.l.b16 %v2254
        %v3695 = vunpack.c.h.b16 %v2254
        %v3696 = vunpack.c.l.b16 %v2255
        %v3697 = vunpack.c.h.b16 %v2255
        %v3698 = vunpack.c.l.b16 %v2256
        %v3699 = vunpack.c.h.b16 %v2256
        %v3700 = vunpack.c.l.b16 %v2257
        %v3701 = vunpack.c.h.b16 %v2257
        %v3702 = vunpack.c.l.b16 %v2258
        %v3703 = vunpack.c.h.b16 %v2258
        %v3704 = vunpack.c.l.b16 %v2259
        %v3705 = vunpack.c.h.b16 %v2259
        %v3706 = vunpack.c.l.b16 %v2260
        %v3707 = vunpack.c.h.b16 %v2260
        %v3708 = vunpack.c.l.b16 %v2261
        %v3709 = vunpack.c.h.b16 %v2261
        %v3710 = vunpack.c.l.b16 %v2262
        %v3711 = vunpack.c.h.b16 %v2262
        %v3712 = vunpack.c.l.b16 %v2263
        %v3713 = vunpack.c.h.b16 %v2263
        %v3714 = vunpack.c.l.b16 %v2264
        %v3715 = vunpack.c.h.b16 %v2264
        %v3716 = vunpack.c.l.b16 %v2265
        %v3717 = vunpack.c.h.b16 %v2265
        %v3718 = vunpack.c.l.b16 %v2266
        %v3719 = vunpack.c.h.b16 %v2266
        %v3720 = vunpack.c.l.b16 %v2267
        %v3721 = vunpack.c.h.b16 %v2267
        %v3722 = vunpack.c.l.b16 %v2268
        %v3723 = vunpack.c.h.b16 %v2268
        %v3724 = vunpack.c.l.b16 %v2269
        %v3725 = vunpack.c.h.b16 %v2269
        %v3726 = vunpack.c.l.b16 %v2270
        %v3727 = vunpack.c.h.b16 %v2270
        %v3728 = vunpack.c.l.b16 %v2271
        %v3729 = vunpack.c.h.b16 %v2271
        %v3730 = vunpack.c.l.b16 %v2272
        %v3731 = vunpack.c.h.b16 %v2272
        %v3732 = vunpack.c.l.b16 %v2273
        %v3733 = vunpack.c.h.b16 %v2273
        %v3734 = vunpack.c.l.b16 %v2274
        %v3735 = vunpack.c.h.b16 %v2274
        %v3736 = vunpack.c.l.b16 %v2275
        %v3737 = vunpack.c.h.b16 %v2275
        %v3738 = vunpack.c.l.b16 %v2276
        %v3739 = vunpack.c.h.b16 %v2276
        %v3740 = vunpack.c.l.b16 %v2277
        %v3741 = vunpack.c.h.b16 %v2277
        %v3742 = vunpack.c.l.b16 %v2278
        %v3743 = vunpack.c.h.b16 %v2278
        %v3744 = vunpack.c.l.b16 %v2279
        %v3745 = vunpack.c.h.b16 %v2279
        %v3746 = vunpack.c.l.b16 %v2280
        %v3747 = vunpack.c.h.b16 %v2280
        %v3748 = vunpack.c.l.b16 %v2281
        %v3749 = vunpack.c.h.b16 %v2281
        %v3750 = vunpack.c.l.b16 %v2282
        %v3751 = vunpack.c.h.b16 %v2282
        %v3752 = vunpack.c.l.b16 %v2283
        %v3753 = vunpack.c.h.b16 %v2283
        %v3754 = vunpack.c.l.b16 %v2284
        %v3755 = vunpack.c.h.b16 %v2284
        %v3756 = vunpack.c.l.b16 %v2285
        %v3757 = vunpack.c.h.b16 %v2285
        %v3758 = vunpack.c.l.b16 %v2286
        %v3759 = vunpack.c.h.b16 %v2286
        %v3760 = vunpack.c.l.b16 %v2287
        %v3761 = vunpack.c.h.b16 %v2287
        %v3762 = vunpack.c.l.b16 %v2288
        %v3763 = vunpack.c.h.b16 %v2288
        %v3764 = vunpack.c.l.b16 %v2289
        %v3765 = vunpack.c.h.b16 %v2289
        %v3766 = vunpack.c.l.b16 %v2290
        %v3767 = vunpack.c.h.b16 %v2290
        %v3768 = vunpack.c.l.b16 %v2291
        %v3769 = vunpack.c.h.b16 %v2291
        %v3770 = vunpack.c.l.b16 %v2292
        %v3771 = vunpack.c.h.b16 %v2292
        %v3772 = vunpack.c.l.b16 %v2293
        %v3773 = vunpack.c.h.b16 %v2293
        %v3774 = vunpack.c.l.b16 %v2294
        %v3775 = vunpack.c.h.b16 %v2294
        %v3776 = vunpack.c.l.b16 %v2295
        %v3777 = vunpack.c.h.b16 %v2295
        %v3778 = vunpack.c.l.b16 %v2296
        %v3779 = vunpack.c.h.b16 %v2296
        %v3780 = vunpack.c.l.b16 %v2297
        %v3781 = vunpack.c.h.b16 %v2297
        %v3782 = vunpack.c.l.b16 %v2298
        %v3783 = vunpack.c.h.b16 %v2298
        %v3784 = vunpack.c.l.b16 %v2299
        %v3785 = vunpack.c.h.b16 %v2299
        %v3786 = vunpack.c.l.b16 %v2300
        %v3787 = vunpack.c.h.b16 %v2300
        %v3788 = vunpack.c.l.b16 %v2301
        %v3789 = vunpack.c.h.b16 %v2301
        %v3790 = vunpack.c.l.b16 %v2302
        %v3791 = vunpack.c.h.b16 %v2302
        %v3792 = vunpack.c.l.b16 %v2303
        %v3793 = vunpack.c.h.b16 %v2303
        %v3794 = vunpack.c.l.b16 %v2304
        %v3795 = vunpack.c.h.b16 %v2304
        %v3796 = vunpack.c.l.b16 %v2305
        %v3797 = vunpack.c.h.b16 %v2305
        %v3798 = vunpack.c.l.b16 %v2306
        %v3799 = vunpack.c.h.b16 %v2306
        %v3800 = vunpack.c.l.b16 %v2307
        %v3801 = vunpack.c.h.b16 %v2307
        %v3802 = vunpack.c.l.b16 %v2308
        %v3803 = vunpack.c.h.b16 %v2308
        %v3804 = vunpack.c.l.b16 %v2309
        %v3805 = vunpack.c.h.b16 %v2309
        %v3806 = vunpack.c.l.b16 %v2310
        %v3807 = vunpack.c.h.b16 %v2310
        %v3808 = vunpack.c.l.b16 %v2311
        %v3809 = vunpack.c.h.b16 %v2311
        %v3810 = vunpack.c.l.b16 %v2312
        %v3811 = vunpack.c.h.b16 %v2312
        %v3812 = vunpack.c.l.b16 %v2313
        %v3813 = vunpack.c.h.b16 %v2313
        %v3814 = vunpack.c.l.b16 %v2314
        %v3815 = vunpack.c.h.b16 %v2314
        %v3816 = vunpack.c.l.b16 %v2315
        %v3817 = vunpack.c.h.b16 %v2315
        %v3818 = vunpack.c.l.b16 %v2316
        %v3819 = vunpack.c.h.b16 %v2316
        %v3820 = vunpack.c.l.b16 %v2317
        %v3821 = vunpack.c.h.b16 %v2317
        %v3822 = vunpack.c.l.b16 %v2318
        %v3823 = vunpack.c.h.b16 %v2318
        %v3824 = vunpack.c.l.b16 %v2319
        %v3825 = vunpack.c.h.b16 %v2319
        %v3826 = vunpack.c.l.b16 %v2320
        %v3827 = vunpack.c.h.b16 %v2320
        %v3828 = vunpack.c.l.b16 %v2321
        %v3829 = vunpack.c.h.b16 %v2321
        %v3830 = vunpack.c.l.b16 %v2322
        %v3831 = vunpack.c.h.b16 %v2322
        %v3832 = vunpack.c.l.b16 %v2323
        %v3833 = vunpack.c.h.b16 %v2323
        %v3834 = vunpack.c.l.b16 %v2324
        %v3835 = vunpack.c.h.b16 %v2324
        %v3836 = vunpack.c.l.b16 %v2325
        %v3837 = vunpack.c.h.b16 %v2325
        %v3838 = vunpack.c.l.b16 %v2326
        %v3839 = vunpack.c.h.b16 %v2326
        %v3840 = vunpack.c.l.b16 %v2327
        %v3841 = vunpack.c.h.b16 %v2327
        %v3842 = vunpack.c.l.b16 %v2328
        %v3843 = vunpack.c.h.b16 %v2328
        %v3844 = vunpack.c.l.b16 %v2329
        %v3845 = vunpack.c.h.b16 %v2329
        %v3846 = vunpack.c.l.b16 %v2330
        %v3847 = vunpack.c.h.b16 %v2330
        %v3848 = vunpack.c.l.b16 %v2331
        %v3849 = vunpack.c.h.b16 %v2331
        %v3850 = vunpack.c.l.b16 %v2332
        %v3851 = vunpack.c.h.b16 %v2332
        %v3852 = vunpack.c.l.b16 %v2333
        %v3853 = vunpack.c.h.b16 %v2333
        %v3854 = vunpack.c.l.b16 %v2334
        %v3855 = vunpack.c.h.b16 %v2334
        %v3856 = vunpack.c.l.b16 %v2335
        %v3857 = vunpack.c.h.b16 %v2335
        %v3858 = vunpack.c.l.b16 %v2336
        %v3859 = vunpack.c.h.b16 %v2336
        %v3860 = vunpack.c.l.b16 %v2337
        %v3861 = vunpack.c.h.b16 %v2337
        %v3862 = vunpack.c.l.b16 %v2338
        %v3863 = vunpack.c.h.b16 %v2338
        %v3864 = vunpack.c.l.b16 %v2339
        %v3865 = vunpack.c.h.b16 %v2339
        %v3866 = vunpack.c.l.b16 %v2340
        %v3867 = vunpack.c.h.b16 %v2340
        %v3868 = vunpack.c.l.b16 %v2341
        %v3869 = vunpack.c.h.b16 %v2341
        %v3870 = vunpack.c.l.b16 %v2342
        %v3871 = vunpack.c.h.b16 %v2342
        %v3872 = vunpack.c.l.b16 %v2343
        %v3873 = vunpack.c.h.b16 %v2343
        %v3874 = vunpack.c.l.b16 %v2344
        %v3875 = vunpack.c.h.b16 %v2344
        %v3876 = vunpack.c.l.b16 %v2345
        %v3877 = vunpack.c.h.b16 %v2345
        %v3878 = vunpack.c.l.b16 %v2346
        %v3879 = vunpack.c.h.b16 %v2346
        %v3880 = vunpack.c.l.b16 %v2347
        %v3881 = vunpack.c.h.b16 %v2347
        %v3882 = vunpack.c.l.b16 %v2348
        %v3883 = vunpack.c.h.b16 %v2348
        %v3884 = vunpack.c.l.b16 %v2349
        %v3885 = vunpack.c.h.b16 %v2349
        %v3886 = vpack.c.b16 %v2866, %v2862
        %v3887 = vpack.c.b16 %v2867, %v2863
        %v3888 = vpack.c.b16 %v2868, %v2864
        %v3889 = vpack.c.b16 %v2869, %v2865
        %v3890 = vpack.c.b16 %v2874, %v2870
        %v3891 = vpack.c.b16 %v2875, %v2871
        %v3892 = vpack.c.b16 %v2876, %v2872
        %v3893 = vpack.c.b16 %v2877, %v2873
        %v3894 = vpack.c.b16 %v2882, %v2878
        %v3895 = vpack.c.b16 %v2883, %v2879
        %v3896 = vpack.c.b16 %v2884, %v2880
        %v3897 = vpack.c.b16 %v2885, %v2881
        %v3898 = vpack.c.b16 %v2890, %v2886
        %v3899 = vpack.c.b16 %v2891, %v2887
        %v3900 = vpack.c.b16 %v2892, %v2888
        %v3901 = vpack.c.b16 %v2893, %v2889
        %v3902 = vpack.c.b16 %v2898, %v2894
        %v3903 = vpack.c.b16 %v2899, %v2895
        %v3904 = vpack.c.b16 %v2900, %v2896
        %v3905 = vpack.c.b16 %v2901, %v2897
        %v3906 = vpack.c.b16 %v2906, %v2902
        %v3907 = vpack.c.b16 %v2907, %v2903
        %v3908 = vpack.c.b16 %v2908, %v2904
        %v3909 = vpack.c.b16 %v2909, %v2905
        %v3910 = vpack.c.b16 %v2914, %v2910
        %v3911 = vpack.c.b16 %v2915, %v2911
        %v3912 = vpack.c.b16 %v2916, %v2912
        %v3913 = vpack.c.b16 %v2917, %v2913
        %v3914 = vpack.c.b16 %v2922, %v2918
        %v3915 = vpack.c.b16 %v2923, %v2919
        %v3916 = vpack.c.b16 %v2924, %v2920
        %v3917 = vpack.c.b16 %v2925, %v2921
        %v3918 = vpack.c.b16 %v2930, %v2926
        %v3919 = vpack.c.b16 %v2931, %v2927
        %v3920 = vpack.c.b16 %v2932, %v2928
        %v3921 = vpack.c.b16 %v2933, %v2929
        %v3922 = vpack.c.b16 %v2938, %v2934
        %v3923 = vpack.c.b16 %v2939, %v2935
        %v3924 = vpack.c.b16 %v2940, %v2936
        %v3925 = vpack.c.b16 %v2941, %v2937
        %v3926 = vpack.c.b16 %v2946, %v2942
        %v3927 = vpack.c.b16 %v2947, %v2943
        %v3928 = vpack.c.b16 %v2948, %v2944
        %v3929 = vpack.c.b16 %v2949, %v2945
        %v3930 = vpack.c.b16 %v2954, %v2950
        %v3931 = vpack.c.b16 %v2955, %v2951
        %v3932 = vpack.c.b16 %v2956, %v2952
        %v3933 = vpack.c.b16 %v2957, %v2953
        %v3934 = vpack.c.b16 %v2962, %v2958
        %v3935 = vpack.c.b16 %v2963, %v2959
        %v3936 = vpack.c.b16 %v2964, %v2960
        %v3937 = vpack.c.b16 %v2965, %v2961
        %v3938 = vpack.c.b16 %v2970, %v2966
        %v3939 = vpack.c.b16 %v2971, %v2967
        %v3940 = vpack.c.b16 %v2972, %v2968
        %v3941 = vpack.c.b16 %v2973, %v2969
        %v3942 = vpack.c.b16 %v2978, %v2974
        %v3943 = vpack.c.b16 %v2979, %v2975
        %v3944 = vpack.c.b16 %v2980, %v2976
        %v3945 = vpack.c.b16 %v2981, %v2977
        %v3946 = vpack.c.b16 %v2986, %v2982
        %v3947 = vpack.c.b16 %v2987, %v2983
        %v3948 = vpack.c.b16 %v2988, %v2984
        %v3949 = vpack.c.b16 %v2989, %v2985
        %v3950 = vpack.c.b16 %v2994, %v2990
        %v3951 = vpack.c.b16 %v2995, %v2991
        %v3952 = vpack.c.b16 %v2996, %v2992
        %v3953 = vpack.c.b16 %v2997, %v2993
        %v3954 = vpack.c.b16 %v3002, %v2998
        %v3955 = vpack.c.b16 %v3003, %v2999
        %v3956 = vpack.c.b16 %v3004, %v3000
        %v3957 = vpack.c.b16 %v3005, %v3001
        %v3958 = vpack.c.b16 %v3010, %v3006
        %v3959 = vpack.c.b16 %v3011, %v3007
        %v3960 = vpack.c.b16 %v3012, %v3008
        %v3961 = vpack.c.b16 %v3013, %v3009
        %v3962 = vpack.c.b16 %v3018, %v3014
        %v3963 = vpack.c.b16 %v3019, %v3015
        %v3964 = vpack.c.b16 %v3020, %v3016
        %v3965 = vpack.c.b16 %v3021, %v3017
        %v3966 = vpack.c.b16 %v3026, %v3022
        %v3967 = vpack.c.b16 %v3027, %v3023
        %v3968 = vpack.c.b16 %v3028, %v3024
        %v3969 = vpack.c.b16 %v3029, %v3025
        %v3970 = vpack.c.b16 %v3034, %v3030
        %v3971 = vpack.c.b16 %v3035, %v3031
        %v3972 = vpack.c.b16 %v3036, %v3032
        %v3973 = vpack.c.b16 %v3037, %v3033
        %v3974 = vpack.c.b16 %v3042, %v3038
        %v3975 = vpack.c.b16 %v3043, %v3039
        %v3976 = vpack.c.b16 %v3044, %v3040
        %v3977 = vpack.c.b16 %v3045, %v3041
        %v3978 = vpack.c.b16 %v3050, %v3046
        %v3979 = vpack.c.b16 %v3051, %v3047
        %v3980 = vpack.c.b16 %v3052, %v3048
        %v3981 = vpack.c.b16 %v3053, %v3049
        %v3982 = vpack.c.b16 %v3058, %v3054
        %v3983 = vpack.c.b16 %v3059, %v3055
        %v3984 = vpack.c.b16 %v3060, %v3056
        %v3985 = vpack.c.b16 %v3061, %v3057
        %v3986 = vpack.c.b16 %v3066, %v3062
        %v3987 = vpack.c.b16 %v3067, %v3063
        %v3988 = vpack.c.b16 %v3068, %v3064
        %v3989 = vpack.c.b16 %v3069, %v3065
        %v3990 = vpack.c.b16 %v3074, %v3070
        %v3991 = vpack.c.b16 %v3075, %v3071
        %v3992 = vpack.c.b16 %v3076, %v3072
        %v3993 = vpack.c.b16 %v3077, %v3073
        %v3994 = vpack.c.b16 %v3082, %v3078
        %v3995 = vpack.c.b16 %v3083, %v3079
        %v3996 = vpack.c.b16 %v3084, %v3080
        %v3997 = vpack.c.b16 %v3085, %v3081
        %v3998 = vpack.c.b16 %v3090, %v3086
        %v3999 = vpack.c.b16 %v3091, %v3087
        %v4000 = vpack.c.b16 %v3092, %v3088
        %v4001 = vpack.c.b16 %v3093, %v3089
        %v4002 = vpack.c.b16 %v3098, %v3094
        %v4003 = vpack.c.b16 %v3099, %v3095
        %v4004 = vpack.c.b16 %v3100, %v3096
        %v4005 = vpack.c.b16 %v3101, %v3097
        %v4006 = vpack.c.b16 %v3106, %v3102
        %v4007 = vpack.c.b16 %v3107, %v3103
        %v4008 = vpack.c.b16 %v3108, %v3104
        %v4009 = vpack.c.b16 %v3109, %v3105
        %v4010 = vpack.c.b16 %v3114, %v3110
        %v4011 = vpack.c.b16 %v3115, %v3111
        %v4012 = vpack.c.b16 %v3116, %v3112
        %v4013 = vpack.c.b16 %v3117, %v3113
        %v4014 = vpack.c.b16 %v3122, %v3118
        %v4015 = vpack.c.b16 %v3123, %v3119
        %v4016 = vpack.c.b16 %v3124, %v3120
        %v4017 = vpack.c.b16 %v3125, %v3121
        %v4018 = vpack.c.b16 %v3130, %v3126
        %v4019 = vpack.c.b16 %v3131, %v3127
        %v4020 = vpack.c.b16 %v3132, %v3128
        %v4021 = vpack.c.b16 %v3133, %v3129
        %v4022 = vpack.c.b16 %v3138, %v3134
        %v4023 = vpack.c.b16 %v3139, %v3135
        %v4024 = vpack.c.b16 %v3140, %v3136
        %v4025 = vpack.c.b16 %v3141, %v3137
        %v4026 = vpack.c.b16 %v3146, %v3142
        %v4027 = vpack.c.b16 %v3147, %v3143
        %v4028 = vpack.c.b16 %v3148, %v3144
        %v4029 = vpack.c.b16 %v3149, %v3145
        %v4030 = vpack.c.b16 %v3154, %v3150
        %v4031 = vpack.c.b16 %v3155, %v3151
        %v4032 = vpack.c.b16 %v3156, %v3152
        %v4033 = vpack.c.b16 %v3157, %v3153
        %v4034 = vpack.c.b16 %v3162, %v3158
        %v4035 = vpack.c.b16 %v3163, %v3159
        %v4036 = vpack.c.b16 %v3164, %v3160
        %v4037 = vpack.c.b16 %v3165, %v3161
        %v4038 = vpack.c.b16 %v3170, %v3166
        %v4039 = vpack.c.b16 %v3171, %v3167
        %v4040 = vpack.c.b16 %v3172, %v3168
        %v4041 = vpack.c.b16 %v3173, %v3169
        %v4042 = vpack.c.b16 %v3178, %v3174
        %v4043 = vpack.c.b16 %v3179, %v3175
        %v4044 = vpack.c.b16 %v3180, %v3176
        %v4045 = vpack.c.b16 %v3181, %v3177
        %v4046 = vpack.c.b16 %v3186, %v3182
        %v4047 = vpack.c.b16 %v3187, %v3183
        %v4048 = vpack.c.b16 %v3188, %v3184
        %v4049 = vpack.c.b16 %v3189, %v3185
        %v4050 = vpack.c.b16 %v3194, %v3190
        %v4051 = vpack.c.b16 %v3195, %v3191
        %v4052 = vpack.c.b16 %v3196, %v3192
        %v4053 = vpack.c.b16 %v3197, %v3193
        %v4054 = vpack.c.b16 %v3202, %v3198
        %v4055 = vpack.c.b16 %v3203, %v3199
        %v4056 = vpack.c.b16 %v3204, %v3200
        %v4057 = vpack.c.b16 %v3205, %v3201
        %v4058 = vpack.c.b16 %v3210, %v3206
        %v4059 = vpack.c.b16 %v3211, %v3207
        %v4060 = vpack.c.b16 %v3212, %v3208
        %v4061 = vpack.c.b16 %v3213, %v3209
        %v4062 = vpack.c.b16 %v3218, %v3214
        %v4063 = vpack.c.b16 %v3219, %v3215
        %v4064 = vpack.c.b16 %v3220, %v3216
        %v4065 = vpack.c.b16 %v3221, %v3217
        %v4066 = vpack.c.b16 %v3226, %v3222
        %v4067 = vpack.c.b16 %v3227, %v3223
        %v4068 = vpack.c.b16 %v3228, %v3224
        %v4069 = vpack.c.b16 %v3229, %v3225
        %v4070 = vpack.c.b16 %v3234, %v3230
        %v4071 = vpack.c.b16 %v3235, %v3231
        %v4072 = vpack.c.b16 %v3236, %v3232
        %v4073 = vpack.c.b16 %v3237, %v3233
        %v4074 = vpack.c.b16 %v3242, %v3238
        %v4075 = vpack.c.b16 %v3243, %v3239
        %v4076 = vpack.c.b16 %v3244, %v3240
        %v4077 = vpack.c.b16 %v3245, %v3241
        %v4078 = vpack.c.b16 %v3250, %v3246
        %v4079 = vpack.c.b16 %v3251, %v3247
        %v4080 = vpack.c.b16 %v3252, %v3248
        %v4081 = vpack.c.b16 %v3253, %v3249
        %v4082 = vpack.c.b16 %v3258, %v3254
        %v4083 = vpack.c.b16 %v3259, %v3255
        %v4084 = vpack.c.b16 %v3260, %v3256
        %v4085 = vpack.c.b16 %v3261, %v3257
        %v4086 = vpack.c.b16 %v3266, %v3262
        %v4087 = vpack.c.b16 %v3267, %v3263
        %v4088 = vpack.c.b16 %v3268, %v3264
        %v4089 = vpack.c.b16 %v3269, %v3265
        %v4090 = vpack.c.b16 %v3274, %v3270
        %v4091 = vpack.c.b16 %v3275, %v3271
        %v4092 = vpack.c.b16 %v3276, %v3272
        %v4093 = vpack.c.b16 %v3277, %v3273
        %v4094 = vpack.c.b16 %v3282, %v3278
        %v4095 = vpack.c.b16 %v3283, %v3279
        %v4096 = vpack.c.b16 %v3284, %v3280
        %v4097 = vpack.c.b16 %v3285, %v3281
        %v4098 = vpack.c.b16 %v3290, %v3286
        %v4099 = vpack.c.b16 %v3291, %v3287
        %v4100 = vpack.c.b16 %v3292, %v3288
        %v4101 = vpack.c.b16 %v3293, %v3289
        %v4102 = vpack.c.b16 %v3298, %v3294
        %v4103 = vpack.c.b16 %v3299, %v3295
        %v4104 = vpack.c.b16 %v3300, %v3296
        %v4105 = vpack.c.b16 %v3301, %v3297
        %v4106 = vpack.c.b16 %v3306, %v3302
        %v4107 = vpack.c.b16 %v3307, %v3303
        %v4108 = vpack.c.b16 %v3308, %v3304
        %v4109 = vpack.c.b16 %v3309, %v3305
        %v4110 = vpack.c.b16 %v3314, %v3310
        %v4111 = vpack.c.b16 %v3315, %v3311
        %v4112 = vpack.c.b16 %v3316, %v3312
        %v4113 = vpack.c.b16 %v3317, %v3313
        %v4114 = vpack.c.b16 %v3322, %v3318
        %v4115 = vpack.c.b16 %v3323, %v3319
        %v4116 = vpack.c.b16 %v3324, %v3320
        %v4117 = vpack.c.b16 %v3325, %v3321
        %v4118 = vpack.c.b16 %v3330, %v3326
        %v4119 = vpack.c.b16 %v3331, %v3327
        %v4120 = vpack.c.b16 %v3332, %v3328
        %v4121 = vpack.c.b16 %v3333, %v3329
        %v4122 = vpack.c.b16 %v3338, %v3334
        %v4123 = vpack.c.b16 %v3339, %v3335
        %v4124 = vpack.c.b16 %v3340, %v3336
        %v4125 = vpack.c.b16 %v3341, %v3337
        %v4126 = vpack.c.b16 %v3346, %v3342
        %v4127 = vpack.c.b16 %v3347, %v3343
        %v4128 = vpack.c.b16 %v3348, %v3344
        %v4129 = vpack.c.b16 %v3349, %v3345
        %v4130 = vpack.c.b16 %v3354, %v3350
        %v4131 = vpack.c.b16 %v3355, %v3351
        %v4132 = vpack.c.b16 %v3356, %v3352
        %v4133 = vpack.c.b16 %v3357, %v3353
        %v4134 = vpack.c.b16 %v3362, %v3358
        %v4135 = vpack.c.b16 %v3363, %v3359
        %v4136 = vpack.c.b16 %v3364, %v3360
        %v4137 = vpack.c.b16 %v3365, %v3361
        %v4138 = vpack.c.b16 %v3370, %v3366
        %v4139 = vpack.c.b16 %v3371, %v3367
        %v4140 = vpack.c.b16 %v3372, %v3368
        %v4141 = vpack.c.b16 %v3373, %v3369
        %v4142 = vpack.c.b16 %v3378, %v3374
        %v4143 = vpack.c.b16 %v3379, %v3375
        %v4144 = vpack.c.b16 %v3380, %v3376
        %v4145 = vpack.c.b16 %v3381, %v3377
        %v4146 = vpack.c.b16 %v3386, %v3382
        %v4147 = vpack.c.b16 %v3387, %v3383
        %v4148 = vpack.c.b16 %v3388, %v3384
        %v4149 = vpack.c.b16 %v3389, %v3385
        %v4150 = vpack.c.b16 %v3394, %v3390
        %v4151 = vpack.c.b16 %v3395, %v3391
        %v4152 = vpack.c.b16 %v3396, %v3392
        %v4153 = vpack.c.b16 %v3397, %v3393
        %v4154 = vpack.c.b16 %v3402, %v3398
        %v4155 = vpack.c.b16 %v3403, %v3399
        %v4156 = vpack.c.b16 %v3404, %v3400
        %v4157 = vpack.c.b16 %v3405, %v3401
        %v4158 = vpack.c.b16 %v3410, %v3406
        %v4159 = vpack.c.b16 %v3411, %v3407
        %v4160 = vpack.c.b16 %v3412, %v3408
        %v4161 = vpack.c.b16 %v3413, %v3409
        %v4162 = vpack.c.b16 %v3418, %v3414
        %v4163 = vpack.c.b16 %v3419, %v3415
        %v4164 = vpack.c.b16 %v3420, %v3416
        %v4165 = vpack.c.b16 %v3421, %v3417
        %v4166 = vpack.c.b16 %v3426, %v3422
        %v4167 = vpack.c.b16 %v3427, %v3423
        %v4168 = vpack.c.b16 %v3428, %v3424
        %v4169 = vpack.c.b16 %v3429, %v3425
        %v4170 = vpack.c.b16 %v3434, %v3430
        %v4171 = vpack.c.b16 %v3435, %v3431
        %v4172 = vpack.c.b16 %v3436, %v3432
        %v4173 = vpack.c.b16 %v3437, %v3433
        %v4174 = vpack.c.b16 %v3442, %v3438
        %v4175 = vpack.c.b16 %v3443, %v3439
        %v4176 = vpack.c.b16 %v3444, %v3440
        %v4177 = vpack.c.b16 %v3445, %v3441
        %v4178 = vpack.c.b16 %v3450, %v3446
        %v4179 = vpack.c.b16 %v3451, %v3447
        %v4180 = vpack.c.b16 %v3452, %v3448
        %v4181 = vpack.c.b16 %v3453, %v3449
        %v4182 = vpack.c.b16 %v3458, %v3454
        %v4183 = vpack.c.b16 %v3459, %v3455
        %v4184 = vpack.c.b16 %v3460, %v3456
        %v4185 = vpack.c.b16 %v3461, %v3457
        %v4186 = vpack.c.b16 %v3466, %v3462
        %v4187 = vpack.c.b16 %v3467, %v3463
        %v4188 = vpack.c.b16 %v3468, %v3464
        %v4189 = vpack.c.b16 %v3469, %v3465
        %v4190 = vpack.c.b16 %v3474, %v3470
        %v4191 = vpack.c.b16 %v3475, %v3471
        %v4192 = vpack.c.b16 %v3476, %v3472
        %v4193 = vpack.c.b16 %v3477, %v3473
        %v4194 = vpack.c.b16 %v3482, %v3478
        %v4195 = vpack.c.b16 %v3483, %v3479
        %v4196 = vpack.c.b16 %v3484, %v3480
        %v4197 = vpack.c.b16 %v3485, %v3481
        %v4198 = vpack.c.b16 %v3490, %v3486
        %v4199 = vpack.c.b16 %v3491, %v3487
        %v4200 = vpack.c.b16 %v3492, %v3488
        %v4201 = vpack.c.b16 %v3493, %v3489
        %v4202 = vpack.c.b16 %v3498, %v3494
        %v4203 = vpack.c.b16 %v3499, %v3495
        %v4204 = vpack.c.b16 %v3500, %v3496
        %v4205 = vpack.c.b16 %v3501, %v3497
        %v4206 = vpack.c.b16 %v3506, %v3502
        %v4207 = vpack.c.b16 %v3507, %v3503
        %v4208 = vpack.c.b16 %v3508, %v3504
        %v4209 = vpack.c.b16 %v3509, %v3505
        %v4210 = vpack.c.b16 %v3514, %v3510
        %v4211 = vpack.c.b16 %v3515, %v3511
        %v4212 = vpack.c.b16 %v3516, %v3512
        %v4213 = vpack.c.b16 %v3517, %v3513
        %v4214 = vpack.c.b16 %v3522, %v3518
        %v4215 = vpack.c.b16 %v3523, %v3519
        %v4216 = vpack.c.b16 %v3524, %v3520
        %v4217 = vpack.c.b16 %v3525, %v3521
        %v4218 = vpack.c.b16 %v3530, %v3526
        %v4219 = vpack.c.b16 %v3531, %v3527
        %v4220 = vpack.c.b16 %v3532, %v3528
        %v4221 = vpack.c.b16 %v3533, %v3529
        %v4222 = vpack.c.b16 %v3538, %v3534
        %v4223 = vpack.c.b16 %v3539, %v3535
        %v4224 = vpack.c.b16 %v3540, %v3536
        %v4225 = vpack.c.b16 %v3541, %v3537
        %v4226 = vpack.c.b16 %v3546, %v3542
        %v4227 = vpack.c.b16 %v3547, %v3543
        %v4228 = vpack.c.b16 %v3548, %v3544
        %v4229 = vpack.c.b16 %v3549, %v3545
        %v4230 = vpack.c.b16 %v3554, %v3550
        %v4231 = vpack.c.b16 %v3555, %v3551
        %v4232 = vpack.c.b16 %v3556, %v3552
        %v4233 = vpack.c.b16 %v3557, %v3553
        %v4234 = vpack.c.b16 %v3562, %v3558
        %v4235 = vpack.c.b16 %v3563, %v3559
        %v4236 = vpack.c.b16 %v3564, %v3560
        %v4237 = vpack.c.b16 %v3565, %v3561
        %v4238 = vpack.c.b16 %v3570, %v3566
        %v4239 = vpack.c.b16 %v3571, %v3567
        %v4240 = vpack.c.b16 %v3572, %v3568
        %v4241 = vpack.c.b16 %v3573, %v3569
        %v4242 = vpack.c.b16 %v3578, %v3574
        %v4243 = vpack.c.b16 %v3579, %v3575
        %v4244 = vpack.c.b16 %v3580, %v3576
        %v4245 = vpack.c.b16 %v3581, %v3577
        %v4246 = vpack.c.b16 %v3586, %v3582
        %v4247 = vpack.c.b16 %v3587, %v3583
        %v4248 = vpack.c.b16 %v3588, %v3584
        %v4249 = vpack.c.b16 %v3589, %v3585
        %v4250 = vpack.c.b16 %v3594, %v3590
        %v4251 = vpack.c.b16 %v3595, %v3591
        %v4252 = vpack.c.b16 %v3596, %v3592
        %v4253 = vpack.c.b16 %v3597, %v3593
        %v4254 = vpack.c.b16 %v3602, %v3598
        %v4255 = vpack.c.b16 %v3603, %v3599
        %v4256 = vpack.c.b16 %v3604, %v3600
        %v4257 = vpack.c.b16 %v3605, %v3601
        %v4258 = vpack.c.b16 %v3610, %v3606
        %v4259 = vpack.c.b16 %v3611, %v3607
        %v4260 = vpack.c.b16 %v3612, %v3608
        %v4261 = vpack.c.b16 %v3613, %v3609
        %v4262 = vpack.c.b16 %v3618, %v3614
        %v4263 = vpack.c.b16 %v3619, %v3615
        %v4264 = vpack.c.b16 %v3620, %v3616
        %v4265 = vpack.c.b16 %v3621, %v3617
        %v4266 = vpack.c.b16 %v3626, %v3622
        %v4267 = vpack.c.b16 %v3627, %v3623
        %v4268 = vpack.c.b16 %v3628, %v3624
        %v4269 = vpack.c.b16 %v3629, %v3625
        %v4270 = vpack.c.b16 %v3634, %v3630
        %v4271 = vpack.c.b16 %v3635, %v3631
        %v4272 = vpack.c.b16 %v3636, %v3632
        %v4273 = vpack.c.b16 %v3637, %v3633
        %v4274 = vpack.c.b16 %v3642, %v3638
        %v4275 = vpack.c.b16 %v3643, %v3639
        %v4276 = vpack.c.b16 %v3644, %v3640
        %v4277 = vpack.c.b16 %v3645, %v3641
        %v4278 = vpack.c.b16 %v3650, %v3646
        %v4279 = vpack.c.b16 %v3651, %v3647
        %v4280 = vpack.c.b16 %v3652, %v3648
        %v4281 = vpack.c.b16 %v3653, %v3649
        %v4282 = vpack.c.b16 %v3658, %v3654
        %v4283 = vpack.c.b16 %v3659, %v3655
        %v4284 = vpack.c.b16 %v3660, %v3656
        %v4285 = vpack.c.b16 %v3661, %v3657
        %v4286 = vpack.c.b16 %v3666, %v3662
        %v4287 = vpack.c.b16 %v3667, %v3663
        %v4288 = vpack.c.b16 %v3668, %v3664
        %v4289 = vpack.c.b16 %v3669, %v3665
        %v4290 = vpack.c.b16 %v3674, %v3670
        %v4291 = vpack.c.b16 %v3675, %v3671
        %v4292 = vpack.c.b16 %v3676, %v3672
        %v4293 = vpack.c.b16 %v3677, %v3673
        %v4294 = vpack.c.b16 %v3682, %v3678
        %v4295 = vpack.c.b16 %v3683, %v3679
        %v4296 = vpack.c.b16 %v3684, %v3680
        %v4297 = vpack.c.b16 %v3685, %v3681
        %v4298 = vpack.c.b16 %v3690, %v3686
        %v4299 = vpack.c.b16 %v3691, %v3687
        %v4300 = vpack.c.b16 %v3692, %v3688
        %v4301 = vpack.c.b16 %v3693, %v3689
        %v4302 = vpack.c.b16 %v3698, %v3694
        %v4303 = vpack.c.b16 %v3699, %v3695
        %v4304 = vpack.c.b16 %v3700, %v3696
        %v4305 = vpack.c.b16 %v3701, %v3697
        %v4306 = vpack.c.b16 %v3706, %v3702
        %v4307 = vpack.c.b16 %v3707, %v3703
        %v4308 = vpack.c.b16 %v3708, %v3704
        %v4309 = vpack.c.b16 %v3709, %v3705
        %v4310 = vpack.c.b16 %v3714, %v3710
        %v4311 = vpack.c.b16 %v3715, %v3711
        %v4312 = vpack.c.b16 %v3716, %v3712
        %v4313 = vpack.c.b16 %v3717, %v3713
        %v4314 = vpack.c.b16 %v3722, %v3718
        %v4315 = vpack.c.b16 %v3723, %v3719
        %v4316 = vpack.c.b16 %v3724, %v3720
        %v4317 = vpack.c.b16 %v3725, %v3721
        %v4318 = vpack.c.b16 %v3730, %v3726
        %v4319 = vpack.c.b16 %v3731, %v3727
        %v4320 = vpack.c.b16 %v3732, %v3728
        %v4321 = vpack.c.b16 %v3733, %v3729
        %v4322 = vpack.c.b16 %v3738, %v3734
        %v4323 = vpack.c.b16 %v3739, %v3735
        %v4324 = vpack.c.b16 %v3740, %v3736
        %v4325 = vpack.c.b16 %v3741, %v3737
        %v4326 = vpack.c.b16 %v3746, %v3742
        %v4327 = vpack.c.b16 %v3747, %v3743
        %v4328 = vpack.c.b16 %v3748, %v3744
        %v4329 = vpack.c.b16 %v3749, %v3745
        %v4330 = vpack.c.b16 %v3754, %v3750
        %v4331 = vpack.c.b16 %v3755, %v3751
        %v4332 = vpack.c.b16 %v3756, %v3752
        %v4333 = vpack.c.b16 %v3757, %v3753
        %v4334 = vpack.c.b16 %v3762, %v3758
        %v4335 = vpack.c.b16 %v3763, %v3759
        %v4336 = vpack.c.b16 %v3764, %v3760
        %v4337 = vpack.c.b16 %v3765, %v3761
        %v4338 = vpack.c.b16 %v3770, %v3766
        %v4339 = vpack.c.b16 %v3771, %v3767
        %v4340 = vpack.c.b16 %v3772, %v3768
        %v4341 = vpack.c.b16 %v3773, %v3769
        %v4342 = vpack.c.b16 %v3778, %v3774
        %v4343 = vpack.c.b16 %v3779, %v3775
        %v4344 = vpack.c.b16 %v3780, %v3776
        %v4345 = vpack.c.b16 %v3781, %v3777
        %v4346 = vpack.c.b16 %v3786, %v3782
        %v4347 = vpack.c.b16 %v3787, %v3783
        %v4348 = vpack.c.b16 %v3788, %v3784
        %v4349 = vpack.c.b16 %v3789, %v3785
        %v4350 = vpack.c.b16 %v3794, %v3790
        %v4351 = vpack.c.b16 %v3795, %v3791
        %v4352 = vpack.c.b16 %v3796, %v3792
        %v4353 = vpack.c.b16 %v3797, %v3793
        %v4354 = vpack.c.b16 %v3802, %v3798
        %v4355 = vpack.c.b16 %v3803, %v3799
        %v4356 = vpack.c.b16 %v3804, %v3800
        %v4357 = vpack.c.b16 %v3805, %v3801
        %v4358 = vpack.c.b16 %v3810, %v3806
        %v4359 = vpack.c.b16 %v3811, %v3807
        %v4360 = vpack.c.b16 %v3812, %v3808
        %v4361 = vpack.c.b16 %v3813, %v3809
        %v4362 = vpack.c.b16 %v3818, %v3814
        %v4363 = vpack.c.b16 %v3819, %v3815
        %v4364 = vpack.c.b16 %v3820, %v3816
        %v4365 = vpack.c.b16 %v3821, %v3817
        %v4366 = vpack.c.b16 %v3826, %v3822
        %v4367 = vpack.c.b16 %v3827, %v3823
        %v4368 = vpack.c.b16 %v3828, %v3824
        %v4369 = vpack.c.b16 %v3829, %v3825
        %v4370 = vpack.c.b16 %v3834, %v3830
        %v4371 = vpack.c.b16 %v3835, %v3831
        %v4372 = vpack.c.b16 %v3836, %v3832
        %v4373 = vpack.c.b16 %v3837, %v3833
        %v4374 = vpack.c.b16 %v3842, %v3838
        %v4375 = vpack.c.b16 %v3843, %v3839
        %v4376 = vpack.c.b16 %v3844, %v3840
        %v4377 = vpack.c.b16 %v3845, %v3841
        %v4378 = vpack.c.b16 %v3850, %v3846
        %v4379 = vpack.c.b16 %v3851, %v3847
        %v4380 = vpack.c.b16 %v3852, %v3848
        %v4381 = vpack.c.b16 %v3853, %v3849
        %v4382 = vpack.c.b16 %v3858, %v3854
        %v4383 = vpack.c.b16 %v3859, %v3855
        %v4384 = vpack.c.b16 %v3860, %v3856
        %v4385 = vpack.c.b16 %v3861, %v3857
        %v4386 = vpack.c.b16 %v3866, %v3862
        %v4387 = vpack.c.b16 %v3867, %v3863
        %v4388 = vpack.c.b16 %v3868, %v3864
        %v4389 = vpack.c.b16 %v3869, %v3865
        %v4390 = vpack.c.b16 %v3874, %v3870
        %v4391 = vpack.c.b16 %v3875, %v3871
        %v4392 = vpack.c.b16 %v3876, %v3872
        %v4393 = vpack.c.b16 %v3877, %v3873
        %v4394 = vpack.c.b16 %v3882, %v3878
        %v4395 = vpack.c.b16 %v3883, %v3879
        %v4396 = vpack.c.b16 %v3884, %v3880
        %v4397 = vpack.c.b16 %v3885, %v3881
        %4910 = vmatpush.bf16.msra.mxu0 %v3914
        %4911 = vmatpush.bf16.msra.mxu0 %v3910
        %4912 = vmatpush.bf16.msra.mxu0 %v3906
        %4913 = vmatpush.bf16.msra.mxu0 %v3902
        %4914 = vmatpush.bf16.msra.mxu0 %v3898
        %4915 = vmatpush.bf16.msra.mxu0 %v3894
        %4916 = vmatpush.bf16.msra.mxu0 %v3890
        %4917 = vmatpush.bf16.msra.mxu0 %v3886
        %4918 = vmatmul.bf16.gmra.mxu0 %v1758
        %v4919 = vpop.f32.mrf.mxu0
        %v4920 = vadd.f32 0.0, %v4919
        %v4921 = vpop.f32.mrf.mxu0
        %v4922 = vadd.f32 0.0, %v4921
        %4923 = vmatmul.bf16.gmra.mxu0 %v1774
        %v4924 = vpop.f32.mrf.mxu0
        %v4925 = vadd.f32 0.0, %v4924
        %v4926 = vpop.f32.mrf.mxu0
        %v4927 = vadd.f32 0.0, %v4926
        %4928 = vmatmul.bf16.gmra.mxu0 %v1790
        %v4929 = vpop.f32.mrf.mxu0
        %v4930 = vadd.f32 0.0, %v4929
        %v4931 = vpop.f32.mrf.mxu0
        %v4932 = vadd.f32 0.0, %v4931
        %4933 = vmatmul.bf16.gmra.mxu0 %v1806
        %v4934 = vpop.f32.mrf.mxu0
        %v4935 = vadd.f32 0.0, %v4934
        %v4936 = vpop.f32.mrf.mxu0
        %v4937 = vadd.f32 0.0, %v4936
        %4938 = vmatmul.bf16.gmra.mxu0 %v1822
        %v4939 = vpop.f32.mrf.mxu0
        %v4940 = vadd.f32 0.0, %v4939
        %v4941 = vpop.f32.mrf.mxu0
        %4942 = vdwg.mxu0
        %4943 = vmatpush.bf16.msra.mxu0 %v3946
        %4944 = vmatpush.bf16.msra.mxu0 %v3942
        %4945 = vmatpush.bf16.msra.mxu0 %v3938
        %4946 = vmatpush.bf16.msra.mxu0 %v3934
        %4947 = vmatpush.bf16.msra.mxu0 %v3930
        %4948 = vmatpush.bf16.msra.mxu0 %v3926
        %4949 = vmatpush.bf16.msra.mxu0 %v3922
        %4950 = vmatpush.bf16.msra.mxu0 %v3918
        %4951 = vmatmul.bf16.gmra.mxu0 %v1759
        %v4952 = vpop.f32.mrf.mxu0
        %v4953 = vadd.f32 %v4920, %v4952
        %v4954 = vpop.f32.mrf.mxu0
        %v4955 = vadd.f32 %v4922, %v4954
        %4956 = vmatmul.bf16.gmra.mxu0 %v1775
        %v4957 = vpop.f32.mrf.mxu0
        %v4958 = vadd.f32 %v4925, %v4957
        %v4959 = vpop.f32.mrf.mxu0
        %v4960 = vadd.f32 %v4927, %v4959
        %4961 = vmatmul.bf16.gmra.mxu0 %v1791
        %v4962 = vpop.f32.mrf.mxu0
        %v4963 = vadd.f32 %v4930, %v4962
        %v4964 = vpop.f32.mrf.mxu0
        %v4965 = vadd.f32 %v4932, %v4964
        %4966 = vmatmul.bf16.gmra.mxu0 %v1807
        %v4967 = vpop.f32.mrf.mxu0
        %v4968 = vadd.f32 %v4935, %v4967
        %v4969 = vpop.f32.mrf.mxu0
        %v4970 = vadd.f32 %v4937, %v4969
        %4971 = vmatmul.bf16.gmra.mxu0 %v1823
        %v4972 = vpop.f32.mrf.mxu0
        %v4973 = vadd.f32 %v4940, %v4972
        %v4974 = vpop.f32.mrf.mxu0
        %4975 = vdwg.mxu0
        %4976 = vmatpush.bf16.msra.mxu0 %v3978
        %4977 = vmatpush.bf16.msra.mxu0 %v3974
        %4978 = vmatpush.bf16.msra.mxu0 %v3970
        %4979 = vmatpush.bf16.msra.mxu0 %v3966
        %4980 = vmatpush.bf16.msra.mxu0 %v3962
        %4981 = vmatpush.bf16.msra.mxu0 %v3958
        %4982 = vmatpush.bf16.msra.mxu0 %v3954
        %4983 = vmatpush.bf16.msra.mxu0 %v3950
        %4984 = vmatmul.bf16.gmra.mxu0 %v1760
        %v4985 = vpop.f32.mrf.mxu0
        %v4986 = vadd.f32 %v4953, %v4985
        %v4987 = vpop.f32.mrf.mxu0
        %v4988 = vadd.f32 %v4955, %v4987
        %4989 = vmatmul.bf16.gmra.mxu0 %v1776
        %v4990 = vpop.f32.mrf.mxu0
        %v4991 = vadd.f32 %v4958, %v4990
        %v4992 = vpop.f32.mrf.mxu0
        %v4993 = vadd.f32 %v4960, %v4992
        %4994 = vmatmul.bf16.gmra.mxu0 %v1792
        %v4995 = vpop.f32.mrf.mxu0
        %v4996 = vadd.f32 %v4963, %v4995
        %v4997 = vpop.f32.mrf.mxu0
        %v4998 = vadd.f32 %v4965, %v4997
        %4999 = vmatmul.bf16.gmra.mxu0 %v1808
        %v5000 = vpop.f32.mrf.mxu0
        %v5001 = vadd.f32 %v4968, %v5000
        %v5002 = vpop.f32.mrf.mxu0
        %v5003 = vadd.f32 %v4970, %v5002
        %5004 = vmatmul.bf16.gmra.mxu0 %v1824
        %v5005 = vpop.f32.mrf.mxu0
        %v5006 = vadd.f32 %v4973, %v5005
        %v5007 = vpop.f32.mrf.mxu0
        %5008 = vdwg.mxu0
        %5009 = vmatpush.bf16.msra.mxu0 %v4010
        %5010 = vmatpush.bf16.msra.mxu0 %v4006
        %5011 = vmatpush.bf16.msra.mxu0 %v4002
        %5012 = vmatpush.bf16.msra.mxu0 %v3998
        %5013 = vmatpush.bf16.msra.mxu0 %v3994
        %5014 = vmatpush.bf16.msra.mxu0 %v3990
        %5015 = vmatpush.bf16.msra.mxu0 %v3986
        %5016 = vmatpush.bf16.msra.mxu0 %v3982
        %5017 = vmatmul.bf16.gmra.mxu0 %v1761
        %v5018 = vpop.f32.mrf.mxu0
        %v5019 = vadd.f32 %v4986, %v5018
        %v5020 = vpop.f32.mrf.mxu0
        %v5021 = vadd.f32 %v4988, %v5020
        %5022 = vmatmul.bf16.gmra.mxu0 %v1777
        %v5023 = vpop.f32.mrf.mxu0
        %v5024 = vadd.f32 %v4991, %v5023
        %v5025 = vpop.f32.mrf.mxu0
        %v5026 = vadd.f32 %v4993, %v5025
        %5027 = vmatmul.bf16.gmra.mxu0 %v1793
        %v5028 = vpop.f32.mrf.mxu0
        %v5029 = vadd.f32 %v4996, %v5028
        %v5030 = vpop.f32.mrf.mxu0
        %v5031 = vadd.f32 %v4998, %v5030
        %5032 = vmatmul.bf16.gmra.mxu0 %v1809
        %v5033 = vpop.f32.mrf.mxu0
        %v5034 = vadd.f32 %v5001, %v5033
        %v5035 = vpop.f32.mrf.mxu0
        %v5036 = vadd.f32 %v5003, %v5035
        %5037 = vmatmul.bf16.gmra.mxu0 %v1825
        %v5038 = vpop.f32.mrf.mxu0
        %v5039 = vadd.f32 %v5006, %v5038
        %v5040 = vpop.f32.mrf.mxu0
        %5041 = vdwg.mxu0
        %5042 = vmatpush.bf16.msra.mxu0 %v4042
        %5043 = vmatpush.bf16.msra.mxu0 %v4038
        %5044 = vmatpush.bf16.msra.mxu0 %v4034
        %5045 = vmatpush.bf16.msra.mxu0 %v4030
        %5046 = vmatpush.bf16.msra.mxu0 %v4026
        %5047 = vmatpush.bf16.msra.mxu0 %v4022
        %5048 = vmatpush.bf16.msra.mxu0 %v4018
        %5049 = vmatpush.bf16.msra.mxu0 %v4014
        %5050 = vmatmul.bf16.gmra.mxu0 %v1762
        %v5051 = vpop.f32.mrf.mxu0
        %v5052 = vadd.f32 %v5019, %v5051
        %v5053 = vpop.f32.mrf.mxu0
        %v5054 = vadd.f32 %v5021, %v5053
        %5055 = vmatmul.bf16.gmra.mxu0 %v1778
        %v5056 = vpop.f32.mrf.mxu0
        %v5057 = vadd.f32 %v5024, %v5056
        %v5058 = vpop.f32.mrf.mxu0
        %v5059 = vadd.f32 %v5026, %v5058
        %5060 = vmatmul.bf16.gmra.mxu0 %v1794
        %v5061 = vpop.f32.mrf.mxu0
        %v5062 = vadd.f32 %v5029, %v5061
        %v5063 = vpop.f32.mrf.mxu0
        %v5064 = vadd.f32 %v5031, %v5063
        %5065 = vmatmul.bf16.gmra.mxu0 %v1810
        %v5066 = vpop.f32.mrf.mxu0
        %v5067 = vadd.f32 %v5034, %v5066
        %v5068 = vpop.f32.mrf.mxu0
        %v5069 = vadd.f32 %v5036, %v5068
        %5070 = vmatmul.bf16.gmra.mxu0 %v1826
        %v5071 = vpop.f32.mrf.mxu0
        %v5072 = vadd.f32 %v5039, %v5071
        %v5073 = vpop.f32.mrf.mxu0
        %5074 = vdwg.mxu0
        %5075 = vmatpush.bf16.msra.mxu0 %v4074
        %5076 = vmatpush.bf16.msra.mxu0 %v4070
        %5077 = vmatpush.bf16.msra.mxu0 %v4066
        %5078 = vmatpush.bf16.msra.mxu0 %v4062
        %5079 = vmatpush.bf16.msra.mxu0 %v4058
        %5080 = vmatpush.bf16.msra.mxu0 %v4054
        %5081 = vmatpush.bf16.msra.mxu0 %v4050
        %5082 = vmatpush.bf16.msra.mxu0 %v4046
        %5083 = vmatmul.bf16.gmra.mxu0 %v1763
        %v5084 = vpop.f32.mrf.mxu0
        %v5085 = vadd.f32 %v5052, %v5084
        %v5086 = vpop.f32.mrf.mxu0
        %v5087 = vadd.f32 %v5054, %v5086
        %5088 = vmatmul.bf16.gmra.mxu0 %v1779
        %v5089 = vpop.f32.mrf.mxu0
        %v5090 = vadd.f32 %v5057, %v5089
        %v5091 = vpop.f32.mrf.mxu0
        %v5092 = vadd.f32 %v5059, %v5091
        %5093 = vmatmul.bf16.gmra.mxu0 %v1795
        %v5094 = vpop.f32.mrf.mxu0
        %v5095 = vadd.f32 %v5062, %v5094
        %v5096 = vpop.f32.mrf.mxu0
        %v5097 = vadd.f32 %v5064, %v5096
        %5098 = vmatmul.bf16.gmra.mxu0 %v1811
        %v5099 = vpop.f32.mrf.mxu0
        %v5100 = vadd.f32 %v5067, %v5099
        %v5101 = vpop.f32.mrf.mxu0
        %v5102 = vadd.f32 %v5069, %v5101
        %5103 = vmatmul.bf16.gmra.mxu0 %v1827
        %v5104 = vpop.f32.mrf.mxu0
        %v5105 = vadd.f32 %v5072, %v5104
        %v5106 = vpop.f32.mrf.mxu0
        %5107 = vdwg.mxu0
        %5108 = vmatpush.bf16.msra.mxu0 %v4106
        %5109 = vmatpush.bf16.msra.mxu0 %v4102
        %5110 = vmatpush.bf16.msra.mxu0 %v4098
        %5111 = vmatpush.bf16.msra.mxu0 %v4094
        %5112 = vmatpush.bf16.msra.mxu0 %v4090
        %5113 = vmatpush.bf16.msra.mxu0 %v4086
        %5114 = vmatpush.bf16.msra.mxu0 %v4082
        %5115 = vmatpush.bf16.msra.mxu0 %v4078
        %5116 = vmatmul.bf16.gmra.mxu0 %v1764
        %v5117 = vpop.f32.mrf.mxu0
        %v5118 = vadd.f32 %v5085, %v5117
        %v5119 = vpop.f32.mrf.mxu0
        %v5120 = vadd.f32 %v5087, %v5119
        %5121 = vmatmul.bf16.gmra.mxu0 %v1780
        %v5122 = vpop.f32.mrf.mxu0
        %v5123 = vadd.f32 %v5090, %v5122
        %v5124 = vpop.f32.mrf.mxu0
        %v5125 = vadd.f32 %v5092, %v5124
        %5126 = vmatmul.bf16.gmra.mxu0 %v1796
        %v5127 = vpop.f32.mrf.mxu0
        %v5128 = vadd.f32 %v5095, %v5127
        %v5129 = vpop.f32.mrf.mxu0
        %v5130 = vadd.f32 %v5097, %v5129
        %5131 = vmatmul.bf16.gmra.mxu0 %v1812
        %v5132 = vpop.f32.mrf.mxu0
        %v5133 = vadd.f32 %v5100, %v5132
        %v5134 = vpop.f32.mrf.mxu0
        %v5135 = vadd.f32 %v5102, %v5134
        %5136 = vmatmul.bf16.gmra.mxu0 %v1828
        %v5137 = vpop.f32.mrf.mxu0
        %v5138 = vadd.f32 %v5105, %v5137
        %v5139 = vpop.f32.mrf.mxu0
        %5140 = vdwg.mxu0
        %5141 = vmatpush.bf16.msra.mxu0 %v4138
        %5142 = vmatpush.bf16.msra.mxu0 %v4134
        %5143 = vmatpush.bf16.msra.mxu0 %v4130
        %5144 = vmatpush.bf16.msra.mxu0 %v4126
        %5145 = vmatpush.bf16.msra.mxu0 %v4122
        %5146 = vmatpush.bf16.msra.mxu0 %v4118
        %5147 = vmatpush.bf16.msra.mxu0 %v4114
        %5148 = vmatpush.bf16.msra.mxu0 %v4110
        %5149 = vmatmul.bf16.gmra.mxu0 %v1765
        %v5150 = vpop.f32.mrf.mxu0
        %v5151 = vadd.f32 %v5118, %v5150
        %v5152 = vpop.f32.mrf.mxu0
        %v5153 = vadd.f32 %v5120, %v5152
        %5154 = vmatmul.bf16.gmra.mxu0 %v1781
        %v5155 = vpop.f32.mrf.mxu0
        %v5156 = vadd.f32 %v5123, %v5155
        %v5157 = vpop.f32.mrf.mxu0
        %v5158 = vadd.f32 %v5125, %v5157
        %5159 = vmatmul.bf16.gmra.mxu0 %v1797
        %v5160 = vpop.f32.mrf.mxu0
        %v5161 = vadd.f32 %v5128, %v5160
        %v5162 = vpop.f32.mrf.mxu0
        %v5163 = vadd.f32 %v5130, %v5162
        %5164 = vmatmul.bf16.gmra.mxu0 %v1813
        %v5165 = vpop.f32.mrf.mxu0
        %v5166 = vadd.f32 %v5133, %v5165
        %v5167 = vpop.f32.mrf.mxu0
        %v5168 = vadd.f32 %v5135, %v5167
        %5169 = vmatmul.bf16.gmra.mxu0 %v1829
        %v5170 = vpop.f32.mrf.mxu0
        %v5171 = vadd.f32 %v5138, %v5170
        %v5172 = vpop.f32.mrf.mxu0
        %5173 = vdwg.mxu0
        %5174 = vmatpush.bf16.msra.mxu0 %v4170
        %5175 = vmatpush.bf16.msra.mxu0 %v4166
        %5176 = vmatpush.bf16.msra.mxu0 %v4162
        %5177 = vmatpush.bf16.msra.mxu0 %v4158
        %5178 = vmatpush.bf16.msra.mxu0 %v4154
        %5179 = vmatpush.bf16.msra.mxu0 %v4150
        %5180 = vmatpush.bf16.msra.mxu0 %v4146
        %5181 = vmatpush.bf16.msra.mxu0 %v4142
        %5182 = vmatmul.bf16.gmra.mxu0 %v1766
        %v5183 = vpop.f32.mrf.mxu0
        %v5184 = vadd.f32 %v5151, %v5183
        %v5185 = vpop.f32.mrf.mxu0
        %v5186 = vadd.f32 %v5153, %v5185
        %5187 = vmatmul.bf16.gmra.mxu0 %v1782
        %v5188 = vpop.f32.mrf.mxu0
        %v5189 = vadd.f32 %v5156, %v5188
        %v5190 = vpop.f32.mrf.mxu0
        %v5191 = vadd.f32 %v5158, %v5190
        %5192 = vmatmul.bf16.gmra.mxu0 %v1798
        %v5193 = vpop.f32.mrf.mxu0
        %v5194 = vadd.f32 %v5161, %v5193
        %v5195 = vpop.f32.mrf.mxu0
        %v5196 = vadd.f32 %v5163, %v5195
        %5197 = vmatmul.bf16.gmra.mxu0 %v1814
        %v5198 = vpop.f32.mrf.mxu0
        %v5199 = vadd.f32 %v5166, %v5198
        %v5200 = vpop.f32.mrf.mxu0
        %v5201 = vadd.f32 %v5168, %v5200
        %5202 = vmatmul.bf16.gmra.mxu0 %v1830
        %v5203 = vpop.f32.mrf.mxu0
        %v5204 = vadd.f32 %v5171, %v5203
        %v5205 = vpop.f32.mrf.mxu0
        %5206 = vdwg.mxu0
        %5207 = vmatpush.bf16.msra.mxu0 %v4202
        %5208 = vmatpush.bf16.msra.mxu0 %v4198
        %5209 = vmatpush.bf16.msra.mxu0 %v4194
        %5210 = vmatpush.bf16.msra.mxu0 %v4190
        %5211 = vmatpush.bf16.msra.mxu0 %v4186
        %5212 = vmatpush.bf16.msra.mxu0 %v4182
        %5213 = vmatpush.bf16.msra.mxu0 %v4178
        %5214 = vmatpush.bf16.msra.mxu0 %v4174
        %5215 = vmatmul.bf16.gmra.mxu0 %v1767
        %v5216 = vpop.f32.mrf.mxu0
        %v5217 = vadd.f32 %v5184, %v5216
        %v5218 = vpop.f32.mrf.mxu0
        %v5219 = vadd.f32 %v5186, %v5218
        %5220 = vmatmul.bf16.gmra.mxu0 %v1783
        %v5221 = vpop.f32.mrf.mxu0
        %v5222 = vadd.f32 %v5189, %v5221
        %v5223 = vpop.f32.mrf.mxu0
        %v5224 = vadd.f32 %v5191, %v5223
        %5225 = vmatmul.bf16.gmra.mxu0 %v1799
        %v5226 = vpop.f32.mrf.mxu0
        %v5227 = vadd.f32 %v5194, %v5226
        %v5228 = vpop.f32.mrf.mxu0
        %v5229 = vadd.f32 %v5196, %v5228
        %5230 = vmatmul.bf16.gmra.mxu0 %v1815
        %v5231 = vpop.f32.mrf.mxu0
        %v5232 = vadd.f32 %v5199, %v5231
        %v5233 = vpop.f32.mrf.mxu0
        %v5234 = vadd.f32 %v5201, %v5233
        %5235 = vmatmul.bf16.gmra.mxu0 %v1831
        %v5236 = vpop.f32.mrf.mxu0
        %v5237 = vadd.f32 %v5204, %v5236
        %v5238 = vpop.f32.mrf.mxu0
        %5239 = vdwg.mxu0
        %5240 = vmatpush.bf16.msra.mxu0 %v4234
        %5241 = vmatpush.bf16.msra.mxu0 %v4230
        %5242 = vmatpush.bf16.msra.mxu0 %v4226
        %5243 = vmatpush.bf16.msra.mxu0 %v4222
        %5244 = vmatpush.bf16.msra.mxu0 %v4218
        %5245 = vmatpush.bf16.msra.mxu0 %v4214
        %5246 = vmatpush.bf16.msra.mxu0 %v4210
        %5247 = vmatpush.bf16.msra.mxu0 %v4206
        %5248 = vmatmul.bf16.gmra.mxu0 %v1768
        %v5249 = vpop.f32.mrf.mxu0
        %v5250 = vadd.f32 %v5217, %v5249
        %v5251 = vpop.f32.mrf.mxu0
        %v5252 = vadd.f32 %v5219, %v5251
        %5253 = vmatmul.bf16.gmra.mxu0 %v1784
        %v5254 = vpop.f32.mrf.mxu0
        %v5255 = vadd.f32 %v5222, %v5254
        %v5256 = vpop.f32.mrf.mxu0
        %v5257 = vadd.f32 %v5224, %v5256
        %5258 = vmatmul.bf16.gmra.mxu0 %v1800
        %v5259 = vpop.f32.mrf.mxu0
        %v5260 = vadd.f32 %v5227, %v5259
        %v5261 = vpop.f32.mrf.mxu0
        %v5262 = vadd.f32 %v5229, %v5261
        %5263 = vmatmul.bf16.gmra.mxu0 %v1816
        %v5264 = vpop.f32.mrf.mxu0
        %v5265 = vadd.f32 %v5232, %v5264
        %v5266 = vpop.f32.mrf.mxu0
        %v5267 = vadd.f32 %v5234, %v5266
        %5268 = vmatmul.bf16.gmra.mxu0 %v1832
        %v5269 = vpop.f32.mrf.mxu0
        %v5270 = vadd.f32 %v5237, %v5269
        %v5271 = vpop.f32.mrf.mxu0
        %5272 = vdwg.mxu0
        %5273 = vmatpush.bf16.msra.mxu0 %v4266
        %5274 = vmatpush.bf16.msra.mxu0 %v4262
        %5275 = vmatpush.bf16.msra.mxu0 %v4258
        %5276 = vmatpush.bf16.msra.mxu0 %v4254
        %5277 = vmatpush.bf16.msra.mxu0 %v4250
        %5278 = vmatpush.bf16.msra.mxu0 %v4246
        %5279 = vmatpush.bf16.msra.mxu0 %v4242
        %5280 = vmatpush.bf16.msra.mxu0 %v4238
        %5281 = vmatmul.bf16.gmra.mxu0 %v1769
        %v5282 = vpop.f32.mrf.mxu0
        %v5283 = vadd.f32 %v5250, %v5282
        %v5284 = vpop.f32.mrf.mxu0
        %v5285 = vadd.f32 %v5252, %v5284
        %5286 = vmatmul.bf16.gmra.mxu0 %v1785
        %v5287 = vpop.f32.mrf.mxu0
        %v5288 = vadd.f32 %v5255, %v5287
        %v5289 = vpop.f32.mrf.mxu0
        %v5290 = vadd.f32 %v5257, %v5289
        %5291 = vmatmul.bf16.gmra.mxu0 %v1801
        %v5292 = vpop.f32.mrf.mxu0
        %v5293 = vadd.f32 %v5260, %v5292
        %v5294 = vpop.f32.mrf.mxu0
        %v5295 = vadd.f32 %v5262, %v5294
        %5296 = vmatmul.bf16.gmra.mxu0 %v1817
        %v5297 = vpop.f32.mrf.mxu0
        %v5298 = vadd.f32 %v5265, %v5297
        %v5299 = vpop.f32.mrf.mxu0
        %v5300 = vadd.f32 %v5267, %v5299
        %5301 = vmatmul.bf16.gmra.mxu0 %v1833
        %v5302 = vpop.f32.mrf.mxu0
        %v5303 = vadd.f32 %v5270, %v5302
        %v5304 = vpop.f32.mrf.mxu0
        %5305 = vdwg.mxu0
        %5306 = vmatpush.bf16.msra.mxu0 %v4298
        %5307 = vmatpush.bf16.msra.mxu0 %v4294
        %5308 = vmatpush.bf16.msra.mxu0 %v4290
        %5309 = vmatpush.bf16.msra.mxu0 %v4286
        %5310 = vmatpush.bf16.msra.mxu0 %v4282
        %5311 = vmatpush.bf16.msra.mxu0 %v4278
        %5312 = vmatpush.bf16.msra.mxu0 %v4274
        %5313 = vmatpush.bf16.msra.mxu0 %v4270
        %5314 = vmatmul.bf16.gmra.mxu0 %v1770
        %v5315 = vpop.f32.mrf.mxu0
        %v5316 = vadd.f32 %v5283, %v5315
        %v5317 = vpop.f32.mrf.mxu0
        %v5318 = vadd.f32 %v5285, %v5317
        %5319 = vmatmul.bf16.gmra.mxu0 %v1786
        %v5320 = vpop.f32.mrf.mxu0
        %v5321 = vadd.f32 %v5288, %v5320
        %v5322 = vpop.f32.mrf.mxu0
        %v5323 = vadd.f32 %v5290, %v5322
        %5324 = vmatmul.bf16.gmra.mxu0 %v1802
        %v5325 = vpop.f32.mrf.mxu0
        %v5326 = vadd.f32 %v5293, %v5325
        %v5327 = vpop.f32.mrf.mxu0
        %v5328 = vadd.f32 %v5295, %v5327
        %5329 = vmatmul.bf16.gmra.mxu0 %v1818
        %v5330 = vpop.f32.mrf.mxu0
        %v5331 = vadd.f32 %v5298, %v5330
        %v5332 = vpop.f32.mrf.mxu0
        %v5333 = vadd.f32 %v5300, %v5332
        %5334 = vmatmul.bf16.gmra.mxu0 %v1834
        %v5335 = vpop.f32.mrf.mxu0
        %v5336 = vadd.f32 %v5303, %v5335
        %v5337 = vpop.f32.mrf.mxu0
        %5338 = vdwg.mxu0
        %5339 = vmatpush.bf16.msra.mxu0 %v4330
        %5340 = vmatpush.bf16.msra.mxu0 %v4326
        %5341 = vmatpush.bf16.msra.mxu0 %v4322
        %5342 = vmatpush.bf16.msra.mxu0 %v4318
        %5343 = vmatpush.bf16.msra.mxu0 %v4314
        %5344 = vmatpush.bf16.msra.mxu0 %v4310
        %5345 = vmatpush.bf16.msra.mxu0 %v4306
        %5346 = vmatpush.bf16.msra.mxu0 %v4302
        %5347 = vmatmul.bf16.gmra.mxu0 %v1771
        %v5348 = vpop.f32.mrf.mxu0
        %v5349 = vadd.f32 %v5316, %v5348
        %v5350 = vpop.f32.mrf.mxu0
        %v5351 = vadd.f32 %v5318, %v5350
        %5352 = vmatmul.bf16.gmra.mxu0 %v1787
        %v5353 = vpop.f32.mrf.mxu0
        %v5354 = vadd.f32 %v5321, %v5353
        %v5355 = vpop.f32.mrf.mxu0
        %v5356 = vadd.f32 %v5323, %v5355
        %5357 = vmatmul.bf16.gmra.mxu0 %v1803
        %v5358 = vpop.f32.mrf.mxu0
        %v5359 = vadd.f32 %v5326, %v5358
        %v5360 = vpop.f32.mrf.mxu0
        %v5361 = vadd.f32 %v5328, %v5360
        %5362 = vmatmul.bf16.gmra.mxu0 %v1819
        %v5363 = vpop.f32.mrf.mxu0
        %v5364 = vadd.f32 %v5331, %v5363
        %v5365 = vpop.f32.mrf.mxu0
        %v5366 = vadd.f32 %v5333, %v5365
        %5367 = vmatmul.bf16.gmra.mxu0 %v1835
        %v5368 = vpop.f32.mrf.mxu0
        %v5369 = vadd.f32 %v5336, %v5368
        %v5370 = vpop.f32.mrf.mxu0
        %5371 = vdwg.mxu0
        %5372 = vmatpush.bf16.msra.mxu0 %v4362
        %5373 = vmatpush.bf16.msra.mxu0 %v4358
        %5374 = vmatpush.bf16.msra.mxu0 %v4354
        %5375 = vmatpush.bf16.msra.mxu0 %v4350
        %5376 = vmatpush.bf16.msra.mxu0 %v4346
        %5377 = vmatpush.bf16.msra.mxu0 %v4342
        %5378 = vmatpush.bf16.msra.mxu0 %v4338
        %5379 = vmatpush.bf16.msra.mxu0 %v4334
        %5380 = vmatmul.bf16.gmra.mxu0 %v1772
        %v5381 = vpop.f32.mrf.mxu0
        %v5382 = vadd.f32 %v5349, %v5381
        %v5383 = vpop.f32.mrf.mxu0
        %v5384 = vadd.f32 %v5351, %v5383
        %5385 = vmatmul.bf16.gmra.mxu0 %v1788
        %v5386 = vpop.f32.mrf.mxu0
        %v5387 = vadd.f32 %v5354, %v5386
        %v5388 = vpop.f32.mrf.mxu0
        %v5389 = vadd.f32 %v5356, %v5388
        %5390 = vmatmul.bf16.gmra.mxu0 %v1804
        %v5391 = vpop.f32.mrf.mxu0
        %v5392 = vadd.f32 %v5359, %v5391
        %v5393 = vpop.f32.mrf.mxu0
        %v5394 = vadd.f32 %v5361, %v5393
        %5395 = vmatmul.bf16.gmra.mxu0 %v1820
        %v5396 = vpop.f32.mrf.mxu0
        %v5397 = vadd.f32 %v5364, %v5396
        %v5398 = vpop.f32.mrf.mxu0
        %v5399 = vadd.f32 %v5366, %v5398
        %5400 = vmatmul.bf16.gmra.mxu0 %v1836
        %v5401 = vpop.f32.mrf.mxu0
        %v5402 = vadd.f32 %v5369, %v5401
        %v5403 = vpop.f32.mrf.mxu0
        %5404 = vdwg.mxu0
        %5405 = vmatpush.bf16.msra.mxu0 %v4394
        %5406 = vmatpush.bf16.msra.mxu0 %v4390
        %5407 = vmatpush.bf16.msra.mxu0 %v4386
        %5408 = vmatpush.bf16.msra.mxu0 %v4382
        %5409 = vmatpush.bf16.msra.mxu0 %v4378
        %5410 = vmatpush.bf16.msra.mxu0 %v4374
        %5411 = vmatpush.bf16.msra.mxu0 %v4370
        %5412 = vmatpush.bf16.msra.mxu0 %v4366
        %5413 = vmatmul.bf16.gmra.mxu0 %v1773
        %v5414 = vpop.f32.mrf.mxu0
        %v5415 = vadd.f32 %v5382, %v5414
        %v5416 = vpop.f32.mrf.mxu0
        %v5417 = vadd.f32 %v5384, %v5416
        %5418 = vmatmul.bf16.gmra.mxu0 %v1789
        %v5419 = vpop.f32.mrf.mxu0
        %v5420 = vadd.f32 %v5387, %v5419
        %v5421 = vpop.f32.mrf.mxu0
        %v5422 = vadd.f32 %v5389, %v5421
        %5423 = vmatmul.bf16.gmra.mxu0 %v1805
        %v5424 = vpop.f32.mrf.mxu0
        %v5425 = vadd.f32 %v5392, %v5424
        %v5426 = vpop.f32.mrf.mxu0
        %v5427 = vadd.f32 %v5394, %v5426
        %5428 = vmatmul.bf16.gmra.mxu0 %v1821
        %v5429 = vpop.f32.mrf.mxu0
        %v5430 = vadd.f32 %v5397, %v5429
        %v5431 = vpop.f32.mrf.mxu0
        %v5432 = vadd.f32 %v5399, %v5431
        %5433 = vmatmul.bf16.gmra.mxu0 %v1837
        %v5434 = vpop.f32.mrf.mxu0
        %v5435 = vadd.f32 %v5402, %v5434
        %v5436 = vpop.f32.mrf.mxu0
        %5437 = vdwg.mxu0
        %5438 = vmatpush.bf16.msra.mxu0 %v3915
        %5439 = vmatpush.bf16.msra.mxu0 %v3911
        %5440 = vmatpush.bf16.msra.mxu0 %v3907
        %5441 = vmatpush.bf16.msra.mxu0 %v3903
        %5442 = vmatpush.bf16.msra.mxu0 %v3899
        %5443 = vmatpush.bf16.msra.mxu0 %v3895
        %5444 = vmatpush.bf16.msra.mxu0 %v3891
        %5445 = vmatpush.bf16.msra.mxu0 %v3887
        %5446 = vmatmul.bf16.gmra.mxu0 %v1758
        %v5447 = vpop.f32.mrf.mxu0
        %v5448 = vadd.f32 0.0, %v5447
        %v5449 = vpop.f32.mrf.mxu0
        %v5450 = vadd.f32 0.0, %v5449
        %5451 = vmatmul.bf16.gmra.mxu0 %v1774
        %v5452 = vpop.f32.mrf.mxu0
        %v5453 = vadd.f32 0.0, %v5452
        %v5454 = vpop.f32.mrf.mxu0
        %v5455 = vadd.f32 0.0, %v5454
        %5456 = vmatmul.bf16.gmra.mxu0 %v1790
        %v5457 = vpop.f32.mrf.mxu0
        %v5458 = vadd.f32 0.0, %v5457
        %v5459 = vpop.f32.mrf.mxu0
        %v5460 = vadd.f32 0.0, %v5459
        %5461 = vmatmul.bf16.gmra.mxu0 %v1806
        %v5462 = vpop.f32.mrf.mxu0
        %v5463 = vadd.f32 0.0, %v5462
        %v5464 = vpop.f32.mrf.mxu0
        %v5465 = vadd.f32 0.0, %v5464
        %5466 = vmatmul.bf16.gmra.mxu0 %v1822
        %v5467 = vpop.f32.mrf.mxu0
        %v5468 = vadd.f32 0.0, %v5467
        %v5469 = vpop.f32.mrf.mxu0
        %5470 = vdwg.mxu0
        %5471 = vmatpush.bf16.msra.mxu0 %v3947
        %5472 = vmatpush.bf16.msra.mxu0 %v3943
        %5473 = vmatpush.bf16.msra.mxu0 %v3939
        %5474 = vmatpush.bf16.msra.mxu0 %v3935
        %5475 = vmatpush.bf16.msra.mxu0 %v3931
        %5476 = vmatpush.bf16.msra.mxu0 %v3927
        %5477 = vmatpush.bf16.msra.mxu0 %v3923
        %5478 = vmatpush.bf16.msra.mxu0 %v3919
        %5479 = vmatmul.bf16.gmra.mxu0 %v1759
        %v5480 = vpop.f32.mrf.mxu0
        %v5481 = vadd.f32 %v5448, %v5480
        %v5482 = vpop.f32.mrf.mxu0
        %v5483 = vadd.f32 %v5450, %v5482
        %5484 = vmatmul.bf16.gmra.mxu0 %v1775
        %v5485 = vpop.f32.mrf.mxu0
        %v5486 = vadd.f32 %v5453, %v5485
        %v5487 = vpop.f32.mrf.mxu0
        %v5488 = vadd.f32 %v5455, %v5487
        %5489 = vmatmul.bf16.gmra.mxu0 %v1791
        %v5490 = vpop.f32.mrf.mxu0
        %v5491 = vadd.f32 %v5458, %v5490
        %v5492 = vpop.f32.mrf.mxu0
        %v5493 = vadd.f32 %v5460, %v5492
        %5494 = vmatmul.bf16.gmra.mxu0 %v1807
        %v5495 = vpop.f32.mrf.mxu0
        %v5496 = vadd.f32 %v5463, %v5495
        %v5497 = vpop.f32.mrf.mxu0
        %v5498 = vadd.f32 %v5465, %v5497
        %5499 = vmatmul.bf16.gmra.mxu0 %v1823
        %v5500 = vpop.f32.mrf.mxu0
        %v5501 = vadd.f32 %v5468, %v5500
        %v5502 = vpop.f32.mrf.mxu0
        %5503 = vdwg.mxu0
        %5504 = vmatpush.bf16.msra.mxu0 %v3979
        %5505 = vmatpush.bf16.msra.mxu0 %v3975
        %5506 = vmatpush.bf16.msra.mxu0 %v3971
        %5507 = vmatpush.bf16.msra.mxu0 %v3967
        %5508 = vmatpush.bf16.msra.mxu0 %v3963
        %5509 = vmatpush.bf16.msra.mxu0 %v3959
        %5510 = vmatpush.bf16.msra.mxu0 %v3955
        %5511 = vmatpush.bf16.msra.mxu0 %v3951
        %5512 = vmatmul.bf16.gmra.mxu0 %v1760
        %v5513 = vpop.f32.mrf.mxu0
        %v5514 = vadd.f32 %v5481, %v5513
        %v5515 = vpop.f32.mrf.mxu0
        %v5516 = vadd.f32 %v5483, %v5515
        %5517 = vmatmul.bf16.gmra.mxu0 %v1776
        %v5518 = vpop.f32.mrf.mxu0
        %v5519 = vadd.f32 %v5486, %v5518
        %v5520 = vpop.f32.mrf.mxu0
        %v5521 = vadd.f32 %v5488, %v5520
        %5522 = vmatmul.bf16.gmra.mxu0 %v1792
        %v5523 = vpop.f32.mrf.mxu0
        %v5524 = vadd.f32 %v5491, %v5523
        %v5525 = vpop.f32.mrf.mxu0
        %v5526 = vadd.f32 %v5493, %v5525
        %5527 = vmatmul.bf16.gmra.mxu0 %v1808
        %v5528 = vpop.f32.mrf.mxu0
        %v5529 = vadd.f32 %v5496, %v5528
        %v5530 = vpop.f32.mrf.mxu0
        %v5531 = vadd.f32 %v5498, %v5530
        %5532 = vmatmul.bf16.gmra.mxu0 %v1824
        %v5533 = vpop.f32.mrf.mxu0
        %v5534 = vadd.f32 %v5501, %v5533
        %v5535 = vpop.f32.mrf.mxu0
        %5536 = vdwg.mxu0
        %5537 = vmatpush.bf16.msra.mxu0 %v4011
        %5538 = vmatpush.bf16.msra.mxu0 %v4007
        %5539 = vmatpush.bf16.msra.mxu0 %v4003
        %5540 = vmatpush.bf16.msra.mxu0 %v3999
        %5541 = vmatpush.bf16.msra.mxu0 %v3995
        %5542 = vmatpush.bf16.msra.mxu0 %v3991
        %5543 = vmatpush.bf16.msra.mxu0 %v3987
        %5544 = vmatpush.bf16.msra.mxu0 %v3983
        %5545 = vmatmul.bf16.gmra.mxu0 %v1761
        %v5546 = vpop.f32.mrf.mxu0
        %v5547 = vadd.f32 %v5514, %v5546
        %v5548 = vpop.f32.mrf.mxu0
        %v5549 = vadd.f32 %v5516, %v5548
        %5550 = vmatmul.bf16.gmra.mxu0 %v1777
        %v5551 = vpop.f32.mrf.mxu0
        %v5552 = vadd.f32 %v5519, %v5551
        %v5553 = vpop.f32.mrf.mxu0
        %v5554 = vadd.f32 %v5521, %v5553
        %5555 = vmatmul.bf16.gmra.mxu0 %v1793
        %v5556 = vpop.f32.mrf.mxu0
        %v5557 = vadd.f32 %v5524, %v5556
        %v5558 = vpop.f32.mrf.mxu0
        %v5559 = vadd.f32 %v5526, %v5558
        %5560 = vmatmul.bf16.gmra.mxu0 %v1809
        %v5561 = vpop.f32.mrf.mxu0
        %v5562 = vadd.f32 %v5529, %v5561
        %v5563 = vpop.f32.mrf.mxu0
        %v5564 = vadd.f32 %v5531, %v5563
        %5565 = vmatmul.bf16.gmra.mxu0 %v1825
        %v5566 = vpop.f32.mrf.mxu0
        %v5567 = vadd.f32 %v5534, %v5566
        %v5568 = vpop.f32.mrf.mxu0
        %5569 = vdwg.mxu0
        %5570 = vmatpush.bf16.msra.mxu0 %v4043
        %5571 = vmatpush.bf16.msra.mxu0 %v4039
        %5572 = vmatpush.bf16.msra.mxu0 %v4035
        %5573 = vmatpush.bf16.msra.mxu0 %v4031
        %5574 = vmatpush.bf16.msra.mxu0 %v4027
        %5575 = vmatpush.bf16.msra.mxu0 %v4023
        %5576 = vmatpush.bf16.msra.mxu0 %v4019
        %5577 = vmatpush.bf16.msra.mxu0 %v4015
        %5578 = vmatmul.bf16.gmra.mxu0 %v1762
        %v5579 = vpop.f32.mrf.mxu0
        %v5580 = vadd.f32 %v5547, %v5579
        %v5581 = vpop.f32.mrf.mxu0
        %v5582 = vadd.f32 %v5549, %v5581
        %5583 = vmatmul.bf16.gmra.mxu0 %v1778
        %v5584 = vpop.f32.mrf.mxu0
        %v5585 = vadd.f32 %v5552, %v5584
        %v5586 = vpop.f32.mrf.mxu0
        %v5587 = vadd.f32 %v5554, %v5586
        %5588 = vmatmul.bf16.gmra.mxu0 %v1794
        %v5589 = vpop.f32.mrf.mxu0
        %v5590 = vadd.f32 %v5557, %v5589
        %v5591 = vpop.f32.mrf.mxu0
        %v5592 = vadd.f32 %v5559, %v5591
        %5593 = vmatmul.bf16.gmra.mxu0 %v1810
        %v5594 = vpop.f32.mrf.mxu0
        %v5595 = vadd.f32 %v5562, %v5594
        %v5596 = vpop.f32.mrf.mxu0
        %v5597 = vadd.f32 %v5564, %v5596
        %5598 = vmatmul.bf16.gmra.mxu0 %v1826
        %v5599 = vpop.f32.mrf.mxu0
        %v5600 = vadd.f32 %v5567, %v5599
        %v5601 = vpop.f32.mrf.mxu0
        %5602 = vdwg.mxu0
        %5603 = vmatpush.bf16.msra.mxu0 %v4075
        %5604 = vmatpush.bf16.msra.mxu0 %v4071
        %5605 = vmatpush.bf16.msra.mxu0 %v4067
        %5606 = vmatpush.bf16.msra.mxu0 %v4063
        %5607 = vmatpush.bf16.msra.mxu0 %v4059
        %5608 = vmatpush.bf16.msra.mxu0 %v4055
        %5609 = vmatpush.bf16.msra.mxu0 %v4051
        %5610 = vmatpush.bf16.msra.mxu0 %v4047
        %5611 = vmatmul.bf16.gmra.mxu0 %v1763
        %v5612 = vpop.f32.mrf.mxu0
        %v5613 = vadd.f32 %v5580, %v5612
        %v5614 = vpop.f32.mrf.mxu0
        %v5615 = vadd.f32 %v5582, %v5614
        %5616 = vmatmul.bf16.gmra.mxu0 %v1779
        %v5617 = vpop.f32.mrf.mxu0
        %v5618 = vadd.f32 %v5585, %v5617
        %v5619 = vpop.f32.mrf.mxu0
        %v5620 = vadd.f32 %v5587, %v5619
        %5621 = vmatmul.bf16.gmra.mxu0 %v1795
        %v5622 = vpop.f32.mrf.mxu0
        %v5623 = vadd.f32 %v5590, %v5622
        %v5624 = vpop.f32.mrf.mxu0
        %v5625 = vadd.f32 %v5592, %v5624
        %5626 = vmatmul.bf16.gmra.mxu0 %v1811
        %v5627 = vpop.f32.mrf.mxu0
        %v5628 = vadd.f32 %v5595, %v5627
        %v5629 = vpop.f32.mrf.mxu0
        %v5630 = vadd.f32 %v5597, %v5629
        %5631 = vmatmul.bf16.gmra.mxu0 %v1827
        %v5632 = vpop.f32.mrf.mxu0
        %v5633 = vadd.f32 %v5600, %v5632
        %v5634 = vpop.f32.mrf.mxu0
        %5635 = vdwg.mxu0
        %5636 = vmatpush.bf16.msra.mxu0 %v4107
        %5637 = vmatpush.bf16.msra.mxu0 %v4103
        %5638 = vmatpush.bf16.msra.mxu0 %v4099
        %5639 = vmatpush.bf16.msra.mxu0 %v4095
        %5640 = vmatpush.bf16.msra.mxu0 %v4091
        %5641 = vmatpush.bf16.msra.mxu0 %v4087
        %5642 = vmatpush.bf16.msra.mxu0 %v4083
        %5643 = vmatpush.bf16.msra.mxu0 %v4079
        %5644 = vmatmul.bf16.gmra.mxu0 %v1764
        %v5645 = vpop.f32.mrf.mxu0
        %v5646 = vadd.f32 %v5613, %v5645
        %v5647 = vpop.f32.mrf.mxu0
        %v5648 = vadd.f32 %v5615, %v5647
        %5649 = vmatmul.bf16.gmra.mxu0 %v1780
        %v5650 = vpop.f32.mrf.mxu0
        %v5651 = vadd.f32 %v5618, %v5650
        %v5652 = vpop.f32.mrf.mxu0
        %v5653 = vadd.f32 %v5620, %v5652
        %5654 = vmatmul.bf16.gmra.mxu0 %v1796
        %v5655 = vpop.f32.mrf.mxu0
        %v5656 = vadd.f32 %v5623, %v5655
        %v5657 = vpop.f32.mrf.mxu0
        %v5658 = vadd.f32 %v5625, %v5657
        %5659 = vmatmul.bf16.gmra.mxu0 %v1812
        %v5660 = vpop.f32.mrf.mxu0
        %v5661 = vadd.f32 %v5628, %v5660
        %v5662 = vpop.f32.mrf.mxu0
        %v5663 = vadd.f32 %v5630, %v5662
        %5664 = vmatmul.bf16.gmra.mxu0 %v1828
        %v5665 = vpop.f32.mrf.mxu0
        %v5666 = vadd.f32 %v5633, %v5665
        %v5667 = vpop.f32.mrf.mxu0
        %5668 = vdwg.mxu0
        %5669 = vmatpush.bf16.msra.mxu0 %v4139
        %5670 = vmatpush.bf16.msra.mxu0 %v4135
        %5671 = vmatpush.bf16.msra.mxu0 %v4131
        %5672 = vmatpush.bf16.msra.mxu0 %v4127
        %5673 = vmatpush.bf16.msra.mxu0 %v4123
        %5674 = vmatpush.bf16.msra.mxu0 %v4119
        %5675 = vmatpush.bf16.msra.mxu0 %v4115
        %5676 = vmatpush.bf16.msra.mxu0 %v4111
        %5677 = vmatmul.bf16.gmra.mxu0 %v1765
        %v5678 = vpop.f32.mrf.mxu0
        %v5679 = vadd.f32 %v5646, %v5678
        %v5680 = vpop.f32.mrf.mxu0
        %v5681 = vadd.f32 %v5648, %v5680
        %5682 = vmatmul.bf16.gmra.mxu0 %v1781
        %v5683 = vpop.f32.mrf.mxu0
        %v5684 = vadd.f32 %v5651, %v5683
        %v5685 = vpop.f32.mrf.mxu0
        %v5686 = vadd.f32 %v5653, %v5685
        %5687 = vmatmul.bf16.gmra.mxu0 %v1797
        %v5688 = vpop.f32.mrf.mxu0
        %v5689 = vadd.f32 %v5656, %v5688
        %v5690 = vpop.f32.mrf.mxu0
        %v5691 = vadd.f32 %v5658, %v5690
        %5692 = vmatmul.bf16.gmra.mxu0 %v1813
        %v5693 = vpop.f32.mrf.mxu0
        %v5694 = vadd.f32 %v5661, %v5693
        %v5695 = vpop.f32.mrf.mxu0
        %v5696 = vadd.f32 %v5663, %v5695
        %5697 = vmatmul.bf16.gmra.mxu0 %v1829
        %v5698 = vpop.f32.mrf.mxu0
        %v5699 = vadd.f32 %v5666, %v5698
        %v5700 = vpop.f32.mrf.mxu0
        %5701 = vdwg.mxu0
        %5702 = vmatpush.bf16.msra.mxu0 %v4171
        %5703 = vmatpush.bf16.msra.mxu0 %v4167
        %5704 = vmatpush.bf16.msra.mxu0 %v4163
        %5705 = vmatpush.bf16.msra.mxu0 %v4159
        %5706 = vmatpush.bf16.msra.mxu0 %v4155
        %5707 = vmatpush.bf16.msra.mxu0 %v4151
        %5708 = vmatpush.bf16.msra.mxu0 %v4147
        %5709 = vmatpush.bf16.msra.mxu0 %v4143
        %5710 = vmatmul.bf16.gmra.mxu0 %v1766
        %v5711 = vpop.f32.mrf.mxu0
        %v5712 = vadd.f32 %v5679, %v5711
        %v5713 = vpop.f32.mrf.mxu0
        %v5714 = vadd.f32 %v5681, %v5713
        %5715 = vmatmul.bf16.gmra.mxu0 %v1782
        %v5716 = vpop.f32.mrf.mxu0
        %v5717 = vadd.f32 %v5684, %v5716
        %v5718 = vpop.f32.mrf.mxu0
        %v5719 = vadd.f32 %v5686, %v5718
        %5720 = vmatmul.bf16.gmra.mxu0 %v1798
        %v5721 = vpop.f32.mrf.mxu0
        %v5722 = vadd.f32 %v5689, %v5721
        %v5723 = vpop.f32.mrf.mxu0
        %v5724 = vadd.f32 %v5691, %v5723
        %5725 = vmatmul.bf16.gmra.mxu0 %v1814
        %v5726 = vpop.f32.mrf.mxu0
        %v5727 = vadd.f32 %v5694, %v5726
        %v5728 = vpop.f32.mrf.mxu0
        %v5729 = vadd.f32 %v5696, %v5728
        %5730 = vmatmul.bf16.gmra.mxu0 %v1830
        %v5731 = vpop.f32.mrf.mxu0
        %v5732 = vadd.f32 %v5699, %v5731
        %v5733 = vpop.f32.mrf.mxu0
        %5734 = vdwg.mxu0
        %5735 = vmatpush.bf16.msra.mxu0 %v4203
        %5736 = vmatpush.bf16.msra.mxu0 %v4199
        %5737 = vmatpush.bf16.msra.mxu0 %v4195
        %5738 = vmatpush.bf16.msra.mxu0 %v4191
        %5739 = vmatpush.bf16.msra.mxu0 %v4187
        %5740 = vmatpush.bf16.msra.mxu0 %v4183
        %5741 = vmatpush.bf16.msra.mxu0 %v4179
        %5742 = vmatpush.bf16.msra.mxu0 %v4175
        %5743 = vmatmul.bf16.gmra.mxu0 %v1767
        %v5744 = vpop.f32.mrf.mxu0
        %v5745 = vadd.f32 %v5712, %v5744
        %v5746 = vpop.f32.mrf.mxu0
        %v5747 = vadd.f32 %v5714, %v5746
        %5748 = vmatmul.bf16.gmra.mxu0 %v1783
        %v5749 = vpop.f32.mrf.mxu0
        %v5750 = vadd.f32 %v5717, %v5749
        %v5751 = vpop.f32.mrf.mxu0
        %v5752 = vadd.f32 %v5719, %v5751
        %5753 = vmatmul.bf16.gmra.mxu0 %v1799
        %v5754 = vpop.f32.mrf.mxu0
        %v5755 = vadd.f32 %v5722, %v5754
        %v5756 = vpop.f32.mrf.mxu0
        %v5757 = vadd.f32 %v5724, %v5756
        %5758 = vmatmul.bf16.gmra.mxu0 %v1815
        %v5759 = vpop.f32.mrf.mxu0
        %v5760 = vadd.f32 %v5727, %v5759
        %v5761 = vpop.f32.mrf.mxu0
        %v5762 = vadd.f32 %v5729, %v5761
        %5763 = vmatmul.bf16.gmra.mxu0 %v1831
        %v5764 = vpop.f32.mrf.mxu0
        %v5765 = vadd.f32 %v5732, %v5764
        %v5766 = vpop.f32.mrf.mxu0
        %5767 = vdwg.mxu0
        %5768 = vmatpush.bf16.msra.mxu0 %v4235
        %5769 = vmatpush.bf16.msra.mxu0 %v4231
        %5770 = vmatpush.bf16.msra.mxu0 %v4227
        %5771 = vmatpush.bf16.msra.mxu0 %v4223
        %5772 = vmatpush.bf16.msra.mxu0 %v4219
        %5773 = vmatpush.bf16.msra.mxu0 %v4215
        %5774 = vmatpush.bf16.msra.mxu0 %v4211
        %5775 = vmatpush.bf16.msra.mxu0 %v4207
        %5776 = vmatmul.bf16.gmra.mxu0 %v1768
        %v5777 = vpop.f32.mrf.mxu0
        %v5778 = vadd.f32 %v5745, %v5777
        %v5779 = vpop.f32.mrf.mxu0
        %v5780 = vadd.f32 %v5747, %v5779
        %5781 = vmatmul.bf16.gmra.mxu0 %v1784
        %v5782 = vpop.f32.mrf.mxu0
        %v5783 = vadd.f32 %v5750, %v5782
        %v5784 = vpop.f32.mrf.mxu0
        %v5785 = vadd.f32 %v5752, %v5784
        %5786 = vmatmul.bf16.gmra.mxu0 %v1800
        %v5787 = vpop.f32.mrf.mxu0
        %v5788 = vadd.f32 %v5755, %v5787
        %v5789 = vpop.f32.mrf.mxu0
        %v5790 = vadd.f32 %v5757, %v5789
        %5791 = vmatmul.bf16.gmra.mxu0 %v1816
        %v5792 = vpop.f32.mrf.mxu0
        %v5793 = vadd.f32 %v5760, %v5792
        %v5794 = vpop.f32.mrf.mxu0
        %v5795 = vadd.f32 %v5762, %v5794
        %5796 = vmatmul.bf16.gmra.mxu0 %v1832
        %v5797 = vpop.f32.mrf.mxu0
        %v5798 = vadd.f32 %v5765, %v5797
        %v5799 = vpop.f32.mrf.mxu0
        %5800 = vdwg.mxu0
        %5801 = vmatpush.bf16.msra.mxu0 %v4267
        %5802 = vmatpush.bf16.msra.mxu0 %v4263
        %5803 = vmatpush.bf16.msra.mxu0 %v4259
        %5804 = vmatpush.bf16.msra.mxu0 %v4255
        %5805 = vmatpush.bf16.msra.mxu0 %v4251
        %5806 = vmatpush.bf16.msra.mxu0 %v4247
        %5807 = vmatpush.bf16.msra.mxu0 %v4243
        %5808 = vmatpush.bf16.msra.mxu0 %v4239
        %5809 = vmatmul.bf16.gmra.mxu0 %v1769
        %v5810 = vpop.f32.mrf.mxu0
        %v5811 = vadd.f32 %v5778, %v5810
        %v5812 = vpop.f32.mrf.mxu0
        %v5813 = vadd.f32 %v5780, %v5812
        %5814 = vmatmul.bf16.gmra.mxu0 %v1785
        %v5815 = vpop.f32.mrf.mxu0
        %v5816 = vadd.f32 %v5783, %v5815
        %v5817 = vpop.f32.mrf.mxu0
        %v5818 = vadd.f32 %v5785, %v5817
        %5819 = vmatmul.bf16.gmra.mxu0 %v1801
        %v5820 = vpop.f32.mrf.mxu0
        %v5821 = vadd.f32 %v5788, %v5820
        %v5822 = vpop.f32.mrf.mxu0
        %v5823 = vadd.f32 %v5790, %v5822
        %5824 = vmatmul.bf16.gmra.mxu0 %v1817
        %v5825 = vpop.f32.mrf.mxu0
        %v5826 = vadd.f32 %v5793, %v5825
        %v5827 = vpop.f32.mrf.mxu0
        %v5828 = vadd.f32 %v5795, %v5827
        %5829 = vmatmul.bf16.gmra.mxu0 %v1833
        %v5830 = vpop.f32.mrf.mxu0
        %v5831 = vadd.f32 %v5798, %v5830
        %v5832 = vpop.f32.mrf.mxu0
        %5833 = vdwg.mxu0
        %5834 = vmatpush.bf16.msra.mxu0 %v4299
        %5835 = vmatpush.bf16.msra.mxu0 %v4295
        %5836 = vmatpush.bf16.msra.mxu0 %v4291
        %5837 = vmatpush.bf16.msra.mxu0 %v4287
        %5838 = vmatpush.bf16.msra.mxu0 %v4283
        %5839 = vmatpush.bf16.msra.mxu0 %v4279
        %5840 = vmatpush.bf16.msra.mxu0 %v4275
        %5841 = vmatpush.bf16.msra.mxu0 %v4271
        %5842 = vmatmul.bf16.gmra.mxu0 %v1770
        %v5843 = vpop.f32.mrf.mxu0
        %v5844 = vadd.f32 %v5811, %v5843
        %v5845 = vpop.f32.mrf.mxu0
        %v5846 = vadd.f32 %v5813, %v5845
        %5847 = vmatmul.bf16.gmra.mxu0 %v1786
        %v5848 = vpop.f32.mrf.mxu0
        %v5849 = vadd.f32 %v5816, %v5848
        %v5850 = vpop.f32.mrf.mxu0
        %v5851 = vadd.f32 %v5818, %v5850
        %5852 = vmatmul.bf16.gmra.mxu0 %v1802
        %v5853 = vpop.f32.mrf.mxu0
        %v5854 = vadd.f32 %v5821, %v5853
        %v5855 = vpop.f32.mrf.mxu0
        %v5856 = vadd.f32 %v5823, %v5855
        %5857 = vmatmul.bf16.gmra.mxu0 %v1818
        %v5858 = vpop.f32.mrf.mxu0
        %v5859 = vadd.f32 %v5826, %v5858
        %v5860 = vpop.f32.mrf.mxu0
        %v5861 = vadd.f32 %v5828, %v5860
        %5862 = vmatmul.bf16.gmra.mxu0 %v1834
        %v5863 = vpop.f32.mrf.mxu0
        %v5864 = vadd.f32 %v5831, %v5863
        %v5865 = vpop.f32.mrf.mxu0
        %5866 = vdwg.mxu0
        %5867 = vmatpush.bf16.msra.mxu0 %v4331
        %5868 = vmatpush.bf16.msra.mxu0 %v4327
        %5869 = vmatpush.bf16.msra.mxu0 %v4323
        %5870 = vmatpush.bf16.msra.mxu0 %v4319
        %5871 = vmatpush.bf16.msra.mxu0 %v4315
        %5872 = vmatpush.bf16.msra.mxu0 %v4311
        %5873 = vmatpush.bf16.msra.mxu0 %v4307
        %5874 = vmatpush.bf16.msra.mxu0 %v4303
        %5875 = vmatmul.bf16.gmra.mxu0 %v1771
        %v5876 = vpop.f32.mrf.mxu0
        %v5877 = vadd.f32 %v5844, %v5876
        %v5878 = vpop.f32.mrf.mxu0
        %v5879 = vadd.f32 %v5846, %v5878
        %5880 = vmatmul.bf16.gmra.mxu0 %v1787
        %v5881 = vpop.f32.mrf.mxu0
        %v5882 = vadd.f32 %v5849, %v5881
        %v5883 = vpop.f32.mrf.mxu0
        %v5884 = vadd.f32 %v5851, %v5883
        %5885 = vmatmul.bf16.gmra.mxu0 %v1803
        %v5886 = vpop.f32.mrf.mxu0
        %v5887 = vadd.f32 %v5854, %v5886
        %v5888 = vpop.f32.mrf.mxu0
        %v5889 = vadd.f32 %v5856, %v5888
        %5890 = vmatmul.bf16.gmra.mxu0 %v1819
        %v5891 = vpop.f32.mrf.mxu0
        %v5892 = vadd.f32 %v5859, %v5891
        %v5893 = vpop.f32.mrf.mxu0
        %v5894 = vadd.f32 %v5861, %v5893
        %5895 = vmatmul.bf16.gmra.mxu0 %v1835
        %v5896 = vpop.f32.mrf.mxu0
        %v5897 = vadd.f32 %v5864, %v5896
        %v5898 = vpop.f32.mrf.mxu0
        %5899 = vdwg.mxu0
        %5900 = vmatpush.bf16.msra.mxu0 %v4363
        %5901 = vmatpush.bf16.msra.mxu0 %v4359
        %5902 = vmatpush.bf16.msra.mxu0 %v4355
        %5903 = vmatpush.bf16.msra.mxu0 %v4351
        %5904 = vmatpush.bf16.msra.mxu0 %v4347
        %5905 = vmatpush.bf16.msra.mxu0 %v4343
        %5906 = vmatpush.bf16.msra.mxu0 %v4339
        %5907 = vmatpush.bf16.msra.mxu0 %v4335
        %5908 = vmatmul.bf16.gmra.mxu0 %v1772
        %v5909 = vpop.f32.mrf.mxu0
        %v5910 = vadd.f32 %v5877, %v5909
        %v5911 = vpop.f32.mrf.mxu0
        %v5912 = vadd.f32 %v5879, %v5911
        %5913 = vmatmul.bf16.gmra.mxu0 %v1788
        %v5914 = vpop.f32.mrf.mxu0
        %v5915 = vadd.f32 %v5882, %v5914
        %v5916 = vpop.f32.mrf.mxu0
        %v5917 = vadd.f32 %v5884, %v5916
        %5918 = vmatmul.bf16.gmra.mxu0 %v1804
        %v5919 = vpop.f32.mrf.mxu0
        %v5920 = vadd.f32 %v5887, %v5919
        %v5921 = vpop.f32.mrf.mxu0
        %v5922 = vadd.f32 %v5889, %v5921
        %5923 = vmatmul.bf16.gmra.mxu0 %v1820
        %v5924 = vpop.f32.mrf.mxu0
        %v5925 = vadd.f32 %v5892, %v5924
        %v5926 = vpop.f32.mrf.mxu0
        %v5927 = vadd.f32 %v5894, %v5926
        %5928 = vmatmul.bf16.gmra.mxu0 %v1836
        %v5929 = vpop.f32.mrf.mxu0
        %v5930 = vadd.f32 %v5897, %v5929
        %v5931 = vpop.f32.mrf.mxu0
        %5932 = vdwg.mxu0
        %5933 = vmatpush.bf16.msra.mxu0 %v4395
        %5934 = vmatpush.bf16.msra.mxu0 %v4391
        %5935 = vmatpush.bf16.msra.mxu0 %v4387
        %5936 = vmatpush.bf16.msra.mxu0 %v4383
        %5937 = vmatpush.bf16.msra.mxu0 %v4379
        %5938 = vmatpush.bf16.msra.mxu0 %v4375
        %5939 = vmatpush.bf16.msra.mxu0 %v4371
        %5940 = vmatpush.bf16.msra.mxu0 %v4367
        %5941 = vmatmul.bf16.gmra.mxu0 %v1773
        %v5942 = vpop.f32.mrf.mxu0
        %v5943 = vadd.f32 %v5910, %v5942
        %v5944 = vpop.f32.mrf.mxu0
        %v5945 = vadd.f32 %v5912, %v5944
        %5946 = vmatmul.bf16.gmra.mxu0 %v1789
        %v5947 = vpop.f32.mrf.mxu0
        %v5948 = vadd.f32 %v5915, %v5947
        %v5949 = vpop.f32.mrf.mxu0
        %v5950 = vadd.f32 %v5917, %v5949
        %5951 = vmatmul.bf16.gmra.mxu0 %v1805
        %v5952 = vpop.f32.mrf.mxu0
        %v5953 = vadd.f32 %v5920, %v5952
        %v5954 = vpop.f32.mrf.mxu0
        %v5955 = vadd.f32 %v5922, %v5954
        %5956 = vmatmul.bf16.gmra.mxu0 %v1821
        %v5957 = vpop.f32.mrf.mxu0
        %v5958 = vadd.f32 %v5925, %v5957
        %v5959 = vpop.f32.mrf.mxu0
        %v5960 = vadd.f32 %v5927, %v5959
        %5961 = vmatmul.bf16.gmra.mxu0 %v1837
        %v5962 = vpop.f32.mrf.mxu0
        %v5963 = vadd.f32 %v5930, %v5962
        %v5964 = vpop.f32.mrf.mxu0
        %5965 = vdwg.mxu0
        %5966 = vmatpush.bf16.msra.mxu0 %v3916
        %5967 = vmatpush.bf16.msra.mxu0 %v3912
        %5968 = vmatpush.bf16.msra.mxu0 %v3908
        %5969 = vmatpush.bf16.msra.mxu0 %v3904
        %5970 = vmatpush.bf16.msra.mxu0 %v3900
        %5971 = vmatpush.bf16.msra.mxu0 %v3896
        %5972 = vmatpush.bf16.msra.mxu0 %v3892
        %5973 = vmatpush.bf16.msra.mxu0 %v3888
        %5974 = vmatmul.bf16.gmra.mxu0 %v1758
        %v5975 = vpop.f32.mrf.mxu0
        %v5976 = vadd.f32 0.0, %v5975
        %v5977 = vpop.f32.mrf.mxu0
        %v5978 = vadd.f32 0.0, %v5977
        %5979 = vmatmul.bf16.gmra.mxu0 %v1774
        %v5980 = vpop.f32.mrf.mxu0
        %v5981 = vadd.f32 0.0, %v5980
        %v5982 = vpop.f32.mrf.mxu0
        %v5983 = vadd.f32 0.0, %v5982
        %5984 = vmatmul.bf16.gmra.mxu0 %v1790
        %v5985 = vpop.f32.mrf.mxu0
        %v5986 = vadd.f32 0.0, %v5985
        %v5987 = vpop.f32.mrf.mxu0
        %v5988 = vadd.f32 0.0, %v5987
        %5989 = vmatmul.bf16.gmra.mxu0 %v1806
        %v5990 = vpop.f32.mrf.mxu0
        %v5991 = vadd.f32 0.0, %v5990
        %v5992 = vpop.f32.mrf.mxu0
        %v5993 = vadd.f32 0.0, %v5992
        %5994 = vmatmul.bf16.gmra.mxu0 %v1822
        %v5995 = vpop.f32.mrf.mxu0
        %v5996 = vadd.f32 0.0, %v5995
        %v5997 = vpop.f32.mrf.mxu0
        %5998 = vdwg.mxu0
        %5999 = vmatpush.bf16.msra.mxu0 %v3948
        %6000 = vmatpush.bf16.msra.mxu0 %v3944
        %6001 = vmatpush.bf16.msra.mxu0 %v3940
        %6002 = vmatpush.bf16.msra.mxu0 %v3936
        %6003 = vmatpush.bf16.msra.mxu0 %v3932
        %6004 = vmatpush.bf16.msra.mxu0 %v3928
        %6005 = vmatpush.bf16.msra.mxu0 %v3924
        %6006 = vmatpush.bf16.msra.mxu0 %v3920
        %6007 = vmatmul.bf16.gmra.mxu0 %v1759
        %v6008 = vpop.f32.mrf.mxu0
        %v6009 = vadd.f32 %v5976, %v6008
        %v6010 = vpop.f32.mrf.mxu0
        %v6011 = vadd.f32 %v5978, %v6010
        %6012 = vmatmul.bf16.gmra.mxu0 %v1775
        %v6013 = vpop.f32.mrf.mxu0
        %v6014 = vadd.f32 %v5981, %v6013
        %v6015 = vpop.f32.mrf.mxu0
        %v6016 = vadd.f32 %v5983, %v6015
        %6017 = vmatmul.bf16.gmra.mxu0 %v1791
        %v6018 = vpop.f32.mrf.mxu0
        %v6019 = vadd.f32 %v5986, %v6018
        %v6020 = vpop.f32.mrf.mxu0
        %v6021 = vadd.f32 %v5988, %v6020
        %6022 = vmatmul.bf16.gmra.mxu0 %v1807
        %v6023 = vpop.f32.mrf.mxu0
        %v6024 = vadd.f32 %v5991, %v6023
        %v6025 = vpop.f32.mrf.mxu0
        %v6026 = vadd.f32 %v5993, %v6025
        %6027 = vmatmul.bf16.gmra.mxu0 %v1823
        %v6028 = vpop.f32.mrf.mxu0
        %v6029 = vadd.f32 %v5996, %v6028
        %v6030 = vpop.f32.mrf.mxu0
        %6031 = vdwg.mxu0
        %6032 = vmatpush.bf16.msra.mxu0 %v3980
        %6033 = vmatpush.bf16.msra.mxu0 %v3976
        %6034 = vmatpush.bf16.msra.mxu0 %v3972
        %6035 = vmatpush.bf16.msra.mxu0 %v3968
        %6036 = vmatpush.bf16.msra.mxu0 %v3964
        %6037 = vmatpush.bf16.msra.mxu0 %v3960
        %6038 = vmatpush.bf16.msra.mxu0 %v3956
        %6039 = vmatpush.bf16.msra.mxu0 %v3952
        %6040 = vmatmul.bf16.gmra.mxu0 %v1760
        %v6041 = vpop.f32.mrf.mxu0
        %v6042 = vadd.f32 %v6009, %v6041
        %v6043 = vpop.f32.mrf.mxu0
        %v6044 = vadd.f32 %v6011, %v6043
        %6045 = vmatmul.bf16.gmra.mxu0 %v1776
        %v6046 = vpop.f32.mrf.mxu0
        %v6047 = vadd.f32 %v6014, %v6046
        %v6048 = vpop.f32.mrf.mxu0
        %v6049 = vadd.f32 %v6016, %v6048
        %6050 = vmatmul.bf16.gmra.mxu0 %v1792
        %v6051 = vpop.f32.mrf.mxu0
        %v6052 = vadd.f32 %v6019, %v6051
        %v6053 = vpop.f32.mrf.mxu0
        %v6054 = vadd.f32 %v6021, %v6053
        %6055 = vmatmul.bf16.gmra.mxu0 %v1808
        %v6056 = vpop.f32.mrf.mxu0
        %v6057 = vadd.f32 %v6024, %v6056
        %v6058 = vpop.f32.mrf.mxu0
        %v6059 = vadd.f32 %v6026, %v6058
        %6060 = vmatmul.bf16.gmra.mxu0 %v1824
        %v6061 = vpop.f32.mrf.mxu0
        %v6062 = vadd.f32 %v6029, %v6061
        %v6063 = vpop.f32.mrf.mxu0
        %6064 = vdwg.mxu0
        %6065 = vmatpush.bf16.msra.mxu0 %v4012
        %6066 = vmatpush.bf16.msra.mxu0 %v4008
        %6067 = vmatpush.bf16.msra.mxu0 %v4004
        %6068 = vmatpush.bf16.msra.mxu0 %v4000
        %6069 = vmatpush.bf16.msra.mxu0 %v3996
        %6070 = vmatpush.bf16.msra.mxu0 %v3992
        %6071 = vmatpush.bf16.msra.mxu0 %v3988
        %6072 = vmatpush.bf16.msra.mxu0 %v3984
        %6073 = vmatmul.bf16.gmra.mxu0 %v1761
        %v6074 = vpop.f32.mrf.mxu0
        %v6075 = vadd.f32 %v6042, %v6074
        %v6076 = vpop.f32.mrf.mxu0
        %v6077 = vadd.f32 %v6044, %v6076
        %6078 = vmatmul.bf16.gmra.mxu0 %v1777
        %v6079 = vpop.f32.mrf.mxu0
        %v6080 = vadd.f32 %v6047, %v6079
        %v6081 = vpop.f32.mrf.mxu0
        %v6082 = vadd.f32 %v6049, %v6081
        %6083 = vmatmul.bf16.gmra.mxu0 %v1793
        %v6084 = vpop.f32.mrf.mxu0
        %v6085 = vadd.f32 %v6052, %v6084
        %v6086 = vpop.f32.mrf.mxu0
        %v6087 = vadd.f32 %v6054, %v6086
        %6088 = vmatmul.bf16.gmra.mxu0 %v1809
        %v6089 = vpop.f32.mrf.mxu0
        %v6090 = vadd.f32 %v6057, %v6089
        %v6091 = vpop.f32.mrf.mxu0
        %v6092 = vadd.f32 %v6059, %v6091
        %6093 = vmatmul.bf16.gmra.mxu0 %v1825
        %v6094 = vpop.f32.mrf.mxu0
        %v6095 = vadd.f32 %v6062, %v6094
        %v6096 = vpop.f32.mrf.mxu0
        %6097 = vdwg.mxu0
        %6098 = vmatpush.bf16.msra.mxu0 %v4044
        %6099 = vmatpush.bf16.msra.mxu0 %v4040
        %6100 = vmatpush.bf16.msra.mxu0 %v4036
        %6101 = vmatpush.bf16.msra.mxu0 %v4032
        %6102 = vmatpush.bf16.msra.mxu0 %v4028
        %6103 = vmatpush.bf16.msra.mxu0 %v4024
        %6104 = vmatpush.bf16.msra.mxu0 %v4020
        %6105 = vmatpush.bf16.msra.mxu0 %v4016
        %6106 = vmatmul.bf16.gmra.mxu0 %v1762
        %v6107 = vpop.f32.mrf.mxu0
        %v6108 = vadd.f32 %v6075, %v6107
        %v6109 = vpop.f32.mrf.mxu0
        %v6110 = vadd.f32 %v6077, %v6109
        %6111 = vmatmul.bf16.gmra.mxu0 %v1778
        %v6112 = vpop.f32.mrf.mxu0
        %v6113 = vadd.f32 %v6080, %v6112
        %v6114 = vpop.f32.mrf.mxu0
        %v6115 = vadd.f32 %v6082, %v6114
        %6116 = vmatmul.bf16.gmra.mxu0 %v1794
        %v6117 = vpop.f32.mrf.mxu0
        %v6118 = vadd.f32 %v6085, %v6117
        %v6119 = vpop.f32.mrf.mxu0
        %v6120 = vadd.f32 %v6087, %v6119
        %6121 = vmatmul.bf16.gmra.mxu0 %v1810
        %v6122 = vpop.f32.mrf.mxu0
        %v6123 = vadd.f32 %v6090, %v6122
        %v6124 = vpop.f32.mrf.mxu0
        %v6125 = vadd.f32 %v6092, %v6124
        %6126 = vmatmul.bf16.gmra.mxu0 %v1826
        %v6127 = vpop.f32.mrf.mxu0
        %v6128 = vadd.f32 %v6095, %v6127
        %v6129 = vpop.f32.mrf.mxu0
        %6130 = vdwg.mxu0
        %6131 = vmatpush.bf16.msra.mxu0 %v4076
        %6132 = vmatpush.bf16.msra.mxu0 %v4072
        %6133 = vmatpush.bf16.msra.mxu0 %v4068
        %6134 = vmatpush.bf16.msra.mxu0 %v4064
        %6135 = vmatpush.bf16.msra.mxu0 %v4060
        %6136 = vmatpush.bf16.msra.mxu0 %v4056
        %6137 = vmatpush.bf16.msra.mxu0 %v4052
        %6138 = vmatpush.bf16.msra.mxu0 %v4048
        %6139 = vmatmul.bf16.gmra.mxu0 %v1763
        %v6140 = vpop.f32.mrf.mxu0
        %v6141 = vadd.f32 %v6108, %v6140
        %v6142 = vpop.f32.mrf.mxu0
        %v6143 = vadd.f32 %v6110, %v6142
        %6144 = vmatmul.bf16.gmra.mxu0 %v1779
        %v6145 = vpop.f32.mrf.mxu0
        %v6146 = vadd.f32 %v6113, %v6145
        %v6147 = vpop.f32.mrf.mxu0
        %v6148 = vadd.f32 %v6115, %v6147
        %6149 = vmatmul.bf16.gmra.mxu0 %v1795
        %v6150 = vpop.f32.mrf.mxu0
        %v6151 = vadd.f32 %v6118, %v6150
        %v6152 = vpop.f32.mrf.mxu0
        %v6153 = vadd.f32 %v6120, %v6152
        %6154 = vmatmul.bf16.gmra.mxu0 %v1811
        %v6155 = vpop.f32.mrf.mxu0
        %v6156 = vadd.f32 %v6123, %v6155
        %v6157 = vpop.f32.mrf.mxu0
        %v6158 = vadd.f32 %v6125, %v6157
        %6159 = vmatmul.bf16.gmra.mxu0 %v1827
        %v6160 = vpop.f32.mrf.mxu0
        %v6161 = vadd.f32 %v6128, %v6160
        %v6162 = vpop.f32.mrf.mxu0
        %6163 = vdwg.mxu0
        %6164 = vmatpush.bf16.msra.mxu0 %v4108
        %6165 = vmatpush.bf16.msra.mxu0 %v4104
        %6166 = vmatpush.bf16.msra.mxu0 %v4100
        %6167 = vmatpush.bf16.msra.mxu0 %v4096
        %6168 = vmatpush.bf16.msra.mxu0 %v4092
        %6169 = vmatpush.bf16.msra.mxu0 %v4088
        %6170 = vmatpush.bf16.msra.mxu0 %v4084
        %6171 = vmatpush.bf16.msra.mxu0 %v4080
        %6172 = vmatmul.bf16.gmra.mxu0 %v1764
        %v6173 = vpop.f32.mrf.mxu0
        %v6174 = vadd.f32 %v6141, %v6173
        %v6175 = vpop.f32.mrf.mxu0
        %v6176 = vadd.f32 %v6143, %v6175
        %6177 = vmatmul.bf16.gmra.mxu0 %v1780
        %v6178 = vpop.f32.mrf.mxu0
        %v6179 = vadd.f32 %v6146, %v6178
        %v6180 = vpop.f32.mrf.mxu0
        %v6181 = vadd.f32 %v6148, %v6180
        %6182 = vmatmul.bf16.gmra.mxu0 %v1796
        %v6183 = vpop.f32.mrf.mxu0
        %v6184 = vadd.f32 %v6151, %v6183
        %v6185 = vpop.f32.mrf.mxu0
        %v6186 = vadd.f32 %v6153, %v6185
        %6187 = vmatmul.bf16.gmra.mxu0 %v1812
        %v6188 = vpop.f32.mrf.mxu0
        %v6189 = vadd.f32 %v6156, %v6188
        %v6190 = vpop.f32.mrf.mxu0
        %v6191 = vadd.f32 %v6158, %v6190
        %6192 = vmatmul.bf16.gmra.mxu0 %v1828
        %v6193 = vpop.f32.mrf.mxu0
        %v6194 = vadd.f32 %v6161, %v6193
        %v6195 = vpop.f32.mrf.mxu0
        %6196 = vdwg.mxu0
        %6197 = vmatpush.bf16.msra.mxu0 %v4140
        %6198 = vmatpush.bf16.msra.mxu0 %v4136
        %6199 = vmatpush.bf16.msra.mxu0 %v4132
        %6200 = vmatpush.bf16.msra.mxu0 %v4128
        %6201 = vmatpush.bf16.msra.mxu0 %v4124
        %6202 = vmatpush.bf16.msra.mxu0 %v4120
        %6203 = vmatpush.bf16.msra.mxu0 %v4116
        %6204 = vmatpush.bf16.msra.mxu0 %v4112
        %6205 = vmatmul.bf16.gmra.mxu0 %v1765
        %v6206 = vpop.f32.mrf.mxu0
        %v6207 = vadd.f32 %v6174, %v6206
        %v6208 = vpop.f32.mrf.mxu0
        %v6209 = vadd.f32 %v6176, %v6208
        %6210 = vmatmul.bf16.gmra.mxu0 %v1781
        %v6211 = vpop.f32.mrf.mxu0
        %v6212 = vadd.f32 %v6179, %v6211
        %v6213 = vpop.f32.mrf.mxu0
        %v6214 = vadd.f32 %v6181, %v6213
        %6215 = vmatmul.bf16.gmra.mxu0 %v1797
        %v6216 = vpop.f32.mrf.mxu0
        %v6217 = vadd.f32 %v6184, %v6216
        %v6218 = vpop.f32.mrf.mxu0
        %v6219 = vadd.f32 %v6186, %v6218
        %6220 = vmatmul.bf16.gmra.mxu0 %v1813
        %v6221 = vpop.f32.mrf.mxu0
        %v6222 = vadd.f32 %v6189, %v6221
        %v6223 = vpop.f32.mrf.mxu0
        %v6224 = vadd.f32 %v6191, %v6223
        %6225 = vmatmul.bf16.gmra.mxu0 %v1829
        %v6226 = vpop.f32.mrf.mxu0
        %v6227 = vadd.f32 %v6194, %v6226
        %v6228 = vpop.f32.mrf.mxu0
        %6229 = vdwg.mxu0
        %6230 = vmatpush.bf16.msra.mxu0 %v4172
        %6231 = vmatpush.bf16.msra.mxu0 %v4168
        %6232 = vmatpush.bf16.msra.mxu0 %v4164
        %6233 = vmatpush.bf16.msra.mxu0 %v4160
        %6234 = vmatpush.bf16.msra.mxu0 %v4156
        %6235 = vmatpush.bf16.msra.mxu0 %v4152
        %6236 = vmatpush.bf16.msra.mxu0 %v4148
        %6237 = vmatpush.bf16.msra.mxu0 %v4144
        %6238 = vmatmul.bf16.gmra.mxu0 %v1766
        %v6239 = vpop.f32.mrf.mxu0
        %v6240 = vadd.f32 %v6207, %v6239
        %v6241 = vpop.f32.mrf.mxu0
        %v6242 = vadd.f32 %v6209, %v6241
        %6243 = vmatmul.bf16.gmra.mxu0 %v1782
        %v6244 = vpop.f32.mrf.mxu0
        %v6245 = vadd.f32 %v6212, %v6244
        %v6246 = vpop.f32.mrf.mxu0
        %v6247 = vadd.f32 %v6214, %v6246
        %6248 = vmatmul.bf16.gmra.mxu0 %v1798
        %v6249 = vpop.f32.mrf.mxu0
        %v6250 = vadd.f32 %v6217, %v6249
        %v6251 = vpop.f32.mrf.mxu0
        %v6252 = vadd.f32 %v6219, %v6251
        %6253 = vmatmul.bf16.gmra.mxu0 %v1814
        %v6254 = vpop.f32.mrf.mxu0
        %v6255 = vadd.f32 %v6222, %v6254
        %v6256 = vpop.f32.mrf.mxu0
        %v6257 = vadd.f32 %v6224, %v6256
        %6258 = vmatmul.bf16.gmra.mxu0 %v1830
        %v6259 = vpop.f32.mrf.mxu0
        %v6260 = vadd.f32 %v6227, %v6259
        %v6261 = vpop.f32.mrf.mxu0
        %6262 = vdwg.mxu0
        %6263 = vmatpush.bf16.msra.mxu0 %v4204
        %6264 = vmatpush.bf16.msra.mxu0 %v4200
        %6265 = vmatpush.bf16.msra.mxu0 %v4196
        %6266 = vmatpush.bf16.msra.mxu0 %v4192
        %6267 = vmatpush.bf16.msra.mxu0 %v4188
        %6268 = vmatpush.bf16.msra.mxu0 %v4184
        %6269 = vmatpush.bf16.msra.mxu0 %v4180
        %6270 = vmatpush.bf16.msra.mxu0 %v4176
        %6271 = vmatmul.bf16.gmra.mxu0 %v1767
        %v6272 = vpop.f32.mrf.mxu0
        %v6273 = vadd.f32 %v6240, %v6272
        %v6274 = vpop.f32.mrf.mxu0
        %v6275 = vadd.f32 %v6242, %v6274
        %6276 = vmatmul.bf16.gmra.mxu0 %v1783
        %v6277 = vpop.f32.mrf.mxu0
        %v6278 = vadd.f32 %v6245, %v6277
        %v6279 = vpop.f32.mrf.mxu0
        %v6280 = vadd.f32 %v6247, %v6279
        %6281 = vmatmul.bf16.gmra.mxu0 %v1799
        %v6282 = vpop.f32.mrf.mxu0
        %v6283 = vadd.f32 %v6250, %v6282
        %v6284 = vpop.f32.mrf.mxu0
        %v6285 = vadd.f32 %v6252, %v6284
        %6286 = vmatmul.bf16.gmra.mxu0 %v1815
        %v6287 = vpop.f32.mrf.mxu0
        %v6288 = vadd.f32 %v6255, %v6287
        %v6289 = vpop.f32.mrf.mxu0
        %v6290 = vadd.f32 %v6257, %v6289
        %6291 = vmatmul.bf16.gmra.mxu0 %v1831
        %v6292 = vpop.f32.mrf.mxu0
        %v6293 = vadd.f32 %v6260, %v6292
        %v6294 = vpop.f32.mrf.mxu0
        %6295 = vdwg.mxu0
        %6296 = vmatpush.bf16.msra.mxu0 %v4236
        %6297 = vmatpush.bf16.msra.mxu0 %v4232
        %6298 = vmatpush.bf16.msra.mxu0 %v4228
        %6299 = vmatpush.bf16.msra.mxu0 %v4224
        %6300 = vmatpush.bf16.msra.mxu0 %v4220
        %6301 = vmatpush.bf16.msra.mxu0 %v4216
        %6302 = vmatpush.bf16.msra.mxu0 %v4212
        %6303 = vmatpush.bf16.msra.mxu0 %v4208
        %6304 = vmatmul.bf16.gmra.mxu0 %v1768
        %v6305 = vpop.f32.mrf.mxu0
        %v6306 = vadd.f32 %v6273, %v6305
        %v6307 = vpop.f32.mrf.mxu0
        %v6308 = vadd.f32 %v6275, %v6307
        %6309 = vmatmul.bf16.gmra.mxu0 %v1784
        %v6310 = vpop.f32.mrf.mxu0
        %v6311 = vadd.f32 %v6278, %v6310
        %v6312 = vpop.f32.mrf.mxu0
        %v6313 = vadd.f32 %v6280, %v6312
        %6314 = vmatmul.bf16.gmra.mxu0 %v1800
        %v6315 = vpop.f32.mrf.mxu0
        %v6316 = vadd.f32 %v6283, %v6315
        %v6317 = vpop.f32.mrf.mxu0
        %v6318 = vadd.f32 %v6285, %v6317
        %6319 = vmatmul.bf16.gmra.mxu0 %v1816
        %v6320 = vpop.f32.mrf.mxu0
        %v6321 = vadd.f32 %v6288, %v6320
        %v6322 = vpop.f32.mrf.mxu0
        %v6323 = vadd.f32 %v6290, %v6322
        %6324 = vmatmul.bf16.gmra.mxu0 %v1832
        %v6325 = vpop.f32.mrf.mxu0
        %v6326 = vadd.f32 %v6293, %v6325
        %v6327 = vpop.f32.mrf.mxu0
        %6328 = vdwg.mxu0
        %6329 = vmatpush.bf16.msra.mxu0 %v4268
        %6330 = vmatpush.bf16.msra.mxu0 %v4264
        %6331 = vmatpush.bf16.msra.mxu0 %v4260
        %6332 = vmatpush.bf16.msra.mxu0 %v4256
        %6333 = vmatpush.bf16.msra.mxu0 %v4252
        %6334 = vmatpush.bf16.msra.mxu0 %v4248
        %6335 = vmatpush.bf16.msra.mxu0 %v4244
        %6336 = vmatpush.bf16.msra.mxu0 %v4240
        %6337 = vmatmul.bf16.gmra.mxu0 %v1769
        %v6338 = vpop.f32.mrf.mxu0
        %v6339 = vadd.f32 %v6306, %v6338
        %v6340 = vpop.f32.mrf.mxu0
        %v6341 = vadd.f32 %v6308, %v6340
        %6342 = vmatmul.bf16.gmra.mxu0 %v1785
        %v6343 = vpop.f32.mrf.mxu0
        %v6344 = vadd.f32 %v6311, %v6343
        %v6345 = vpop.f32.mrf.mxu0
        %v6346 = vadd.f32 %v6313, %v6345
        %6347 = vmatmul.bf16.gmra.mxu0 %v1801
        %v6348 = vpop.f32.mrf.mxu0
        %v6349 = vadd.f32 %v6316, %v6348
        %v6350 = vpop.f32.mrf.mxu0
        %v6351 = vadd.f32 %v6318, %v6350
        %6352 = vmatmul.bf16.gmra.mxu0 %v1817
        %v6353 = vpop.f32.mrf.mxu0
        %v6354 = vadd.f32 %v6321, %v6353
        %v6355 = vpop.f32.mrf.mxu0
        %v6356 = vadd.f32 %v6323, %v6355
        %6357 = vmatmul.bf16.gmra.mxu0 %v1833
        %v6358 = vpop.f32.mrf.mxu0
        %v6359 = vadd.f32 %v6326, %v6358
        %v6360 = vpop.f32.mrf.mxu0
        %6361 = vdwg.mxu0
        %6362 = vmatpush.bf16.msra.mxu0 %v4300
        %6363 = vmatpush.bf16.msra.mxu0 %v4296
        %6364 = vmatpush.bf16.msra.mxu0 %v4292
        %6365 = vmatpush.bf16.msra.mxu0 %v4288
        %6366 = vmatpush.bf16.msra.mxu0 %v4284
        %6367 = vmatpush.bf16.msra.mxu0 %v4280
        %6368 = vmatpush.bf16.msra.mxu0 %v4276
        %6369 = vmatpush.bf16.msra.mxu0 %v4272
        %6370 = vmatmul.bf16.gmra.mxu0 %v1770
        %v6371 = vpop.f32.mrf.mxu0
        %v6372 = vadd.f32 %v6339, %v6371
        %v6373 = vpop.f32.mrf.mxu0
        %v6374 = vadd.f32 %v6341, %v6373
        %6375 = vmatmul.bf16.gmra.mxu0 %v1786
        %v6376 = vpop.f32.mrf.mxu0
        %v6377 = vadd.f32 %v6344, %v6376
        %v6378 = vpop.f32.mrf.mxu0
        %v6379 = vadd.f32 %v6346, %v6378
        %6380 = vmatmul.bf16.gmra.mxu0 %v1802
        %v6381 = vpop.f32.mrf.mxu0
        %v6382 = vadd.f32 %v6349, %v6381
        %v6383 = vpop.f32.mrf.mxu0
        %v6384 = vadd.f32 %v6351, %v6383
        %6385 = vmatmul.bf16.gmra.mxu0 %v1818
        %v6386 = vpop.f32.mrf.mxu0
        %v6387 = vadd.f32 %v6354, %v6386
        %v6388 = vpop.f32.mrf.mxu0
        %v6389 = vadd.f32 %v6356, %v6388
        %6390 = vmatmul.bf16.gmra.mxu0 %v1834
        %v6391 = vpop.f32.mrf.mxu0
        %v6392 = vadd.f32 %v6359, %v6391
        %v6393 = vpop.f32.mrf.mxu0
        %6394 = vdwg.mxu0
        %6395 = vmatpush.bf16.msra.mxu0 %v4332
        %6396 = vmatpush.bf16.msra.mxu0 %v4328
        %6397 = vmatpush.bf16.msra.mxu0 %v4324
        %6398 = vmatpush.bf16.msra.mxu0 %v4320
        %6399 = vmatpush.bf16.msra.mxu0 %v4316
        %6400 = vmatpush.bf16.msra.mxu0 %v4312
        %6401 = vmatpush.bf16.msra.mxu0 %v4308
        %6402 = vmatpush.bf16.msra.mxu0 %v4304
        %6403 = vmatmul.bf16.gmra.mxu0 %v1771
        %v6404 = vpop.f32.mrf.mxu0
        %v6405 = vadd.f32 %v6372, %v6404
        %v6406 = vpop.f32.mrf.mxu0
        %v6407 = vadd.f32 %v6374, %v6406
        %6408 = vmatmul.bf16.gmra.mxu0 %v1787
        %v6409 = vpop.f32.mrf.mxu0
        %v6410 = vadd.f32 %v6377, %v6409
        %v6411 = vpop.f32.mrf.mxu0
        %v6412 = vadd.f32 %v6379, %v6411
        %6413 = vmatmul.bf16.gmra.mxu0 %v1803
        %v6414 = vpop.f32.mrf.mxu0
        %v6415 = vadd.f32 %v6382, %v6414
        %v6416 = vpop.f32.mrf.mxu0
        %v6417 = vadd.f32 %v6384, %v6416
        %6418 = vmatmul.bf16.gmra.mxu0 %v1819
        %v6419 = vpop.f32.mrf.mxu0
        %v6420 = vadd.f32 %v6387, %v6419
        %v6421 = vpop.f32.mrf.mxu0
        %v6422 = vadd.f32 %v6389, %v6421
        %6423 = vmatmul.bf16.gmra.mxu0 %v1835
        %v6424 = vpop.f32.mrf.mxu0
        %v6425 = vadd.f32 %v6392, %v6424
        %v6426 = vpop.f32.mrf.mxu0
        %6427 = vdwg.mxu0
        %6428 = vmatpush.bf16.msra.mxu0 %v4364
        %6429 = vmatpush.bf16.msra.mxu0 %v4360
        %6430 = vmatpush.bf16.msra.mxu0 %v4356
        %6431 = vmatpush.bf16.msra.mxu0 %v4352
        %6432 = vmatpush.bf16.msra.mxu0 %v4348
        %6433 = vmatpush.bf16.msra.mxu0 %v4344
        %6434 = vmatpush.bf16.msra.mxu0 %v4340
        %6435 = vmatpush.bf16.msra.mxu0 %v4336
        %6436 = vmatmul.bf16.gmra.mxu0 %v1772
        %v6437 = vpop.f32.mrf.mxu0
        %v6438 = vadd.f32 %v6405, %v6437
        %v6439 = vpop.f32.mrf.mxu0
        %v6440 = vadd.f32 %v6407, %v6439
        %6441 = vmatmul.bf16.gmra.mxu0 %v1788
        %v6442 = vpop.f32.mrf.mxu0
        %v6443 = vadd.f32 %v6410, %v6442
        %v6444 = vpop.f32.mrf.mxu0
        %v6445 = vadd.f32 %v6412, %v6444
        %6446 = vmatmul.bf16.gmra.mxu0 %v1804
        %v6447 = vpop.f32.mrf.mxu0
        %v6448 = vadd.f32 %v6415, %v6447
        %v6449 = vpop.f32.mrf.mxu0
        %v6450 = vadd.f32 %v6417, %v6449
        %6451 = vmatmul.bf16.gmra.mxu0 %v1820
        %v6452 = vpop.f32.mrf.mxu0
        %v6453 = vadd.f32 %v6420, %v6452
        %v6454 = vpop.f32.mrf.mxu0
        %v6455 = vadd.f32 %v6422, %v6454
        %6456 = vmatmul.bf16.gmra.mxu0 %v1836
        %v6457 = vpop.f32.mrf.mxu0
        %v6458 = vadd.f32 %v6425, %v6457
        %v6459 = vpop.f32.mrf.mxu0
        %6460 = vdwg.mxu0
        %6461 = vmatpush.bf16.msra.mxu0 %v4396
        %6462 = vmatpush.bf16.msra.mxu0 %v4392
        %6463 = vmatpush.bf16.msra.mxu0 %v4388
        %6464 = vmatpush.bf16.msra.mxu0 %v4384
        %6465 = vmatpush.bf16.msra.mxu0 %v4380
        %6466 = vmatpush.bf16.msra.mxu0 %v4376
        %6467 = vmatpush.bf16.msra.mxu0 %v4372
        %6468 = vmatpush.bf16.msra.mxu0 %v4368
        %6469 = vmatmul.bf16.gmra.mxu0 %v1773
        %v6470 = vpop.f32.mrf.mxu0
        %v6471 = vadd.f32 %v6438, %v6470
        %v6472 = vpop.f32.mrf.mxu0
        %v6473 = vadd.f32 %v6440, %v6472
        %6474 = vmatmul.bf16.gmra.mxu0 %v1789
        %v6475 = vpop.f32.mrf.mxu0
        %v6476 = vadd.f32 %v6443, %v6475
        %v6477 = vpop.f32.mrf.mxu0
        %v6478 = vadd.f32 %v6445, %v6477
        %6479 = vmatmul.bf16.gmra.mxu0 %v1805
        %v6480 = vpop.f32.mrf.mxu0
        %v6481 = vadd.f32 %v6448, %v6480
        %v6482 = vpop.f32.mrf.mxu0
        %v6483 = vadd.f32 %v6450, %v6482
        %6484 = vmatmul.bf16.gmra.mxu0 %v1821
        %v6485 = vpop.f32.mrf.mxu0
        %v6486 = vadd.f32 %v6453, %v6485
        %v6487 = vpop.f32.mrf.mxu0
        %v6488 = vadd.f32 %v6455, %v6487
        %6489 = vmatmul.bf16.gmra.mxu0 %v1837
        %v6490 = vpop.f32.mrf.mxu0
        %v6491 = vadd.f32 %v6458, %v6490
        %v6492 = vpop.f32.mrf.mxu0
        %6493 = vdwg.mxu0
        %6494 = vmatpush.bf16.msra.mxu0 %v3917
        %6495 = vmatpush.bf16.msra.mxu0 %v3913
        %6496 = vmatpush.bf16.msra.mxu0 %v3909
        %6497 = vmatpush.bf16.msra.mxu0 %v3905
        %6498 = vmatpush.bf16.msra.mxu0 %v3901
        %6499 = vmatpush.bf16.msra.mxu0 %v3897
        %6500 = vmatpush.bf16.msra.mxu0 %v3893
        %6501 = vmatpush.bf16.msra.mxu0 %v3889
        %6502 = vmatmul.bf16.gmra.mxu0 %v1758
        %v6503 = vpop.f32.mrf.mxu0
        %v6504 = vadd.f32 0.0, %v6503
        %v6505 = vpop.f32.mrf.mxu0
        %v6506 = vadd.f32 0.0, %v6505
        %6507 = vmatmul.bf16.gmra.mxu0 %v1774
        %v6508 = vpop.f32.mrf.mxu0
        %v6509 = vadd.f32 0.0, %v6508
        %v6510 = vpop.f32.mrf.mxu0
        %v6511 = vadd.f32 0.0, %v6510
        %6512 = vmatmul.bf16.gmra.mxu0 %v1790
        %v6513 = vpop.f32.mrf.mxu0
        %v6514 = vadd.f32 0.0, %v6513
        %v6515 = vpop.f32.mrf.mxu0
        %v6516 = vadd.f32 0.0, %v6515
        %6517 = vmatmul.bf16.gmra.mxu0 %v1806
        %v6518 = vpop.f32.mrf.mxu0
        %v6519 = vadd.f32 0.0, %v6518
        %v6520 = vpop.f32.mrf.mxu0
        %v6521 = vadd.f32 0.0, %v6520
        %6522 = vmatmul.bf16.gmra.mxu0 %v1822
        %v6523 = vpop.f32.mrf.mxu0
        %v6524 = vadd.f32 0.0, %v6523
        %v6525 = vpop.f32.mrf.mxu0
        %6526 = vdwg.mxu0
        %6527 = vmatpush.bf16.msra.mxu0 %v3949
        %6528 = vmatpush.bf16.msra.mxu0 %v3945
        %6529 = vmatpush.bf16.msra.mxu0 %v3941
        %6530 = vmatpush.bf16.msra.mxu0 %v3937
        %6531 = vmatpush.bf16.msra.mxu0 %v3933
        %6532 = vmatpush.bf16.msra.mxu0 %v3929
        %6533 = vmatpush.bf16.msra.mxu0 %v3925
        %6534 = vmatpush.bf16.msra.mxu0 %v3921
        %6535 = vmatmul.bf16.gmra.mxu0 %v1759
        %v6536 = vpop.f32.mrf.mxu0
        %v6537 = vadd.f32 %v6504, %v6536
        %v6538 = vpop.f32.mrf.mxu0
        %v6539 = vadd.f32 %v6506, %v6538
        %6540 = vmatmul.bf16.gmra.mxu0 %v1775
        %v6541 = vpop.f32.mrf.mxu0
        %v6542 = vadd.f32 %v6509, %v6541
        %v6543 = vpop.f32.mrf.mxu0
        %v6544 = vadd.f32 %v6511, %v6543
        %6545 = vmatmul.bf16.gmra.mxu0 %v1791
        %v6546 = vpop.f32.mrf.mxu0
        %v6547 = vadd.f32 %v6514, %v6546
        %v6548 = vpop.f32.mrf.mxu0
        %v6549 = vadd.f32 %v6516, %v6548
        %6550 = vmatmul.bf16.gmra.mxu0 %v1807
        %v6551 = vpop.f32.mrf.mxu0
        %v6552 = vadd.f32 %v6519, %v6551
        %v6553 = vpop.f32.mrf.mxu0
        %v6554 = vadd.f32 %v6521, %v6553
        %6555 = vmatmul.bf16.gmra.mxu0 %v1823
        %v6556 = vpop.f32.mrf.mxu0
        %v6557 = vadd.f32 %v6524, %v6556
        %v6558 = vpop.f32.mrf.mxu0
        %6559 = vdwg.mxu0
        %6560 = vmatpush.bf16.msra.mxu0 %v3981
        %6561 = vmatpush.bf16.msra.mxu0 %v3977
        %6562 = vmatpush.bf16.msra.mxu0 %v3973
        %6563 = vmatpush.bf16.msra.mxu0 %v3969
        %6564 = vmatpush.bf16.msra.mxu0 %v3965
        %6565 = vmatpush.bf16.msra.mxu0 %v3961
        %6566 = vmatpush.bf16.msra.mxu0 %v3957
        %6567 = vmatpush.bf16.msra.mxu0 %v3953
        %6568 = vmatmul.bf16.gmra.mxu0 %v1760
        %v6569 = vpop.f32.mrf.mxu0
        %v6570 = vadd.f32 %v6537, %v6569
        %v6571 = vpop.f32.mrf.mxu0
        %v6572 = vadd.f32 %v6539, %v6571
        %6573 = vmatmul.bf16.gmra.mxu0 %v1776
        %v6574 = vpop.f32.mrf.mxu0
        %v6575 = vadd.f32 %v6542, %v6574
        %v6576 = vpop.f32.mrf.mxu0
        %v6577 = vadd.f32 %v6544, %v6576
        %6578 = vmatmul.bf16.gmra.mxu0 %v1792
        %v6579 = vpop.f32.mrf.mxu0
        %v6580 = vadd.f32 %v6547, %v6579
        %v6581 = vpop.f32.mrf.mxu0
        %v6582 = vadd.f32 %v6549, %v6581
        %6583 = vmatmul.bf16.gmra.mxu0 %v1808
        %v6584 = vpop.f32.mrf.mxu0
        %v6585 = vadd.f32 %v6552, %v6584
        %v6586 = vpop.f32.mrf.mxu0
        %v6587 = vadd.f32 %v6554, %v6586
        %6588 = vmatmul.bf16.gmra.mxu0 %v1824
        %v6589 = vpop.f32.mrf.mxu0
        %v6590 = vadd.f32 %v6557, %v6589
        %v6591 = vpop.f32.mrf.mxu0
        %6592 = vdwg.mxu0
        %6593 = vmatpush.bf16.msra.mxu0 %v4013
        %6594 = vmatpush.bf16.msra.mxu0 %v4009
        %6595 = vmatpush.bf16.msra.mxu0 %v4005
        %6596 = vmatpush.bf16.msra.mxu0 %v4001
        %6597 = vmatpush.bf16.msra.mxu0 %v3997
        %6598 = vmatpush.bf16.msra.mxu0 %v3993
        %6599 = vmatpush.bf16.msra.mxu0 %v3989
        %6600 = vmatpush.bf16.msra.mxu0 %v3985
        %6601 = vmatmul.bf16.gmra.mxu0 %v1761
        %v6602 = vpop.f32.mrf.mxu0
        %v6603 = vadd.f32 %v6570, %v6602
        %v6604 = vpop.f32.mrf.mxu0
        %v6605 = vadd.f32 %v6572, %v6604
        %6606 = vmatmul.bf16.gmra.mxu0 %v1777
        %v6607 = vpop.f32.mrf.mxu0
        %v6608 = vadd.f32 %v6575, %v6607
        %v6609 = vpop.f32.mrf.mxu0
        %v6610 = vadd.f32 %v6577, %v6609
        %6611 = vmatmul.bf16.gmra.mxu0 %v1793
        %v6612 = vpop.f32.mrf.mxu0
        %v6613 = vadd.f32 %v6580, %v6612
        %v6614 = vpop.f32.mrf.mxu0
        %v6615 = vadd.f32 %v6582, %v6614
        %6616 = vmatmul.bf16.gmra.mxu0 %v1809
        %v6617 = vpop.f32.mrf.mxu0
        %v6618 = vadd.f32 %v6585, %v6617
        %v6619 = vpop.f32.mrf.mxu0
        %v6620 = vadd.f32 %v6587, %v6619
        %6621 = vmatmul.bf16.gmra.mxu0 %v1825
        %v6622 = vpop.f32.mrf.mxu0
        %v6623 = vadd.f32 %v6590, %v6622
        %v6624 = vpop.f32.mrf.mxu0
        %6625 = vdwg.mxu0
        %6626 = vmatpush.bf16.msra.mxu0 %v4045
        %6627 = vmatpush.bf16.msra.mxu0 %v4041
        %6628 = vmatpush.bf16.msra.mxu0 %v4037
        %6629 = vmatpush.bf16.msra.mxu0 %v4033
        %6630 = vmatpush.bf16.msra.mxu0 %v4029
        %6631 = vmatpush.bf16.msra.mxu0 %v4025
        %6632 = vmatpush.bf16.msra.mxu0 %v4021
        %6633 = vmatpush.bf16.msra.mxu0 %v4017
        %6634 = vmatmul.bf16.gmra.mxu0 %v1762
        %v6635 = vpop.f32.mrf.mxu0
        %v6636 = vadd.f32 %v6603, %v6635
        %v6637 = vpop.f32.mrf.mxu0
        %v6638 = vadd.f32 %v6605, %v6637
        %6639 = vmatmul.bf16.gmra.mxu0 %v1778
        %v6640 = vpop.f32.mrf.mxu0
        %v6641 = vadd.f32 %v6608, %v6640
        %v6642 = vpop.f32.mrf.mxu0
        %v6643 = vadd.f32 %v6610, %v6642
        %6644 = vmatmul.bf16.gmra.mxu0 %v1794
        %v6645 = vpop.f32.mrf.mxu0
        %v6646 = vadd.f32 %v6613, %v6645
        %v6647 = vpop.f32.mrf.mxu0
        %v6648 = vadd.f32 %v6615, %v6647
        %6649 = vmatmul.bf16.gmra.mxu0 %v1810
        %v6650 = vpop.f32.mrf.mxu0
        %v6651 = vadd.f32 %v6618, %v6650
        %v6652 = vpop.f32.mrf.mxu0
        %v6653 = vadd.f32 %v6620, %v6652
        %6654 = vmatmul.bf16.gmra.mxu0 %v1826
        %v6655 = vpop.f32.mrf.mxu0
        %v6656 = vadd.f32 %v6623, %v6655
        %v6657 = vpop.f32.mrf.mxu0
        %6658 = vdwg.mxu0
        %6659 = vmatpush.bf16.msra.mxu0 %v4077
        %6660 = vmatpush.bf16.msra.mxu0 %v4073
        %6661 = vmatpush.bf16.msra.mxu0 %v4069
        %6662 = vmatpush.bf16.msra.mxu0 %v4065
        %6663 = vmatpush.bf16.msra.mxu0 %v4061
        %6664 = vmatpush.bf16.msra.mxu0 %v4057
        %6665 = vmatpush.bf16.msra.mxu0 %v4053
        %6666 = vmatpush.bf16.msra.mxu0 %v4049
        %6667 = vmatmul.bf16.gmra.mxu0 %v1763
        %v6668 = vpop.f32.mrf.mxu0
        %v6669 = vadd.f32 %v6636, %v6668
        %v6670 = vpop.f32.mrf.mxu0
        %v6671 = vadd.f32 %v6638, %v6670
        %6672 = vmatmul.bf16.gmra.mxu0 %v1779
        %v6673 = vpop.f32.mrf.mxu0
        %v6674 = vadd.f32 %v6641, %v6673
        %v6675 = vpop.f32.mrf.mxu0
        %v6676 = vadd.f32 %v6643, %v6675
        %6677 = vmatmul.bf16.gmra.mxu0 %v1795
        %v6678 = vpop.f32.mrf.mxu0
        %v6679 = vadd.f32 %v6646, %v6678
        %v6680 = vpop.f32.mrf.mxu0
        %v6681 = vadd.f32 %v6648, %v6680
        %6682 = vmatmul.bf16.gmra.mxu0 %v1811
        %v6683 = vpop.f32.mrf.mxu0
        %v6684 = vadd.f32 %v6651, %v6683
        %v6685 = vpop.f32.mrf.mxu0
        %v6686 = vadd.f32 %v6653, %v6685
        %6687 = vmatmul.bf16.gmra.mxu0 %v1827
        %v6688 = vpop.f32.mrf.mxu0
        %v6689 = vadd.f32 %v6656, %v6688
        %v6690 = vpop.f32.mrf.mxu0
        %6691 = vdwg.mxu0
        %6692 = vmatpush.bf16.msra.mxu0 %v4109
        %6693 = vmatpush.bf16.msra.mxu0 %v4105
        %6694 = vmatpush.bf16.msra.mxu0 %v4101
        %6695 = vmatpush.bf16.msra.mxu0 %v4097
        %6696 = vmatpush.bf16.msra.mxu0 %v4093
        %6697 = vmatpush.bf16.msra.mxu0 %v4089
        %6698 = vmatpush.bf16.msra.mxu0 %v4085
        %6699 = vmatpush.bf16.msra.mxu0 %v4081
        %6700 = vmatmul.bf16.gmra.mxu0 %v1764
        %v6701 = vpop.f32.mrf.mxu0
        %v6702 = vadd.f32 %v6669, %v6701
        %v6703 = vpop.f32.mrf.mxu0
        %v6704 = vadd.f32 %v6671, %v6703
        %6705 = vmatmul.bf16.gmra.mxu0 %v1780
        %v6706 = vpop.f32.mrf.mxu0
        %v6707 = vadd.f32 %v6674, %v6706
        %v6708 = vpop.f32.mrf.mxu0
        %v6709 = vadd.f32 %v6676, %v6708
        %6710 = vmatmul.bf16.gmra.mxu0 %v1796
        %v6711 = vpop.f32.mrf.mxu0
        %v6712 = vadd.f32 %v6679, %v6711
        %v6713 = vpop.f32.mrf.mxu0
        %v6714 = vadd.f32 %v6681, %v6713
        %6715 = vmatmul.bf16.gmra.mxu0 %v1812
        %v6716 = vpop.f32.mrf.mxu0
        %v6717 = vadd.f32 %v6684, %v6716
        %v6718 = vpop.f32.mrf.mxu0
        %v6719 = vadd.f32 %v6686, %v6718
        %6720 = vmatmul.bf16.gmra.mxu0 %v1828
        %v6721 = vpop.f32.mrf.mxu0
        %v6722 = vadd.f32 %v6689, %v6721
        %v6723 = vpop.f32.mrf.mxu0
        %6724 = vdwg.mxu0
        %6725 = vmatpush.bf16.msra.mxu0 %v4141
        %6726 = vmatpush.bf16.msra.mxu0 %v4137
        %6727 = vmatpush.bf16.msra.mxu0 %v4133
        %6728 = vmatpush.bf16.msra.mxu0 %v4129
        %6729 = vmatpush.bf16.msra.mxu0 %v4125
        %6730 = vmatpush.bf16.msra.mxu0 %v4121
        %6731 = vmatpush.bf16.msra.mxu0 %v4117
        %6732 = vmatpush.bf16.msra.mxu0 %v4113
        %6733 = vmatmul.bf16.gmra.mxu0 %v1765
        %v6734 = vpop.f32.mrf.mxu0
        %v6735 = vadd.f32 %v6702, %v6734
        %v6736 = vpop.f32.mrf.mxu0
        %v6737 = vadd.f32 %v6704, %v6736
        %6738 = vmatmul.bf16.gmra.mxu0 %v1781
        %v6739 = vpop.f32.mrf.mxu0
        %v6740 = vadd.f32 %v6707, %v6739
        %v6741 = vpop.f32.mrf.mxu0
        %v6742 = vadd.f32 %v6709, %v6741
        %6743 = vmatmul.bf16.gmra.mxu0 %v1797
        %v6744 = vpop.f32.mrf.mxu0
        %v6745 = vadd.f32 %v6712, %v6744
        %v6746 = vpop.f32.mrf.mxu0
        %v6747 = vadd.f32 %v6714, %v6746
        %6748 = vmatmul.bf16.gmra.mxu0 %v1813
        %v6749 = vpop.f32.mrf.mxu0
        %v6750 = vadd.f32 %v6717, %v6749
        %v6751 = vpop.f32.mrf.mxu0
        %v6752 = vadd.f32 %v6719, %v6751
        %6753 = vmatmul.bf16.gmra.mxu0 %v1829
        %v6754 = vpop.f32.mrf.mxu0
        %v6755 = vadd.f32 %v6722, %v6754
        %v6756 = vpop.f32.mrf.mxu0
        %6757 = vdwg.mxu0
        %6758 = vmatpush.bf16.msra.mxu0 %v4173
        %6759 = vmatpush.bf16.msra.mxu0 %v4169
        %6760 = vmatpush.bf16.msra.mxu0 %v4165
        %6761 = vmatpush.bf16.msra.mxu0 %v4161
        %6762 = vmatpush.bf16.msra.mxu0 %v4157
        %6763 = vmatpush.bf16.msra.mxu0 %v4153
        %6764 = vmatpush.bf16.msra.mxu0 %v4149
        %6765 = vmatpush.bf16.msra.mxu0 %v4145
        %6766 = vmatmul.bf16.gmra.mxu0 %v1766
        %v6767 = vpop.f32.mrf.mxu0
        %v6768 = vadd.f32 %v6735, %v6767
        %v6769 = vpop.f32.mrf.mxu0
        %v6770 = vadd.f32 %v6737, %v6769
        %6771 = vmatmul.bf16.gmra.mxu0 %v1782
        %v6772 = vpop.f32.mrf.mxu0
        %v6773 = vadd.f32 %v6740, %v6772
        %v6774 = vpop.f32.mrf.mxu0
        %v6775 = vadd.f32 %v6742, %v6774
        %6776 = vmatmul.bf16.gmra.mxu0 %v1798
        %v6777 = vpop.f32.mrf.mxu0
        %v6778 = vadd.f32 %v6745, %v6777
        %v6779 = vpop.f32.mrf.mxu0
        %v6780 = vadd.f32 %v6747, %v6779
        %6781 = vmatmul.bf16.gmra.mxu0 %v1814
        %v6782 = vpop.f32.mrf.mxu0
        %v6783 = vadd.f32 %v6750, %v6782
        %v6784 = vpop.f32.mrf.mxu0
        %v6785 = vadd.f32 %v6752, %v6784
        %6786 = vmatmul.bf16.gmra.mxu0 %v1830
        %v6787 = vpop.f32.mrf.mxu0
        %v6788 = vadd.f32 %v6755, %v6787
        %v6789 = vpop.f32.mrf.mxu0
        %6790 = vdwg.mxu0
        %6791 = vmatpush.bf16.msra.mxu0 %v4205
        %6792 = vmatpush.bf16.msra.mxu0 %v4201
        %6793 = vmatpush.bf16.msra.mxu0 %v4197
        %6794 = vmatpush.bf16.msra.mxu0 %v4193
        %6795 = vmatpush.bf16.msra.mxu0 %v4189
        %6796 = vmatpush.bf16.msra.mxu0 %v4185
        %6797 = vmatpush.bf16.msra.mxu0 %v4181
        %6798 = vmatpush.bf16.msra.mxu0 %v4177
        %6799 = vmatmul.bf16.gmra.mxu0 %v1767
        %v6800 = vpop.f32.mrf.mxu0
        %v6801 = vadd.f32 %v6768, %v6800
        %v6802 = vpop.f32.mrf.mxu0
        %v6803 = vadd.f32 %v6770, %v6802
        %6804 = vmatmul.bf16.gmra.mxu0 %v1783
        %v6805 = vpop.f32.mrf.mxu0
        %v6806 = vadd.f32 %v6773, %v6805
        %v6807 = vpop.f32.mrf.mxu0
        %v6808 = vadd.f32 %v6775, %v6807
        %6809 = vmatmul.bf16.gmra.mxu0 %v1799
        %v6810 = vpop.f32.mrf.mxu0
        %v6811 = vadd.f32 %v6778, %v6810
        %v6812 = vpop.f32.mrf.mxu0
        %v6813 = vadd.f32 %v6780, %v6812
        %6814 = vmatmul.bf16.gmra.mxu0 %v1815
        %v6815 = vpop.f32.mrf.mxu0
        %v6816 = vadd.f32 %v6783, %v6815
        %v6817 = vpop.f32.mrf.mxu0
        %v6818 = vadd.f32 %v6785, %v6817
        %6819 = vmatmul.bf16.gmra.mxu0 %v1831
        %v6820 = vpop.f32.mrf.mxu0
        %v6821 = vadd.f32 %v6788, %v6820
        %v6822 = vpop.f32.mrf.mxu0
        %6823 = vdwg.mxu0
        %6824 = vmatpush.bf16.msra.mxu0 %v4237
        %6825 = vmatpush.bf16.msra.mxu0 %v4233
        %6826 = vmatpush.bf16.msra.mxu0 %v4229
        %6827 = vmatpush.bf16.msra.mxu0 %v4225
        %6828 = vmatpush.bf16.msra.mxu0 %v4221
        %6829 = vmatpush.bf16.msra.mxu0 %v4217
        %6830 = vmatpush.bf16.msra.mxu0 %v4213
        %6831 = vmatpush.bf16.msra.mxu0 %v4209
        %6832 = vmatmul.bf16.gmra.mxu0 %v1768
        %v6833 = vpop.f32.mrf.mxu0
        %v6834 = vadd.f32 %v6801, %v6833
        %v6835 = vpop.f32.mrf.mxu0
        %v6836 = vadd.f32 %v6803, %v6835
        %6837 = vmatmul.bf16.gmra.mxu0 %v1784
        %v6838 = vpop.f32.mrf.mxu0
        %v6839 = vadd.f32 %v6806, %v6838
        %v6840 = vpop.f32.mrf.mxu0
        %v6841 = vadd.f32 %v6808, %v6840
        %6842 = vmatmul.bf16.gmra.mxu0 %v1800
        %v6843 = vpop.f32.mrf.mxu0
        %v6844 = vadd.f32 %v6811, %v6843
        %v6845 = vpop.f32.mrf.mxu0
        %v6846 = vadd.f32 %v6813, %v6845
        %6847 = vmatmul.bf16.gmra.mxu0 %v1816
        %v6848 = vpop.f32.mrf.mxu0
        %v6849 = vadd.f32 %v6816, %v6848
        %v6850 = vpop.f32.mrf.mxu0
        %v6851 = vadd.f32 %v6818, %v6850
        %6852 = vmatmul.bf16.gmra.mxu0 %v1832
        %v6853 = vpop.f32.mrf.mxu0
        %v6854 = vadd.f32 %v6821, %v6853
        %v6855 = vpop.f32.mrf.mxu0
        %6856 = vdwg.mxu0
        %6857 = vmatpush.bf16.msra.mxu0 %v4269
        %6858 = vmatpush.bf16.msra.mxu0 %v4265
        %6859 = vmatpush.bf16.msra.mxu0 %v4261
        %6860 = vmatpush.bf16.msra.mxu0 %v4257
        %6861 = vmatpush.bf16.msra.mxu0 %v4253
        %6862 = vmatpush.bf16.msra.mxu0 %v4249
        %6863 = vmatpush.bf16.msra.mxu0 %v4245
        %6864 = vmatpush.bf16.msra.mxu0 %v4241
        %6865 = vmatmul.bf16.gmra.mxu0 %v1769
        %v6866 = vpop.f32.mrf.mxu0
        %v6867 = vadd.f32 %v6834, %v6866
        %v6868 = vpop.f32.mrf.mxu0
        %v6869 = vadd.f32 %v6836, %v6868
        %6870 = vmatmul.bf16.gmra.mxu0 %v1785
        %v6871 = vpop.f32.mrf.mxu0
        %v6872 = vadd.f32 %v6839, %v6871
        %v6873 = vpop.f32.mrf.mxu0
        %v6874 = vadd.f32 %v6841, %v6873
        %6875 = vmatmul.bf16.gmra.mxu0 %v1801
        %v6876 = vpop.f32.mrf.mxu0
        %v6877 = vadd.f32 %v6844, %v6876
        %v6878 = vpop.f32.mrf.mxu0
        %v6879 = vadd.f32 %v6846, %v6878
        %6880 = vmatmul.bf16.gmra.mxu0 %v1817
        %v6881 = vpop.f32.mrf.mxu0
        %v6882 = vadd.f32 %v6849, %v6881
        %v6883 = vpop.f32.mrf.mxu0
        %v6884 = vadd.f32 %v6851, %v6883
        %6885 = vmatmul.bf16.gmra.mxu0 %v1833
        %v6886 = vpop.f32.mrf.mxu0
        %v6887 = vadd.f32 %v6854, %v6886
        %v6888 = vpop.f32.mrf.mxu0
        %6889 = vdwg.mxu0
        %6890 = vmatpush.bf16.msra.mxu0 %v4301
        %6891 = vmatpush.bf16.msra.mxu0 %v4297
        %6892 = vmatpush.bf16.msra.mxu0 %v4293
        %6893 = vmatpush.bf16.msra.mxu0 %v4289
        %6894 = vmatpush.bf16.msra.mxu0 %v4285
        %6895 = vmatpush.bf16.msra.mxu0 %v4281
        %6896 = vmatpush.bf16.msra.mxu0 %v4277
        %6897 = vmatpush.bf16.msra.mxu0 %v4273
        %6898 = vmatmul.bf16.gmra.mxu0 %v1770
        %v6899 = vpop.f32.mrf.mxu0
        %v6900 = vadd.f32 %v6867, %v6899
        %v6901 = vpop.f32.mrf.mxu0
        %v6902 = vadd.f32 %v6869, %v6901
        %6903 = vmatmul.bf16.gmra.mxu0 %v1786
        %v6904 = vpop.f32.mrf.mxu0
        %v6905 = vadd.f32 %v6872, %v6904
        %v6906 = vpop.f32.mrf.mxu0
        %v6907 = vadd.f32 %v6874, %v6906
        %6908 = vmatmul.bf16.gmra.mxu0 %v1802
        %v6909 = vpop.f32.mrf.mxu0
        %v6910 = vadd.f32 %v6877, %v6909
        %v6911 = vpop.f32.mrf.mxu0
        %v6912 = vadd.f32 %v6879, %v6911
        %6913 = vmatmul.bf16.gmra.mxu0 %v1818
        %v6914 = vpop.f32.mrf.mxu0
        %v6915 = vadd.f32 %v6882, %v6914
        %v6916 = vpop.f32.mrf.mxu0
        %v6917 = vadd.f32 %v6884, %v6916
        %6918 = vmatmul.bf16.gmra.mxu0 %v1834
        %v6919 = vpop.f32.mrf.mxu0
        %v6920 = vadd.f32 %v6887, %v6919
        %v6921 = vpop.f32.mrf.mxu0
        %6922 = vdwg.mxu0
        %6923 = vmatpush.bf16.msra.mxu0 %v4333
        %6924 = vmatpush.bf16.msra.mxu0 %v4329
        %6925 = vmatpush.bf16.msra.mxu0 %v4325
        %6926 = vmatpush.bf16.msra.mxu0 %v4321
        %6927 = vmatpush.bf16.msra.mxu0 %v4317
        %6928 = vmatpush.bf16.msra.mxu0 %v4313
        %6929 = vmatpush.bf16.msra.mxu0 %v4309
        %6930 = vmatpush.bf16.msra.mxu0 %v4305
        %6931 = vmatmul.bf16.gmra.mxu0 %v1771
        %v6932 = vpop.f32.mrf.mxu0
        %v6933 = vadd.f32 %v6900, %v6932
        %v6934 = vpop.f32.mrf.mxu0
        %v6935 = vadd.f32 %v6902, %v6934
        %6936 = vmatmul.bf16.gmra.mxu0 %v1787
        %v6937 = vpop.f32.mrf.mxu0
        %v6938 = vadd.f32 %v6905, %v6937
        %v6939 = vpop.f32.mrf.mxu0
        %v6940 = vadd.f32 %v6907, %v6939
        %6941 = vmatmul.bf16.gmra.mxu0 %v1803
        %v6942 = vpop.f32.mrf.mxu0
        %v6943 = vadd.f32 %v6910, %v6942
        %v6944 = vpop.f32.mrf.mxu0
        %v6945 = vadd.f32 %v6912, %v6944
        %6946 = vmatmul.bf16.gmra.mxu0 %v1819
        %v6947 = vpop.f32.mrf.mxu0
        %v6948 = vadd.f32 %v6915, %v6947
        %v6949 = vpop.f32.mrf.mxu0
        %v6950 = vadd.f32 %v6917, %v6949
        %6951 = vmatmul.bf16.gmra.mxu0 %v1835
        %v6952 = vpop.f32.mrf.mxu0
        %v6953 = vadd.f32 %v6920, %v6952
        %v6954 = vpop.f32.mrf.mxu0
        %6955 = vdwg.mxu0
        %6956 = vmatpush.bf16.msra.mxu0 %v4365
        %6957 = vmatpush.bf16.msra.mxu0 %v4361
        %6958 = vmatpush.bf16.msra.mxu0 %v4357
        %6959 = vmatpush.bf16.msra.mxu0 %v4353
        %6960 = vmatpush.bf16.msra.mxu0 %v4349
        %6961 = vmatpush.bf16.msra.mxu0 %v4345
        %6962 = vmatpush.bf16.msra.mxu0 %v4341
        %6963 = vmatpush.bf16.msra.mxu0 %v4337
        %6964 = vmatmul.bf16.gmra.mxu0 %v1772
        %v6965 = vpop.f32.mrf.mxu0
        %v6966 = vadd.f32 %v6933, %v6965
        %v6967 = vpop.f32.mrf.mxu0
        %v6968 = vadd.f32 %v6935, %v6967
        %6969 = vmatmul.bf16.gmra.mxu0 %v1788
        %v6970 = vpop.f32.mrf.mxu0
        %v6971 = vadd.f32 %v6938, %v6970
        %v6972 = vpop.f32.mrf.mxu0
        %v6973 = vadd.f32 %v6940, %v6972
        %6974 = vmatmul.bf16.gmra.mxu0 %v1804
        %v6975 = vpop.f32.mrf.mxu0
        %v6976 = vadd.f32 %v6943, %v6975
        %v6977 = vpop.f32.mrf.mxu0
        %v6978 = vadd.f32 %v6945, %v6977
        %6979 = vmatmul.bf16.gmra.mxu0 %v1820
        %v6980 = vpop.f32.mrf.mxu0
        %v6981 = vadd.f32 %v6948, %v6980
        %v6982 = vpop.f32.mrf.mxu0
        %v6983 = vadd.f32 %v6950, %v6982
        %6984 = vmatmul.bf16.gmra.mxu0 %v1836
        %v6985 = vpop.f32.mrf.mxu0
        %v6986 = vadd.f32 %v6953, %v6985
        %v6987 = vpop.f32.mrf.mxu0
        %6988 = vdwg.mxu0
        %6989 = vmatpush.bf16.msra.mxu0 %v4397
        %6990 = vmatpush.bf16.msra.mxu0 %v4393
        %6991 = vmatpush.bf16.msra.mxu0 %v4389
        %6992 = vmatpush.bf16.msra.mxu0 %v4385
        %6993 = vmatpush.bf16.msra.mxu0 %v4381
        %6994 = vmatpush.bf16.msra.mxu0 %v4377
        %6995 = vmatpush.bf16.msra.mxu0 %v4373
        %6996 = vmatpush.bf16.msra.mxu0 %v4369
        %6997 = vmatmul.bf16.gmra.mxu0 %v1773
        %v6998 = vpop.f32.mrf.mxu0
        %v6999 = vadd.f32 %v6966, %v6998
        %v7000 = vpop.f32.mrf.mxu0
        %v7001 = vadd.f32 %v6968, %v7000
        %7002 = vmatmul.bf16.gmra.mxu0 %v1789
        %v7003 = vpop.f32.mrf.mxu0
        %v7004 = vadd.f32 %v6971, %v7003
        %v7005 = vpop.f32.mrf.mxu0
        %v7006 = vadd.f32 %v6973, %v7005
        %7007 = vmatmul.bf16.gmra.mxu0 %v1805
        %v7008 = vpop.f32.mrf.mxu0
        %v7009 = vadd.f32 %v6976, %v7008
        %v7010 = vpop.f32.mrf.mxu0
        %v7011 = vadd.f32 %v6978, %v7010
        %7012 = vmatmul.bf16.gmra.mxu0 %v1821
        %v7013 = vpop.f32.mrf.mxu0
        %v7014 = vadd.f32 %v6981, %v7013
        %v7015 = vpop.f32.mrf.mxu0
        %v7016 = vadd.f32 %v6983, %v7015
        %7017 = vmatmul.bf16.gmra.mxu0 %v1837
        %v7018 = vpop.f32.mrf.mxu0
        %v7019 = vadd.f32 %v6986, %v7018
        %v7020 = vpop.f32.mrf.mxu0
        %7021 = vdwg.mxu0
        %v7022 = vld [vmem:[%s358] sm:$0xf]
        %v7024 = vperm.slane %v7022, 0
        %v7025 = vperm.slane %v7022, 1
        %v7026 = vperm.slane %v7022, 2
        %v7027 = vperm.slane %v7022, 3
        %v7032 = vmul.f32 %v5415, %v7024
        %v7033 = vmul.f32 %v5943, %v7025
        %v7034 = vmul.f32 %v6471, %v7026
        %v7035 = vmul.f32 %v6999, %v7027
        %v7036 = vmul.f32 %v5417, %v7024
        %v7037 = vmul.f32 %v5945, %v7025
        %v7038 = vmul.f32 %v6473, %v7026
        %v7039 = vmul.f32 %v7001, %v7027
        %v7040 = vmul.f32 %v5420, %v7024
        %v7041 = vmul.f32 %v5948, %v7025
        %v7042 = vmul.f32 %v6476, %v7026
        %v7043 = vmul.f32 %v7004, %v7027
        %v7044 = vmul.f32 %v5422, %v7024
        %v7045 = vmul.f32 %v5950, %v7025
        %v7046 = vmul.f32 %v6478, %v7026
        %v7047 = vmul.f32 %v7006, %v7027
        %v7048 = vmul.f32 %v5425, %v7024
        %v7049 = vmul.f32 %v5953, %v7025
        %v7050 = vmul.f32 %v6481, %v7026
        %v7051 = vmul.f32 %v7009, %v7027
        %v7052 = vmul.f32 %v5427, %v7024
        %v7053 = vmul.f32 %v5955, %v7025
        %v7054 = vmul.f32 %v6483, %v7026
        %v7055 = vmul.f32 %v7011, %v7027
        %v7056 = vmul.f32 %v5430, %v7024
        %v7057 = vmul.f32 %v5958, %v7025
        %v7058 = vmul.f32 %v6486, %v7026
        %v7059 = vmul.f32 %v7014, %v7027
        %v7060 = vmul.f32 %v5432, %v7024
        %v7061 = vmul.f32 %v5960, %v7025
        %v7062 = vmul.f32 %v6488, %v7026
        %v7063 = vmul.f32 %v7016, %v7027
        %v7064 = vmul.f32 %v5435, %v7024
        %v7065 = vmul.f32 %v5963, %v7025
        %v7066 = vmul.f32 %v6491, %v7026
        %v7067 = vmul.f32 %v7019, %v7027
        %v7068 = vld [vmem:[%s368] sm:$0xf]
        %v7070 = vperm.slane %v7068, 0
        %v7071 = vperm.slane %v7068, 1
        %v7072 = vperm.slane %v7068, 2
        %v7073 = vperm.slane %v7068, 3
        %v7078 = vadd.f32 %v7032, %v7070
        %v7079 = vadd.f32 %v7033, %v7071
        %v7080 = vadd.f32 %v7034, %v7072
        %v7081 = vadd.f32 %v7035, %v7073
        %v7082 = vadd.f32 %v7036, %v7070
        %v7083 = vadd.f32 %v7037, %v7071
        %v7084 = vadd.f32 %v7038, %v7072
        %v7085 = vadd.f32 %v7039, %v7073
        %v7086 = vadd.f32 %v7040, %v7070
        %v7087 = vadd.f32 %v7041, %v7071
        %v7088 = vadd.f32 %v7042, %v7072
        %v7089 = vadd.f32 %v7043, %v7073
        %v7090 = vadd.f32 %v7044, %v7070
        %v7091 = vadd.f32 %v7045, %v7071
        %v7092 = vadd.f32 %v7046, %v7072
        %v7093 = vadd.f32 %v7047, %v7073
        %v7094 = vadd.f32 %v7048, %v7070
        %v7095 = vadd.f32 %v7049, %v7071
        %v7096 = vadd.f32 %v7050, %v7072
        %v7097 = vadd.f32 %v7051, %v7073
        %v7098 = vadd.f32 %v7052, %v7070
        %v7099 = vadd.f32 %v7053, %v7071
        %v7100 = vadd.f32 %v7054, %v7072
        %v7101 = vadd.f32 %v7055, %v7073
        %v7102 = vadd.f32 %v7056, %v7070
        %v7103 = vadd.f32 %v7057, %v7071
        %v7104 = vadd.f32 %v7058, %v7072
        %v7105 = vadd.f32 %v7059, %v7073
        %v7106 = vadd.f32 %v7060, %v7070
        %v7107 = vadd.f32 %v7061, %v7071
        %v7108 = vadd.f32 %v7062, %v7072
        %v7109 = vadd.f32 %v7063, %v7073
        %v7110 = vadd.f32 %v7064, %v7070
        %v7111 = vadd.f32 %v7065, %v7071
        %v7112 = vadd.f32 %v7066, %v7072
        %v7113 = vadd.f32 %v7067, %v7073
        %v7114 = vmax.f32 %v7078, 0.0
        %v7115 = vmax.f32 %v7079, 0.0
        %v7116 = vmax.f32 %v7080, 0.0
        %v7117 = vmax.f32 %v7081, 0.0
        %v7118 = vmax.f32 %v7082, 0.0
        %v7119 = vmax.f32 %v7083, 0.0
        %v7120 = vmax.f32 %v7084, 0.0
        %v7121 = vmax.f32 %v7085, 0.0
        %v7122 = vmax.f32 %v7086, 0.0
        %v7123 = vmax.f32 %v7087, 0.0
        %v7124 = vmax.f32 %v7088, 0.0
        %v7125 = vmax.f32 %v7089, 0.0
        %v7126 = vmax.f32 %v7090, 0.0
        %v7127 = vmax.f32 %v7091, 0.0
        %v7128 = vmax.f32 %v7092, 0.0
        %v7129 = vmax.f32 %v7093, 0.0
        %v7130 = vmax.f32 %v7094, 0.0
        %v7131 = vmax.f32 %v7095, 0.0
        %v7132 = vmax.f32 %v7096, 0.0
        %v7133 = vmax.f32 %v7097, 0.0
        %v7134 = vmax.f32 %v7098, 0.0
        %v7135 = vmax.f32 %v7099, 0.0
        %v7136 = vmax.f32 %v7100, 0.0
        %v7137 = vmax.f32 %v7101, 0.0
        %v7138 = vmax.f32 %v7102, 0.0
        %v7139 = vmax.f32 %v7103, 0.0
        %v7140 = vmax.f32 %v7104, 0.0
        %v7141 = vmax.f32 %v7105, 0.0
        %v7142 = vmax.f32 %v7106, 0.0
        %v7143 = vmax.f32 %v7107, 0.0
        %v7144 = vmax.f32 %v7108, 0.0
        %v7145 = vmax.f32 %v7109, 0.0
        %v7146 = vmax.f32 %v7110, 0.0
        %v7147 = vmax.f32 %v7111, 0.0
        %v7148 = vmax.f32 %v7112, 0.0
        %v7149 = vmax.f32 %v7113, 0.0
        %v7150 = vld [vmem:[%s422] sm:$0xf]
        %v7151 = vld [vmem:[%s422 + $0x4] sm:$0xf]
        %v7152 = vld [vmem:[%s422 + $0x8] sm:$0xf]
        %v7153 = vld [vmem:[%s422 + $0xc] sm:$0xf]
        %v7154 = vld [vmem:[%s422 + $0x10] sm:$0xf]
        %v7155 = vld [vmem:[%s422 + $0x14] sm:$0xf]
        %v7156 = vld [vmem:[%s422 + $0x18] sm:$0xf]
        %v7157 = vld [vmem:[%s422 + $0x1c] sm:$0xf]
        %v7158 = vld [vmem:[%s422 + $0x20] sm:$0xf]
        %v7159 = vld [vmem:[%s422 + $0x24] sm:$0xf]
        %v7160 = vld [vmem:[%s422 + $0x28] sm:$0xf]
        %v7161 = vld [vmem:[%s422 + $0x2c] sm:$0xf]
        %v7162 = vld [vmem:[%s422 + $0x30] sm:$0xf]
        %v7163 = vld [vmem:[%s422 + $0x34] sm:$0xf]
        %v7164 = vld [vmem:[%s422 + $0x38] sm:$0xf]
        %v7165 = vld [vmem:[%s422 + $0x3c] sm:$0xf]
        %v7166 = vpack.c.bf16 %v7118, %v7114
        %v7167 = vpack.c.bf16 %v7119, %v7115
        %v7168 = vpack.c.bf16 %v7120, %v7116
        %v7169 = vpack.c.bf16 %v7121, %v7117
        %v7170 = vpack.c.bf16 %v7126, %v7122
        %v7171 = vpack.c.bf16 %v7127, %v7123
        %v7172 = vpack.c.bf16 %v7128, %v7124
        %v7173 = vpack.c.bf16 %v7129, %v7125
        %v7174 = vpack.c.bf16 %v7134, %v7130
        %v7175 = vpack.c.bf16 %v7135, %v7131
        %v7176 = vpack.c.bf16 %v7136, %v7132
        %v7177 = vpack.c.bf16 %v7137, %v7133
        %v7178 = vpack.c.bf16 %v7142, %v7138
        %v7179 = vpack.c.bf16 %v7143, %v7139
        %v7180 = vpack.c.bf16 %v7144, %v7140
        %v7181 = vpack.c.bf16 %v7145, %v7141
        %v7182 = vpack.c.bf16 %v7146, %v7146
        %v7183 = vpack.c.bf16 %v7147, %v7147
        %v7184 = vpack.c.bf16 %v7148, %v7148
        %v7185 = vpack.c.bf16 %v7149, %v7149
        %v7202 = vunpack.c.l.b16 %v7150
        %v7203 = vunpack.c.l.b16 %v7151
        %v7204 = vunpack.c.l.b16 %v7152
        %v7205 = vunpack.c.l.b16 %v7153
        %v7206 = vunpack.c.l.b16 %v7154
        %v7207 = vunpack.c.l.b16 %v7155
        %v7208 = vunpack.c.l.b16 %v7156
        %v7209 = vunpack.c.l.b16 %v7157
        %v7210 = vunpack.c.l.b16 %v7158
        %v7211 = vunpack.c.l.b16 %v7159
        %v7212 = vunpack.c.l.b16 %v7160
        %v7213 = vunpack.c.l.b16 %v7161
        %v7214 = vunpack.c.l.b16 %v7162
        %v7215 = vunpack.c.l.b16 %v7163
        %v7216 = vunpack.c.l.b16 %v7164
        %v7217 = vunpack.c.l.b16 %v7165
        %v7218 = vpack.c.b16 %v7203, %v7202
        %v7219 = vpack.c.b16 %v7205, %v7204
        %v7220 = vpack.c.b16 %v7207, %v7206
        %v7221 = vpack.c.b16 %v7209, %v7208
        %v7222 = vpack.c.b16 %v7211, %v7210
        %v7223 = vpack.c.b16 %v7213, %v7212
        %v7224 = vpack.c.b16 %v7215, %v7214
        %v7225 = vpack.c.b16 %v7217, %v7216
        %vm7226 = vcmask 588800
        %v7228 = vsel %vm7226, %v7218, 0
        %v7231 = vsel %vm7226, %v7219, 0
        %v7234 = vsel %vm7226, %v7220, 0
        %v7237 = vsel %vm7226, %v7221, 0
        %v7240 = vsel %vm7226, %v7222, 0
        %v7243 = vsel %vm7226, %v7223, 0
        %v7246 = vsel %vm7226, %v7224, 0
        %v7249 = vsel %vm7226, %v7225, 0
        %vm7251 = vcmask 1043456
        %v7253 = vsel %vm7251, %v7182, 0
        %v7256 = vsel %vm7251, %v7183, 0
        %v7259 = vsel %vm7251, %v7184, 0
        %v7262 = vsel %vm7251, %v7185, 0
        %7264 = vmatpush.bf16.msra.mxu0 0
        %7265 = vmatpush.bf16.msra.mxu0 0
        %7266 = vmatpush.bf16.msra.mxu0 0
        %7267 = vmatpush.bf16.msra.mxu0 %v7253
        %7268 = vmatpush.bf16.msra.mxu0 %v7178
        %7269 = vmatpush.bf16.msra.mxu0 %v7174
        %7270 = vmatpush.bf16.msra.mxu0 %v7170
        %7271 = vmatpush.bf16.msra.mxu0 %v7166
        %7272 = vmatmul.bf16.gmra.mxu0 %v7228
        %v7273 = vpop.f32.mrf.mxu0
        %v7274 = vadd.f32 0.0, %v7273
        %v7275 = vpop.f32.mrf.mxu0
        %v7276 = vadd.f32 0.0, %v7275
        %7277 = vmatmul.bf16.gmra.mxu0 %v7231
        %v7278 = vpop.f32.mrf.mxu0
        %v7279 = vadd.f32 0.0, %v7278
        %v7280 = vpop.f32.mrf.mxu0
        %v7281 = vadd.f32 0.0, %v7280
        %7282 = vmatmul.bf16.gmra.mxu0 %v7234
        %v7283 = vpop.f32.mrf.mxu0
        %v7284 = vadd.f32 0.0, %v7283
        %v7285 = vpop.f32.mrf.mxu0
        %v7286 = vadd.f32 0.0, %v7285
        %7287 = vmatmul.bf16.gmra.mxu0 %v7237
        %v7288 = vpop.f32.mrf.mxu0
        %v7289 = vadd.f32 0.0, %v7288
        %v7290 = vpop.f32.mrf.mxu0
        %v7291 = vadd.f32 0.0, %v7290
        %7292 = vmatmul.bf16.gmra.mxu0 %v7240
        %v7293 = vpop.f32.mrf.mxu0
        %v7294 = vadd.f32 0.0, %v7293
        %v7295 = vpop.f32.mrf.mxu0
        %v7296 = vadd.f32 0.0, %v7295
        %7297 = vmatmul.bf16.gmra.mxu0 %v7243
        %v7298 = vpop.f32.mrf.mxu0
        %v7299 = vadd.f32 0.0, %v7298
        %v7300 = vpop.f32.mrf.mxu0
        %v7301 = vadd.f32 0.0, %v7300
        %7302 = vmatmul.bf16.gmra.mxu0 %v7246
        %v7303 = vpop.f32.mrf.mxu0
        %v7304 = vadd.f32 0.0, %v7303
        %v7305 = vpop.f32.mrf.mxu0
        %v7306 = vadd.f32 0.0, %v7305
        %7307 = vmatmul.bf16.gmra.mxu0 %v7249
        %v7308 = vpop.f32.mrf.mxu0
        %v7309 = vadd.f32 0.0, %v7308
        %v7310 = vpop.f32.mrf.mxu0
        %v7311 = vadd.f32 0.0, %v7310
        %7312 = vdwg.mxu0
        %7313 = vmatpush.bf16.msra.mxu0 0
        %7314 = vmatpush.bf16.msra.mxu0 0
        %7315 = vmatpush.bf16.msra.mxu0 0
        %7316 = vmatpush.bf16.msra.mxu0 %v7256
        %7317 = vmatpush.bf16.msra.mxu0 %v7179
        %7318 = vmatpush.bf16.msra.mxu0 %v7175
        %7319 = vmatpush.bf16.msra.mxu0 %v7171
        %7320 = vmatpush.bf16.msra.mxu0 %v7167
        %7321 = vmatmul.bf16.gmra.mxu0 %v7228
        %v7322 = vpop.f32.mrf.mxu0
        %v7323 = vadd.f32 0.0, %v7322
        %v7324 = vpop.f32.mrf.mxu0
        %v7325 = vadd.f32 0.0, %v7324
        %7326 = vmatmul.bf16.gmra.mxu0 %v7231
        %v7327 = vpop.f32.mrf.mxu0
        %v7328 = vadd.f32 0.0, %v7327
        %v7329 = vpop.f32.mrf.mxu0
        %v7330 = vadd.f32 0.0, %v7329
        %7331 = vmatmul.bf16.gmra.mxu0 %v7234
        %v7332 = vpop.f32.mrf.mxu0
        %v7333 = vadd.f32 0.0, %v7332
        %v7334 = vpop.f32.mrf.mxu0
        %v7335 = vadd.f32 0.0, %v7334
        %7336 = vmatmul.bf16.gmra.mxu0 %v7237
        %v7337 = vpop.f32.mrf.mxu0
        %v7338 = vadd.f32 0.0, %v7337
        %v7339 = vpop.f32.mrf.mxu0
        %v7340 = vadd.f32 0.0, %v7339
        %7341 = vmatmul.bf16.gmra.mxu0 %v7240
        %v7342 = vpop.f32.mrf.mxu0
        %v7343 = vadd.f32 0.0, %v7342
        %v7344 = vpop.f32.mrf.mxu0
        %v7345 = vadd.f32 0.0, %v7344
        %7346 = vmatmul.bf16.gmra.mxu0 %v7243
        %v7347 = vpop.f32.mrf.mxu0
        %v7348 = vadd.f32 0.0, %v7347
        %v7349 = vpop.f32.mrf.mxu0
        %v7350 = vadd.f32 0.0, %v7349
        %7351 = vmatmul.bf16.gmra.mxu0 %v7246
        %v7352 = vpop.f32.mrf.mxu0
        %v7353 = vadd.f32 0.0, %v7352
        %v7354 = vpop.f32.mrf.mxu0
        %v7355 = vadd.f32 0.0, %v7354
        %7356 = vmatmul.bf16.gmra.mxu0 %v7249
        %v7357 = vpop.f32.mrf.mxu0
        %v7358 = vadd.f32 0.0, %v7357
        %v7359 = vpop.f32.mrf.mxu0
        %v7360 = vadd.f32 0.0, %v7359
        %7361 = vdwg.mxu0
        %7362 = vmatpush.bf16.msra.mxu0 0
        %7363 = vmatpush.bf16.msra.mxu0 0
        %7364 = vmatpush.bf16.msra.mxu0 0
        %7365 = vmatpush.bf16.msra.mxu0 %v7259
        %7366 = vmatpush.bf16.msra.mxu0 %v7180
        %7367 = vmatpush.bf16.msra.mxu0 %v7176
        %7368 = vmatpush.bf16.msra.mxu0 %v7172
        %7369 = vmatpush.bf16.msra.mxu0 %v7168
        %7370 = vmatmul.bf16.gmra.mxu0 %v7228
        %v7371 = vpop.f32.mrf.mxu0
        %v7372 = vadd.f32 0.0, %v7371
        %v7373 = vpop.f32.mrf.mxu0
        %v7374 = vadd.f32 0.0, %v7373
        %7375 = vmatmul.bf16.gmra.mxu0 %v7231
        %v7376 = vpop.f32.mrf.mxu0
        %v7377 = vadd.f32 0.0, %v7376
        %v7378 = vpop.f32.mrf.mxu0
        %v7379 = vadd.f32 0.0, %v7378
        %7380 = vmatmul.bf16.gmra.mxu0 %v7234
        %v7381 = vpop.f32.mrf.mxu0
        %v7382 = vadd.f32 0.0, %v7381
        %v7383 = vpop.f32.mrf.mxu0
        %v7384 = vadd.f32 0.0, %v7383
        %7385 = vmatmul.bf16.gmra.mxu0 %v7237
        %v7386 = vpop.f32.mrf.mxu0
        %v7387 = vadd.f32 0.0, %v7386
        %v7388 = vpop.f32.mrf.mxu0
        %v7389 = vadd.f32 0.0, %v7388
        %7390 = vmatmul.bf16.gmra.mxu0 %v7240
        %v7391 = vpop.f32.mrf.mxu0
        %v7392 = vadd.f32 0.0, %v7391
        %v7393 = vpop.f32.mrf.mxu0
        %v7394 = vadd.f32 0.0, %v7393
        %7395 = vmatmul.bf16.gmra.mxu0 %v7243
        %v7396 = vpop.f32.mrf.mxu0
        %v7397 = vadd.f32 0.0, %v7396
        %v7398 = vpop.f32.mrf.mxu0
        %v7399 = vadd.f32 0.0, %v7398
        %7400 = vmatmul.bf16.gmra.mxu0 %v7246
        %v7401 = vpop.f32.mrf.mxu0
        %v7402 = vadd.f32 0.0, %v7401
        %v7403 = vpop.f32.mrf.mxu0
        %v7404 = vadd.f32 0.0, %v7403
        %7405 = vmatmul.bf16.gmra.mxu0 %v7249
        %v7406 = vpop.f32.mrf.mxu0
        %v7407 = vadd.f32 0.0, %v7406
        %v7408 = vpop.f32.mrf.mxu0
        %v7409 = vadd.f32 0.0, %v7408
        %7410 = vdwg.mxu0
        %7411 = vmatpush.bf16.msra.mxu0 0
        %7412 = vmatpush.bf16.msra.mxu0 0
        %7413 = vmatpush.bf16.msra.mxu0 0
        %7414 = vmatpush.bf16.msra.mxu0 %v7262
        %7415 = vmatpush.bf16.msra.mxu0 %v7181
        %7416 = vmatpush.bf16.msra.mxu0 %v7177
        %7417 = vmatpush.bf16.msra.mxu0 %v7173
        %7418 = vmatpush.bf16.msra.mxu0 %v7169
        %7419 = vmatmul.bf16.gmra.mxu0 %v7228
        %v7420 = vpop.f32.mrf.mxu0
        %v7421 = vadd.f32 0.0, %v7420
        %v7422 = vpop.f32.mrf.mxu0
        %v7423 = vadd.f32 0.0, %v7422
        %7424 = vmatmul.bf16.gmra.mxu0 %v7231
        %v7425 = vpop.f32.mrf.mxu0
        %v7426 = vadd.f32 0.0, %v7425
        %v7427 = vpop.f32.mrf.mxu0
        %v7428 = vadd.f32 0.0, %v7427
        %7429 = vmatmul.bf16.gmra.mxu0 %v7234
        %v7430 = vpop.f32.mrf.mxu0
        %v7431 = vadd.f32 0.0, %v7430
        %v7432 = vpop.f32.mrf.mxu0
        %v7433 = vadd.f32 0.0, %v7432
        %7434 = vmatmul.bf16.gmra.mxu0 %v7237
        %v7435 = vpop.f32.mrf.mxu0
        %v7436 = vadd.f32 0.0, %v7435
        %v7437 = vpop.f32.mrf.mxu0
        %v7438 = vadd.f32 0.0, %v7437
        %7439 = vmatmul.bf16.gmra.mxu0 %v7240
        %v7440 = vpop.f32.mrf.mxu0
        %v7441 = vadd.f32 0.0, %v7440
        %v7442 = vpop.f32.mrf.mxu0
        %v7443 = vadd.f32 0.0, %v7442
        %7444 = vmatmul.bf16.gmra.mxu0 %v7243
        %v7445 = vpop.f32.mrf.mxu0
        %v7446 = vadd.f32 0.0, %v7445
        %v7447 = vpop.f32.mrf.mxu0
        %v7448 = vadd.f32 0.0, %v7447
        %7449 = vmatmul.bf16.gmra.mxu0 %v7246
        %v7450 = vpop.f32.mrf.mxu0
        %v7451 = vadd.f32 0.0, %v7450
        %v7452 = vpop.f32.mrf.mxu0
        %v7453 = vadd.f32 0.0, %v7452
        %7454 = vmatmul.bf16.gmra.mxu0 %v7249
        %v7455 = vpop.f32.mrf.mxu0
        %v7456 = vadd.f32 0.0, %v7455
        %v7457 = vpop.f32.mrf.mxu0
        %v7458 = vadd.f32 0.0, %v7457
        %7459 = vdwg.mxu0
        %v7460 = vpack.c.bf16 %v7323, %v7274
        %v7461 = vpack.c.bf16 %v7421, %v7372
        %v7462 = vpack.c.bf16 %v7325, %v7276
        %v7463 = vpack.c.bf16 %v7423, %v7374
        %v7464 = vpack.c.bf16 %v7328, %v7279
        %v7465 = vpack.c.bf16 %v7426, %v7377
        %v7466 = vpack.c.bf16 %v7330, %v7281
        %v7467 = vpack.c.bf16 %v7428, %v7379
        %v7468 = vpack.c.bf16 %v7333, %v7284
        %v7469 = vpack.c.bf16 %v7431, %v7382
        %v7470 = vpack.c.bf16 %v7335, %v7286
        %v7471 = vpack.c.bf16 %v7433, %v7384
        %v7472 = vpack.c.bf16 %v7338, %v7289
        %v7473 = vpack.c.bf16 %v7436, %v7387
        %v7474 = vpack.c.bf16 %v7340, %v7291
        %v7475 = vpack.c.bf16 %v7438, %v7389
        %v7476 = vpack.c.bf16 %v7343, %v7294
        %v7477 = vpack.c.bf16 %v7441, %v7392
        %v7478 = vpack.c.bf16 %v7345, %v7296
        %v7479 = vpack.c.bf16 %v7443, %v7394
        %v7480 = vpack.c.bf16 %v7348, %v7299
        %v7481 = vpack.c.bf16 %v7446, %v7397
        %v7482 = vpack.c.bf16 %v7350, %v7301
        %v7483 = vpack.c.bf16 %v7448, %v7399
        %v7484 = vpack.c.bf16 %v7353, %v7304
        %v7485 = vpack.c.bf16 %v7451, %v7402
        %v7486 = vpack.c.bf16 %v7355, %v7306
        %v7487 = vpack.c.bf16 %v7453, %v7404
        %v7488 = vpack.c.bf16 %v7358, %v7309
        %v7489 = vpack.c.bf16 %v7456, %v7407
        %v7490 = vpack.c.bf16 %v7360, %v7311
        %v7491 = vpack.c.bf16 %v7458, %v7409
        %7492 = vst [vmem:[%s417] sm:$0xff] %v7460
        %7493 = vst [vmem:[%s417 + $0x8] sm:$0xff] %v7461
        %7494 = vst [vmem:[%s417 + $0x10] sm:$0xff] %v7462
        %7495 = vst [vmem:[%s417 + $0x18] sm:$0xff] %v7463
        %7496 = vst [vmem:[%s417 + $0x20] sm:$0xff] %v7464
        %7497 = vst [vmem:[%s417 + $0x28] sm:$0xff] %v7465
        %7498 = vst [vmem:[%s417 + $0x30] sm:$0xff] %v7466
        %7499 = vst [vmem:[%s417 + $0x38] sm:$0xff] %v7467
        %7500 = vst [vmem:[%s417 + $0x40] sm:$0xff] %v7468
        %7501 = vst [vmem:[%s417 + $0x48] sm:$0xff] %v7469
        %7502 = vst [vmem:[%s417 + $0x50] sm:$0xff] %v7470
        %7503 = vst [vmem:[%s417 + $0x58] sm:$0xff] %v7471
        %7504 = vst [vmem:[%s417 + $0x60] sm:$0xff] %v7472
        %7505 = vst [vmem:[%s417 + $0x68] sm:$0xff] %v7473
        %7506 = vst [vmem:[%s417 + $0x70] sm:$0xff] %v7474
        %7507 = vst [vmem:[%s417 + $0x78] sm:$0xff] %v7475
        %7508 = vst [vmem:[%s417 + $0x80] sm:$0xff] %v7476
        %7509 = vst [vmem:[%s417 + $0x88] sm:$0xff] %v7477
        %7510 = vst [vmem:[%s417 + $0x90] sm:$0xff] %v7478
        %7511 = vst [vmem:[%s417 + $0x98] sm:$0xff] %v7479
        %7512 = vst [vmem:[%s417 + $0xa0] sm:$0xff] %v7480
        %7513 = vst [vmem:[%s417 + $0xa8] sm:$0xff] %v7481
        %7514 = vst [vmem:[%s417 + $0xb0] sm:$0xff] %v7482
        %7515 = vst [vmem:[%s417 + $0xb8] sm:$0xff] %v7483
        %7516 = vst [vmem:[%s417 + $0xc0] sm:$0xff] %v7484
        %7517 = vst [vmem:[%s417 + $0xc8] sm:$0xff] %v7485
        %7518 = vst [vmem:[%s417 + $0xd0] sm:$0xff] %v7486
        %7519 = vst [vmem:[%s417 + $0xd8] sm:$0xff] %v7487
        %7520 = vst [vmem:[%s417 + $0xe0] sm:$0xff] %v7488
        %7521 = vst [vmem:[%s417 + $0xe8] sm:$0xff] %v7489
        %7522 = vst [vmem:[%s417 + $0xf0] sm:$0xff] %v7490
        %7523 = vst [vmem:[%s417 + $0xf8] sm:$0xff] %v7491
        %s7524 = sand.u32 %s186, 1
        %s7525 = scalar_lea.sflag [#allocation4], %s7524
        %s7526 = sand.u32 %s186, 1
        %s7527 = smul.addr %s7526, 256
        %s7528 = scalar_lea.vmem [#allocation11], %s7527
        // Predicated region
        $region65: #{tpu_custom_call.1} parent=43 // pred_check
          %p7529 = pneg %p196
        $region66: #{tpu_custom_call.1} parent=43 // pred_check_branch
          %7531 = sbr.rel (%p7529) target = $region68
        $region67: #{tpu_custom_call.1} parent=43 // pred_region
          %s7532 = smul.u32 4, %s27
          %7534 = vsyncadd %s7525, 0
          %s7535 = smul.addr %s7532, 4
          %s7536 = scalar_lea.hbm %s6, %s7535
          %s7537 = sshll.u32 %s7528, 4
          %s7538 = int_to_ptr.vmem [resolvable:$true] %s7537
          %s7539 = sshll.u32 %s7536, 4
          %s7540 = int_to_ptr.hbm [resolvable:$true] %s7539
          %7545 = dma.vmem_to_hbm [thread:$0]  %s7538, 4096, %s7540, %s7525, 256, 1024, 16
        $region68: #{tpu_custom_call.1} parent=43 // pred_fallthru
          _
      $region44: #{tpu_custom_call.1} parent=5 // pred_fallthru
        _
      %p7546 = scmp.le.s32.totalorder 2, %s22
      // Predicated region
      $region69: #{tpu_custom_call.1} parent=5 // pred_check
        %p7547 = pneg %p7546
      $region70: #{tpu_custom_call.1} parent=5 // pred_check_branch
        %7549 = sbr.rel (%p7547) target = $region72
      $region71: #{tpu_custom_call.1} parent=5 // pred_region
        %s7550 = ssub.s32 %s22, 2
        // Predicated region
        $region73: #{tpu_custom_call.1} parent=71 // pred_check
          %p7551 = pneg %p202
        $region74: #{tpu_custom_call.1} parent=71 // pred_check_branch
          %7553 = sbr.rel (%p7551) target = $region76
        $region75: #{tpu_custom_call.1} parent=71 // pred_region
          %s7554 = sand.u32 %s187, 1
          %s7555 = scalar_lea.sflag [#allocation4], %s7554
          %s7556 = sand.u32 %s187, 1
          %s7557 = smul.addr %s7556, 256
          %s7558 = scalar_lea.vmem [#allocation11], %s7557
          %7560 = dma.done %s7555, 4096
        $region76: #{tpu_custom_call.1} parent=71 // pred_fallthru
          _
      $region72: #{tpu_custom_call.1} parent=5 // pred_fallthru
        _
    $region6: #{tpu_custom_call.1} parent=1 // loop_footer
      %s26 = sadd.s32 1, %s22
    $region7: #{tpu_custom_call.1} parent=1 // loop_footer_branch
      %21 = sbr.rel target = $region3
    $region8: #{tpu_custom_call.1} parent=1 // loop_exit
      _
    %7561 = vsyncpa [#allocation3], 1
    %s7562 = scalar_lea.sflag [#allocation3], 1
    %7563 = vsyncpa %s7562, 1
    %7564 = vsyncpa [#allocation6], 1
    %s7565 = scalar_lea.sflag [#allocation6], 1
    %7566 = vsyncpa %s7565, 1
    %7567 = vsyncpa [#allocation9], 1
    %s7568 = scalar_lea.sflag [#allocation9], 1
    %7569 = vsyncpa %s7568, 1
    %7570 = vsyncpa [#allocation4], 1
    %s7571 = scalar_lea.sflag [#allocation4], 1
    %7572 = vsyncpa %s7571, 1

</llo_original>
